<compile_context>
chip_gen: v5e
topology: v5e:2x2
jax: 0.10.0
libtpu: 0.0.40
codegen_flags: <defaults>
</compile_context>

<pallas_src>
import functools

import jax
import jax.numpy as jnp
from jax import lax
from jax.experimental import pallas as pl
from jax.experimental.pallas import tpu as pltpu


def _conv3d_kernel(*args, apply_relu, hb, fold_kh):
    # args = (plane_0, ..., plane_{td+1}, w_ref, b_ref, o_ref)
    #   plane_j : (1, 1, H+2, W+2, Cin)   padded input plane at depth td*d + j
    #   w_ref   : (3, 9*Cin, Cout)        if fold_kh else (3, 3, 3*Cin, Cout)
    #   b_ref   : (1, Cout) float32
    #   o_ref   : (1, td, H, W, Cout)     td output depth slices for this grid step
    *plane_refs, w_ref, b_ref, o_ref = args
    td = o_ref.shape[1]
    H, W, Cout = o_ref.shape[2], o_ref.shape[3], o_ref.shape[4]

    # kw folded into the contraction: patch3[h, w, kw*Cin + ci] = plane[h, w + kw, ci].
    patch3 = []
    for p_ref in plane_refs:
        plane = p_ref[0, 0]                                            # (H+2, W+2, Cin)
        patch3.append(jnp.concatenate(
            [plane[:, 0:W, :], plane[:, 1:W + 1, :], plane[:, 2:W + 2, :]], axis=-1))

    if fold_kh:
        # Also fold kh: patch9[h, w, (kh*3 + kw)*Cin + ci] = plane[h + kh, w + kw, ci].
        patches = jnp.stack(
            [jnp.concatenate([p[0:H], p[1:H + 1], p[2:H + 2]], axis=-1) for p in patch3],
            axis=0)                                                    # (td+2, H,   W, 9*Cin)
        taps = [(kd, None) for kd in range(3)]
    else:
        patches = jnp.stack(patch3, axis=0)                            # (td+2, H+2, W, 3*Cin)
        taps = [(kd, kh) for kd in range(3) for kh in range(3)]

    bias = b_ref[...].astype(jnp.float32)                              # (1, Cout)

    for h0 in range(0, H, hb):                  # spatial row tile (remainder tile allowed)
        hb_t = min(hb, H - h0)
        m = td * hb_t * W                       # all td depth slices stacked into one lhs
        acc = None
        for kd, kh in taps:
            if kh is None:
                lhs = patches[kd:kd + td, h0:h0 + hb_t]
                rhs = w_ref[kd]
            else:
                lhs = patches[kd:kd + td, h0 + kh:h0 + kh + hb_t]
                rhs = w_ref[kd, kh]
            part = jnp.dot(lhs.reshape(m, lhs.shape[-1]), rhs,
                           preferred_element_type=jnp.float32)
            acc = part if acc is None else acc + part
        acc = acc + bias
        if apply_relu:
            acc = jnp.maximum(acc, 0.0)
        o_ref[0, :, h0:h0 + hb_t] = acc.reshape(td, hb_t, W, Cout).astype(o_ref.dtype)


def _vmem_cap_bytes():
    """~80% of the current chip's per-core VMEM (falls back to v7x's 64 MiB if unknown)."""
    capacity = 0
    try:
        capacity = int(getattr(pltpu.get_tpu_info(), "vmem_capacity_bytes", 0) or 0)
    except Exception:
        capacity = 0
    if capacity <= 0:
        capacity = 64 << 20
    return int(0.8 * capacity)


def _vmem_estimate(H, Wp, Cin, Cout, td, hb, fold_kh, act_isz, out_isz):
    n_planes = td + 2
    plane_b = (H + 2) * (Wp + 2) * Cin * act_isz
    patch3_b = n_planes * (H + 2) * Wp * 3 * Cin * act_isz
    patch9_b = n_planes * H * Wp * 9 * Cin * act_isz if fold_kh else 0
    k = (9 if fold_kh else 3) * Cin
    w_b = 27 * Cin * Cout * act_isz
    out_b = td * H * Wp * Cout * out_isz
    m = td * hb * Wp
    return (2 * n_planes * plane_b              # double-buffered input plane windows
            + patch3_b + patch9_b               # im2col intermediates
            + 2 * w_b + 2 * out_b               # double-buffered weights / output block
            + 2 * m * k * act_isz               # lhs staging
            + 3 * m * Cout * 4                  # f32 accumulator + dot result + cast
            + (2 << 20))                        # headroom


def _select_tiling(D, H, Wp, Cin, Cout, act_isz, out_isz, cap):
    """Pick (td, hb, fold_kh): depth grid >= 2 (megacore), M ~= 256, estimate within cap."""
    divisors = [t for t in (4, 2, 1) if D % t == 0]
    divisors.sort(key=lambda t: ((D // t) >= 2, t * Wp <= 256, t), reverse=True)
    for td in divisors:
        hb = max(1, min(H, 256 // (td * Wp)))
        for fold_kh in (True, False):
            if _vmem_estimate(H, Wp, Cin, Cout, td, hb, fold_kh, act_isz, out_isz) <= cap:
                return td, hb, fold_kh
    return 1, 1, False                          # last resort; smallest footprint


def _fold_weight(w, fold_kh, dtype):
    """(Cout, Cin, kd, kh, kw) -> contraction-major layout matching the im2col patches."""
    Cout, Cin = w.shape[0], w.shape[1]
    wt = jnp.transpose(w, (2, 3, 4, 1, 0))      # (kd, kh, kw, Cin, Cout)
    if fold_kh:
        return wt.reshape(3, 9 * Cin, Cout).astype(dtype)
    return wt.reshape(3, 3, 3 * Cin, Cout).astype(dtype)


def conv3d_same_ndhwc(x, w, b, *, apply_relu=False, out_dtype=None):
    """3D conv, kernel 3, stride 1, padding 1. x: (N,D,H,W,Cin); w: (Cout,Cin,3,3,3); b: (Cout,)."""
    N, D, H, W, Cin = x.shape
    Cout = w.shape[0]
    if out_dtype is None:
        out_dtype = x.dtype

    act_isz = jnp.dtype(x.dtype).itemsize
    out_isz = jnp.dtype(out_dtype).itemsize
    Wp = max(8, -(-W // 8) * 8)                 # lane/sublane-friendly compute width
    cap = _vmem_cap_bytes()
    td, hb, fold_kh = _select_tiling(D, H, Wp, Cin, Cout, act_isz, out_isz, cap)
    n_planes = td + 2                           # depth halo resident in VMEM per grid step

    # TODO(synk): coalesce the td+2 plane inputs into one (td+2)-deep slab DMA and fuse
    # conv0+ReLU+conv1 into a single pallas_call (VMEM ring of conv0 slices) to remove the
    # remaining full-volume HBM round trips and this host-side pad.
    xp = jnp.pad(x, ((0, 0), (1, 1), (1, 1), (1, 1 + Wp - W), (0, 0)))
    wf = _fold_weight(w, fold_kh, x.dtype)
    b2 = b.reshape(1, Cout).astype(jnp.float32)

    in_specs = [
        pl.BlockSpec((1, 1, H + 2, Wp + 2, Cin),
                     lambda n, d, j=j, td=td: (n, td * d + j, 0, 0, 0))
        for j in range(n_planes)
    ]
    if fold_kh:
        in_specs.append(pl.BlockSpec((3, 9 * Cin, Cout), lambda n, d: (0, 0, 0)))
    else:
        in_specs.append(pl.BlockSpec((3, 3, 3 * Cin, Cout), lambda n, d: (0, 0, 0, 0)))
    in_specs.append(pl.BlockSpec((1, Cout), lambda n, d: (0, 0)))

    kernel = functools.partial(_conv3d_kernel, apply_relu=apply_relu, hb=hb, fold_kh=fold_kh)
    out = pl.pallas_call(
        kernel,
        out_shape=jax.ShapeDtypeStruct((N, D, H, Wp, Cout), out_dtype),
        grid_spec=pltpu.PrefetchScalarGridSpec(
            num_scalar_prefetch=0,
            grid=(N, D // td),
            in_specs=in_specs,
            out_specs=pl.BlockSpec((1, td, H, Wp, Cout), lambda n, d: (n, d, 0, 0, 0)),
        ),
        compiler_params=pltpu.CompilerParams(
            dimension_semantics=("parallel", "parallel"),
            vmem_limit_bytes=cap),
    )(*([xp] * n_planes), wf, b2)
    if Wp != W:
        out = out[:, :, :, :W, :]
    return out


def init_params(key, num_channels):
    """Deterministic init matching nn.Conv3d shapes: weight (Cout,Cin,3,3,3), bias (Cout,)."""
    k0, k1, k2, k3 = jax.random.split(key, 4)
    fan_in = num_channels * 27
    bound = 1.0 / jnp.sqrt(fan_in)
    w0 = jax.random.uniform(k0, (num_channels, num_channels, 3, 3, 3), jnp.float32, -bound, bound)
    b0 = jax.random.uniform(k1, (num_channels,), jnp.float32, -bound, bound)
    w1 = jax.random.uniform(k2, (num_channels, num_channels, 3, 3, 3), jnp.float32, -bound, bound)
    b1 = jax.random.uniform(k3, (num_channels,), jnp.float32, -bound, bound)
    return w0, b0, w1, b1


def conv3d_one_input(latent_ncdhw, params, *, compute_dtype=jnp.bfloat16):
    """Forward pass of Conv3D_one_input. Input/output are NCDHW like PyTorch."""
    w0, b0, w1, b1 = params
    # NCDHW -> NDHWC; bf16 activations on the MXU (f32 accumulation inside the kernel).
    x = jnp.transpose(latent_ncdhw, (0, 2, 3, 4, 1)).astype(compute_dtype)
    h = conv3d_same_ndhwc(x, w0, b0, apply_relu=True, out_dtype=compute_dtype)      # conv0 + ReLU
    y = conv3d_same_ndhwc(h, w1, b1, apply_relu=False, out_dtype=latent_ncdhw.dtype)  # conv1
    return jnp.transpose(y, (0, 4, 1, 2, 3))                                        # NDHWC -> NCDHW


def _ref_forward(latent_ncdhw, params):
    """Pure-JAX f32 reference using lax.conv_general_dilated for correctness check."""
    w0, b0, w1, b1 = params

    def conv(x, w, b):
        y = lax.conv_general_dilated(
            x, w, window_strides=(1, 1, 1),
            padding=((1, 1), (1, 1), (1, 1)),
            dimension_numbers=("NCDHW", "OIDHW", "NCDHW"),
            precision=lax.Precision.HIGHEST)
        return y + b[None, :, None, None, None]

    z = conv(latent_ncdhw, w0, b0)
    return conv(jnp.maximum(z, 0.0), w1, b1)


if __name__ == "__main__":
    key = jax.random.PRNGKey(0)
    k_in, k_par = jax.random.split(key)

    # Production channel count (128, so lanes are fully exercised and the im2col concat is
    # lane-aligned) with small spatial dims.
    N, C, D, H, W = 2, 128, 8, 8, 8
    latent = jax.random.normal(k_in, (N, C, D, H, W), jnp.float32)
    params = init_params(k_par, C)

    out = jax.jit(conv3d_one_input)(latent, params)
    out = jax.block_until_ready(out)

    ref = _ref_forward(latent, params)
    assert out.shape == ref.shape == (N, C, D, H, W)
    # bf16 activations/weights -> relaxed tolerance vs the f32 reference.
    assert jnp.allclose(out, ref, atol=5e-2, rtol=5e-2), float(jnp.max(jnp.abs(out - ref)))

    print("KERNEL_OK")
</pallas_src>

<mosaic_0001>
module attributes {stable_mosaic.version = 11 : i64} {
  func.func @_conv3d_kernel(%arg0: i32, %arg1: i32, %arg2: memref<1x1x10x10x128xbf16, #tpu.memory_space<vmem>>, %arg3: memref<1x1x10x10x128xbf16, #tpu.memory_space<vmem>>, %arg4: memref<1x1x10x10x128xbf16, #tpu.memory_space<vmem>>, %arg5: memref<1x1x10x10x128xbf16, #tpu.memory_space<vmem>>, %arg6: memref<1x1x10x10x128xbf16, #tpu.memory_space<vmem>>, %arg7: memref<1x1x10x10x128xbf16, #tpu.memory_space<vmem>>, %arg8: memref<3x1152x128xbf16, #tpu.memory_space<vmem>>, %arg9: memref<1x128xf32, #tpu.memory_space<vmem>>, %arg10: memref<1x4x8x8x128xbf16, #tpu.memory_space<vmem>>) attributes {dimension_semantics = [#tpu.dimension_semantics<parallel>, #tpu.dimension_semantics<parallel>], iteration_bounds = array<i64: 2, 2>, scalar_prefetch = 0 : i64, scratch_operands = 0 : i64, tpu.core_type = #tpu.core_type<tc>, window_params = [{transform_indices = @transform_0, window_bounds = array<i64: 1, 1, 10, 10, 128>}, {transform_indices = @transform_1, window_bounds = array<i64: 1, 1, 10, 10, 128>}, {transform_indices = @transform_2, window_bounds = array<i64: 1, 1, 10, 10, 128>}, {transform_indices = @transform_3, window_bounds = array<i64: 1, 1, 10, 10, 128>}, {transform_indices = @transform_4, window_bounds = array<i64: 1, 1, 10, 10, 128>}, {transform_indices = @transform_5, window_bounds = array<i64: 1, 1, 10, 10, 128>}, {pipeline_mode = #tpu.pipeline_mode<synchronous>, transform_indices = @transform_6, window_bounds = array<i64: 3, 1152, 128>}, {pipeline_mode = #tpu.pipeline_mode<synchronous>, transform_indices = @transform_7, window_bounds = array<i64: 1, 128>}, {transform_indices = @transform_8, window_bounds = array<i64: 1, 4, 8, 8, 128>}]} {
    %c0 = arith.constant 0 : index
    %c0_0 = arith.constant 0 : index
    %c0_1 = arith.constant 0 : index
    %c0_2 = arith.constant 0 : index
    %c0_3 = arith.constant 0 : index
    %0 = vector.load %arg2[%c0, %c0_0, %c0_1, %c0_2, %c0_3] : memref<1x1x10x10x128xbf16, #tpu.memory_space<vmem>>, vector<1x1x10x10x128xbf16>
    %1 = vector.shape_cast %0 : vector<1x1x10x10x128xbf16> to vector<10x10x128xbf16>
    %2 = vector.extract_strided_slice %1 {offsets = [0, 0, 0], sizes = [10, 8, 128], strides = [1, 1, 1]} : vector<10x10x128xbf16> to vector<10x8x128xbf16>
    %3 = vector.extract_strided_slice %1 {offsets = [0, 1, 0], sizes = [10, 8, 128], strides = [1, 1, 1]} : vector<10x10x128xbf16> to vector<10x8x128xbf16>
    %4 = vector.extract_strided_slice %1 {offsets = [0, 2, 0], sizes = [10, 8, 128], strides = [1, 1, 1]} : vector<10x10x128xbf16> to vector<10x8x128xbf16>
    %5 = tpu.concatenate %2, %3, %4 in 2 : vector<10x8x128xbf16>, vector<10x8x128xbf16>, vector<10x8x128xbf16> -> vector<10x8x384xbf16>
    %c0_4 = arith.constant 0 : index
    %c0_5 = arith.constant 0 : index
    %c0_6 = arith.constant 0 : index
    %c0_7 = arith.constant 0 : index
    %c0_8 = arith.constant 0 : index
    %6 = vector.load %arg3[%c0_4, %c0_5, %c0_6, %c0_7, %c0_8] : memref<1x1x10x10x128xbf16, #tpu.memory_space<vmem>>, vector<1x1x10x10x128xbf16>
    %7 = vector.shape_cast %6 : vector<1x1x10x10x128xbf16> to vector<10x10x128xbf16>
    %8 = vector.extract_strided_slice %7 {offsets = [0, 0, 0], sizes = [10, 8, 128], strides = [1, 1, 1]} : vector<10x10x128xbf16> to vector<10x8x128xbf16>
    %9 = vector.extract_strided_slice %7 {offsets = [0, 1, 0], sizes = [10, 8, 128], strides = [1, 1, 1]} : vector<10x10x128xbf16> to vector<10x8x128xbf16>
    %10 = vector.extract_strided_slice %7 {offsets = [0, 2, 0], sizes = [10, 8, 128], strides = [1, 1, 1]} : vector<10x10x128xbf16> to vector<10x8x128xbf16>
    %11 = tpu.concatenate %8, %9, %10 in 2 : vector<10x8x128xbf16>, vector<10x8x128xbf16>, vector<10x8x128xbf16> -> vector<10x8x384xbf16>
    %c0_9 = arith.constant 0 : index
    %c0_10 = arith.constant 0 : index
    %c0_11 = arith.constant 0 : index
    %c0_12 = arith.constant 0 : index
    %c0_13 = arith.constant 0 : index
    %12 = vector.load %arg4[%c0_9, %c0_10, %c0_11, %c0_12, %c0_13] : memref<1x1x10x10x128xbf16, #tpu.memory_space<vmem>>, vector<1x1x10x10x128xbf16>
    %13 = vector.shape_cast %12 : vector<1x1x10x10x128xbf16> to vector<10x10x128xbf16>
    %14 = vector.extract_strided_slice %13 {offsets = [0, 0, 0], sizes = [10, 8, 128], strides = [1, 1, 1]} : vector<10x10x128xbf16> to vector<10x8x128xbf16>
    %15 = vector.extract_strided_slice %13 {offsets = [0, 1, 0], sizes = [10, 8, 128], strides = [1, 1, 1]} : vector<10x10x128xbf16> to vector<10x8x128xbf16>
    %16 = vector.extract_strided_slice %13 {offsets = [0, 2, 0], sizes = [10, 8, 128], strides = [1, 1, 1]} : vector<10x10x128xbf16> to vector<10x8x128xbf16>
    %17 = tpu.concatenate %14, %15, %16 in 2 : vector<10x8x128xbf16>, vector<10x8x128xbf16>, vector<10x8x128xbf16> -> vector<10x8x384xbf16>
    %c0_14 = arith.constant 0 : index
    %c0_15 = arith.constant 0 : index
    %c0_16 = arith.constant 0 : index
    %c0_17 = arith.constant 0 : index
    %c0_18 = arith.constant 0 : index
    %18 = vector.load %arg5[%c0_14, %c0_15, %c0_16, %c0_17, %c0_18] : memref<1x1x10x10x128xbf16, #tpu.memory_space<vmem>>, vector<1x1x10x10x128xbf16>
    %19 = vector.shape_cast %18 : vector<1x1x10x10x128xbf16> to vector<10x10x128xbf16>
    %20 = vector.extract_strided_slice %19 {offsets = [0, 0, 0], sizes = [10, 8, 128], strides = [1, 1, 1]} : vector<10x10x128xbf16> to vector<10x8x128xbf16>
    %21 = vector.extract_strided_slice %19 {offsets = [0, 1, 0], sizes = [10, 8, 128], strides = [1, 1, 1]} : vector<10x10x128xbf16> to vector<10x8x128xbf16>
    %22 = vector.extract_strided_slice %19 {offsets = [0, 2, 0], sizes = [10, 8, 128], strides = [1, 1, 1]} : vector<10x10x128xbf16> to vector<10x8x128xbf16>
    %23 = tpu.concatenate %20, %21, %22 in 2 : vector<10x8x128xbf16>, vector<10x8x128xbf16>, vector<10x8x128xbf16> -> vector<10x8x384xbf16>
    %c0_19 = arith.constant 0 : index
    %c0_20 = arith.constant 0 : index
    %c0_21 = arith.constant 0 : index
    %c0_22 = arith.constant 0 : index
    %c0_23 = arith.constant 0 : index
    %24 = vector.load %arg6[%c0_19, %c0_20, %c0_21, %c0_22, %c0_23] : memref<1x1x10x10x128xbf16, #tpu.memory_space<vmem>>, vector<1x1x10x10x128xbf16>
    %25 = vector.shape_cast %24 : vector<1x1x10x10x128xbf16> to vector<10x10x128xbf16>
    %26 = vector.extract_strided_slice %25 {offsets = [0, 0, 0], sizes = [10, 8, 128], strides = [1, 1, 1]} : vector<10x10x128xbf16> to vector<10x8x128xbf16>
    %27 = vector.extract_strided_slice %25 {offsets = [0, 1, 0], sizes = [10, 8, 128], strides = [1, 1, 1]} : vector<10x10x128xbf16> to vector<10x8x128xbf16>
    %28 = vector.extract_strided_slice %25 {offsets = [0, 2, 0], sizes = [10, 8, 128], strides = [1, 1, 1]} : vector<10x10x128xbf16> to vector<10x8x128xbf16>
    %29 = tpu.concatenate %26, %27, %28 in 2 : vector<10x8x128xbf16>, vector<10x8x128xbf16>, vector<10x8x128xbf16> -> vector<10x8x384xbf16>
    %c0_24 = arith.constant 0 : index
    %c0_25 = arith.constant 0 : index
    %c0_26 = arith.constant 0 : index
    %c0_27 = arith.constant 0 : index
    %c0_28 = arith.constant 0 : index
    %30 = vector.load %arg7[%c0_24, %c0_25, %c0_26, %c0_27, %c0_28] : memref<1x1x10x10x128xbf16, #tpu.memory_space<vmem>>, vector<1x1x10x10x128xbf16>
    %31 = vector.shape_cast %30 : vector<1x1x10x10x128xbf16> to vector<10x10x128xbf16>
    %32 = vector.extract_strided_slice %31 {offsets = [0, 0, 0], sizes = [10, 8, 128], strides = [1, 1, 1]} : vector<10x10x128xbf16> to vector<10x8x128xbf16>
    %33 = vector.extract_strided_slice %31 {offsets = [0, 1, 0], sizes = [10, 8, 128], strides = [1, 1, 1]} : vector<10x10x128xbf16> to vector<10x8x128xbf16>
    %34 = vector.extract_strided_slice %31 {offsets = [0, 2, 0], sizes = [10, 8, 128], strides = [1, 1, 1]} : vector<10x10x128xbf16> to vector<10x8x128xbf16>
    %35 = tpu.concatenate %32, %33, %34 in 2 : vector<10x8x128xbf16>, vector<10x8x128xbf16>, vector<10x8x128xbf16> -> vector<10x8x384xbf16>
    %36 = vector.extract_strided_slice %5 {offsets = [0, 0, 0], sizes = [8, 8, 384], strides = [1, 1, 1]} : vector<10x8x384xbf16> to vector<8x8x384xbf16>
    %37 = vector.extract_strided_slice %5 {offsets = [1, 0, 0], sizes = [8, 8, 384], strides = [1, 1, 1]} : vector<10x8x384xbf16> to vector<8x8x384xbf16>
    %38 = vector.extract_strided_slice %5 {offsets = [2, 0, 0], sizes = [8, 8, 384], strides = [1, 1, 1]} : vector<10x8x384xbf16> to vector<8x8x384xbf16>
    %39 = tpu.concatenate %36, %37, %38 in 2 : vector<8x8x384xbf16>, vector<8x8x384xbf16>, vector<8x8x384xbf16> -> vector<8x8x1152xbf16>
    %40 = vector.extract_strided_slice %11 {offsets = [0, 0, 0], sizes = [8, 8, 384], strides = [1, 1, 1]} : vector<10x8x384xbf16> to vector<8x8x384xbf16>
    %41 = vector.extract_strided_slice %11 {offsets = [1, 0, 0], sizes = [8, 8, 384], strides = [1, 1, 1]} : vector<10x8x384xbf16> to vector<8x8x384xbf16>
    %42 = vector.extract_strided_slice %11 {offsets = [2, 0, 0], sizes = [8, 8, 384], strides = [1, 1, 1]} : vector<10x8x384xbf16> to vector<8x8x384xbf16>
    %43 = tpu.concatenate %40, %41, %42 in 2 : vector<8x8x384xbf16>, vector<8x8x384xbf16>, vector<8x8x384xbf16> -> vector<8x8x1152xbf16>
    %44 = vector.extract_strided_slice %17 {offsets = [0, 0, 0], sizes = [8, 8, 384], strides = [1, 1, 1]} : vector<10x8x384xbf16> to vector<8x8x384xbf16>
    %45 = vector.extract_strided_slice %17 {offsets = [1, 0, 0], sizes = [8, 8, 384], strides = [1, 1, 1]} : vector<10x8x384xbf16> to vector<8x8x384xbf16>
    %46 = vector.extract_strided_slice %17 {offsets = [2, 0, 0], sizes = [8, 8, 384], strides = [1, 1, 1]} : vector<10x8x384xbf16> to vector<8x8x384xbf16>
    %47 = tpu.concatenate %44, %45, %46 in 2 : vector<8x8x384xbf16>, vector<8x8x384xbf16>, vector<8x8x384xbf16> -> vector<8x8x1152xbf16>
    %48 = vector.extract_strided_slice %23 {offsets = [0, 0, 0], sizes = [8, 8, 384], strides = [1, 1, 1]} : vector<10x8x384xbf16> to vector<8x8x384xbf16>
    %49 = vector.extract_strided_slice %23 {offsets = [1, 0, 0], sizes = [8, 8, 384], strides = [1, 1, 1]} : vector<10x8x384xbf16> to vector<8x8x384xbf16>
    %50 = vector.extract_strided_slice %23 {offsets = [2, 0, 0], sizes = [8, 8, 384], strides = [1, 1, 1]} : vector<10x8x384xbf16> to vector<8x8x384xbf16>
    %51 = tpu.concatenate %48, %49, %50 in 2 : vector<8x8x384xbf16>, vector<8x8x384xbf16>, vector<8x8x384xbf16> -> vector<8x8x1152xbf16>
    %52 = vector.extract_strided_slice %29 {offsets = [0, 0, 0], sizes = [8, 8, 384], strides = [1, 1, 1]} : vector<10x8x384xbf16> to vector<8x8x384xbf16>
    %53 = vector.extract_strided_slice %29 {offsets = [1, 0, 0], sizes = [8, 8, 384], strides = [1, 1, 1]} : vector<10x8x384xbf16> to vector<8x8x384xbf16>
    %54 = vector.extract_strided_slice %29 {offsets = [2, 0, 0], sizes = [8, 8, 384], strides = [1, 1, 1]} : vector<10x8x384xbf16> to vector<8x8x384xbf16>
    %55 = tpu.concatenate %52, %53, %54 in 2 : vector<8x8x384xbf16>, vector<8x8x384xbf16>, vector<8x8x384xbf16> -> vector<8x8x1152xbf16>
    %56 = vector.extract_strided_slice %35 {offsets = [0, 0, 0], sizes = [8, 8, 384], strides = [1, 1, 1]} : vector<10x8x384xbf16> to vector<8x8x384xbf16>
    %57 = vector.extract_strided_slice %35 {offsets = [1, 0, 0], sizes = [8, 8, 384], strides = [1, 1, 1]} : vector<10x8x384xbf16> to vector<8x8x384xbf16>
    %58 = vector.extract_strided_slice %35 {offsets = [2, 0, 0], sizes = [8, 8, 384], strides = [1, 1, 1]} : vector<10x8x384xbf16> to vector<8x8x384xbf16>
    %59 = tpu.concatenate %56, %57, %58 in 2 : vector<8x8x384xbf16>, vector<8x8x384xbf16>, vector<8x8x384xbf16> -> vector<8x8x1152xbf16>
    %60 = vector.shape_cast %39 : vector<8x8x1152xbf16> to vector<1x8x8x1152xbf16>
    %61 = vector.shape_cast %43 : vector<8x8x1152xbf16> to vector<1x8x8x1152xbf16>
    %62 = vector.shape_cast %47 : vector<8x8x1152xbf16> to vector<1x8x8x1152xbf16>
    %63 = vector.shape_cast %51 : vector<8x8x1152xbf16> to vector<1x8x8x1152xbf16>
    %64 = vector.shape_cast %55 : vector<8x8x1152xbf16> to vector<1x8x8x1152xbf16>
    %65 = vector.shape_cast %59 : vector<8x8x1152xbf16> to vector<1x8x8x1152xbf16>
    %66 = tpu.concatenate %60, %61, %62, %63, %64, %65 in 0 : vector<1x8x8x1152xbf16>, vector<1x8x8x1152xbf16>, vector<1x8x8x1152xbf16>, vector<1x8x8x1152xbf16>, vector<1x8x8x1152xbf16>, vector<1x8x8x1152xbf16> -> vector<6x8x8x1152xbf16>
    %c0_29 = arith.constant 0 : index
    %c0_30 = arith.constant 0 : index
    %67 = vector.load %arg9[%c0_29, %c0_30] : memref<1x128xf32, #tpu.memory_space<vmem>>, vector<1x128xf32>
    %68 = vector.extract_strided_slice %66 {offsets = [0, 0, 0, 0], sizes = [4, 8, 8, 1152], strides = [1, 1, 1, 1]} : vector<6x8x8x1152xbf16> to vector<4x8x8x1152xbf16>
    %c0_31 = arith.constant 0 : index
    %c0_32 = arith.constant 0 : index
    %c0_33 = arith.constant 0 : index
    %69 = vector.load %arg8[%c0_31, %c0_32, %c0_33] : memref<3x1152x128xbf16, #tpu.memory_space<vmem>>, vector<1x1152x128xbf16>
    %70 = vector.shape_cast %69 : vector<1x1152x128xbf16> to vector<1152x128xbf16>
    %71 = vector.shape_cast %68 : vector<4x8x8x1152xbf16> to vector<256x1152xbf16>
    %cst = arith.constant dense<0.000000e+00> : vector<256x128xf32>
    %72 = tpu.matmul %71, %70, %cst {dimension_numbers = #tpu.dot_dimension_numbers<[1], [0], [0], [1], [0, 0, 1, 1], [], []>} : vector<256x1152xbf16>, vector<1152x128xbf16>, vector<256x128xf32> -> vector<256x128xf32>
    %73 = vector.extract_strided_slice %66 {offsets = [1, 0, 0, 0], sizes = [4, 8, 8, 1152], strides = [1, 1, 1, 1]} : vector<6x8x8x1152xbf16> to vector<4x8x8x1152xbf16>
    %c1 = arith.constant 1 : index
    %c0_34 = arith.constant 0 : index
    %c0_35 = arith.constant 0 : index
    %74 = vector.load %arg8[%c1, %c0_34, %c0_35] : memref<3x1152x128xbf16, #tpu.memory_space<vmem>>, vector<1x1152x128xbf16>
    %75 = vector.shape_cast %74 : vector<1x1152x128xbf16> to vector<1152x128xbf16>
    %76 = vector.shape_cast %73 : vector<4x8x8x1152xbf16> to vector<256x1152xbf16>
    %cst_36 = arith.constant dense<0.000000e+00> : vector<256x128xf32>
    %77 = tpu.matmul %76, %75, %cst_36 {dimension_numbers = #tpu.dot_dimension_numbers<[1], [0], [0], [1], [0, 0, 1, 1], [], []>} : vector<256x1152xbf16>, vector<1152x128xbf16>, vector<256x128xf32> -> vector<256x128xf32>
    %78 = arith.addf %72, %77 : vector<256x128xf32>
    %79 = vector.extract_strided_slice %66 {offsets = [2, 0, 0, 0], sizes = [4, 8, 8, 1152], strides = [1, 1, 1, 1]} : vector<6x8x8x1152xbf16> to vector<4x8x8x1152xbf16>
    %c2 = arith.constant 2 : index
    %c0_37 = arith.constant 0 : index
    %c0_38 = arith.constant 0 : index
    %80 = vector.load %arg8[%c2, %c0_37, %c0_38] : memref<3x1152x128xbf16, #tpu.memory_space<vmem>>, vector<1x1152x128xbf16>
    %81 = vector.shape_cast %80 : vector<1x1152x128xbf16> to vector<1152x128xbf16>
    %82 = vector.shape_cast %79 : vector<4x8x8x1152xbf16> to vector<256x1152xbf16>
    %cst_39 = arith.constant dense<0.000000e+00> : vector<256x128xf32>
    %83 = tpu.matmul %82, %81, %cst_39 {dimension_numbers = #tpu.dot_dimension_numbers<[1], [0], [0], [1], [0, 0, 1, 1], [], []>} : vector<256x1152xbf16>, vector<1152x128xbf16>, vector<256x128xf32> -> vector<256x128xf32>
    %84 = arith.addf %78, %83 : vector<256x128xf32>
    %85 = vector.broadcast %67 : vector<1x128xf32> to vector<256x128xf32>
    %86 = arith.addf %84, %85 : vector<256x128xf32>
    %cst_40 = arith.constant 0.000000e+00 : f32
    %87 = vector.broadcast %cst_40 : f32 to vector<256x128xf32>
    %88 = arith.maximumf %86, %87 : vector<256x128xf32>
    %89 = vector.shape_cast %88 : vector<256x128xf32> to vector<4x8x8x128xf32>
    %90 = arith.truncf %89 : vector<4x8x8x128xf32> to vector<4x8x8x128xbf16>
    %c0_41 = arith.constant 0 : index
    %c0_42 = arith.constant 0 : index
    %c0_43 = arith.constant 0 : index
    %c0_44 = arith.constant 0 : index
    %c0_45 = arith.constant 0 : index
    %91 = vector.load %arg10[%c0_41, %c0_42, %c0_43, %c0_44, %c0_45] : memref<1x4x8x8x128xbf16, #tpu.memory_space<vmem>>, vector<1x4x8x8x128xbf16>
    %92 = vector.shape_cast %91 : vector<1x4x8x8x128xbf16> to vector<4x8x8x128xbf16>
    %93 = vector.shape_cast %90 : vector<4x8x8x128xbf16> to vector<1x4x8x8x128xbf16>
    tpu.vector_store %arg10[%c0_41, %c0_42, %c0_43, %c0_44, %c0_45], %93 {strides = array<i32>} : memref<1x4x8x8x128xbf16, #tpu.memory_space<vmem>>, vector<1x4x8x8x128xbf16>,
    return
  }
  func.func @transform_0(%arg0: i32, %arg1: i32) -> (i32, i32, i32, i32, i32) {
    %c4_i32 = arith.constant 4 : i32
    %0 = arith.muli %c4_i32, %arg1 : i32
    %c0_i32 = arith.constant 0 : i32
    %1 = arith.addi %0, %c0_i32 : i32
    %c0_i32_0 = arith.constant 0 : i32
    %c0_i32_1 = arith.constant 0 : i32
    %c0_i32_2 = arith.constant 0 : i32
    %c0_i32_3 = arith.constant 0 : i32
    return %arg0, %1, %c0_i32_0, %c0_i32_1, %c0_i32_2 : i32, i32, i32, i32, i32
  }
  func.func @transform_1(%arg0: i32, %arg1: i32) -> (i32, i32, i32, i32, i32) {
    %c4_i32 = arith.constant 4 : i32
    %0 = arith.muli %c4_i32, %arg1 : i32
    %c1_i32 = arith.constant 1 : i32
    %1 = arith.addi %0, %c1_i32 : i32
    %c0_i32 = arith.constant 0 : i32
    %c0_i32_0 = arith.constant 0 : i32
    %c0_i32_1 = arith.constant 0 : i32
    %c0_i32_2 = arith.constant 0 : i32
    return %arg0, %1, %c0_i32, %c0_i32_0, %c0_i32_1 : i32, i32, i32, i32, i32
  }
  func.func @transform_2(%arg0: i32, %arg1: i32) -> (i32, i32, i32, i32, i32) {
    %c4_i32 = arith.constant 4 : i32
    %0 = arith.muli %c4_i32, %arg1 : i32
    %c2_i32 = arith.constant 2 : i32
    %1 = arith.addi %0, %c2_i32 : i32
    %c0_i32 = arith.constant 0 : i32
    %c0_i32_0 = arith.constant 0 : i32
    %c0_i32_1 = arith.constant 0 : i32
    %c0_i32_2 = arith.constant 0 : i32
    return %arg0, %1, %c0_i32, %c0_i32_0, %c0_i32_1 : i32, i32, i32, i32, i32
  }
  func.func @transform_3(%arg0: i32, %arg1: i32) -> (i32, i32, i32, i32, i32) {
    %c4_i32 = arith.constant 4 : i32
    %0 = arith.muli %c4_i32, %arg1 : i32
    %c3_i32 = arith.constant 3 : i32
    %1 = arith.addi %0, %c3_i32 : i32
    %c0_i32 = arith.constant 0 : i32
    %c0_i32_0 = arith.constant 0 : i32
    %c0_i32_1 = arith.constant 0 : i32
    %c0_i32_2 = arith.constant 0 : i32
    return %arg0, %1, %c0_i32, %c0_i32_0, %c0_i32_1 : i32, i32, i32, i32, i32
  }
  func.func @transform_4(%arg0: i32, %arg1: i32) -> (i32, i32, i32, i32, i32) {
    %c4_i32 = arith.constant 4 : i32
    %0 = arith.muli %c4_i32, %arg1 : i32
    %c4_i32_0 = arith.constant 4 : i32
    %1 = arith.addi %0, %c4_i32_0 : i32
    %c0_i32 = arith.constant 0 : i32
    %c0_i32_1 = arith.constant 0 : i32
    %c0_i32_2 = arith.constant 0 : i32
    %c0_i32_3 = arith.constant 0 : i32
    return %arg0, %1, %c0_i32, %c0_i32_1, %c0_i32_2 : i32, i32, i32, i32, i32
  }
  func.func @transform_5(%arg0: i32, %arg1: i32) -> (i32, i32, i32, i32, i32) {
    %c4_i32 = arith.constant 4 : i32
    %0 = arith.muli %c4_i32, %arg1 : i32
    %c5_i32 = arith.constant 5 : i32
    %1 = arith.addi %0, %c5_i32 : i32
    %c0_i32 = arith.constant 0 : i32
    %c0_i32_0 = arith.constant 0 : i32
    %c0_i32_1 = arith.constant 0 : i32
    %c0_i32_2 = arith.constant 0 : i32
    return %arg0, %1, %c0_i32, %c0_i32_0, %c0_i32_1 : i32, i32, i32, i32, i32
  }
  func.func @transform_6(%arg0: i32, %arg1: i32) -> (i32, i32, i32) {
    %c0_i32 = arith.constant 0 : i32
    %c0_i32_0 = arith.constant 0 : i32
    %c0_i32_1 = arith.constant 0 : i32
    %c0_i32_2 = arith.constant 0 : i32
    return %c0_i32, %c0_i32_0, %c0_i32_1 : i32, i32, i32
  }
  func.func @transform_7(%arg0: i32, %arg1: i32) -> (i32, i32) {
    %c0_i32 = arith.constant 0 : i32
    %c0_i32_0 = arith.constant 0 : i32
    %c0_i32_1 = arith.constant 0 : i32
    return %c0_i32, %c0_i32_0 : i32, i32
  }
  func.func @transform_8(%arg0: i32, %arg1: i32) -> (i32, i32, i32, i32, i32) {
    %c0_i32 = arith.constant 0 : i32
    %c0_i32_0 = arith.constant 0 : i32
    %c0_i32_1 = arith.constant 0 : i32
    %c0_i32_2 = arith.constant 0 : i32
    return %arg0, %arg1, %c0_i32, %c0_i32_0, %c0_i32_1 : i32, i32, i32, i32, i32
  }
}

module attributes {stable_mosaic.version = 11 : i64} {
  func.func @_conv3d_kernel(%arg0: i32, %arg1: i32, %arg2: memref<1x1x10x10x128xbf16, #tpu.memory_space<vmem>>, %arg3: memref<1x1x10x10x128xbf16, #tpu.memory_space<vmem>>, %arg4: memref<1x1x10x10x128xbf16, #tpu.memory_space<vmem>>, %arg5: memref<1x1x10x10x128xbf16, #tpu.memory_space<vmem>>, %arg6: memref<1x1x10x10x128xbf16, #tpu.memory_space<vmem>>, %arg7: memref<1x1x10x10x128xbf16, #tpu.memory_space<vmem>>, %arg8: memref<3x1152x128xbf16, #tpu.memory_space<vmem>>, %arg9: memref<1x128xf32, #tpu.memory_space<vmem>>, %arg10: memref<1x4x8x8x128xf32, #tpu.memory_space<vmem>>) attributes {dimension_semantics = [#tpu.dimension_semantics<parallel>, #tpu.dimension_semantics<parallel>], iteration_bounds = array<i64: 2, 2>, scalar_prefetch = 0 : i64, scratch_operands = 0 : i64, tpu.core_type = #tpu.core_type<tc>, window_params = [{transform_indices = @transform_0, window_bounds = array<i64: 1, 1, 10, 10, 128>}, {transform_indices = @transform_1, window_bounds = array<i64: 1, 1, 10, 10, 128>}, {transform_indices = @transform_2, window_bounds = array<i64: 1, 1, 10, 10, 128>}, {transform_indices = @transform_3, window_bounds = array<i64: 1, 1, 10, 10, 128>}, {transform_indices = @transform_4, window_bounds = array<i64: 1, 1, 10, 10, 128>}, {transform_indices = @transform_5, window_bounds = array<i64: 1, 1, 10, 10, 128>}, {pipeline_mode = #tpu.pipeline_mode<synchronous>, transform_indices = @transform_6, window_bounds = array<i64: 3, 1152, 128>}, {pipeline_mode = #tpu.pipeline_mode<synchronous>, transform_indices = @transform_7, window_bounds = array<i64: 1, 128>}, {transform_indices = @transform_8, window_bounds = array<i64: 1, 4, 8, 8, 128>}]} {
    %c0 = arith.constant 0 : index
    %c0_0 = arith.constant 0 : index
    %c0_1 = arith.constant 0 : index
    %c0_2 = arith.constant 0 : index
    %c0_3 = arith.constant 0 : index
    %0 = vector.load %arg2[%c0, %c0_0, %c0_1, %c0_2, %c0_3] : memref<1x1x10x10x128xbf16, #tpu.memory_space<vmem>>, vector<1x1x10x10x128xbf16>
    %1 = vector.shape_cast %0 : vector<1x1x10x10x128xbf16> to vector<10x10x128xbf16>
    %2 = vector.extract_strided_slice %1 {offsets = [0, 0, 0], sizes = [10, 8, 128], strides = [1, 1, 1]} : vector<10x10x128xbf16> to vector<10x8x128xbf16>
    %3 = vector.extract_strided_slice %1 {offsets = [0, 1, 0], sizes = [10, 8, 128], strides = [1, 1, 1]} : vector<10x10x128xbf16> to vector<10x8x128xbf16>
    %4 = vector.extract_strided_slice %1 {offsets = [0, 2, 0], sizes = [10, 8, 128], strides = [1, 1, 1]} : vector<10x10x128xbf16> to vector<10x8x128xbf16>
    %5 = tpu.concatenate %2, %3, %4 in 2 : vector<10x8x128xbf16>, vector<10x8x128xbf16>, vector<10x8x128xbf16> -> vector<10x8x384xbf16>
    %c0_4 = arith.constant 0 : index
    %c0_5 = arith.constant 0 : index
    %c0_6 = arith.constant 0 : index
    %c0_7 = arith.constant 0 : index
    %c0_8 = arith.constant 0 : index
    %6 = vector.load %arg3[%c0_4, %c0_5, %c0_6, %c0_7, %c0_8] : memref<1x1x10x10x128xbf16, #tpu.memory_space<vmem>>, vector<1x1x10x10x128xbf16>
    %7 = vector.shape_cast %6 : vector<1x1x10x10x128xbf16> to vector<10x10x128xbf16>
    %8 = vector.extract_strided_slice %7 {offsets = [0, 0, 0], sizes = [10, 8, 128], strides = [1, 1, 1]} : vector<10x10x128xbf16> to vector<10x8x128xbf16>
    %9 = vector.extract_strided_slice %7 {offsets = [0, 1, 0], sizes = [10, 8, 128], strides = [1, 1, 1]} : vector<10x10x128xbf16> to vector<10x8x128xbf16>
    %10 = vector.extract_strided_slice %7 {offsets = [0, 2, 0], sizes = [10, 8, 128], strides = [1, 1, 1]} : vector<10x10x128xbf16> to vector<10x8x128xbf16>
    %11 = tpu.concatenate %8, %9, %10 in 2 : vector<10x8x128xbf16>, vector<10x8x128xbf16>, vector<10x8x128xbf16> -> vector<10x8x384xbf16>
    %c0_9 = arith.constant 0 : index
    %c0_10 = arith.constant 0 : index
    %c0_11 = arith.constant 0 : index
    %c0_12 = arith.constant 0 : index
    %c0_13 = arith.constant 0 : index
    %12 = vector.load %arg4[%c0_9, %c0_10, %c0_11, %c0_12, %c0_13] : memref<1x1x10x10x128xbf16, #tpu.memory_space<vmem>>, vector<1x1x10x10x128xbf16>
    %13 = vector.shape_cast %12 : vector<1x1x10x10x128xbf16> to vector<10x10x128xbf16>
    %14 = vector.extract_strided_slice %13 {offsets = [0, 0, 0], sizes = [10, 8, 128], strides = [1, 1, 1]} : vector<10x10x128xbf16> to vector<10x8x128xbf16>
    %15 = vector.extract_strided_slice %13 {offsets = [0, 1, 0], sizes = [10, 8, 128], strides = [1, 1, 1]} : vector<10x10x128xbf16> to vector<10x8x128xbf16>
    %16 = vector.extract_strided_slice %13 {offsets = [0, 2, 0], sizes = [10, 8, 128], strides = [1, 1, 1]} : vector<10x10x128xbf16> to vector<10x8x128xbf16>
    %17 = tpu.concatenate %14, %15, %16 in 2 : vector<10x8x128xbf16>, vector<10x8x128xbf16>, vector<10x8x128xbf16> -> vector<10x8x384xbf16>
    %c0_14 = arith.constant 0 : index
    %c0_15 = arith.constant 0 : index
    %c0_16 = arith.constant 0 : index
    %c0_17 = arith.constant 0 : index
    %c0_18 = arith.constant 0 : index
    %18 = vector.load %arg5[%c0_14, %c0_15, %c0_16, %c0_17, %c0_18] : memref<1x1x10x10x128xbf16, #tpu.memory_space<vmem>>, vector<1x1x10x10x128xbf16>
    %19 = vector.shape_cast %18 : vector<1x1x10x10x128xbf16> to vector<10x10x128xbf16>
    %20 = vector.extract_strided_slice %19 {offsets = [0, 0, 0], sizes = [10, 8, 128], strides = [1, 1, 1]} : vector<10x10x128xbf16> to vector<10x8x128xbf16>
    %21 = vector.extract_strided_slice %19 {offsets = [0, 1, 0], sizes = [10, 8, 128], strides = [1, 1, 1]} : vector<10x10x128xbf16> to vector<10x8x128xbf16>
    %22 = vector.extract_strided_slice %19 {offsets = [0, 2, 0], sizes = [10, 8, 128], strides = [1, 1, 1]} : vector<10x10x128xbf16> to vector<10x8x128xbf16>
    %23 = tpu.concatenate %20, %21, %22 in 2 : vector<10x8x128xbf16>, vector<10x8x128xbf16>, vector<10x8x128xbf16> -> vector<10x8x384xbf16>
    %c0_19 = arith.constant 0 : index
    %c0_20 = arith.constant 0 : index
    %c0_21 = arith.constant 0 : index
    %c0_22 = arith.constant 0 : index
    %c0_23 = arith.constant 0 : index
    %24 = vector.load %arg6[%c0_19, %c0_20, %c0_21, %c0_22, %c0_23] : memref<1x1x10x10x128xbf16, #tpu.memory_space<vmem>>, vector<1x1x10x10x128xbf16>
    %25 = vector.shape_cast %24 : vector<1x1x10x10x128xbf16> to vector<10x10x128xbf16>
    %26 = vector.extract_strided_slice %25 {offsets = [0, 0, 0], sizes = [10, 8, 128], strides = [1, 1, 1]} : vector<10x10x128xbf16> to vector<10x8x128xbf16>
    %27 = vector.extract_strided_slice %25 {offsets = [0, 1, 0], sizes = [10, 8, 128], strides = [1, 1, 1]} : vector<10x10x128xbf16> to vector<10x8x128xbf16>
    %28 = vector.extract_strided_slice %25 {offsets = [0, 2, 0], sizes = [10, 8, 128], strides = [1, 1, 1]} : vector<10x10x128xbf16> to vector<10x8x128xbf16>
    %29 = tpu.concatenate %26, %27, %28 in 2 : vector<10x8x128xbf16>, vector<10x8x128xbf16>, vector<10x8x128xbf16> -> vector<10x8x384xbf16>
    %c0_24 = arith.constant 0 : index
    %c0_25 = arith.constant 0 : index
    %c0_26 = arith.constant 0 : index
    %c0_27 = arith.constant 0 : index
    %c0_28 = arith.constant 0 : index
    %30 = vector.load %arg7[%c0_24, %c0_25, %c0_26, %c0_27, %c0_28] : memref<1x1x10x10x128xbf16, #tpu.memory_space<vmem>>, vector<1x1x10x10x128xbf16>
    %31 = vector.shape_cast %30 : vector<1x1x10x10x128xbf16> to vector<10x10x128xbf16>
    %32 = vector.extract_strided_slice %31 {offsets = [0, 0, 0], sizes = [10, 8, 128], strides = [1, 1, 1]} : vector<10x10x128xbf16> to vector<10x8x128xbf16>
    %33 = vector.extract_strided_slice %31 {offsets = [0, 1, 0], sizes = [10, 8, 128], strides = [1, 1, 1]} : vector<10x10x128xbf16> to vector<10x8x128xbf16>
    %34 = vector.extract_strided_slice %31 {offsets = [0, 2, 0], sizes = [10, 8, 128], strides = [1, 1, 1]} : vector<10x10x128xbf16> to vector<10x8x128xbf16>
    %35 = tpu.concatenate %32, %33, %34 in 2 : vector<10x8x128xbf16>, vector<10x8x128xbf16>, vector<10x8x128xbf16> -> vector<10x8x384xbf16>
    %36 = vector.extract_strided_slice %5 {offsets = [0, 0, 0], sizes = [8, 8, 384], strides = [1, 1, 1]} : vector<10x8x384xbf16> to vector<8x8x384xbf16>
    %37 = vector.extract_strided_slice %5 {offsets = [1, 0, 0], sizes = [8, 8, 384], strides = [1, 1, 1]} : vector<10x8x384xbf16> to vector<8x8x384xbf16>
    %38 = vector.extract_strided_slice %5 {offsets = [2, 0, 0], sizes = [8, 8, 384], strides = [1, 1, 1]} : vector<10x8x384xbf16> to vector<8x8x384xbf16>
    %39 = tpu.concatenate %36, %37, %38 in 2 : vector<8x8x384xbf16>, vector<8x8x384xbf16>, vector<8x8x384xbf16> -> vector<8x8x1152xbf16>
    %40 = vector.extract_strided_slice %11 {offsets = [0, 0, 0], sizes = [8, 8, 384], strides = [1, 1, 1]} : vector<10x8x384xbf16> to vector<8x8x384xbf16>
    %41 = vector.extract_strided_slice %11 {offsets = [1, 0, 0], sizes = [8, 8, 384], strides = [1, 1, 1]} : vector<10x8x384xbf16> to vector<8x8x384xbf16>
    %42 = vector.extract_strided_slice %11 {offsets = [2, 0, 0], sizes = [8, 8, 384], strides = [1, 1, 1]} : vector<10x8x384xbf16> to vector<8x8x384xbf16>
    %43 = tpu.concatenate %40, %41, %42 in 2 : vector<8x8x384xbf16>, vector<8x8x384xbf16>, vector<8x8x384xbf16> -> vector<8x8x1152xbf16>
    %44 = vector.extract_strided_slice %17 {offsets = [0, 0, 0], sizes = [8, 8, 384], strides = [1, 1, 1]} : vector<10x8x384xbf16> to vector<8x8x384xbf16>
    %45 = vector.extract_strided_slice %17 {offsets = [1, 0, 0], sizes = [8, 8, 384], strides = [1, 1, 1]} : vector<10x8x384xbf16> to vector<8x8x384xbf16>
    %46 = vector.extract_strided_slice %17 {offsets = [2, 0, 0], sizes = [8, 8, 384], strides = [1, 1, 1]} : vector<10x8x384xbf16> to vector<8x8x384xbf16>
    %47 = tpu.concatenate %44, %45, %46 in 2 : vector<8x8x384xbf16>, vector<8x8x384xbf16>, vector<8x8x384xbf16> -> vector<8x8x1152xbf16>
    %48 = vector.extract_strided_slice %23 {offsets = [0, 0, 0], sizes = [8, 8, 384], strides = [1, 1, 1]} : vector<10x8x384xbf16> to vector<8x8x384xbf16>
    %49 = vector.extract_strided_slice %23 {offsets = [1, 0, 0], sizes = [8, 8, 384], strides = [1, 1, 1]} : vector<10x8x384xbf16> to vector<8x8x384xbf16>
    %50 = vector.extract_strided_slice %23 {offsets = [2, 0, 0], sizes = [8, 8, 384], strides = [1, 1, 1]} : vector<10x8x384xbf16> to vector<8x8x384xbf16>
    %51 = tpu.concatenate %48, %49, %50 in 2 : vector<8x8x384xbf16>, vector<8x8x384xbf16>, vector<8x8x384xbf16> -> vector<8x8x1152xbf16>
    %52 = vector.extract_strided_slice %29 {offsets = [0, 0, 0], sizes = [8, 8, 384], strides = [1, 1, 1]} : vector<10x8x384xbf16> to vector<8x8x384xbf16>
    %53 = vector.extract_strided_slice %29 {offsets = [1, 0, 0], sizes = [8, 8, 384], strides = [1, 1, 1]} : vector<10x8x384xbf16> to vector<8x8x384xbf16>
    %54 = vector.extract_strided_slice %29 {offsets = [2, 0, 0], sizes = [8, 8, 384], strides = [1, 1, 1]} : vector<10x8x384xbf16> to vector<8x8x384xbf16>
    %55 = tpu.concatenate %52, %53, %54 in 2 : vector<8x8x384xbf16>, vector<8x8x384xbf16>, vector<8x8x384xbf16> -> vector<8x8x1152xbf16>
    %56 = vector.extract_strided_slice %35 {offsets = [0, 0, 0], sizes = [8, 8, 384], strides = [1, 1, 1]} : vector<10x8x384xbf16> to vector<8x8x384xbf16>
    %57 = vector.extract_strided_slice %35 {offsets = [1, 0, 0], sizes = [8, 8, 384], strides = [1, 1, 1]} : vector<10x8x384xbf16> to vector<8x8x384xbf16>
    %58 = vector.extract_strided_slice %35 {offsets = [2, 0, 0], sizes = [8, 8, 384], strides = [1, 1, 1]} : vector<10x8x384xbf16> to vector<8x8x384xbf16>
    %59 = tpu.concatenate %56, %57, %58 in 2 : vector<8x8x384xbf16>, vector<8x8x384xbf16>, vector<8x8x384xbf16> -> vector<8x8x1152xbf16>
    %60 = vector.shape_cast %39 : vector<8x8x1152xbf16> to vector<1x8x8x1152xbf16>
    %61 = vector.shape_cast %43 : vector<8x8x1152xbf16> to vector<1x8x8x1152xbf16>
    %62 = vector.shape_cast %47 : vector<8x8x1152xbf16> to vector<1x8x8x1152xbf16>
    %63 = vector.shape_cast %51 : vector<8x8x1152xbf16> to vector<1x8x8x1152xbf16>
    %64 = vector.shape_cast %55 : vector<8x8x1152xbf16> to vector<1x8x8x1152xbf16>
    %65 = vector.shape_cast %59 : vector<8x8x1152xbf16> to vector<1x8x8x1152xbf16>
    %66 = tpu.concatenate %60, %61, %62, %63, %64, %65 in 0 : vector<1x8x8x1152xbf16>, vector<1x8x8x1152xbf16>, vector<1x8x8x1152xbf16>, vector<1x8x8x1152xbf16>, vector<1x8x8x1152xbf16>, vector<1x8x8x1152xbf16> -> vector<6x8x8x1152xbf16>
    %c0_29 = arith.constant 0 : index
    %c0_30 = arith.constant 0 : index
    %67 = vector.load %arg9[%c0_29, %c0_30] : memref<1x128xf32, #tpu.memory_space<vmem>>, vector<1x128xf32>
    %68 = vector.extract_strided_slice %66 {offsets = [0, 0, 0, 0], sizes = [4, 8, 8, 1152], strides = [1, 1, 1, 1]} : vector<6x8x8x1152xbf16> to vector<4x8x8x1152xbf16>
    %c0_31 = arith.constant 0 : index
    %c0_32 = arith.constant 0 : index
    %c0_33 = arith.constant 0 : index
    %69 = vector.load %arg8[%c0_31, %c0_32, %c0_33] : memref<3x1152x128xbf16, #tpu.memory_space<vmem>>, vector<1x1152x128xbf16>
    %70 = vector.shape_cast %69 : vector<1x1152x128xbf16> to vector<1152x128xbf16>
    %71 = vector.shape_cast %68 : vector<4x8x8x1152xbf16> to vector<256x1152xbf16>
    %cst = arith.constant dense<0.000000e+00> : vector<256x128xf32>
    %72 = tpu.matmul %71, %70, %cst {dimension_numbers = #tpu.dot_dimension_numbers<[1], [0], [0], [1], [0, 0, 1, 1], [], []>} : vector<256x1152xbf16>, vector<1152x128xbf16>, vector<256x128xf32> -> vector<256x128xf32>
    %73 = vector.extract_strided_slice %66 {offsets = [1, 0, 0, 0], sizes = [4, 8, 8, 1152], strides = [1, 1, 1, 1]} : vector<6x8x8x1152xbf16> to vector<4x8x8x1152xbf16>
    %c1 = arith.constant 1 : index
    %c0_34 = arith.constant 0 : index
    %c0_35 = arith.constant 0 : index
    %74 = vector.load %arg8[%c1, %c0_34, %c0_35] : memref<3x1152x128xbf16, #tpu.memory_space<vmem>>, vector<1x1152x128xbf16>
    %75 = vector.shape_cast %74 : vector<1x1152x128xbf16> to vector<1152x128xbf16>
    %76 = vector.shape_cast %73 : vector<4x8x8x1152xbf16> to vector<256x1152xbf16>
    %cst_36 = arith.constant dense<0.000000e+00> : vector<256x128xf32>
    %77 = tpu.matmul %76, %75, %cst_36 {dimension_numbers = #tpu.dot_dimension_numbers<[1], [0], [0], [1], [0, 0, 1, 1], [], []>} : vector<256x1152xbf16>, vector<1152x128xbf16>, vector<256x128xf32> -> vector<256x128xf32>
    %78 = arith.addf %72, %77 : vector<256x128xf32>
    %79 = vector.extract_strided_slice %66 {offsets = [2, 0, 0, 0], sizes = [4, 8, 8, 1152], strides = [1, 1, 1, 1]} : vector<6x8x8x1152xbf16> to vector<4x8x8x1152xbf16>
    %c2 = arith.constant 2 : index
    %c0_37 = arith.constant 0 : index
    %c0_38 = arith.constant 0 : index
    %80 = vector.load %arg8[%c2, %c0_37, %c0_38] : memref<3x1152x128xbf16, #tpu.memory_space<vmem>>, vector<1x1152x128xbf16>
    %81 = vector.shape_cast %80 : vector<1x1152x128xbf16> to vector<1152x128xbf16>
    %82 = vector.shape_cast %79 : vector<4x8x8x1152xbf16> to vector<256x1152xbf16>
    %cst_39 = arith.constant dense<0.000000e+00> : vector<256x128xf32>
    %83 = tpu.matmul %82, %81, %cst_39 {dimension_numbers = #tpu.dot_dimension_numbers<[1], [0], [0], [1], [0, 0, 1, 1], [], []>} : vector<256x1152xbf16>, vector<1152x128xbf16>, vector<256x128xf32> -> vector<256x128xf32>
    %84 = arith.addf %78, %83 : vector<256x128xf32>
    %85 = vector.broadcast %67 : vector<1x128xf32> to vector<256x128xf32>
    %86 = arith.addf %84, %85 : vector<256x128xf32>
    %87 = vector.shape_cast %86 : vector<256x128xf32> to vector<4x8x8x128xf32>
    %c0_40 = arith.constant 0 : index
    %c0_41 = arith.constant 0 : index
    %c0_42 = arith.constant 0 : index
    %c0_43 = arith.constant 0 : index
    %c0_44 = arith.constant 0 : index
    %88 = vector.load %arg10[%c0_40, %c0_41, %c0_42, %c0_43, %c0_44] : memref<1x4x8x8x128xf32, #tpu.memory_space<vmem>>, vector<1x4x8x8x128xf32>
    %89 = vector.shape_cast %88 : vector<1x4x8x8x128xf32> to vector<4x8x8x128xf32>
    %90 = vector.shape_cast %87 : vector<4x8x8x128xf32> to vector<1x4x8x8x128xf32>
    tpu.vector_store %arg10[%c0_40, %c0_41, %c0_42, %c0_43, %c0_44], %90 {strides = array<i32>} : memref<1x4x8x8x128xf32, #tpu.memory_space<vmem>>, vector<1x4x8x8x128xf32>,
    return
  }
  func.func @transform_0(%arg0: i32, %arg1: i32) -> (i32, i32, i32, i32, i32) {
    %c4_i32 = arith.constant 4 : i32
    %0 = arith.muli %c4_i32, %arg1 : i32
    %c0_i32 = arith.constant 0 : i32
    %1 = arith.addi %0, %c0_i32 : i32
    %c0_i32_0 = arith.constant 0 : i32
    %c0_i32_1 = arith.constant 0 : i32
    %c0_i32_2 = arith.constant 0 : i32
    %c0_i32_3 = arith.constant 0 : i32
    return %arg0, %1, %c0_i32_0, %c0_i32_1, %c0_i32_2 : i32, i32, i32, i32, i32
  }
  func.func @transform_1(%arg0: i32, %arg1: i32) -> (i32, i32, i32, i32, i32) {
    %c4_i32 = arith.constant 4 : i32
    %0 = arith.muli %c4_i32, %arg1 : i32
    %c1_i32 = arith.constant 1 : i32
    %1 = arith.addi %0, %c1_i32 : i32
    %c0_i32 = arith.constant 0 : i32
    %c0_i32_0 = arith.constant 0 : i32
    %c0_i32_1 = arith.constant 0 : i32
    %c0_i32_2 = arith.constant 0 : i32
    return %arg0, %1, %c0_i32, %c0_i32_0, %c0_i32_1 : i32, i32, i32, i32, i32
  }
  func.func @transform_2(%arg0: i32, %arg1: i32) -> (i32, i32, i32, i32, i32) {
    %c4_i32 = arith.constant 4 : i32
    %0 = arith.muli %c4_i32, %arg1 : i32
    %c2_i32 = arith.constant 2 : i32
    %1 = arith.addi %0, %c2_i32 : i32
    %c0_i32 = arith.constant 0 : i32
    %c0_i32_0 = arith.constant 0 : i32
    %c0_i32_1 = arith.constant 0 : i32
    %c0_i32_2 = arith.constant 0 : i32
    return %arg0, %1, %c0_i32, %c0_i32_0, %c0_i32_1 : i32, i32, i32, i32, i32
  }
  func.func @transform_3(%arg0: i32, %arg1: i32) -> (i32, i32, i32, i32, i32) {
    %c4_i32 = arith.constant 4 : i32
    %0 = arith.muli %c4_i32, %arg1 : i32
    %c3_i32 = arith.constant 3 : i32
    %1 = arith.addi %0, %c3_i32 : i32
    %c0_i32 = arith.constant 0 : i32
    %c0_i32_0 = arith.constant 0 : i32
    %c0_i32_1 = arith.constant 0 : i32
    %c0_i32_2 = arith.constant 0 : i32
    return %arg0, %1, %c0_i32, %c0_i32_0, %c0_i32_1 : i32, i32, i32, i32, i32
  }
  func.func @transform_4(%arg0: i32, %arg1: i32) -> (i32, i32, i32, i32, i32) {
    %c4_i32 = arith.constant 4 : i32
    %0 = arith.muli %c4_i32, %arg1 : i32
    %c4_i32_0 = arith.constant 4 : i32
    %1 = arith.addi %0, %c4_i32_0 : i32
    %c0_i32 = arith.constant 0 : i32
    %c0_i32_1 = arith.constant 0 : i32
    %c0_i32_2 = arith.constant 0 : i32
    %c0_i32_3 = arith.constant 0 : i32
    return %arg0, %1, %c0_i32, %c0_i32_1, %c0_i32_2 : i32, i32, i32, i32, i32
  }
  func.func @transform_5(%arg0: i32, %arg1: i32) -> (i32, i32, i32, i32, i32) {
    %c4_i32 = arith.constant 4 : i32
    %0 = arith.muli %c4_i32, %arg1 : i32
    %c5_i32 = arith.constant 5 : i32
    %1 = arith.addi %0, %c5_i32 : i32
    %c0_i32 = arith.constant 0 : i32
    %c0_i32_0 = arith.constant 0 : i32
    %c0_i32_1 = arith.constant 0 : i32
    %c0_i32_2 = arith.constant 0 : i32
    return %arg0, %1, %c0_i32, %c0_i32_0, %c0_i32_1 : i32, i32, i32, i32, i32
  }
  func.func @transform_6(%arg0: i32, %arg1: i32) -> (i32, i32, i32) {
    %c0_i32 = arith.constant 0 : i32
    %c0_i32_0 = arith.constant 0 : i32
    %c0_i32_1 = arith.constant 0 : i32
    %c0_i32_2 = arith.constant 0 : i32
    return %c0_i32, %c0_i32_0, %c0_i32_1 : i32, i32, i32
  }
  func.func @transform_7(%arg0: i32, %arg1: i32) -> (i32, i32) {
    %c0_i32 = arith.constant 0 : i32
    %c0_i32_0 = arith.constant 0 : i32
    %c0_i32_1 = arith.constant 0 : i32
    return %c0_i32, %c0_i32_0 : i32, i32
  }
  func.func @transform_8(%arg0: i32, %arg1: i32) -> (i32, i32, i32, i32, i32) {
    %c0_i32 = arith.constant 0 : i32
    %c0_i32_0 = arith.constant 0 : i32
    %c0_i32_1 = arith.constant 0 : i32
    %c0_i32_2 = arith.constant 0 : i32
    return %arg0, %arg1, %c0_i32, %c0_i32_0, %c0_i32_1 : i32, i32, i32, i32, i32
  }
}

</mosaic_0001>

<llo_original>
// kernel: conv3d_one_input.3
$region0: #{conv3d_one_input.3}
  #allocation0 [shape = 'u32[]', space=smem, size = 0x4, offset = 0x4, fixed_abs, tag = 'smem constant byte address 0x4 - core index']
  #allocation1 [shape = 'u32[72,128]{1,0:T(1,128)}', space=vmem, size = 0x9000, scoped, tag = 'internal scratch']
  %s0 = inlined_call_operand.vmem [shape: bf16[2,10,10,10,128], index: 0, kind: input, shape index: {}, may-alias: {0,1,2,3,4,5}]
  %s1 = inlined_call_operand.vmem [shape: bf16[2,10,10,10,128], index: 1, kind: input, shape index: {}, may-alias: {0,1,2,3,4,5}]
  %s2 = inlined_call_operand.vmem [shape: bf16[2,10,10,10,128], index: 2, kind: input, shape index: {}, may-alias: {0,1,2,3,4,5}]
  %s3 = inlined_call_operand.vmem [shape: bf16[2,10,10,10,128], index: 3, kind: input, shape index: {}, may-alias: {0,1,2,3,4,5}]
  %s4 = inlined_call_operand.vmem [shape: bf16[2,10,10,10,128], index: 4, kind: input, shape index: {}, may-alias: {0,1,2,3,4,5}]
  %s5 = inlined_call_operand.vmem [shape: bf16[2,10,10,10,128], index: 5, kind: input, shape index: {}, may-alias: {0,1,2,3,4,5}]
  %s6 = inlined_call_operand.vmem [shape: bf16[3,1152,128], index: 6, kind: input, shape index: {}]
  %s7 = inlined_call_operand.vmem [shape: f32[1,128], index: 7, kind: input, shape index: {}]
  %s8 = inlined_call_operand.hbm [shape: f32[2,8,8,8,128], index: 8, kind: output, shape index: {}]
  %s9 = sld [smem:[#allocation0]]
  $region65: #{conv3d_one_input.3} parent=0
    _
  %s11 = ssub.s32 1, %s9
  %s12 = scalar_select 0, %s11, %s9
  $region1: #{conv3d_one_input.3} parent=0
    #allocation2 [shape = 'u8[262144]{0}', space=vmem, size = 0x40000, scoped, tag = 'output window, operand 0']
    #allocation3 [shape = 's32[2]{0}', space=sflag, size = 0x8, scoped, tag = 'scoped memory for conv3d_one_input.3']
    %13 = vsyncpa [#allocation3], 0
    %s14 = scalar_lea.sflag [#allocation3], 1
    %15 = vsyncpa %s14, 0
    loop: start=0, step=1, limit=6
    $region2: #{conv3d_one_input.3} parent=1 // loop_pre_header
      _
    $region3: #{conv3d_one_input.3} parent=1 // loop_header
      %s17 = sphi 0, %s21
      %p18 = scmp.ge.s32.totalorder %s17, 6
      %s24 = sphi 0, %s36
      %s25 = sphi 0, %s32
      %s26 = sphi 0, %s24
      %s27 = sphi 0, %s25
      %s28 = sphi 0, %s26
      %s29 = sphi 0, %s27
      %s43 = sphi 0, %s45
      %s46 = sphi 0, %s43
      %s47 = sphi 0, %s46
      %s63 = sphi 0, %s47
      %s75 = sphi 0, %s77
      %s78 = sphi 0, %s75
      %s79 = sphi 0, %s78
      %s95 = sphi 0, %s79
      %s107 = sphi 0, %s109
      %s110 = sphi 0, %s107
      %s111 = sphi 0, %s110
      %s127 = sphi 0, %s111
      %s139 = sphi 0, %s141
      %s142 = sphi 0, %s139
      %s143 = sphi 0, %s142
      %s159 = sphi 0, %s143
      %s171 = sphi 0, %s173
      %s174 = sphi 0, %s171
      %s175 = sphi 0, %s174
      %s191 = sphi 0, %s175
      %s203 = sphi 0, %s205
      %s206 = sphi 0, %s203
      %s207 = sphi 0, %s206
      %s223 = sphi 0, %s207
      %s227 = sphi 0, %s227
      %s229 = sphi 0, %s227
      %s230 = sphi 0, %s229
      %s244 = sphi 0, %s230
      %s248 = sphi 0, %s248
      %s250 = sphi 0, %s248
      %s251 = sphi 0, %s250
      %s265 = sphi 0, %s251
      %s273 = sphi 0, %s275
      %s276 = sphi 0, %s273
      %s277 = sphi 0, %s276
      %s293 = sphi 0, %s277
    $region4: #{conv3d_one_input.3} parent=1 // loop_header_branch
      %20 = sbr.rel (%p18) target = $region8
    $region5: #{conv3d_one_input.3} parent=1 // loop_body
      %s22 = ssub.s32 %s17, 1
      %s23 = ssub.s32 %s17, 2
      %s30 = sadd.s32 1, %s25
      %p31 = scmp.ge.s32.totalorder %s30, 2
      %s32 = scalar_select %p31, 0, %s30
      %s33 = sadd.s32 1, %s24
      %s34 = scalar_select %p31, %s33, %s24
      %p35 = scmp.ge.s32.totalorder %s34, 2
      %s36 = scalar_select %p35, 0, %s34
      %s37 = smul.u32 %s25, 4
      %s38 = smul.u32 %s32, 4
      %s39 = ssub.s32 %s24, %s36
      %s40 = ssub.s32 %s37, %s38
      %s41 = sor.u32 %s39, %s40
      %p42 = scmp.eq.s32.totalorder %s41, 0
      %s44 = sadd.s32 %s43, 1
      %s45 = scalar_select %p42, %s43, %s44
      %p48 = pneg %p42
      %p49 = scmp.eq.s32.totalorder %s17, 3
      %p50 = por %p48, %p49
      %p51 = scmp.ne.s32.totalorder %s43, %s46
      %p52 = scmp.eq.s32.totalorder %s17, 0
      %p53 = por %p51, %p52
      %p54 = scmp.ne.s32.totalorder %s43, %s46
      %p55 = scmp.eq.s32.totalorder %s22, 3
      %p56 = por %p54, %p55
      %p57 = scmp.ne.s32.totalorder %s46, %s47
      %p58 = scmp.eq.s32.totalorder %s22, 0
      %p59 = por %p57, %p58
      %p60 = scmp.ne.s32.totalorder %s46, %s47
      %p61 = scmp.eq.s32.totalorder %s23, 3
      %p62 = por %p60, %p61
      %p64 = scmp.ne.s32.totalorder %s47, %s63
      %p65 = scmp.eq.s32.totalorder %s23, 0
      %p66 = por %p64, %p65
      %s67 = smul.u32 %s25, 4
      %s68 = sadd.s32 %s67, 1
      %s69 = smul.u32 %s32, 4
      %s70 = sadd.s32 %s69, 1
      %s71 = ssub.s32 %s24, %s36
      %s72 = ssub.s32 %s68, %s70
      %s73 = sor.u32 %s71, %s72
      %p74 = scmp.eq.s32.totalorder %s73, 0
      %s76 = sadd.s32 %s75, 1
      %s77 = scalar_select %p74, %s75, %s76
      %p80 = pneg %p74
      %p81 = scmp.eq.s32.totalorder %s17, 3
      %p82 = por %p80, %p81
      %p83 = scmp.ne.s32.totalorder %s75, %s78
      %p84 = scmp.eq.s32.totalorder %s17, 0
      %p85 = por %p83, %p84
      %p86 = scmp.ne.s32.totalorder %s75, %s78
      %p87 = scmp.eq.s32.totalorder %s22, 3
      %p88 = por %p86, %p87
      %p89 = scmp.ne.s32.totalorder %s78, %s79
      %p90 = scmp.eq.s32.totalorder %s22, 0
      %p91 = por %p89, %p90
      %p92 = scmp.ne.s32.totalorder %s78, %s79
      %p93 = scmp.eq.s32.totalorder %s23, 3
      %p94 = por %p92, %p93
      %p96 = scmp.ne.s32.totalorder %s79, %s95
      %p97 = scmp.eq.s32.totalorder %s23, 0
      %p98 = por %p96, %p97
      %s99 = smul.u32 %s25, 4
      %s100 = sadd.s32 %s99, 2
      %s101 = smul.u32 %s32, 4
      %s102 = sadd.s32 %s101, 2
      %s103 = ssub.s32 %s24, %s36
      %s104 = ssub.s32 %s100, %s102
      %s105 = sor.u32 %s103, %s104
      %p106 = scmp.eq.s32.totalorder %s105, 0
      %s108 = sadd.s32 %s107, 1
      %s109 = scalar_select %p106, %s107, %s108
      %p112 = pneg %p106
      %p113 = scmp.eq.s32.totalorder %s17, 3
      %p114 = por %p112, %p113
      %p115 = scmp.ne.s32.totalorder %s107, %s110
      %p116 = scmp.eq.s32.totalorder %s17, 0
      %p117 = por %p115, %p116
      %p118 = scmp.ne.s32.totalorder %s107, %s110
      %p119 = scmp.eq.s32.totalorder %s22, 3
      %p120 = por %p118, %p119
      %p121 = scmp.ne.s32.totalorder %s110, %s111
      %p122 = scmp.eq.s32.totalorder %s22, 0
      %p123 = por %p121, %p122
      %p124 = scmp.ne.s32.totalorder %s110, %s111
      %p125 = scmp.eq.s32.totalorder %s23, 3
      %p126 = por %p124, %p125
      %p128 = scmp.ne.s32.totalorder %s111, %s127
      %p129 = scmp.eq.s32.totalorder %s23, 0
      %p130 = por %p128, %p129
      %s131 = smul.u32 %s25, 4
      %s132 = sadd.s32 %s131, 3
      %s133 = smul.u32 %s32, 4
      %s134 = sadd.s32 %s133, 3
      %s135 = ssub.s32 %s24, %s36
      %s136 = ssub.s32 %s132, %s134
      %s137 = sor.u32 %s135, %s136
      %p138 = scmp.eq.s32.totalorder %s137, 0
      %s140 = sadd.s32 %s139, 1
      %s141 = scalar_select %p138, %s139, %s140
      %p144 = pneg %p138
      %p145 = scmp.eq.s32.totalorder %s17, 3
      %p146 = por %p144, %p145
      %p147 = scmp.ne.s32.totalorder %s139, %s142
      %p148 = scmp.eq.s32.totalorder %s17, 0
      %p149 = por %p147, %p148
      %p150 = scmp.ne.s32.totalorder %s139, %s142
      %p151 = scmp.eq.s32.totalorder %s22, 3
      %p152 = por %p150, %p151
      %p153 = scmp.ne.s32.totalorder %s142, %s143
      %p154 = scmp.eq.s32.totalorder %s22, 0
      %p155 = por %p153, %p154
      %p156 = scmp.ne.s32.totalorder %s142, %s143
      %p157 = scmp.eq.s32.totalorder %s23, 3
      %p158 = por %p156, %p157
      %p160 = scmp.ne.s32.totalorder %s143, %s159
      %p161 = scmp.eq.s32.totalorder %s23, 0
      %p162 = por %p160, %p161
      %s163 = smul.u32 %s25, 4
      %s164 = sadd.s32 %s163, 4
      %s165 = smul.u32 %s32, 4
      %s166 = sadd.s32 %s165, 4
      %s167 = ssub.s32 %s24, %s36
      %s168 = ssub.s32 %s164, %s166
      %s169 = sor.u32 %s167, %s168
      %p170 = scmp.eq.s32.totalorder %s169, 0
      %s172 = sadd.s32 %s171, 1
      %s173 = scalar_select %p170, %s171, %s172
      %p176 = pneg %p170
      %p177 = scmp.eq.s32.totalorder %s17, 3
      %p178 = por %p176, %p177
      %p179 = scmp.ne.s32.totalorder %s171, %s174
      %p180 = scmp.eq.s32.totalorder %s17, 0
      %p181 = por %p179, %p180
      %p182 = scmp.ne.s32.totalorder %s171, %s174
      %p183 = scmp.eq.s32.totalorder %s22, 3
      %p184 = por %p182, %p183
      %p185 = scmp.ne.s32.totalorder %s174, %s175
      %p186 = scmp.eq.s32.totalorder %s22, 0
      %p187 = por %p185, %p186
      %p188 = scmp.ne.s32.totalorder %s174, %s175
      %p189 = scmp.eq.s32.totalorder %s23, 3
      %p190 = por %p188, %p189
      %p192 = scmp.ne.s32.totalorder %s175, %s191
      %p193 = scmp.eq.s32.totalorder %s23, 0
      %p194 = por %p192, %p193
      %s195 = smul.u32 %s25, 4
      %s196 = sadd.s32 %s195, 5
      %s197 = smul.u32 %s32, 4
      %s198 = sadd.s32 %s197, 5
      %s199 = ssub.s32 %s24, %s36
      %s200 = ssub.s32 %s196, %s198
      %s201 = sor.u32 %s199, %s200
      %p202 = scmp.eq.s32.totalorder %s201, 0
      %s204 = sadd.s32 %s203, 1
      %s205 = scalar_select %p202, %s203, %s204
      %p208 = pneg %p202
      %p209 = scmp.eq.s32.totalorder %s17, 3
      %p210 = por %p208, %p209
      %p211 = scmp.ne.s32.totalorder %s203, %s206
      %p212 = scmp.eq.s32.totalorder %s17, 0
      %p213 = por %p211, %p212
      %p214 = scmp.ne.s32.totalorder %s203, %s206
      %p215 = scmp.eq.s32.totalorder %s22, 3
      %p216 = por %p214, %p215
      %p217 = scmp.ne.s32.totalorder %s206, %s207
      %p218 = scmp.eq.s32.totalorder %s22, 0
      %p219 = por %p217, %p218
      %p220 = scmp.ne.s32.totalorder %s206, %s207
      %p221 = scmp.eq.s32.totalorder %s23, 3
      %p222 = por %p220, %p221
      %p224 = scmp.ne.s32.totalorder %s207, %s223
      %p225 = scmp.eq.s32.totalorder %s23, 0
      %p226 = por %p224, %p225
      %s228 = sadd.s32 %s227, 1
      %p231 = scmp.eq.s32.totalorder %s17, 3
      %p232 = scmp.ne.s32.totalorder %s227, %s229
      %p233 = scmp.eq.s32.totalorder %s17, 0
      %p234 = por %p232, %p233
      %p235 = scmp.ne.s32.totalorder %s227, %s229
      %p236 = scmp.eq.s32.totalorder %s22, 3
      %p237 = por %p235, %p236
      %p238 = scmp.ne.s32.totalorder %s229, %s230
      %p239 = scmp.eq.s32.totalorder %s22, 0
      %p240 = por %p238, %p239
      %p241 = scmp.ne.s32.totalorder %s229, %s230
      %p242 = scmp.eq.s32.totalorder %s23, 3
      %p243 = por %p241, %p242
      %p245 = scmp.ne.s32.totalorder %s230, %s244
      %p246 = scmp.eq.s32.totalorder %s23, 0
      %p247 = por %p245, %p246
      %s249 = sadd.s32 %s248, 1
      %p252 = scmp.eq.s32.totalorder %s17, 3
      %p253 = scmp.ne.s32.totalorder %s248, %s250
      %p254 = scmp.eq.s32.totalorder %s17, 0
      %p255 = por %p253, %p254
      %p256 = scmp.ne.s32.totalorder %s248, %s250
      %p257 = scmp.eq.s32.totalorder %s22, 3
      %p258 = por %p256, %p257
      %p259 = scmp.ne.s32.totalorder %s250, %s251
      %p260 = scmp.eq.s32.totalorder %s22, 0
      %p261 = por %p259, %p260
      %p262 = scmp.ne.s32.totalorder %s250, %s251
      %p263 = scmp.eq.s32.totalorder %s23, 3
      %p264 = por %p262, %p263
      %p266 = scmp.ne.s32.totalorder %s251, %s265
      %p267 = scmp.eq.s32.totalorder %s23, 0
      %p268 = por %p266, %p267
      %s269 = ssub.s32 %s24, %s36
      %s270 = ssub.s32 %s25, %s32
      %s271 = sor.u32 %s269, %s270
      %p272 = scmp.eq.s32.totalorder %s271, 0
      %s274 = sadd.s32 %s273, 1
      %s275 = scalar_select %p272, %s273, %s274
      %p278 = pneg %p272
      %p279 = scmp.eq.s32.totalorder %s17, 3
      %p280 = por %p278, %p279
      %p281 = scmp.ne.s32.totalorder %s273, %s276
      %p282 = scmp.eq.s32.totalorder %s17, 0
      %p283 = por %p281, %p282
      %p284 = scmp.ne.s32.totalorder %s273, %s276
      %p285 = scmp.eq.s32.totalorder %s22, 3
      %p286 = por %p284, %p285
      %p287 = scmp.ne.s32.totalorder %s276, %s277
      %p288 = scmp.eq.s32.totalorder %s22, 0
      %p289 = por %p287, %p288
      %p290 = scmp.ne.s32.totalorder %s276, %s277
      %p291 = scmp.eq.s32.totalorder %s23, 3
      %p292 = por %p290, %p291
      %p294 = scmp.ne.s32.totalorder %s277, %s293
      %p295 = scmp.eq.s32.totalorder %s23, 0
      %p296 = por %p294, %p295
      %p297 = scmp.le.s32.totalorder 1, %s17
      %p298 = scmp.lt.s32.totalorder %s17, 5
      %p299 = pnand %p297, %p298
      %p300 = pneg %p299
      // Predicated region
      $region9: #{conv3d_one_input.3} parent=5 // pred_check
        _
      $region10: #{conv3d_one_input.3} parent=5 // pred_check_branch
        %302 = sbr.rel (%p299) target = $region12
      $region11: #{conv3d_one_input.3} parent=5 // pred_region
        %s303 = ssub.s32 %s17, 1
        // Predicated region
        $region13: #{conv3d_one_input.3} parent=11 // pred_check
          %p304 = pneg %p240
        $region14: #{conv3d_one_input.3} parent=11 // pred_check_branch
          %306 = sbr.rel (%p304) target = $region16
        $region15: #{conv3d_one_input.3} parent=11 // pred_region
          _
        $region16: #{conv3d_one_input.3} parent=11 // pred_fallthru
          _
        // Predicated region
        $region17: #{conv3d_one_input.3} parent=11 // pred_check
          %p307 = pneg %p261
        $region18: #{conv3d_one_input.3} parent=11 // pred_check_branch
          %309 = sbr.rel (%p307) target = $region20
        $region19: #{conv3d_one_input.3} parent=11 // pred_region
          _
        $region20: #{conv3d_one_input.3} parent=11 // pred_fallthru
          _
      $region12: #{conv3d_one_input.3} parent=5 // pred_fallthru
        _
      %p310 = scmp.lt.s32.totalorder %s17, 4
      // Predicated region
      $region21: #{conv3d_one_input.3} parent=5 // pred_check
        %p311 = pneg %p310
      $region22: #{conv3d_one_input.3} parent=5 // pred_check_branch
        %313 = sbr.rel (%p311) target = $region24
      $region23: #{conv3d_one_input.3} parent=5 // pred_region
        // Predicated region
        $region25: #{conv3d_one_input.3} parent=23 // pred_check
          %p314 = pneg %p53
        $region26: #{conv3d_one_input.3} parent=23 // pred_check_branch
          %316 = sbr.rel (%p314) target = $region28
        $region27: #{conv3d_one_input.3} parent=23 // pred_region
          %s317 = smul.u32 %s25, 4
          %p318 = scmp.lt.s32.totalorder %s24, 1
          %s319 = scalar_select %p318, %s24, 1
          %p320 = scmp.lt.s32.totalorder %s317, 9
          %s321 = scalar_select %p320, %s317, 9
          %s322 = smul.addr %s321, 20
          %s323 = smul.addr %s319, 200
          %s324 = sadd.s32 %s322, %s323
          %s325 = smul.addr %s324, 4
          %s326 = scalar_lea.vmem %s0, %s325
          %s327 = smul.u32 %s25, 4
        $region28: #{conv3d_one_input.3} parent=23 // pred_fallthru
          _
        // Predicated region
        $region29: #{conv3d_one_input.3} parent=23 // pred_check
          %p328 = pneg %p85
        $region30: #{conv3d_one_input.3} parent=23 // pred_check_branch
          %330 = sbr.rel (%p328) target = $region32
        $region31: #{conv3d_one_input.3} parent=23 // pred_region
          %s331 = smul.u32 %s25, 4
          %s332 = sadd.s32 %s331, 1
          %p333 = scmp.lt.s32.totalorder %s24, 1
          %s334 = scalar_select %p333, %s24, 1
          %p335 = scmp.lt.s32.totalorder %s332, 9
          %s336 = scalar_select %p335, %s332, 9
          %s337 = smul.addr %s336, 20
          %s338 = smul.addr %s334, 200
          %s339 = sadd.s32 %s337, %s338
          %s340 = smul.addr %s339, 4
          %s341 = scalar_lea.vmem %s1, %s340
          %s342 = smul.u32 %s25, 4
          %s343 = sadd.s32 %s342, 1
        $region32: #{conv3d_one_input.3} parent=23 // pred_fallthru
          _
        // Predicated region
        $region33: #{conv3d_one_input.3} parent=23 // pred_check
          %p344 = pneg %p117
        $region34: #{conv3d_one_input.3} parent=23 // pred_check_branch
          %346 = sbr.rel (%p344) target = $region36
        $region35: #{conv3d_one_input.3} parent=23 // pred_region
          %s347 = smul.u32 %s25, 4
          %s348 = sadd.s32 %s347, 2
          %p349 = scmp.lt.s32.totalorder %s24, 1
          %s350 = scalar_select %p349, %s24, 1
          %p351 = scmp.lt.s32.totalorder %s348, 9
          %s352 = scalar_select %p351, %s348, 9
          %s353 = smul.addr %s352, 20
          %s354 = smul.addr %s350, 200
          %s355 = sadd.s32 %s353, %s354
          %s356 = smul.addr %s355, 4
          %s357 = scalar_lea.vmem %s2, %s356
          %s358 = smul.u32 %s25, 4
          %s359 = sadd.s32 %s358, 2
        $region36: #{conv3d_one_input.3} parent=23 // pred_fallthru
          _
        // Predicated region
        $region37: #{conv3d_one_input.3} parent=23 // pred_check
          %p360 = pneg %p149
        $region38: #{conv3d_one_input.3} parent=23 // pred_check_branch
          %362 = sbr.rel (%p360) target = $region40
        $region39: #{conv3d_one_input.3} parent=23 // pred_region
          %s363 = smul.u32 %s25, 4
          %s364 = sadd.s32 %s363, 3
          %p365 = scmp.lt.s32.totalorder %s24, 1
          %s366 = scalar_select %p365, %s24, 1
          %p367 = scmp.lt.s32.totalorder %s364, 9
          %s368 = scalar_select %p367, %s364, 9
          %s369 = smul.addr %s368, 20
          %s370 = smul.addr %s366, 200
          %s371 = sadd.s32 %s369, %s370
          %s372 = smul.addr %s371, 4
          %s373 = scalar_lea.vmem %s3, %s372
          %s374 = smul.u32 %s25, 4
          %s375 = sadd.s32 %s374, 3
        $region40: #{conv3d_one_input.3} parent=23 // pred_fallthru
          _
        // Predicated region
        $region41: #{conv3d_one_input.3} parent=23 // pred_check
          %p376 = pneg %p181
        $region42: #{conv3d_one_input.3} parent=23 // pred_check_branch
          %378 = sbr.rel (%p376) target = $region44
        $region43: #{conv3d_one_input.3} parent=23 // pred_region
          %s379 = smul.u32 %s25, 4
          %s380 = sadd.s32 %s379, 4
          %p381 = scmp.lt.s32.totalorder %s24, 1
          %s382 = scalar_select %p381, %s24, 1
          %p383 = scmp.lt.s32.totalorder %s380, 9
          %s384 = scalar_select %p383, %s380, 9
          %s385 = smul.addr %s384, 20
          %s386 = smul.addr %s382, 200
          %s387 = sadd.s32 %s385, %s386
          %s388 = smul.addr %s387, 4
          %s389 = scalar_lea.vmem %s4, %s388
          %s390 = smul.u32 %s25, 4
          %s391 = sadd.s32 %s390, 4
        $region44: #{conv3d_one_input.3} parent=23 // pred_fallthru
          _
        // Predicated region
        $region45: #{conv3d_one_input.3} parent=23 // pred_check
          %p392 = pneg %p213
        $region46: #{conv3d_one_input.3} parent=23 // pred_check_branch
          %394 = sbr.rel (%p392) target = $region48
        $region47: #{conv3d_one_input.3} parent=23 // pred_region
          %s395 = smul.u32 %s25, 4
          %s396 = sadd.s32 %s395, 5
          %p397 = scmp.lt.s32.totalorder %s24, 1
          %s398 = scalar_select %p397, %s24, 1
          %p399 = scmp.lt.s32.totalorder %s396, 9
          %s400 = scalar_select %p399, %s396, 9
          %s401 = smul.addr %s400, 20
          %s402 = smul.addr %s398, 200
          %s403 = sadd.s32 %s401, %s402
          %s404 = smul.addr %s403, 4
          %s405 = scalar_lea.vmem %s5, %s404
          %s406 = smul.u32 %s25, 4
          %s407 = sadd.s32 %s406, 5
        $region48: #{conv3d_one_input.3} parent=23 // pred_fallthru
          _
      $region24: #{conv3d_one_input.3} parent=5 // pred_fallthru
        _
      %p408 = scmp.le.s32.totalorder 1, %s17
      %p409 = scmp.lt.s32.totalorder %s17, 5
      %p410 = pnand %p408, %p409
      %p411 = pneg %p410
      // Predicated region
      $region49: #{conv3d_one_input.3} parent=5 // pred_check
        _
      $region50: #{conv3d_one_input.3} parent=5 // pred_check_branch
        %413 = sbr.rel (%p410) target = $region52
      $region51: #{conv3d_one_input.3} parent=5 // pred_region
        %s414 = ssub.s32 %s17, 1
        %s415 = smul.u32 %s27, 4
        %p416 = scmp.lt.s32.totalorder %s26, 1
        %s417 = scalar_select %p416, %s26, 1
        %p418 = scmp.lt.s32.totalorder %s415, 9
        %s419 = scalar_select %p418, %s415, 9
        %s420 = smul.addr %s419, 20
        %s421 = smul.addr %s417, 200
        %s422 = sadd.s32 %s420, %s421
        %s423 = smul.addr %s422, 4
        %s424 = scalar_lea.vmem %s0, %s423
        %p425 = pneg %p59
        %p426 = pneg %p56
        %s427 = smul.u32 %s27, 4
        %s428 = sadd.s32 %s427, 1
        %p429 = scmp.lt.s32.totalorder %s26, 1
        %s430 = scalar_select %p429, %s26, 1
        %p431 = scmp.lt.s32.totalorder %s428, 9
        %s432 = scalar_select %p431, %s428, 9
        %s433 = smul.addr %s432, 20
        %s434 = smul.addr %s430, 200
        %s435 = sadd.s32 %s433, %s434
        %s436 = smul.addr %s435, 4
        %s437 = scalar_lea.vmem %s1, %s436
        %p438 = pneg %p91
        %p439 = pneg %p88
        %s440 = smul.u32 %s27, 4
        %s441 = sadd.s32 %s440, 2
        %p442 = scmp.lt.s32.totalorder %s26, 1
        %s443 = scalar_select %p442, %s26, 1
        %p444 = scmp.lt.s32.totalorder %s441, 9
        %s445 = scalar_select %p444, %s441, 9
        %s446 = smul.addr %s445, 20
        %s447 = smul.addr %s443, 200
        %s448 = sadd.s32 %s446, %s447
        %s449 = smul.addr %s448, 4
        %s450 = scalar_lea.vmem %s2, %s449
        %p451 = pneg %p123
        %p452 = pneg %p120
        %s453 = smul.u32 %s27, 4
        %s454 = sadd.s32 %s453, 3
        %p455 = scmp.lt.s32.totalorder %s26, 1
        %s456 = scalar_select %p455, %s26, 1
        %p457 = scmp.lt.s32.totalorder %s454, 9
        %s458 = scalar_select %p457, %s454, 9
        %s459 = smul.addr %s458, 20
        %s460 = smul.addr %s456, 200
        %s461 = sadd.s32 %s459, %s460
        %s462 = smul.addr %s461, 4
        %s463 = scalar_lea.vmem %s3, %s462
        %p464 = pneg %p155
        %p465 = pneg %p152
        %s466 = smul.u32 %s27, 4
        %s467 = sadd.s32 %s466, 4
        %p468 = scmp.lt.s32.totalorder %s26, 1
        %s469 = scalar_select %p468, %s26, 1
        %p470 = scmp.lt.s32.totalorder %s467, 9
        %s471 = scalar_select %p470, %s467, 9
        %s472 = smul.addr %s471, 20
        %s473 = smul.addr %s469, 200
        %s474 = sadd.s32 %s472, %s473
        %s475 = smul.addr %s474, 4
        %s476 = scalar_lea.vmem %s4, %s475
        %p477 = pneg %p187
        %p478 = pneg %p184
        %s479 = smul.u32 %s27, 4
        %s480 = sadd.s32 %s479, 5
        %p481 = scmp.lt.s32.totalorder %s26, 1
        %s482 = scalar_select %p481, %s26, 1
        %p483 = scmp.lt.s32.totalorder %s480, 9
        %s484 = scalar_select %p483, %s480, 9
        %s485 = smul.addr %s484, 20
        %s486 = smul.addr %s482, 200
        %s487 = sadd.s32 %s485, %s486
        %s488 = smul.addr %s487, 4
        %s489 = scalar_lea.vmem %s5, %s488
        %p490 = pneg %p219
        %p491 = pneg %p216
        %p492 = pneg %p240
        %p493 = pneg %p237
        %p494 = pneg %p261
        %p495 = pneg %p258
        %p496 = pneg %p289
        %p497 = pneg %p286
        %s498 = sand.u32 %s276, 1
        %s499 = scalar_lea.sflag [#allocation3], %s498
        %s500 = sand.u32 %s276, 1
        %s501 = smul.addr %s500, 256
        %s502 = scalar_lea.vmem [#allocation2], %s501
        %s503 = smul.u32 %s27, 4
        %p504 = scmp.lt.s32.totalorder %s26, 1
        %s505 = scalar_select %p504, %s26, 1
        %p506 = scmp.lt.s32.totalorder %s503, 9
        %s507 = scalar_select %p506, %s503, 9
        %s508 = smul.addr %s507, 20
        %s509 = smul.addr %s505, 200
        %s510 = sadd.s32 %s508, %s509
        %s511 = smul.addr %s510, 4
        %s512 = scalar_lea.vmem %s0, %s511
        %s513 = smul.u32 %s27, 4
        %s514 = smul.u32 %s27, 4
        %s515 = sadd.s32 %s514, 1
        %p516 = scmp.lt.s32.totalorder %s26, 1
        %s517 = scalar_select %p516, %s26, 1
        %p518 = scmp.lt.s32.totalorder %s515, 9
        %s519 = scalar_select %p518, %s515, 9
        %s520 = smul.addr %s519, 20
        %s521 = smul.addr %s517, 200
        %s522 = sadd.s32 %s520, %s521
        %s523 = smul.addr %s522, 4
        %s524 = scalar_lea.vmem %s1, %s523
        %s525 = smul.u32 %s27, 4
        %s526 = sadd.s32 %s525, 1
        %s527 = smul.u32 %s27, 4
        %s528 = sadd.s32 %s527, 2
        %p529 = scmp.lt.s32.totalorder %s26, 1
        %s530 = scalar_select %p529, %s26, 1
        %p531 = scmp.lt.s32.totalorder %s528, 9
        %s532 = scalar_select %p531, %s528, 9
        %s533 = smul.addr %s532, 20
        %s534 = smul.addr %s530, 200
        %s535 = sadd.s32 %s533, %s534
        %s536 = smul.addr %s535, 4
        %s537 = scalar_lea.vmem %s2, %s536
        %s538 = smul.u32 %s27, 4
        %s539 = sadd.s32 %s538, 2
        %s540 = smul.u32 %s27, 4
        %s541 = sadd.s32 %s540, 3
        %p542 = scmp.lt.s32.totalorder %s26, 1
        %s543 = scalar_select %p542, %s26, 1
        %p544 = scmp.lt.s32.totalorder %s541, 9
        %s545 = scalar_select %p544, %s541, 9
        %s546 = smul.addr %s545, 20
        %s547 = smul.addr %s543, 200
        %s548 = sadd.s32 %s546, %s547
        %s549 = smul.addr %s548, 4
        %s550 = scalar_lea.vmem %s3, %s549
        %s551 = smul.u32 %s27, 4
        %s552 = sadd.s32 %s551, 3
        %s553 = smul.u32 %s27, 4
        %s554 = sadd.s32 %s553, 4
        %p555 = scmp.lt.s32.totalorder %s26, 1
        %s556 = scalar_select %p555, %s26, 1
        %p557 = scmp.lt.s32.totalorder %s554, 9
        %s558 = scalar_select %p557, %s554, 9
        %s559 = smul.addr %s558, 20
        %s560 = smul.addr %s556, 200
        %s561 = sadd.s32 %s559, %s560
        %s562 = smul.addr %s561, 4
        %s563 = scalar_lea.vmem %s4, %s562
        %s564 = smul.u32 %s27, 4
        %s565 = sadd.s32 %s564, 4
        %s566 = smul.u32 %s27, 4
        %s567 = sadd.s32 %s566, 5
        %p568 = scmp.lt.s32.totalorder %s26, 1
        %s569 = scalar_select %p568, %s26, 1
        %p570 = scmp.lt.s32.totalorder %s567, 9
        %s571 = scalar_select %p570, %s567, 9
        %s572 = smul.addr %s571, 20
        %s573 = smul.addr %s569, 200
        %s574 = sadd.s32 %s572, %s573
        %s575 = smul.addr %s574, 4
        %s576 = scalar_lea.vmem %s5, %s575
        %s577 = smul.u32 %s27, 4
        %s578 = sadd.s32 %s577, 5
        %s579 = smul.u32 4, %s27
        %v580 = vld [vmem:[%s512] sm:$0xf]
        %v581 = vld [vmem:[%s512 + $0x4] sm:$0x1]
        %v582 = vld [vmem:[%s512 + $0x8] sm:$0xf]
        %v583 = vld [vmem:[%s512 + $0xc] sm:$0x1]
        %v584 = vld [vmem:[%s512 + $0x10] sm:$0xf]
        %v585 = vld [vmem:[%s512 + $0x14] sm:$0x1]
        %v586 = vld [vmem:[%s512 + $0x18] sm:$0xf]
        %v587 = vld [vmem:[%s512 + $0x1c] sm:$0x1]
        %v588 = vld [vmem:[%s512 + $0x20] sm:$0xf]
        %v589 = vld [vmem:[%s512 + $0x24] sm:$0x1]
        %v590 = vld [vmem:[%s512 + $0x28] sm:$0xf]
        %v591 = vld [vmem:[%s512 + $0x2c] sm:$0x1]
        %v592 = vld [vmem:[%s512 + $0x30] sm:$0xf]
        %v593 = vld [vmem:[%s512 + $0x34] sm:$0x1]
        %v594 = vld [vmem:[%s512 + $0x38] sm:$0xf]
        %v595 = vld [vmem:[%s512 + $0x3c] sm:$0x1]
        %v596 = vld [vmem:[%s512 + $0x40] sm:$0xf]
        %v597 = vld [vmem:[%s512 + $0x44] sm:$0x1]
        %v598 = vld [vmem:[%s512 + $0x48] sm:$0xf]
        %v599 = vld [vmem:[%s512 + $0x4c] sm:$0x1]
        %v620 = vunpack.c.l.b16 %v580
        %v621 = vunpack.c.l.b16 %v581
        %v622 = vunpack.c.l.b16 %v582
        %v623 = vunpack.c.l.b16 %v583
        %v624 = vunpack.c.l.b16 %v584
        %v625 = vunpack.c.l.b16 %v585
        %v626 = vunpack.c.l.b16 %v586
        %v627 = vunpack.c.l.b16 %v587
        %v628 = vunpack.c.l.b16 %v588
        %v629 = vunpack.c.l.b16 %v589
        %v630 = vunpack.c.l.b16 %v590
        %v631 = vunpack.c.l.b16 %v591
        %v632 = vunpack.c.l.b16 %v592
        %v633 = vunpack.c.l.b16 %v593
        %v634 = vunpack.c.l.b16 %v594
        %v635 = vunpack.c.l.b16 %v595
        %v636 = vunpack.c.l.b16 %v596
        %v637 = vunpack.c.l.b16 %v597
        %v638 = vunpack.c.l.b16 %v598
        %v639 = vunpack.c.l.b16 %v599
        %v640 = vpack.c.b16 %v621, %v620
        %v641 = vpack.c.b16 %v623, %v622
        %v642 = vpack.c.b16 %v625, %v624
        %v643 = vpack.c.b16 %v627, %v626
        %v644 = vpack.c.b16 %v629, %v628
        %v645 = vpack.c.b16 %v631, %v630
        %v646 = vpack.c.b16 %v633, %v632
        %v647 = vpack.c.b16 %v635, %v634
        %v648 = vpack.c.b16 %v637, %v636
        %v649 = vpack.c.b16 %v639, %v638
        %v651 = vshrl.u32 %v640, 16
        %v653 = vshll.u32 %v640, 16
        %v655 = vrot.slane %v653, 1
        %v656 = vor.u32 %v651, %v655
        %v658 = vshrl.u32 %v641, 16
        %v660 = vshll.u32 %v641, 16
        %v662 = vrot.slane %v660, 1
        %v663 = vor.u32 %v658, %v662
        %v665 = vshrl.u32 %v642, 16
        %v667 = vshll.u32 %v642, 16
        %v669 = vrot.slane %v667, 1
        %v670 = vor.u32 %v665, %v669
        %v672 = vshrl.u32 %v643, 16
        %v674 = vshll.u32 %v643, 16
        %v676 = vrot.slane %v674, 1
        %v677 = vor.u32 %v672, %v676
        %v679 = vshrl.u32 %v644, 16
        %v681 = vshll.u32 %v644, 16
        %v683 = vrot.slane %v681, 1
        %v684 = vor.u32 %v679, %v683
        %v686 = vshrl.u32 %v645, 16
        %v688 = vshll.u32 %v645, 16
        %v690 = vrot.slane %v688, 1
        %v691 = vor.u32 %v686, %v690
        %v693 = vshrl.u32 %v646, 16
        %v695 = vshll.u32 %v646, 16
        %v697 = vrot.slane %v695, 1
        %v698 = vor.u32 %v693, %v697
        %v700 = vshrl.u32 %v647, 16
        %v702 = vshll.u32 %v647, 16
        %v704 = vrot.slane %v702, 1
        %v705 = vor.u32 %v700, %v704
        %v707 = vshrl.u32 %v648, 16
        %v709 = vshll.u32 %v648, 16
        %v711 = vrot.slane %v709, 1
        %v712 = vor.u32 %v707, %v711
        %v714 = vshrl.u32 %v649, 16
        %v716 = vshll.u32 %v649, 16
        %v718 = vrot.slane %v716, 1
        %v719 = vor.u32 %v714, %v718
        %v720 = vrot.slane %v640, 1
        %v721 = vrot.slane %v641, 1
        %v722 = vrot.slane %v642, 1
        %v723 = vrot.slane %v643, 1
        %v724 = vrot.slane %v644, 1
        %v725 = vrot.slane %v645, 1
        %v726 = vrot.slane %v646, 1
        %v727 = vrot.slane %v647, 1
        %v728 = vrot.slane %v648, 1
        %v729 = vrot.slane %v649, 1
        %v730 = vld [vmem:[%s524] sm:$0xf]
        %v731 = vld [vmem:[%s524 + $0x4] sm:$0x1]
        %v732 = vld [vmem:[%s524 + $0x8] sm:$0xf]
        %v733 = vld [vmem:[%s524 + $0xc] sm:$0x1]
        %v734 = vld [vmem:[%s524 + $0x10] sm:$0xf]
        %v735 = vld [vmem:[%s524 + $0x14] sm:$0x1]
        %v736 = vld [vmem:[%s524 + $0x18] sm:$0xf]
        %v737 = vld [vmem:[%s524 + $0x1c] sm:$0x1]
        %v738 = vld [vmem:[%s524 + $0x20] sm:$0xf]
        %v739 = vld [vmem:[%s524 + $0x24] sm:$0x1]
        %v740 = vld [vmem:[%s524 + $0x28] sm:$0xf]
        %v741 = vld [vmem:[%s524 + $0x2c] sm:$0x1]
        %v742 = vld [vmem:[%s524 + $0x30] sm:$0xf]
        %v743 = vld [vmem:[%s524 + $0x34] sm:$0x1]
        %v744 = vld [vmem:[%s524 + $0x38] sm:$0xf]
        %v745 = vld [vmem:[%s524 + $0x3c] sm:$0x1]
        %v746 = vld [vmem:[%s524 + $0x40] sm:$0xf]
        %v747 = vld [vmem:[%s524 + $0x44] sm:$0x1]
        %v748 = vld [vmem:[%s524 + $0x48] sm:$0xf]
        %v749 = vld [vmem:[%s524 + $0x4c] sm:$0x1]
        %v770 = vunpack.c.l.b16 %v730
        %v771 = vunpack.c.l.b16 %v731
        %v772 = vunpack.c.l.b16 %v732
        %v773 = vunpack.c.l.b16 %v733
        %v774 = vunpack.c.l.b16 %v734
        %v775 = vunpack.c.l.b16 %v735
        %v776 = vunpack.c.l.b16 %v736
        %v777 = vunpack.c.l.b16 %v737
        %v778 = vunpack.c.l.b16 %v738
        %v779 = vunpack.c.l.b16 %v739
        %v780 = vunpack.c.l.b16 %v740
        %v781 = vunpack.c.l.b16 %v741
        %v782 = vunpack.c.l.b16 %v742
        %v783 = vunpack.c.l.b16 %v743
        %v784 = vunpack.c.l.b16 %v744
        %v785 = vunpack.c.l.b16 %v745
        %v786 = vunpack.c.l.b16 %v746
        %v787 = vunpack.c.l.b16 %v747
        %v788 = vunpack.c.l.b16 %v748
        %v789 = vunpack.c.l.b16 %v749
        %v790 = vpack.c.b16 %v771, %v770
        %v791 = vpack.c.b16 %v773, %v772
        %v792 = vpack.c.b16 %v775, %v774
        %v793 = vpack.c.b16 %v777, %v776
        %v794 = vpack.c.b16 %v779, %v778
        %v795 = vpack.c.b16 %v781, %v780
        %v796 = vpack.c.b16 %v783, %v782
        %v797 = vpack.c.b16 %v785, %v784
        %v798 = vpack.c.b16 %v787, %v786
        %v799 = vpack.c.b16 %v789, %v788
        %v801 = vshrl.u32 %v790, 16
        %v803 = vshll.u32 %v790, 16
        %v805 = vrot.slane %v803, 1
        %v806 = vor.u32 %v801, %v805
        %v808 = vshrl.u32 %v791, 16
        %v810 = vshll.u32 %v791, 16
        %v812 = vrot.slane %v810, 1
        %v813 = vor.u32 %v808, %v812
        %v815 = vshrl.u32 %v792, 16
        %v817 = vshll.u32 %v792, 16
        %v819 = vrot.slane %v817, 1
        %v820 = vor.u32 %v815, %v819
        %v822 = vshrl.u32 %v793, 16
        %v824 = vshll.u32 %v793, 16
        %v826 = vrot.slane %v824, 1
        %v827 = vor.u32 %v822, %v826
        %v829 = vshrl.u32 %v794, 16
        %v831 = vshll.u32 %v794, 16
        %v833 = vrot.slane %v831, 1
        %v834 = vor.u32 %v829, %v833
        %v836 = vshrl.u32 %v795, 16
        %v838 = vshll.u32 %v795, 16
        %v840 = vrot.slane %v838, 1
        %v841 = vor.u32 %v836, %v840
        %v843 = vshrl.u32 %v796, 16
        %v845 = vshll.u32 %v796, 16
        %v847 = vrot.slane %v845, 1
        %v848 = vor.u32 %v843, %v847
        %v850 = vshrl.u32 %v797, 16
        %v852 = vshll.u32 %v797, 16
        %v854 = vrot.slane %v852, 1
        %v855 = vor.u32 %v850, %v854
        %v857 = vshrl.u32 %v798, 16
        %v859 = vshll.u32 %v798, 16
        %v861 = vrot.slane %v859, 1
        %v862 = vor.u32 %v857, %v861
        %v864 = vshrl.u32 %v799, 16
        %v866 = vshll.u32 %v799, 16
        %v868 = vrot.slane %v866, 1
        %v869 = vor.u32 %v864, %v868
        %v870 = vrot.slane %v790, 1
        %v871 = vrot.slane %v791, 1
        %v872 = vrot.slane %v792, 1
        %v873 = vrot.slane %v793, 1
        %v874 = vrot.slane %v794, 1
        %v875 = vrot.slane %v795, 1
        %v876 = vrot.slane %v796, 1
        %v877 = vrot.slane %v797, 1
        %v878 = vrot.slane %v798, 1
        %v879 = vrot.slane %v799, 1
        %v880 = vld [vmem:[%s537] sm:$0xf]
        %v881 = vld [vmem:[%s537 + $0x4] sm:$0x1]
        %v882 = vld [vmem:[%s537 + $0x8] sm:$0xf]
        %v883 = vld [vmem:[%s537 + $0xc] sm:$0x1]
        %v884 = vld [vmem:[%s537 + $0x10] sm:$0xf]
        %v885 = vld [vmem:[%s537 + $0x14] sm:$0x1]
        %v886 = vld [vmem:[%s537 + $0x18] sm:$0xf]
        %v887 = vld [vmem:[%s537 + $0x1c] sm:$0x1]
        %v888 = vld [vmem:[%s537 + $0x20] sm:$0xf]
        %v889 = vld [vmem:[%s537 + $0x24] sm:$0x1]
        %v890 = vld [vmem:[%s537 + $0x28] sm:$0xf]
        %v891 = vld [vmem:[%s537 + $0x2c] sm:$0x1]
        %v892 = vld [vmem:[%s537 + $0x30] sm:$0xf]
        %v893 = vld [vmem:[%s537 + $0x34] sm:$0x1]
        %v894 = vld [vmem:[%s537 + $0x38] sm:$0xf]
        %v895 = vld [vmem:[%s537 + $0x3c] sm:$0x1]
        %v896 = vld [vmem:[%s537 + $0x40] sm:$0xf]
        %v897 = vld [vmem:[%s537 + $0x44] sm:$0x1]
        %v898 = vld [vmem:[%s537 + $0x48] sm:$0xf]
        %v899 = vld [vmem:[%s537 + $0x4c] sm:$0x1]
        %v920 = vunpack.c.l.b16 %v880
        %v921 = vunpack.c.l.b16 %v881
        %v922 = vunpack.c.l.b16 %v882
        %v923 = vunpack.c.l.b16 %v883
        %v924 = vunpack.c.l.b16 %v884
        %v925 = vunpack.c.l.b16 %v885
        %v926 = vunpack.c.l.b16 %v886
        %v927 = vunpack.c.l.b16 %v887
        %v928 = vunpack.c.l.b16 %v888
        %v929 = vunpack.c.l.b16 %v889
        %v930 = vunpack.c.l.b16 %v890
        %v931 = vunpack.c.l.b16 %v891
        %v932 = vunpack.c.l.b16 %v892
        %v933 = vunpack.c.l.b16 %v893
        %v934 = vunpack.c.l.b16 %v894
        %v935 = vunpack.c.l.b16 %v895
        %v936 = vunpack.c.l.b16 %v896
        %v937 = vunpack.c.l.b16 %v897
        %v938 = vunpack.c.l.b16 %v898
        %v939 = vunpack.c.l.b16 %v899
        %v940 = vpack.c.b16 %v921, %v920
        %v941 = vpack.c.b16 %v923, %v922
        %v942 = vpack.c.b16 %v925, %v924
        %v943 = vpack.c.b16 %v927, %v926
        %v944 = vpack.c.b16 %v929, %v928
        %v945 = vpack.c.b16 %v931, %v930
        %v946 = vpack.c.b16 %v933, %v932
        %v947 = vpack.c.b16 %v935, %v934
        %v948 = vpack.c.b16 %v937, %v936
        %v949 = vpack.c.b16 %v939, %v938
        %v951 = vshrl.u32 %v940, 16
        %v953 = vshll.u32 %v940, 16
        %v955 = vrot.slane %v953, 1
        %v956 = vor.u32 %v951, %v955
        %v958 = vshrl.u32 %v941, 16
        %v960 = vshll.u32 %v941, 16
        %v962 = vrot.slane %v960, 1
        %v963 = vor.u32 %v958, %v962
        %v965 = vshrl.u32 %v942, 16
        %v967 = vshll.u32 %v942, 16
        %v969 = vrot.slane %v967, 1
        %v970 = vor.u32 %v965, %v969
        %v972 = vshrl.u32 %v943, 16
        %v974 = vshll.u32 %v943, 16
        %v976 = vrot.slane %v974, 1
        %v977 = vor.u32 %v972, %v976
        %v979 = vshrl.u32 %v944, 16
        %v981 = vshll.u32 %v944, 16
        %v983 = vrot.slane %v981, 1
        %v984 = vor.u32 %v979, %v983
        %v986 = vshrl.u32 %v945, 16
        %v988 = vshll.u32 %v945, 16
        %v990 = vrot.slane %v988, 1
        %v991 = vor.u32 %v986, %v990
        %v993 = vshrl.u32 %v946, 16
        %v995 = vshll.u32 %v946, 16
        %v997 = vrot.slane %v995, 1
        %v998 = vor.u32 %v993, %v997
        %v1000 = vshrl.u32 %v947, 16
        %v1002 = vshll.u32 %v947, 16
        %v1004 = vrot.slane %v1002, 1
        %v1005 = vor.u32 %v1000, %v1004
        %v1007 = vshrl.u32 %v948, 16
        %v1009 = vshll.u32 %v948, 16
        %v1011 = vrot.slane %v1009, 1
        %v1012 = vor.u32 %v1007, %v1011
        %v1014 = vshrl.u32 %v949, 16
        %v1016 = vshll.u32 %v949, 16
        %v1018 = vrot.slane %v1016, 1
        %v1019 = vor.u32 %v1014, %v1018
        %v1020 = vrot.slane %v940, 1
        %v1021 = vrot.slane %v941, 1
        %v1022 = vrot.slane %v942, 1
        %v1023 = vrot.slane %v943, 1
        %v1024 = vrot.slane %v944, 1
        %v1025 = vrot.slane %v945, 1
        %v1026 = vrot.slane %v946, 1
        %v1027 = vrot.slane %v947, 1
        %v1028 = vrot.slane %v948, 1
        %v1029 = vrot.slane %v949, 1
        %v1030 = vld [vmem:[%s550] sm:$0xf]
        %v1031 = vld [vmem:[%s550 + $0x4] sm:$0x1]
        %v1032 = vld [vmem:[%s550 + $0x8] sm:$0xf]
        %v1033 = vld [vmem:[%s550 + $0xc] sm:$0x1]
        %v1034 = vld [vmem:[%s550 + $0x10] sm:$0xf]
        %v1035 = vld [vmem:[%s550 + $0x14] sm:$0x1]
        %v1036 = vld [vmem:[%s550 + $0x18] sm:$0xf]
        %v1037 = vld [vmem:[%s550 + $0x1c] sm:$0x1]
        %v1038 = vld [vmem:[%s550 + $0x20] sm:$0xf]
        %v1039 = vld [vmem:[%s550 + $0x24] sm:$0x1]
        %v1040 = vld [vmem:[%s550 + $0x28] sm:$0xf]
        %v1041 = vld [vmem:[%s550 + $0x2c] sm:$0x1]
        %v1042 = vld [vmem:[%s550 + $0x30] sm:$0xf]
        %v1043 = vld [vmem:[%s550 + $0x34] sm:$0x1]
        %v1044 = vld [vmem:[%s550 + $0x38] sm:$0xf]
        %v1045 = vld [vmem:[%s550 + $0x3c] sm:$0x1]
        %v1046 = vld [vmem:[%s550 + $0x40] sm:$0xf]
        %v1047 = vld [vmem:[%s550 + $0x44] sm:$0x1]
        %v1048 = vld [vmem:[%s550 + $0x48] sm:$0xf]
        %v1049 = vld [vmem:[%s550 + $0x4c] sm:$0x1]
        %v1070 = vunpack.c.l.b16 %v1030
        %v1071 = vunpack.c.l.b16 %v1031
        %v1072 = vunpack.c.l.b16 %v1032
        %v1073 = vunpack.c.l.b16 %v1033
        %v1074 = vunpack.c.l.b16 %v1034
        %v1075 = vunpack.c.l.b16 %v1035
        %v1076 = vunpack.c.l.b16 %v1036
        %v1077 = vunpack.c.l.b16 %v1037
        %v1078 = vunpack.c.l.b16 %v1038
        %v1079 = vunpack.c.l.b16 %v1039
        %v1080 = vunpack.c.l.b16 %v1040
        %v1081 = vunpack.c.l.b16 %v1041
        %v1082 = vunpack.c.l.b16 %v1042
        %v1083 = vunpack.c.l.b16 %v1043
        %v1084 = vunpack.c.l.b16 %v1044
        %v1085 = vunpack.c.l.b16 %v1045
        %v1086 = vunpack.c.l.b16 %v1046
        %v1087 = vunpack.c.l.b16 %v1047
        %v1088 = vunpack.c.l.b16 %v1048
        %v1089 = vunpack.c.l.b16 %v1049
        %v1090 = vpack.c.b16 %v1071, %v1070
        %v1091 = vpack.c.b16 %v1073, %v1072
        %v1092 = vpack.c.b16 %v1075, %v1074
        %v1093 = vpack.c.b16 %v1077, %v1076
        %v1094 = vpack.c.b16 %v1079, %v1078
        %v1095 = vpack.c.b16 %v1081, %v1080
        %v1096 = vpack.c.b16 %v1083, %v1082
        %v1097 = vpack.c.b16 %v1085, %v1084
        %v1098 = vpack.c.b16 %v1087, %v1086
        %v1099 = vpack.c.b16 %v1089, %v1088
        %v1101 = vshrl.u32 %v1090, 16
        %v1103 = vshll.u32 %v1090, 16
        %v1105 = vrot.slane %v1103, 1
        %v1106 = vor.u32 %v1101, %v1105
        %v1108 = vshrl.u32 %v1091, 16
        %v1110 = vshll.u32 %v1091, 16
        %v1112 = vrot.slane %v1110, 1
        %v1113 = vor.u32 %v1108, %v1112
        %v1115 = vshrl.u32 %v1092, 16
        %v1117 = vshll.u32 %v1092, 16
        %v1119 = vrot.slane %v1117, 1
        %v1120 = vor.u32 %v1115, %v1119
        %v1122 = vshrl.u32 %v1093, 16
        %v1124 = vshll.u32 %v1093, 16
        %v1126 = vrot.slane %v1124, 1
        %v1127 = vor.u32 %v1122, %v1126
        %v1129 = vshrl.u32 %v1094, 16
        %v1131 = vshll.u32 %v1094, 16
        %v1133 = vrot.slane %v1131, 1
        %v1134 = vor.u32 %v1129, %v1133
        %v1136 = vshrl.u32 %v1095, 16
        %v1138 = vshll.u32 %v1095, 16
        %v1140 = vrot.slane %v1138, 1
        %v1141 = vor.u32 %v1136, %v1140
        %v1143 = vshrl.u32 %v1096, 16
        %v1145 = vshll.u32 %v1096, 16
        %v1147 = vrot.slane %v1145, 1
        %v1148 = vor.u32 %v1143, %v1147
        %v1150 = vshrl.u32 %v1097, 16
        %v1152 = vshll.u32 %v1097, 16
        %v1154 = vrot.slane %v1152, 1
        %v1155 = vor.u32 %v1150, %v1154
        %v1157 = vshrl.u32 %v1098, 16
        %v1159 = vshll.u32 %v1098, 16
        %v1161 = vrot.slane %v1159, 1
        %v1162 = vor.u32 %v1157, %v1161
        %v1164 = vshrl.u32 %v1099, 16
        %v1166 = vshll.u32 %v1099, 16
        %v1168 = vrot.slane %v1166, 1
        %v1169 = vor.u32 %v1164, %v1168
        %v1170 = vrot.slane %v1090, 1
        %v1171 = vrot.slane %v1091, 1
        %v1172 = vrot.slane %v1092, 1
        %v1173 = vrot.slane %v1093, 1
        %v1174 = vrot.slane %v1094, 1
        %v1175 = vrot.slane %v1095, 1
        %v1176 = vrot.slane %v1096, 1
        %v1177 = vrot.slane %v1097, 1
        %v1178 = vrot.slane %v1098, 1
        %v1179 = vrot.slane %v1099, 1
        %v1180 = vld [vmem:[%s563] sm:$0xf]
        %v1181 = vld [vmem:[%s563 + $0x4] sm:$0x1]
        %v1182 = vld [vmem:[%s563 + $0x8] sm:$0xf]
        %v1183 = vld [vmem:[%s563 + $0xc] sm:$0x1]
        %v1184 = vld [vmem:[%s563 + $0x10] sm:$0xf]
        %v1185 = vld [vmem:[%s563 + $0x14] sm:$0x1]
        %v1186 = vld [vmem:[%s563 + $0x18] sm:$0xf]
        %v1187 = vld [vmem:[%s563 + $0x1c] sm:$0x1]
        %v1188 = vld [vmem:[%s563 + $0x20] sm:$0xf]
        %v1189 = vld [vmem:[%s563 + $0x24] sm:$0x1]
        %v1190 = vld [vmem:[%s563 + $0x28] sm:$0xf]
        %v1191 = vld [vmem:[%s563 + $0x2c] sm:$0x1]
        %v1192 = vld [vmem:[%s563 + $0x30] sm:$0xf]
        %v1193 = vld [vmem:[%s563 + $0x34] sm:$0x1]
        %v1194 = vld [vmem:[%s563 + $0x38] sm:$0xf]
        %v1195 = vld [vmem:[%s563 + $0x3c] sm:$0x1]
        %v1196 = vld [vmem:[%s563 + $0x40] sm:$0xf]
        %v1197 = vld [vmem:[%s563 + $0x44] sm:$0x1]
        %v1198 = vld [vmem:[%s563 + $0x48] sm:$0xf]
        %v1199 = vld [vmem:[%s563 + $0x4c] sm:$0x1]
        %v1220 = vunpack.c.l.b16 %v1180
        %v1221 = vunpack.c.l.b16 %v1181
        %v1222 = vunpack.c.l.b16 %v1182
        %v1223 = vunpack.c.l.b16 %v1183
        %v1224 = vunpack.c.l.b16 %v1184
        %v1225 = vunpack.c.l.b16 %v1185
        %v1226 = vunpack.c.l.b16 %v1186
        %v1227 = vunpack.c.l.b16 %v1187
        %v1228 = vunpack.c.l.b16 %v1188
        %v1229 = vunpack.c.l.b16 %v1189
        %v1230 = vunpack.c.l.b16 %v1190
        %v1231 = vunpack.c.l.b16 %v1191
        %v1232 = vunpack.c.l.b16 %v1192
        %v1233 = vunpack.c.l.b16 %v1193
        %v1234 = vunpack.c.l.b16 %v1194
        %v1235 = vunpack.c.l.b16 %v1195
        %v1236 = vunpack.c.l.b16 %v1196
        %v1237 = vunpack.c.l.b16 %v1197
        %v1238 = vunpack.c.l.b16 %v1198
        %v1239 = vunpack.c.l.b16 %v1199
        %v1240 = vpack.c.b16 %v1221, %v1220
        %v1241 = vpack.c.b16 %v1223, %v1222
        %v1242 = vpack.c.b16 %v1225, %v1224
        %v1243 = vpack.c.b16 %v1227, %v1226
        %v1244 = vpack.c.b16 %v1229, %v1228
        %v1245 = vpack.c.b16 %v1231, %v1230
        %v1246 = vpack.c.b16 %v1233, %v1232
        %v1247 = vpack.c.b16 %v1235, %v1234
        %v1248 = vpack.c.b16 %v1237, %v1236
        %v1249 = vpack.c.b16 %v1239, %v1238
        %v1251 = vshrl.u32 %v1240, 16
        %v1253 = vshll.u32 %v1240, 16
        %v1255 = vrot.slane %v1253, 1
        %v1256 = vor.u32 %v1251, %v1255
        %v1258 = vshrl.u32 %v1241, 16
        %v1260 = vshll.u32 %v1241, 16
        %v1262 = vrot.slane %v1260, 1
        %v1263 = vor.u32 %v1258, %v1262
        %v1265 = vshrl.u32 %v1242, 16
        %v1267 = vshll.u32 %v1242, 16
        %v1269 = vrot.slane %v1267, 1
        %v1270 = vor.u32 %v1265, %v1269
        %v1272 = vshrl.u32 %v1243, 16
        %v1274 = vshll.u32 %v1243, 16
        %v1276 = vrot.slane %v1274, 1
        %v1277 = vor.u32 %v1272, %v1276
        %v1279 = vshrl.u32 %v1244, 16
        %v1281 = vshll.u32 %v1244, 16
        %v1283 = vrot.slane %v1281, 1
        %v1284 = vor.u32 %v1279, %v1283
        %v1286 = vshrl.u32 %v1245, 16
        %v1288 = vshll.u32 %v1245, 16
        %v1290 = vrot.slane %v1288, 1
        %v1291 = vor.u32 %v1286, %v1290
        %v1293 = vshrl.u32 %v1246, 16
        %v1295 = vshll.u32 %v1246, 16
        %v1297 = vrot.slane %v1295, 1
        %v1298 = vor.u32 %v1293, %v1297
        %v1300 = vshrl.u32 %v1247, 16
        %v1302 = vshll.u32 %v1247, 16
        %v1304 = vrot.slane %v1302, 1
        %v1305 = vor.u32 %v1300, %v1304
        %v1307 = vshrl.u32 %v1248, 16
        %v1309 = vshll.u32 %v1248, 16
        %v1311 = vrot.slane %v1309, 1
        %v1312 = vor.u32 %v1307, %v1311
        %v1314 = vshrl.u32 %v1249, 16
        %v1316 = vshll.u32 %v1249, 16
        %v1318 = vrot.slane %v1316, 1
        %v1319 = vor.u32 %v1314, %v1318
        %v1320 = vrot.slane %v1240, 1
        %v1321 = vrot.slane %v1241, 1
        %v1322 = vrot.slane %v1242, 1
        %v1323 = vrot.slane %v1243, 1
        %v1324 = vrot.slane %v1244, 1
        %v1325 = vrot.slane %v1245, 1
        %v1326 = vrot.slane %v1246, 1
        %v1327 = vrot.slane %v1247, 1
        %v1328 = vrot.slane %v1248, 1
        %v1329 = vrot.slane %v1249, 1
        %v1330 = vld [vmem:[%s576] sm:$0xf]
        %v1331 = vld [vmem:[%s576 + $0x4] sm:$0x1]
        %v1332 = vld [vmem:[%s576 + $0x8] sm:$0xf]
        %v1333 = vld [vmem:[%s576 + $0xc] sm:$0x1]
        %v1334 = vld [vmem:[%s576 + $0x10] sm:$0xf]
        %v1335 = vld [vmem:[%s576 + $0x14] sm:$0x1]
        %v1336 = vld [vmem:[%s576 + $0x18] sm:$0xf]
        %v1337 = vld [vmem:[%s576 + $0x1c] sm:$0x1]
        %v1338 = vld [vmem:[%s576 + $0x20] sm:$0xf]
        %v1339 = vld [vmem:[%s576 + $0x24] sm:$0x1]
        %v1340 = vld [vmem:[%s576 + $0x28] sm:$0xf]
        %v1341 = vld [vmem:[%s576 + $0x2c] sm:$0x1]
        %v1342 = vld [vmem:[%s576 + $0x30] sm:$0xf]
        %v1343 = vld [vmem:[%s576 + $0x34] sm:$0x1]
        %v1344 = vld [vmem:[%s576 + $0x38] sm:$0xf]
        %v1345 = vld [vmem:[%s576 + $0x3c] sm:$0x1]
        %v1346 = vld [vmem:[%s576 + $0x40] sm:$0xf]
        %v1347 = vld [vmem:[%s576 + $0x44] sm:$0x1]
        %v1348 = vld [vmem:[%s576 + $0x48] sm:$0xf]
        %v1349 = vld [vmem:[%s576 + $0x4c] sm:$0x1]
        %v1370 = vunpack.c.l.b16 %v1330
        %v1371 = vunpack.c.l.b16 %v1331
        %v1372 = vunpack.c.l.b16 %v1332
        %v1373 = vunpack.c.l.b16 %v1333
        %v1374 = vunpack.c.l.b16 %v1334
        %v1375 = vunpack.c.l.b16 %v1335
        %v1376 = vunpack.c.l.b16 %v1336
        %v1377 = vunpack.c.l.b16 %v1337
        %v1378 = vunpack.c.l.b16 %v1338
        %v1379 = vunpack.c.l.b16 %v1339
        %v1380 = vunpack.c.l.b16 %v1340
        %v1381 = vunpack.c.l.b16 %v1341
        %v1382 = vunpack.c.l.b16 %v1342
        %v1383 = vunpack.c.l.b16 %v1343
        %v1384 = vunpack.c.l.b16 %v1344
        %v1385 = vunpack.c.l.b16 %v1345
        %v1386 = vunpack.c.l.b16 %v1346
        %v1387 = vunpack.c.l.b16 %v1347
        %v1388 = vunpack.c.l.b16 %v1348
        %v1389 = vunpack.c.l.b16 %v1349
        %v1390 = vpack.c.b16 %v1371, %v1370
        %v1391 = vpack.c.b16 %v1373, %v1372
        %v1392 = vpack.c.b16 %v1375, %v1374
        %v1393 = vpack.c.b16 %v1377, %v1376
        %v1394 = vpack.c.b16 %v1379, %v1378
        %v1395 = vpack.c.b16 %v1381, %v1380
        %v1396 = vpack.c.b16 %v1383, %v1382
        %v1397 = vpack.c.b16 %v1385, %v1384
        %v1398 = vpack.c.b16 %v1387, %v1386
        %v1399 = vpack.c.b16 %v1389, %v1388
        %v1401 = vshrl.u32 %v1390, 16
        %v1403 = vshll.u32 %v1390, 16
        %v1405 = vrot.slane %v1403, 1
        %v1406 = vor.u32 %v1401, %v1405
        %v1408 = vshrl.u32 %v1391, 16
        %v1410 = vshll.u32 %v1391, 16
        %v1412 = vrot.slane %v1410, 1
        %v1413 = vor.u32 %v1408, %v1412
        %v1415 = vshrl.u32 %v1392, 16
        %v1417 = vshll.u32 %v1392, 16
        %v1419 = vrot.slane %v1417, 1
        %v1420 = vor.u32 %v1415, %v1419
        %v1422 = vshrl.u32 %v1393, 16
        %v1424 = vshll.u32 %v1393, 16
        %v1426 = vrot.slane %v1424, 1
        %v1427 = vor.u32 %v1422, %v1426
        %v1429 = vshrl.u32 %v1394, 16
        %v1431 = vshll.u32 %v1394, 16
        %v1433 = vrot.slane %v1431, 1
        %v1434 = vor.u32 %v1429, %v1433
        %v1436 = vshrl.u32 %v1395, 16
        %v1438 = vshll.u32 %v1395, 16
        %v1440 = vrot.slane %v1438, 1
        %v1441 = vor.u32 %v1436, %v1440
        %v1443 = vshrl.u32 %v1396, 16
        %v1445 = vshll.u32 %v1396, 16
        %v1447 = vrot.slane %v1445, 1
        %v1448 = vor.u32 %v1443, %v1447
        %v1450 = vshrl.u32 %v1397, 16
        %v1452 = vshll.u32 %v1397, 16
        %v1454 = vrot.slane %v1452, 1
        %v1455 = vor.u32 %v1450, %v1454
        %v1457 = vshrl.u32 %v1398, 16
        %v1459 = vshll.u32 %v1398, 16
        %v1461 = vrot.slane %v1459, 1
        %v1462 = vor.u32 %v1457, %v1461
        %v1464 = vshrl.u32 %v1399, 16
        %v1466 = vshll.u32 %v1399, 16
        %v1468 = vrot.slane %v1466, 1
        %v1469 = vor.u32 %v1464, %v1468
        %v1470 = vrot.slane %v1390, 1
        %v1471 = vrot.slane %v1391, 1
        %v1472 = vrot.slane %v1392, 1
        %v1473 = vrot.slane %v1393, 1
        %v1474 = vrot.slane %v1394, 1
        %v1475 = vrot.slane %v1395, 1
        %v1476 = vrot.slane %v1396, 1
        %v1477 = vrot.slane %v1397, 1
        %v1478 = vrot.slane %v1398, 1
        %v1479 = vrot.slane %v1399, 1
        %v1480 = vld [vmem:[%s7] sm:$0x1]
        %v1481 = vld [vmem:[%s6] sm:$0xf]
        %v1482 = vld [vmem:[%s6 + $0x4] sm:$0xf]
        %v1483 = vld [vmem:[%s6 + $0x8] sm:$0xf]
        %v1484 = vld [vmem:[%s6 + $0xc] sm:$0xf]
        %v1485 = vld [vmem:[%s6 + $0x10] sm:$0xf]
        %v1486 = vld [vmem:[%s6 + $0x14] sm:$0xf]
        %v1487 = vld [vmem:[%s6 + $0x18] sm:$0xf]
        %v1488 = vld [vmem:[%s6 + $0x1c] sm:$0xf]
        %v1489 = vld [vmem:[%s6 + $0x20] sm:$0xf]
        %v1490 = vld [vmem:[%s6 + $0x24] sm:$0xf]
        %v1491 = vld [vmem:[%s6 + $0x28] sm:$0xf]
        %v1492 = vld [vmem:[%s6 + $0x2c] sm:$0xf]
        %v1493 = vld [vmem:[%s6 + $0x30] sm:$0xf]
        %v1494 = vld [vmem:[%s6 + $0x34] sm:$0xf]
        %v1495 = vld [vmem:[%s6 + $0x38] sm:$0xf]
        %v1496 = vld [vmem:[%s6 + $0x3c] sm:$0xf]
        %v1497 = vld [vmem:[%s6 + $0x40] sm:$0xf]
        %v1498 = vld [vmem:[%s6 + $0x44] sm:$0xf]
        %v1499 = vld [vmem:[%s6 + $0x48] sm:$0xf]
        %v1500 = vld [vmem:[%s6 + $0x4c] sm:$0xf]
        %v1501 = vld [vmem:[%s6 + $0x50] sm:$0xf]
        %v1502 = vld [vmem:[%s6 + $0x54] sm:$0xf]
        %v1503 = vld [vmem:[%s6 + $0x58] sm:$0xf]
        %v1504 = vld [vmem:[%s6 + $0x5c] sm:$0xf]
        %v1505 = vld [vmem:[%s6 + $0x60] sm:$0xf]
        %v1506 = vld [vmem:[%s6 + $0x64] sm:$0xf]
        %v1507 = vld [vmem:[%s6 + $0x68] sm:$0xf]
        %v1508 = vld [vmem:[%s6 + $0x6c] sm:$0xf]
        %v1509 = vld [vmem:[%s6 + $0x70] sm:$0xf]
        %v1510 = vld [vmem:[%s6 + $0x74] sm:$0xf]
        %v1511 = vld [vmem:[%s6 + $0x78] sm:$0xf]
        %v1512 = vld [vmem:[%s6 + $0x7c] sm:$0xf]
        %v1513 = vld [vmem:[%s6 + $0x80] sm:$0xf]
        %v1514 = vld [vmem:[%s6 + $0x84] sm:$0xf]
        %v1515 = vld [vmem:[%s6 + $0x88] sm:$0xf]
        %v1516 = vld [vmem:[%s6 + $0x8c] sm:$0xf]
        %v1517 = vld [vmem:[%s6 + $0x90] sm:$0xf]
        %v1518 = vld [vmem:[%s6 + $0x94] sm:$0xf]
        %v1519 = vld [vmem:[%s6 + $0x98] sm:$0xf]
        %v1520 = vld [vmem:[%s6 + $0x9c] sm:$0xf]
        %v1521 = vld [vmem:[%s6 + $0xa0] sm:$0xf]
        %v1522 = vld [vmem:[%s6 + $0xa4] sm:$0xf]
        %v1523 = vld [vmem:[%s6 + $0xa8] sm:$0xf]
        %v1524 = vld [vmem:[%s6 + $0xac] sm:$0xf]
        %v1525 = vld [vmem:[%s6 + $0xb0] sm:$0xf]
        %v1526 = vld [vmem:[%s6 + $0xb4] sm:$0xf]
        %v1527 = vld [vmem:[%s6 + $0xb8] sm:$0xf]
        %v1528 = vld [vmem:[%s6 + $0xbc] sm:$0xf]
        %v1529 = vld [vmem:[%s6 + $0xc0] sm:$0xf]
        %v1530 = vld [vmem:[%s6 + $0xc4] sm:$0xf]
        %v1531 = vld [vmem:[%s6 + $0xc8] sm:$0xf]
        %v1532 = vld [vmem:[%s6 + $0xcc] sm:$0xf]
        %v1533 = vld [vmem:[%s6 + $0xd0] sm:$0xf]
        %v1534 = vld [vmem:[%s6 + $0xd4] sm:$0xf]
        %v1535 = vld [vmem:[%s6 + $0xd8] sm:$0xf]
        %v1536 = vld [vmem:[%s6 + $0xdc] sm:$0xf]
        %v1537 = vld [vmem:[%s6 + $0xe0] sm:$0xf]
        %v1538 = vld [vmem:[%s6 + $0xe4] sm:$0xf]
        %v1539 = vld [vmem:[%s6 + $0xe8] sm:$0xf]
        %v1540 = vld [vmem:[%s6 + $0xec] sm:$0xf]
        %v1541 = vld [vmem:[%s6 + $0xf0] sm:$0xf]
        %v1542 = vld [vmem:[%s6 + $0xf4] sm:$0xf]
        %v1543 = vld [vmem:[%s6 + $0xf8] sm:$0xf]
        %v1544 = vld [vmem:[%s6 + $0xfc] sm:$0xf]
        %v1545 = vld [vmem:[%s6 + $0x100] sm:$0xf]
        %v1546 = vld [vmem:[%s6 + $0x104] sm:$0xf]
        %v1547 = vld [vmem:[%s6 + $0x108] sm:$0xf]
        %v1548 = vld [vmem:[%s6 + $0x10c] sm:$0xf]
        %v1549 = vld [vmem:[%s6 + $0x110] sm:$0xf]
        %v1550 = vld [vmem:[%s6 + $0x114] sm:$0xf]
        %v1551 = vld [vmem:[%s6 + $0x118] sm:$0xf]
        %v1552 = vld [vmem:[%s6 + $0x11c] sm:$0xf]
        %v1553 = vld [vmem:[%s6 + $0x120] sm:$0xf]
        %v1554 = vld [vmem:[%s6 + $0x124] sm:$0xf]
        %v1555 = vld [vmem:[%s6 + $0x128] sm:$0xf]
        %v1556 = vld [vmem:[%s6 + $0x12c] sm:$0xf]
        %v1557 = vld [vmem:[%s6 + $0x130] sm:$0xf]
        %v1558 = vld [vmem:[%s6 + $0x134] sm:$0xf]
        %v1559 = vld [vmem:[%s6 + $0x138] sm:$0xf]
        %v1560 = vld [vmem:[%s6 + $0x13c] sm:$0xf]
        %v1561 = vld [vmem:[%s6 + $0x140] sm:$0xf]
        %v1562 = vld [vmem:[%s6 + $0x144] sm:$0xf]
        %v1563 = vld [vmem:[%s6 + $0x148] sm:$0xf]
        %v1564 = vld [vmem:[%s6 + $0x14c] sm:$0xf]
        %v1565 = vld [vmem:[%s6 + $0x150] sm:$0xf]
        %v1566 = vld [vmem:[%s6 + $0x154] sm:$0xf]
        %v1567 = vld [vmem:[%s6 + $0x158] sm:$0xf]
        %v1568 = vld [vmem:[%s6 + $0x15c] sm:$0xf]
        %v1569 = vld [vmem:[%s6 + $0x160] sm:$0xf]
        %v1570 = vld [vmem:[%s6 + $0x164] sm:$0xf]
        %v1571 = vld [vmem:[%s6 + $0x168] sm:$0xf]
        %v1572 = vld [vmem:[%s6 + $0x16c] sm:$0xf]
        %v1573 = vld [vmem:[%s6 + $0x170] sm:$0xf]
        %v1574 = vld [vmem:[%s6 + $0x174] sm:$0xf]
        %v1575 = vld [vmem:[%s6 + $0x178] sm:$0xf]
        %v1576 = vld [vmem:[%s6 + $0x17c] sm:$0xf]
        %v1577 = vld [vmem:[%s6 + $0x180] sm:$0xf]
        %v1578 = vld [vmem:[%s6 + $0x184] sm:$0xf]
        %v1579 = vld [vmem:[%s6 + $0x188] sm:$0xf]
        %v1580 = vld [vmem:[%s6 + $0x18c] sm:$0xf]
        %v1581 = vld [vmem:[%s6 + $0x190] sm:$0xf]
        %v1582 = vld [vmem:[%s6 + $0x194] sm:$0xf]
        %v1583 = vld [vmem:[%s6 + $0x198] sm:$0xf]
        %v1584 = vld [vmem:[%s6 + $0x19c] sm:$0xf]
        %v1585 = vld [vmem:[%s6 + $0x1a0] sm:$0xf]
        %v1586 = vld [vmem:[%s6 + $0x1a4] sm:$0xf]
        %v1587 = vld [vmem:[%s6 + $0x1a8] sm:$0xf]
        %v1588 = vld [vmem:[%s6 + $0x1ac] sm:$0xf]
        %v1589 = vld [vmem:[%s6 + $0x1b0] sm:$0xf]
        %v1590 = vld [vmem:[%s6 + $0x1b4] sm:$0xf]
        %v1591 = vld [vmem:[%s6 + $0x1b8] sm:$0xf]
        %v1592 = vld [vmem:[%s6 + $0x1bc] sm:$0xf]
        %v1593 = vld [vmem:[%s6 + $0x1c0] sm:$0xf]
        %v1594 = vld [vmem:[%s6 + $0x1c4] sm:$0xf]
        %v1595 = vld [vmem:[%s6 + $0x1c8] sm:$0xf]
        %v1596 = vld [vmem:[%s6 + $0x1cc] sm:$0xf]
        %v1597 = vld [vmem:[%s6 + $0x1d0] sm:$0xf]
        %v1598 = vld [vmem:[%s6 + $0x1d4] sm:$0xf]
        %v1599 = vld [vmem:[%s6 + $0x1d8] sm:$0xf]
        %v1600 = vld [vmem:[%s6 + $0x1dc] sm:$0xf]
        %v1601 = vld [vmem:[%s6 + $0x1e0] sm:$0xf]
        %v1602 = vld [vmem:[%s6 + $0x1e4] sm:$0xf]
        %v1603 = vld [vmem:[%s6 + $0x1e8] sm:$0xf]
        %v1604 = vld [vmem:[%s6 + $0x1ec] sm:$0xf]
        %v1605 = vld [vmem:[%s6 + $0x1f0] sm:$0xf]
        %v1606 = vld [vmem:[%s6 + $0x1f4] sm:$0xf]
        %v1607 = vld [vmem:[%s6 + $0x1f8] sm:$0xf]
        %v1608 = vld [vmem:[%s6 + $0x1fc] sm:$0xf]
        %v1609 = vld [vmem:[%s6 + $0x200] sm:$0xf]
        %v1610 = vld [vmem:[%s6 + $0x204] sm:$0xf]
        %v1611 = vld [vmem:[%s6 + $0x208] sm:$0xf]
        %v1612 = vld [vmem:[%s6 + $0x20c] sm:$0xf]
        %v1613 = vld [vmem:[%s6 + $0x210] sm:$0xf]
        %v1614 = vld [vmem:[%s6 + $0x214] sm:$0xf]
        %v1615 = vld [vmem:[%s6 + $0x218] sm:$0xf]
        %v1616 = vld [vmem:[%s6 + $0x21c] sm:$0xf]
        %v1617 = vld [vmem:[%s6 + $0x220] sm:$0xf]
        %v1618 = vld [vmem:[%s6 + $0x224] sm:$0xf]
        %v1619 = vld [vmem:[%s6 + $0x228] sm:$0xf]
        %v1620 = vld [vmem:[%s6 + $0x22c] sm:$0xf]
        %v1621 = vld [vmem:[%s6 + $0x230] sm:$0xf]
        %v1622 = vld [vmem:[%s6 + $0x234] sm:$0xf]
        %v1623 = vld [vmem:[%s6 + $0x238] sm:$0xf]
        %v1624 = vld [vmem:[%s6 + $0x23c] sm:$0xf]
        %v1625 = vunpack.c.l.b16 %v656
        %v1626 = vunpack.c.l.b16 %v720
        %v1627 = vunpack.c.l.b16 %v663
        %v1628 = vunpack.c.l.b16 %v721
        %v1629 = vunpack.c.l.b16 %v670
        %v1630 = vunpack.c.l.b16 %v722
        %v1631 = vunpack.c.l.b16 %v677
        %v1632 = vunpack.c.l.b16 %v723
        %v1633 = vunpack.c.l.b16 %v684
        %v1634 = vunpack.c.l.b16 %v724
        %v1635 = vunpack.c.l.b16 %v691
        %v1636 = vunpack.c.l.b16 %v725
        %v1637 = vunpack.c.l.b16 %v698
        %v1638 = vunpack.c.l.b16 %v726
        %v1639 = vunpack.c.l.b16 %v705
        %v1640 = vunpack.c.l.b16 %v727
        %v1641 = vunpack.c.l.b16 %v712
        %v1642 = vunpack.c.l.b16 %v728
        %v1643 = vunpack.c.l.b16 %v719
        %v1644 = vunpack.c.l.b16 %v729
        %v1645 = vunpack.c.l.b16 %v806
        %v1646 = vunpack.c.l.b16 %v870
        %v1647 = vunpack.c.l.b16 %v813
        %v1648 = vunpack.c.l.b16 %v871
        %v1649 = vunpack.c.l.b16 %v820
        %v1650 = vunpack.c.l.b16 %v872
        %v1651 = vunpack.c.l.b16 %v827
        %v1652 = vunpack.c.l.b16 %v873
        %v1653 = vunpack.c.l.b16 %v834
        %v1654 = vunpack.c.l.b16 %v874
        %v1655 = vunpack.c.l.b16 %v841
        %v1656 = vunpack.c.l.b16 %v875
        %v1657 = vunpack.c.l.b16 %v848
        %v1658 = vunpack.c.l.b16 %v876
        %v1659 = vunpack.c.l.b16 %v855
        %v1660 = vunpack.c.l.b16 %v877
        %v1661 = vunpack.c.l.b16 %v862
        %v1662 = vunpack.c.l.b16 %v878
        %v1663 = vunpack.c.l.b16 %v869
        %v1664 = vunpack.c.l.b16 %v879
        %v1665 = vunpack.c.l.b16 %v956
        %v1666 = vunpack.c.l.b16 %v1020
        %v1667 = vunpack.c.l.b16 %v963
        %v1668 = vunpack.c.l.b16 %v1021
        %v1669 = vunpack.c.l.b16 %v970
        %v1670 = vunpack.c.l.b16 %v1022
        %v1671 = vunpack.c.l.b16 %v977
        %v1672 = vunpack.c.l.b16 %v1023
        %v1673 = vunpack.c.l.b16 %v984
        %v1674 = vunpack.c.l.b16 %v1024
        %v1675 = vunpack.c.l.b16 %v991
        %v1676 = vunpack.c.l.b16 %v1025
        %v1677 = vunpack.c.l.b16 %v998
        %v1678 = vunpack.c.l.b16 %v1026
        %v1679 = vunpack.c.l.b16 %v1005
        %v1680 = vunpack.c.l.b16 %v1027
        %v1681 = vunpack.c.l.b16 %v1012
        %v1682 = vunpack.c.l.b16 %v1028
        %v1683 = vunpack.c.l.b16 %v1019
        %v1684 = vunpack.c.l.b16 %v1029
        %v1685 = vunpack.c.l.b16 %v1106
        %v1686 = vunpack.c.l.b16 %v1170
        %v1687 = vunpack.c.l.b16 %v1113
        %v1688 = vunpack.c.l.b16 %v1171
        %v1689 = vunpack.c.l.b16 %v1120
        %v1690 = vunpack.c.l.b16 %v1172
        %v1691 = vunpack.c.l.b16 %v1127
        %v1692 = vunpack.c.l.b16 %v1173
        %v1693 = vunpack.c.l.b16 %v1134
        %v1694 = vunpack.c.l.b16 %v1174
        %v1695 = vunpack.c.l.b16 %v1141
        %v1696 = vunpack.c.l.b16 %v1175
        %v1697 = vunpack.c.l.b16 %v1148
        %v1698 = vunpack.c.l.b16 %v1176
        %v1699 = vunpack.c.l.b16 %v1155
        %v1700 = vunpack.c.l.b16 %v1177
        %v1701 = vunpack.c.l.b16 %v1162
        %v1702 = vunpack.c.l.b16 %v1178
        %v1703 = vunpack.c.l.b16 %v1169
        %v1704 = vunpack.c.l.b16 %v1179
        %s1705 = scalar_lea.vmem %s6, 576
        %v1706 = vld [vmem:[%s1705] sm:$0xf]
        %v1707 = vld [vmem:[%s1705 + $0x4] sm:$0xf]
        %v1708 = vld [vmem:[%s1705 + $0x8] sm:$0xf]
        %v1709 = vld [vmem:[%s1705 + $0xc] sm:$0xf]
        %v1710 = vld [vmem:[%s1705 + $0x10] sm:$0xf]
        %v1711 = vld [vmem:[%s1705 + $0x14] sm:$0xf]
        %v1712 = vld [vmem:[%s1705 + $0x18] sm:$0xf]
        %v1713 = vld [vmem:[%s1705 + $0x1c] sm:$0xf]
        %v1714 = vld [vmem:[%s1705 + $0x20] sm:$0xf]
        %v1715 = vld [vmem:[%s1705 + $0x24] sm:$0xf]
        %v1716 = vld [vmem:[%s1705 + $0x28] sm:$0xf]
        %v1717 = vld [vmem:[%s1705 + $0x2c] sm:$0xf]
        %v1718 = vld [vmem:[%s1705 + $0x30] sm:$0xf]
        %v1719 = vld [vmem:[%s1705 + $0x34] sm:$0xf]
        %v1720 = vld [vmem:[%s1705 + $0x38] sm:$0xf]
        %v1721 = vld [vmem:[%s1705 + $0x3c] sm:$0xf]
        %v1722 = vld [vmem:[%s1705 + $0x40] sm:$0xf]
        %v1723 = vld [vmem:[%s1705 + $0x44] sm:$0xf]
        %v1724 = vld [vmem:[%s1705 + $0x48] sm:$0xf]
        %v1725 = vld [vmem:[%s1705 + $0x4c] sm:$0xf]
        %v1726 = vld [vmem:[%s1705 + $0x50] sm:$0xf]
        %v1727 = vld [vmem:[%s1705 + $0x54] sm:$0xf]
        %v1728 = vld [vmem:[%s1705 + $0x58] sm:$0xf]
        %v1729 = vld [vmem:[%s1705 + $0x5c] sm:$0xf]
        %v1730 = vld [vmem:[%s1705 + $0x60] sm:$0xf]
        %v1731 = vld [vmem:[%s1705 + $0x64] sm:$0xf]
        %v1732 = vld [vmem:[%s1705 + $0x68] sm:$0xf]
        %v1733 = vld [vmem:[%s1705 + $0x6c] sm:$0xf]
        %v1734 = vld [vmem:[%s1705 + $0x70] sm:$0xf]
        %v1735 = vld [vmem:[%s1705 + $0x74] sm:$0xf]
        %v1736 = vld [vmem:[%s1705 + $0x78] sm:$0xf]
        %v1737 = vld [vmem:[%s1705 + $0x7c] sm:$0xf]
        %v1738 = vld [vmem:[%s1705 + $0x80] sm:$0xf]
        %v1739 = vld [vmem:[%s1705 + $0x84] sm:$0xf]
        %v1740 = vld [vmem:[%s1705 + $0x88] sm:$0xf]
        %v1741 = vld [vmem:[%s1705 + $0x8c] sm:$0xf]
        %v1742 = vld [vmem:[%s1705 + $0x90] sm:$0xf]
        %v1743 = vld [vmem:[%s1705 + $0x94] sm:$0xf]
        %v1744 = vld [vmem:[%s1705 + $0x98] sm:$0xf]
        %v1745 = vld [vmem:[%s1705 + $0x9c] sm:$0xf]
        %v1746 = vld [vmem:[%s1705 + $0xa0] sm:$0xf]
        %v1747 = vld [vmem:[%s1705 + $0xa4] sm:$0xf]
        %v1748 = vld [vmem:[%s1705 + $0xa8] sm:$0xf]
        %v1749 = vld [vmem:[%s1705 + $0xac] sm:$0xf]
        %v1750 = vld [vmem:[%s1705 + $0xb0] sm:$0xf]
        %v1751 = vld [vmem:[%s1705 + $0xb4] sm:$0xf]
        %v1752 = vld [vmem:[%s1705 + $0xb8] sm:$0xf]
        %v1753 = vld [vmem:[%s1705 + $0xbc] sm:$0xf]
        %v1754 = vld [vmem:[%s1705 + $0xc0] sm:$0xf]
        %v1755 = vld [vmem:[%s1705 + $0xc4] sm:$0xf]
        %v1756 = vld [vmem:[%s1705 + $0xc8] sm:$0xf]
        %v1757 = vld [vmem:[%s1705 + $0xcc] sm:$0xf]
        %v1758 = vld [vmem:[%s1705 + $0xd0] sm:$0xf]
        %v1759 = vld [vmem:[%s1705 + $0xd4] sm:$0xf]
        %v1760 = vld [vmem:[%s1705 + $0xd8] sm:$0xf]
        %v1761 = vld [vmem:[%s1705 + $0xdc] sm:$0xf]
        %v1762 = vld [vmem:[%s1705 + $0xe0] sm:$0xf]
        %v1763 = vld [vmem:[%s1705 + $0xe4] sm:$0xf]
        %v1764 = vld [vmem:[%s1705 + $0xe8] sm:$0xf]
        %v1765 = vld [vmem:[%s1705 + $0xec] sm:$0xf]
        %v1766 = vld [vmem:[%s1705 + $0xf0] sm:$0xf]
        %v1767 = vld [vmem:[%s1705 + $0xf4] sm:$0xf]
        %v1768 = vld [vmem:[%s1705 + $0xf8] sm:$0xf]
        %v1769 = vld [vmem:[%s1705 + $0xfc] sm:$0xf]
        %v1770 = vld [vmem:[%s1705 + $0x100] sm:$0xf]
        %v1771 = vld [vmem:[%s1705 + $0x104] sm:$0xf]
        %v1772 = vld [vmem:[%s1705 + $0x108] sm:$0xf]
        %v1773 = vld [vmem:[%s1705 + $0x10c] sm:$0xf]
        %v1774 = vld [vmem:[%s1705 + $0x110] sm:$0xf]
        %v1775 = vld [vmem:[%s1705 + $0x114] sm:$0xf]
        %v1776 = vld [vmem:[%s1705 + $0x118] sm:$0xf]
        %v1777 = vld [vmem:[%s1705 + $0x11c] sm:$0xf]
        %v1778 = vld [vmem:[%s1705 + $0x120] sm:$0xf]
        %v1779 = vld [vmem:[%s1705 + $0x124] sm:$0xf]
        %v1780 = vld [vmem:[%s1705 + $0x128] sm:$0xf]
        %v1781 = vld [vmem:[%s1705 + $0x12c] sm:$0xf]
        %v1782 = vld [vmem:[%s1705 + $0x130] sm:$0xf]
        %v1783 = vld [vmem:[%s1705 + $0x134] sm:$0xf]
        %v1784 = vld [vmem:[%s1705 + $0x138] sm:$0xf]
        %v1785 = vld [vmem:[%s1705 + $0x13c] sm:$0xf]
        %v1786 = vld [vmem:[%s1705 + $0x140] sm:$0xf]
        %v1787 = vld [vmem:[%s1705 + $0x144] sm:$0xf]
        %v1788 = vld [vmem:[%s1705 + $0x148] sm:$0xf]
        %v1789 = vld [vmem:[%s1705 + $0x14c] sm:$0xf]
        %v1790 = vld [vmem:[%s1705 + $0x150] sm:$0xf]
        %v1791 = vld [vmem:[%s1705 + $0x154] sm:$0xf]
        %v1792 = vld [vmem:[%s1705 + $0x158] sm:$0xf]
        %v1793 = vld [vmem:[%s1705 + $0x15c] sm:$0xf]
        %v1794 = vld [vmem:[%s1705 + $0x160] sm:$0xf]
        %v1795 = vld [vmem:[%s1705 + $0x164] sm:$0xf]
        %v1796 = vld [vmem:[%s1705 + $0x168] sm:$0xf]
        %v1797 = vld [vmem:[%s1705 + $0x16c] sm:$0xf]
        %v1798 = vld [vmem:[%s1705 + $0x170] sm:$0xf]
        %v1799 = vld [vmem:[%s1705 + $0x174] sm:$0xf]
        %v1800 = vld [vmem:[%s1705 + $0x178] sm:$0xf]
        %v1801 = vld [vmem:[%s1705 + $0x17c] sm:$0xf]
        %v1802 = vld [vmem:[%s1705 + $0x180] sm:$0xf]
        %v1803 = vld [vmem:[%s1705 + $0x184] sm:$0xf]
        %v1804 = vld [vmem:[%s1705 + $0x188] sm:$0xf]
        %v1805 = vld [vmem:[%s1705 + $0x18c] sm:$0xf]
        %v1806 = vld [vmem:[%s1705 + $0x190] sm:$0xf]
        %v1807 = vld [vmem:[%s1705 + $0x194] sm:$0xf]
        %v1808 = vld [vmem:[%s1705 + $0x198] sm:$0xf]
        %v1809 = vld [vmem:[%s1705 + $0x19c] sm:$0xf]
        %v1810 = vld [vmem:[%s1705 + $0x1a0] sm:$0xf]
        %v1811 = vld [vmem:[%s1705 + $0x1a4] sm:$0xf]
        %v1812 = vld [vmem:[%s1705 + $0x1a8] sm:$0xf]
        %v1813 = vld [vmem:[%s1705 + $0x1ac] sm:$0xf]
        %v1814 = vld [vmem:[%s1705 + $0x1b0] sm:$0xf]
        %v1815 = vld [vmem:[%s1705 + $0x1b4] sm:$0xf]
        %v1816 = vld [vmem:[%s1705 + $0x1b8] sm:$0xf]
        %v1817 = vld [vmem:[%s1705 + $0x1bc] sm:$0xf]
        %v1818 = vld [vmem:[%s1705 + $0x1c0] sm:$0xf]
        %v1819 = vld [vmem:[%s1705 + $0x1c4] sm:$0xf]
        %v1820 = vld [vmem:[%s1705 + $0x1c8] sm:$0xf]
        %v1821 = vld [vmem:[%s1705 + $0x1cc] sm:$0xf]
        %v1822 = vld [vmem:[%s1705 + $0x1d0] sm:$0xf]
        %v1823 = vld [vmem:[%s1705 + $0x1d4] sm:$0xf]
        %v1824 = vld [vmem:[%s1705 + $0x1d8] sm:$0xf]
        %v1825 = vld [vmem:[%s1705 + $0x1dc] sm:$0xf]
        %v1826 = vld [vmem:[%s1705 + $0x1e0] sm:$0xf]
        %v1827 = vld [vmem:[%s1705 + $0x1e4] sm:$0xf]
        %v1828 = vld [vmem:[%s1705 + $0x1e8] sm:$0xf]
        %v1829 = vld [vmem:[%s1705 + $0x1ec] sm:$0xf]
        %v1830 = vld [vmem:[%s1705 + $0x1f0] sm:$0xf]
        %v1831 = vld [vmem:[%s1705 + $0x1f4] sm:$0xf]
        %v1832 = vld [vmem:[%s1705 + $0x1f8] sm:$0xf]
        %v1833 = vld [vmem:[%s1705 + $0x1fc] sm:$0xf]
        %v1834 = vld [vmem:[%s1705 + $0x200] sm:$0xf]
        %v1835 = vld [vmem:[%s1705 + $0x204] sm:$0xf]
        %v1836 = vld [vmem:[%s1705 + $0x208] sm:$0xf]
        %v1837 = vld [vmem:[%s1705 + $0x20c] sm:$0xf]
        %v1838 = vld [vmem:[%s1705 + $0x210] sm:$0xf]
        %v1839 = vld [vmem:[%s1705 + $0x214] sm:$0xf]
        %v1840 = vld [vmem:[%s1705 + $0x218] sm:$0xf]
        %v1841 = vld [vmem:[%s1705 + $0x21c] sm:$0xf]
        %v1842 = vld [vmem:[%s1705 + $0x220] sm:$0xf]
        %v1843 = vld [vmem:[%s1705 + $0x224] sm:$0xf]
        %v1844 = vld [vmem:[%s1705 + $0x228] sm:$0xf]
        %v1845 = vld [vmem:[%s1705 + $0x22c] sm:$0xf]
        %v1846 = vld [vmem:[%s1705 + $0x230] sm:$0xf]
        %v1847 = vld [vmem:[%s1705 + $0x234] sm:$0xf]
        %v1848 = vld [vmem:[%s1705 + $0x238] sm:$0xf]
        %v1849 = vld [vmem:[%s1705 + $0x23c] sm:$0xf]
        %v1850 = vunpack.c.l.b16 %v1256
        %v1851 = vunpack.c.l.b16 %v1320
        %v1852 = vunpack.c.l.b16 %v1263
        %v1853 = vunpack.c.l.b16 %v1321
        %v1854 = vunpack.c.l.b16 %v1270
        %v1855 = vunpack.c.l.b16 %v1322
        %v1856 = vunpack.c.l.b16 %v1277
        %v1857 = vunpack.c.l.b16 %v1323
        %v1858 = vunpack.c.l.b16 %v1284
        %v1859 = vunpack.c.l.b16 %v1324
        %v1860 = vunpack.c.l.b16 %v1291
        %v1861 = vunpack.c.l.b16 %v1325
        %v1862 = vunpack.c.l.b16 %v1298
        %v1863 = vunpack.c.l.b16 %v1326
        %v1864 = vunpack.c.l.b16 %v1305
        %v1865 = vunpack.c.l.b16 %v1327
        %v1866 = vunpack.c.l.b16 %v1312
        %v1867 = vunpack.c.l.b16 %v1328
        %v1868 = vunpack.c.l.b16 %v1319
        %v1869 = vunpack.c.l.b16 %v1329
        %v1870 = vpack.c.b16 %v772, %v770
        %v1871 = vpack.c.b16 %v1647, %v1645
        %v1872 = vpack.c.b16 %v1648, %v1646
        %v1873 = vpack.c.b16 %v774, %v772
        %v1874 = vpack.c.b16 %v1649, %v1647
        %v1875 = vpack.c.b16 %v1650, %v1648
        %v1876 = vpack.c.b16 %v776, %v774
        %v1877 = vpack.c.b16 %v1651, %v1649
        %v1878 = vpack.c.b16 %v1652, %v1650
        %v1879 = vpack.c.b16 %v778, %v776
        %v1880 = vpack.c.b16 %v1653, %v1651
        %v1881 = vpack.c.b16 %v1654, %v1652
        %v1882 = vpack.c.b16 %v780, %v778
        %v1883 = vpack.c.b16 %v1655, %v1653
        %v1884 = vpack.c.b16 %v1656, %v1654
        %v1885 = vpack.c.b16 %v782, %v780
        %v1886 = vpack.c.b16 %v1657, %v1655
        %v1887 = vpack.c.b16 %v1658, %v1656
        %v1888 = vpack.c.b16 %v784, %v782
        %v1889 = vpack.c.b16 %v1659, %v1657
        %v1890 = vpack.c.b16 %v1660, %v1658
        %v1891 = vpack.c.b16 %v786, %v784
        %v1892 = vpack.c.b16 %v1661, %v1659
        %v1893 = vpack.c.b16 %v1662, %v1660
        %v1894 = vpack.c.b16 %v788, %v786
        %v1895 = vpack.c.b16 %v1663, %v1661
        %v1896 = vpack.c.b16 %v1664, %v1662
        %v1897 = vpack.c.b16 %v922, %v920
        %v1898 = vpack.c.b16 %v1667, %v1665
        %v1899 = vpack.c.b16 %v1668, %v1666
        %v1900 = vpack.c.b16 %v924, %v922
        %v1901 = vpack.c.b16 %v1669, %v1667
        %v1902 = vpack.c.b16 %v1670, %v1668
        %v1903 = vpack.c.b16 %v926, %v924
        %v1904 = vpack.c.b16 %v1671, %v1669
        %v1905 = vpack.c.b16 %v1672, %v1670
        %v1906 = vpack.c.b16 %v928, %v926
        %v1907 = vpack.c.b16 %v1673, %v1671
        %v1908 = vpack.c.b16 %v1674, %v1672
        %v1909 = vpack.c.b16 %v930, %v928
        %v1910 = vpack.c.b16 %v1675, %v1673
        %v1911 = vpack.c.b16 %v1676, %v1674
        %v1912 = vpack.c.b16 %v932, %v930
        %v1913 = vpack.c.b16 %v1677, %v1675
        %v1914 = vpack.c.b16 %v1678, %v1676
        %v1915 = vpack.c.b16 %v934, %v932
        %v1916 = vpack.c.b16 %v1679, %v1677
        %v1917 = vpack.c.b16 %v1680, %v1678
        %v1918 = vpack.c.b16 %v936, %v934
        %v1919 = vpack.c.b16 %v1681, %v1679
        %v1920 = vpack.c.b16 %v1682, %v1680
        %v1921 = vpack.c.b16 %v938, %v936
        %v1922 = vpack.c.b16 %v1683, %v1681
        %v1923 = vpack.c.b16 %v1684, %v1682
        %v1924 = vpack.c.b16 %v1072, %v1070
        %v1925 = vpack.c.b16 %v1687, %v1685
        %v1926 = vpack.c.b16 %v1688, %v1686
        %v1927 = vpack.c.b16 %v1074, %v1072
        %v1928 = vpack.c.b16 %v1689, %v1687
        %v1929 = vpack.c.b16 %v1690, %v1688
        %v1930 = vpack.c.b16 %v1076, %v1074
        %v1931 = vpack.c.b16 %v1691, %v1689
        %v1932 = vpack.c.b16 %v1692, %v1690
        %v1933 = vpack.c.b16 %v1078, %v1076
        %v1934 = vpack.c.b16 %v1693, %v1691
        %v1935 = vpack.c.b16 %v1694, %v1692
        %v1936 = vpack.c.b16 %v1080, %v1078
        %v1937 = vpack.c.b16 %v1695, %v1693
        %v1938 = vpack.c.b16 %v1696, %v1694
        %v1939 = vpack.c.b16 %v1082, %v1080
        %v1940 = vpack.c.b16 %v1697, %v1695
        %v1941 = vpack.c.b16 %v1698, %v1696
        %v1942 = vpack.c.b16 %v1084, %v1082
        %v1943 = vpack.c.b16 %v1699, %v1697
        %v1944 = vpack.c.b16 %v1700, %v1698
        %v1945 = vpack.c.b16 %v1086, %v1084
        %v1946 = vpack.c.b16 %v1701, %v1699
        %v1947 = vpack.c.b16 %v1702, %v1700
        %v1948 = vpack.c.b16 %v1088, %v1086
        %v1949 = vpack.c.b16 %v1703, %v1701
        %v1950 = vpack.c.b16 %v1704, %v1702
        %v1951 = vpack.c.b16 %v1222, %v1220
        %v1952 = vpack.c.b16 %v1852, %v1850
        %v1953 = vpack.c.b16 %v1853, %v1851
        %v1954 = vpack.c.b16 %v1224, %v1222
        %v1955 = vpack.c.b16 %v1854, %v1852
        %v1956 = vpack.c.b16 %v1855, %v1853
        %v1957 = vpack.c.b16 %v1226, %v1224
        %v1958 = vpack.c.b16 %v1856, %v1854
        %v1959 = vpack.c.b16 %v1857, %v1855
        %v1960 = vpack.c.b16 %v1228, %v1226
        %v1961 = vpack.c.b16 %v1858, %v1856
        %v1962 = vpack.c.b16 %v1859, %v1857
        %v1963 = vpack.c.b16 %v1230, %v1228
        %v1964 = vpack.c.b16 %v1860, %v1858
        %v1965 = vpack.c.b16 %v1861, %v1859
        %v1966 = vpack.c.b16 %v1232, %v1230
        %v1967 = vpack.c.b16 %v1862, %v1860
        %v1968 = vpack.c.b16 %v1863, %v1861
        %v1969 = vpack.c.b16 %v1234, %v1232
        %v1970 = vpack.c.b16 %v1864, %v1862
        %v1971 = vpack.c.b16 %v1865, %v1863
        %v1972 = vpack.c.b16 %v1236, %v1234
        %v1973 = vpack.c.b16 %v1866, %v1864
        %v1974 = vpack.c.b16 %v1867, %v1865
        %v1975 = vpack.c.b16 %v1238, %v1236
        %v1976 = vpack.c.b16 %v1868, %v1866
        %v1977 = vpack.c.b16 %v1869, %v1867
        %v2230 = vunpack.c.l.b16 %v1706
        %v2231 = vunpack.c.l.b16 %v1707
        %v2232 = vunpack.c.l.b16 %v1708
        %v2233 = vunpack.c.l.b16 %v1709
        %v2234 = vunpack.c.l.b16 %v1710
        %v2235 = vunpack.c.l.b16 %v1711
        %v2236 = vunpack.c.l.b16 %v1712
        %v2237 = vunpack.c.l.b16 %v1713
        %v2238 = vunpack.c.l.b16 %v1714
        %v2239 = vunpack.c.l.b16 %v1715
        %v2240 = vunpack.c.l.b16 %v1716
        %v2241 = vunpack.c.l.b16 %v1717
        %v2242 = vunpack.c.l.b16 %v1718
        %v2243 = vunpack.c.l.b16 %v1719
        %v2244 = vunpack.c.l.b16 %v1720
        %v2245 = vunpack.c.l.b16 %v1721
        %v2246 = vunpack.c.l.b16 %v1722
        %v2247 = vunpack.c.l.b16 %v1723
        %v2248 = vunpack.c.l.b16 %v1724
        %v2249 = vunpack.c.l.b16 %v1725
        %v2250 = vunpack.c.l.b16 %v1726
        %v2251 = vunpack.c.l.b16 %v1727
        %v2252 = vunpack.c.l.b16 %v1728
        %v2253 = vunpack.c.l.b16 %v1729
        %v2254 = vunpack.c.l.b16 %v1730
        %v2255 = vunpack.c.l.b16 %v1731
        %v2256 = vunpack.c.l.b16 %v1732
        %v2257 = vunpack.c.l.b16 %v1733
        %v2258 = vunpack.c.l.b16 %v1734
        %v2259 = vunpack.c.l.b16 %v1735
        %v2260 = vunpack.c.l.b16 %v1736
        %v2261 = vunpack.c.l.b16 %v1737
        %v2262 = vunpack.c.l.b16 %v1738
        %v2263 = vunpack.c.l.b16 %v1739
        %v2264 = vunpack.c.l.b16 %v1740
        %v2265 = vunpack.c.l.b16 %v1741
        %v2266 = vunpack.c.l.b16 %v1742
        %v2267 = vunpack.c.l.b16 %v1743
        %v2268 = vunpack.c.l.b16 %v1744
        %v2269 = vunpack.c.l.b16 %v1745
        %v2270 = vunpack.c.l.b16 %v1746
        %v2271 = vunpack.c.l.b16 %v1747
        %v2272 = vunpack.c.l.b16 %v1748
        %v2273 = vunpack.c.l.b16 %v1749
        %v2274 = vunpack.c.l.b16 %v1750
        %v2275 = vunpack.c.l.b16 %v1751
        %v2276 = vunpack.c.l.b16 %v1752
        %v2277 = vunpack.c.l.b16 %v1753
        %v2278 = vunpack.c.l.b16 %v1754
        %v2279 = vunpack.c.l.b16 %v1755
        %v2280 = vunpack.c.l.b16 %v1756
        %v2281 = vunpack.c.l.b16 %v1757
        %v2282 = vunpack.c.l.b16 %v1758
        %v2283 = vunpack.c.l.b16 %v1759
        %v2284 = vunpack.c.l.b16 %v1760
        %v2285 = vunpack.c.l.b16 %v1761
        %v2286 = vunpack.c.l.b16 %v1762
        %v2287 = vunpack.c.l.b16 %v1763
        %v2288 = vunpack.c.l.b16 %v1764
        %v2289 = vunpack.c.l.b16 %v1765
        %v2290 = vunpack.c.l.b16 %v1766
        %v2291 = vunpack.c.l.b16 %v1767
        %v2292 = vunpack.c.l.b16 %v1768
        %v2293 = vunpack.c.l.b16 %v1769
        %v2294 = vunpack.c.l.b16 %v1770
        %v2295 = vunpack.c.l.b16 %v1771
        %v2296 = vunpack.c.l.b16 %v1772
        %v2297 = vunpack.c.l.b16 %v1773
        %v2298 = vunpack.c.l.b16 %v1774
        %v2299 = vunpack.c.l.b16 %v1775
        %v2300 = vunpack.c.l.b16 %v1776
        %v2301 = vunpack.c.l.b16 %v1777
        %v2302 = vunpack.c.l.b16 %v1778
        %v2303 = vunpack.c.l.b16 %v1779
        %v2304 = vunpack.c.l.b16 %v1780
        %v2305 = vunpack.c.l.b16 %v1781
        %v2306 = vunpack.c.l.b16 %v1782
        %v2307 = vunpack.c.l.b16 %v1783
        %v2308 = vunpack.c.l.b16 %v1784
        %v2309 = vunpack.c.l.b16 %v1785
        %v2310 = vunpack.c.l.b16 %v1786
        %v2311 = vunpack.c.l.b16 %v1787
        %v2312 = vunpack.c.l.b16 %v1788
        %v2313 = vunpack.c.l.b16 %v1789
        %v2314 = vunpack.c.l.b16 %v1790
        %v2315 = vunpack.c.l.b16 %v1791
        %v2316 = vunpack.c.l.b16 %v1792
        %v2317 = vunpack.c.l.b16 %v1793
        %v2318 = vunpack.c.l.b16 %v1794
        %v2319 = vunpack.c.l.b16 %v1795
        %v2320 = vunpack.c.l.b16 %v1796
        %v2321 = vunpack.c.l.b16 %v1797
        %v2322 = vunpack.c.l.b16 %v1798
        %v2323 = vunpack.c.l.b16 %v1799
        %v2324 = vunpack.c.l.b16 %v1800
        %v2325 = vunpack.c.l.b16 %v1801
        %v2326 = vunpack.c.l.b16 %v1802
        %v2327 = vunpack.c.l.b16 %v1803
        %v2328 = vunpack.c.l.b16 %v1804
        %v2329 = vunpack.c.l.b16 %v1805
        %v2330 = vunpack.c.l.b16 %v1806
        %v2331 = vunpack.c.l.b16 %v1807
        %v2332 = vunpack.c.l.b16 %v1808
        %v2333 = vunpack.c.l.b16 %v1809
        %v2334 = vunpack.c.l.b16 %v1810
        %v2335 = vunpack.c.l.b16 %v1811
        %v2336 = vunpack.c.l.b16 %v1812
        %v2337 = vunpack.c.l.b16 %v1813
        %v2338 = vunpack.c.l.b16 %v1814
        %v2339 = vunpack.c.l.b16 %v1815
        %v2340 = vunpack.c.l.b16 %v1816
        %v2341 = vunpack.c.l.b16 %v1817
        %v2342 = vunpack.c.l.b16 %v1818
        %v2343 = vunpack.c.l.b16 %v1819
        %v2344 = vunpack.c.l.b16 %v1820
        %v2345 = vunpack.c.l.b16 %v1821
        %v2346 = vunpack.c.l.b16 %v1822
        %v2347 = vunpack.c.l.b16 %v1823
        %v2348 = vunpack.c.l.b16 %v1824
        %v2349 = vunpack.c.l.b16 %v1825
        %v2350 = vunpack.c.l.b16 %v1826
        %v2351 = vunpack.c.l.b16 %v1827
        %v2352 = vunpack.c.l.b16 %v1828
        %v2353 = vunpack.c.l.b16 %v1829
        %v2354 = vunpack.c.l.b16 %v1830
        %v2355 = vunpack.c.l.b16 %v1831
        %v2356 = vunpack.c.l.b16 %v1832
        %v2357 = vunpack.c.l.b16 %v1833
        %v2358 = vunpack.c.l.b16 %v1834
        %v2359 = vunpack.c.l.b16 %v1835
        %v2360 = vunpack.c.l.b16 %v1836
        %v2361 = vunpack.c.l.b16 %v1837
        %v2362 = vunpack.c.l.b16 %v1838
        %v2363 = vunpack.c.l.b16 %v1839
        %v2364 = vunpack.c.l.b16 %v1840
        %v2365 = vunpack.c.l.b16 %v1841
        %v2366 = vunpack.c.l.b16 %v1842
        %v2367 = vunpack.c.l.b16 %v1843
        %v2368 = vunpack.c.l.b16 %v1844
        %v2369 = vunpack.c.l.b16 %v1845
        %v2370 = vunpack.c.l.b16 %v1846
        %v2371 = vunpack.c.l.b16 %v1847
        %v2372 = vunpack.c.l.b16 %v1848
        %v2373 = vunpack.c.l.b16 %v1849
        %v2374 = vpack.c.b16 %v2231, %v2230
        %v2375 = vpack.c.b16 %v2233, %v2232
        %v2376 = vpack.c.b16 %v2235, %v2234
        %v2377 = vpack.c.b16 %v2237, %v2236
        %v2378 = vpack.c.b16 %v2239, %v2238
        %v2379 = vpack.c.b16 %v2241, %v2240
        %v2380 = vpack.c.b16 %v2243, %v2242
        %v2381 = vpack.c.b16 %v2245, %v2244
        %v2382 = vpack.c.b16 %v2247, %v2246
        %v2383 = vpack.c.b16 %v2249, %v2248
        %v2384 = vpack.c.b16 %v2251, %v2250
        %v2385 = vpack.c.b16 %v2253, %v2252
        %v2386 = vpack.c.b16 %v2255, %v2254
        %v2387 = vpack.c.b16 %v2257, %v2256
        %v2388 = vpack.c.b16 %v2259, %v2258
        %v2389 = vpack.c.b16 %v2261, %v2260
        %v2390 = vpack.c.b16 %v2263, %v2262
        %v2391 = vpack.c.b16 %v2265, %v2264
        %v2392 = vpack.c.b16 %v2267, %v2266
        %v2393 = vpack.c.b16 %v2269, %v2268
        %v2394 = vpack.c.b16 %v2271, %v2270
        %v2395 = vpack.c.b16 %v2273, %v2272
        %v2396 = vpack.c.b16 %v2275, %v2274
        %v2397 = vpack.c.b16 %v2277, %v2276
        %v2398 = vpack.c.b16 %v2279, %v2278
        %v2399 = vpack.c.b16 %v2281, %v2280
        %v2400 = vpack.c.b16 %v2283, %v2282
        %v2401 = vpack.c.b16 %v2285, %v2284
        %v2402 = vpack.c.b16 %v2287, %v2286
        %v2403 = vpack.c.b16 %v2289, %v2288
        %v2404 = vpack.c.b16 %v2291, %v2290
        %v2405 = vpack.c.b16 %v2293, %v2292
        %v2406 = vpack.c.b16 %v2295, %v2294
        %v2407 = vpack.c.b16 %v2297, %v2296
        %v2408 = vpack.c.b16 %v2299, %v2298
        %v2409 = vpack.c.b16 %v2301, %v2300
        %v2410 = vpack.c.b16 %v2303, %v2302
        %v2411 = vpack.c.b16 %v2305, %v2304
        %v2412 = vpack.c.b16 %v2307, %v2306
        %v2413 = vpack.c.b16 %v2309, %v2308
        %v2414 = vpack.c.b16 %v2311, %v2310
        %v2415 = vpack.c.b16 %v2313, %v2312
        %v2416 = vpack.c.b16 %v2315, %v2314
        %v2417 = vpack.c.b16 %v2317, %v2316
        %v2418 = vpack.c.b16 %v2319, %v2318
        %v2419 = vpack.c.b16 %v2321, %v2320
        %v2420 = vpack.c.b16 %v2323, %v2322
        %v2421 = vpack.c.b16 %v2325, %v2324
        %v2422 = vpack.c.b16 %v2327, %v2326
        %v2423 = vpack.c.b16 %v2329, %v2328
        %v2424 = vpack.c.b16 %v2331, %v2330
        %v2425 = vpack.c.b16 %v2333, %v2332
        %v2426 = vpack.c.b16 %v2335, %v2334
        %v2427 = vpack.c.b16 %v2337, %v2336
        %v2428 = vpack.c.b16 %v2339, %v2338
        %v2429 = vpack.c.b16 %v2341, %v2340
        %v2430 = vpack.c.b16 %v2343, %v2342
        %v2431 = vpack.c.b16 %v2345, %v2344
        %v2432 = vpack.c.b16 %v2347, %v2346
        %v2433 = vpack.c.b16 %v2349, %v2348
        %v2434 = vpack.c.b16 %v2351, %v2350
        %v2435 = vpack.c.b16 %v2353, %v2352
        %v2436 = vpack.c.b16 %v2355, %v2354
        %v2437 = vpack.c.b16 %v2357, %v2356
        %v2438 = vpack.c.b16 %v2359, %v2358
        %v2439 = vpack.c.b16 %v2361, %v2360
        %v2440 = vpack.c.b16 %v2363, %v2362
        %v2441 = vpack.c.b16 %v2365, %v2364
        %v2442 = vpack.c.b16 %v2367, %v2366
        %v2443 = vpack.c.b16 %v2369, %v2368
        %v2444 = vpack.c.b16 %v2371, %v2370
        %v2445 = vpack.c.b16 %v2373, %v2372
        %2518 = vmatpush.bf16.msra.mxu0 %v2381
        %2519 = vmatpush.bf16.msra.mxu0 %v2380
        %2520 = vmatpush.bf16.msra.mxu0 %v2379
        %2521 = vmatpush.bf16.msra.mxu0 %v2378
        %2522 = vmatpush.bf16.msra.mxu0 %v2377
        %2523 = vmatpush.bf16.msra.mxu0 %v2376
        %2524 = vmatpush.bf16.msra.mxu0 %v2375
        %2525 = vmatpush.bf16.msra.mxu0 %v2374
        %2526 = vmatmul.bf16.gmra.mxu0 %v1870
        %v2527 = vpop.f32.mrf.mxu0
        %v2528 = vadd.f32 0.0, %v2527
        %v2529 = vpop.f32.mrf.mxu0
        %v2530 = vadd.f32 0.0, %v2529
        %2531 = vmatmul.bf16.gmra.mxu0 %v1876
        %v2532 = vpop.f32.mrf.mxu0
        %v2533 = vadd.f32 0.0, %v2532
        %v2534 = vpop.f32.mrf.mxu0
        %v2535 = vadd.f32 0.0, %v2534
        %2536 = vmatmul.bf16.gmra.mxu0 %v1882
        %v2537 = vpop.f32.mrf.mxu0
        %v2538 = vadd.f32 0.0, %v2537
        %v2539 = vpop.f32.mrf.mxu0
        %v2540 = vadd.f32 0.0, %v2539
        %2541 = vmatmul.bf16.gmra.mxu0 %v1888
        %v2542 = vpop.f32.mrf.mxu0
        %v2543 = vadd.f32 0.0, %v2542
        %v2544 = vpop.f32.mrf.mxu0
        %v2545 = vadd.f32 0.0, %v2544
        %2546 = vmatmul.bf16.gmra.mxu0 %v1897
        %v2547 = vpop.f32.mrf.mxu0
        %v2548 = vadd.f32 0.0, %v2547
        %v2549 = vpop.f32.mrf.mxu0
        %v2550 = vadd.f32 0.0, %v2549
        %2551 = vmatmul.bf16.gmra.mxu0 %v1903
        %v2552 = vpop.f32.mrf.mxu0
        %v2553 = vadd.f32 0.0, %v2552
        %v2554 = vpop.f32.mrf.mxu0
        %v2555 = vadd.f32 0.0, %v2554
        %2556 = vmatmul.bf16.gmra.mxu0 %v1909
        %v2557 = vpop.f32.mrf.mxu0
        %v2558 = vadd.f32 0.0, %v2557
        %v2559 = vpop.f32.mrf.mxu0
        %v2560 = vadd.f32 0.0, %v2559
        %2561 = vmatmul.bf16.gmra.mxu0 %v1915
        %v2562 = vpop.f32.mrf.mxu0
        %v2563 = vadd.f32 0.0, %v2562
        %v2564 = vpop.f32.mrf.mxu0
        %v2565 = vadd.f32 0.0, %v2564
        %2566 = vmatmul.bf16.gmra.mxu0 %v1924
        %v2567 = vpop.f32.mrf.mxu0
        %v2568 = vadd.f32 0.0, %v2567
        %v2569 = vpop.f32.mrf.mxu0
        %v2570 = vadd.f32 0.0, %v2569
        %2571 = vmatmul.bf16.gmra.mxu0 %v1930
        %v2572 = vpop.f32.mrf.mxu0
        %v2573 = vadd.f32 0.0, %v2572
        %v2574 = vpop.f32.mrf.mxu0
        %v2575 = vadd.f32 0.0, %v2574
        %2576 = vmatmul.bf16.gmra.mxu0 %v1936
        %v2577 = vpop.f32.mrf.mxu0
        %v2578 = vadd.f32 0.0, %v2577
        %v2579 = vpop.f32.mrf.mxu0
        %v2580 = vadd.f32 0.0, %v2579
        %2581 = vmatmul.bf16.gmra.mxu0 %v1942
        %v2582 = vpop.f32.mrf.mxu0
        %v2583 = vadd.f32 0.0, %v2582
        %v2584 = vpop.f32.mrf.mxu0
        %v2585 = vadd.f32 0.0, %v2584
        %2586 = vmatmul.bf16.gmra.mxu0 %v1951
        %v2587 = vpop.f32.mrf.mxu0
        %v2588 = vadd.f32 0.0, %v2587
        %v2589 = vpop.f32.mrf.mxu0
        %v2590 = vadd.f32 0.0, %v2589
        %2591 = vmatmul.bf16.gmra.mxu0 %v1957
        %v2592 = vpop.f32.mrf.mxu0
        %v2593 = vadd.f32 0.0, %v2592
        %v2594 = vpop.f32.mrf.mxu0
        %v2595 = vadd.f32 0.0, %v2594
        %2596 = vmatmul.bf16.gmra.mxu0 %v1963
        %v2597 = vpop.f32.mrf.mxu0
        %v2598 = vadd.f32 0.0, %v2597
        %v2599 = vpop.f32.mrf.mxu0
        %v2600 = vadd.f32 0.0, %v2599
        %2601 = vmatmul.bf16.gmra.mxu0 %v1969
        %v2602 = vpop.f32.mrf.mxu0
        %v2603 = vadd.f32 0.0, %v2602
        %v2604 = vpop.f32.mrf.mxu0
        %v2605 = vadd.f32 0.0, %v2604
        %2606 = vdwg.mxu0
        %2607 = vmatpush.bf16.msra.mxu0 %v2389
        %2608 = vmatpush.bf16.msra.mxu0 %v2388
        %2609 = vmatpush.bf16.msra.mxu0 %v2387
        %2610 = vmatpush.bf16.msra.mxu0 %v2386
        %2611 = vmatpush.bf16.msra.mxu0 %v2385
        %2612 = vmatpush.bf16.msra.mxu0 %v2384
        %2613 = vmatpush.bf16.msra.mxu0 %v2383
        %2614 = vmatpush.bf16.msra.mxu0 %v2382
        %2615 = vmatmul.bf16.gmra.mxu0 %v1871
        %v2616 = vpop.f32.mrf.mxu0
        %v2617 = vadd.f32 %v2528, %v2616
        %v2618 = vpop.f32.mrf.mxu0
        %v2619 = vadd.f32 %v2530, %v2618
        %2620 = vmatmul.bf16.gmra.mxu0 %v1877
        %v2621 = vpop.f32.mrf.mxu0
        %v2622 = vadd.f32 %v2533, %v2621
        %v2623 = vpop.f32.mrf.mxu0
        %v2624 = vadd.f32 %v2535, %v2623
        %2625 = vmatmul.bf16.gmra.mxu0 %v1883
        %v2626 = vpop.f32.mrf.mxu0
        %v2627 = vadd.f32 %v2538, %v2626
        %v2628 = vpop.f32.mrf.mxu0
        %v2629 = vadd.f32 %v2540, %v2628
        %2630 = vmatmul.bf16.gmra.mxu0 %v1889
        %v2631 = vpop.f32.mrf.mxu0
        %v2632 = vadd.f32 %v2543, %v2631
        %v2633 = vpop.f32.mrf.mxu0
        %v2634 = vadd.f32 %v2545, %v2633
        %2635 = vmatmul.bf16.gmra.mxu0 %v1898
        %v2636 = vpop.f32.mrf.mxu0
        %v2637 = vadd.f32 %v2548, %v2636
        %v2638 = vpop.f32.mrf.mxu0
        %v2639 = vadd.f32 %v2550, %v2638
        %2640 = vmatmul.bf16.gmra.mxu0 %v1904
        %v2641 = vpop.f32.mrf.mxu0
        %v2642 = vadd.f32 %v2553, %v2641
        %v2643 = vpop.f32.mrf.mxu0
        %v2644 = vadd.f32 %v2555, %v2643
        %2645 = vmatmul.bf16.gmra.mxu0 %v1910
        %v2646 = vpop.f32.mrf.mxu0
        %v2647 = vadd.f32 %v2558, %v2646
        %v2648 = vpop.f32.mrf.mxu0
        %v2649 = vadd.f32 %v2560, %v2648
        %2650 = vmatmul.bf16.gmra.mxu0 %v1916
        %v2651 = vpop.f32.mrf.mxu0
        %v2652 = vadd.f32 %v2563, %v2651
        %v2653 = vpop.f32.mrf.mxu0
        %v2654 = vadd.f32 %v2565, %v2653
        %2655 = vmatmul.bf16.gmra.mxu0 %v1925
        %v2656 = vpop.f32.mrf.mxu0
        %v2657 = vadd.f32 %v2568, %v2656
        %v2658 = vpop.f32.mrf.mxu0
        %v2659 = vadd.f32 %v2570, %v2658
        %2660 = vmatmul.bf16.gmra.mxu0 %v1931
        %v2661 = vpop.f32.mrf.mxu0
        %v2662 = vadd.f32 %v2573, %v2661
        %v2663 = vpop.f32.mrf.mxu0
        %v2664 = vadd.f32 %v2575, %v2663
        %2665 = vmatmul.bf16.gmra.mxu0 %v1937
        %v2666 = vpop.f32.mrf.mxu0
        %v2667 = vadd.f32 %v2578, %v2666
        %v2668 = vpop.f32.mrf.mxu0
        %v2669 = vadd.f32 %v2580, %v2668
        %2670 = vmatmul.bf16.gmra.mxu0 %v1943
        %v2671 = vpop.f32.mrf.mxu0
        %v2672 = vadd.f32 %v2583, %v2671
        %v2673 = vpop.f32.mrf.mxu0
        %v2674 = vadd.f32 %v2585, %v2673
        %2675 = vmatmul.bf16.gmra.mxu0 %v1952
        %v2676 = vpop.f32.mrf.mxu0
        %v2677 = vadd.f32 %v2588, %v2676
        %v2678 = vpop.f32.mrf.mxu0
        %v2679 = vadd.f32 %v2590, %v2678
        %2680 = vmatmul.bf16.gmra.mxu0 %v1958
        %v2681 = vpop.f32.mrf.mxu0
        %v2682 = vadd.f32 %v2593, %v2681
        %v2683 = vpop.f32.mrf.mxu0
        %v2684 = vadd.f32 %v2595, %v2683
        %2685 = vmatmul.bf16.gmra.mxu0 %v1964
        %v2686 = vpop.f32.mrf.mxu0
        %v2687 = vadd.f32 %v2598, %v2686
        %v2688 = vpop.f32.mrf.mxu0
        %v2689 = vadd.f32 %v2600, %v2688
        %2690 = vmatmul.bf16.gmra.mxu0 %v1970
        %v2691 = vpop.f32.mrf.mxu0
        %v2692 = vadd.f32 %v2603, %v2691
        %v2693 = vpop.f32.mrf.mxu0
        %v2694 = vadd.f32 %v2605, %v2693
        %2695 = vdwg.mxu0
        %2696 = vmatpush.bf16.msra.mxu0 %v2397
        %2697 = vmatpush.bf16.msra.mxu0 %v2396
        %2698 = vmatpush.bf16.msra.mxu0 %v2395
        %2699 = vmatpush.bf16.msra.mxu0 %v2394
        %2700 = vmatpush.bf16.msra.mxu0 %v2393
        %2701 = vmatpush.bf16.msra.mxu0 %v2392
        %2702 = vmatpush.bf16.msra.mxu0 %v2391
        %2703 = vmatpush.bf16.msra.mxu0 %v2390
        %2704 = vmatmul.bf16.gmra.mxu0 %v1872
        %v2705 = vpop.f32.mrf.mxu0
        %v2706 = vadd.f32 %v2617, %v2705
        %v2707 = vpop.f32.mrf.mxu0
        %v2708 = vadd.f32 %v2619, %v2707
        %2709 = vmatmul.bf16.gmra.mxu0 %v1878
        %v2710 = vpop.f32.mrf.mxu0
        %v2711 = vadd.f32 %v2622, %v2710
        %v2712 = vpop.f32.mrf.mxu0
        %v2713 = vadd.f32 %v2624, %v2712
        %2714 = vmatmul.bf16.gmra.mxu0 %v1884
        %v2715 = vpop.f32.mrf.mxu0
        %v2716 = vadd.f32 %v2627, %v2715
        %v2717 = vpop.f32.mrf.mxu0
        %v2718 = vadd.f32 %v2629, %v2717
        %2719 = vmatmul.bf16.gmra.mxu0 %v1890
        %v2720 = vpop.f32.mrf.mxu0
        %v2721 = vadd.f32 %v2632, %v2720
        %v2722 = vpop.f32.mrf.mxu0
        %v2723 = vadd.f32 %v2634, %v2722
        %2724 = vmatmul.bf16.gmra.mxu0 %v1899
        %v2725 = vpop.f32.mrf.mxu0
        %v2726 = vadd.f32 %v2637, %v2725
        %v2727 = vpop.f32.mrf.mxu0
        %v2728 = vadd.f32 %v2639, %v2727
        %2729 = vmatmul.bf16.gmra.mxu0 %v1905
        %v2730 = vpop.f32.mrf.mxu0
        %v2731 = vadd.f32 %v2642, %v2730
        %v2732 = vpop.f32.mrf.mxu0
        %v2733 = vadd.f32 %v2644, %v2732
        %2734 = vmatmul.bf16.gmra.mxu0 %v1911
        %v2735 = vpop.f32.mrf.mxu0
        %v2736 = vadd.f32 %v2647, %v2735
        %v2737 = vpop.f32.mrf.mxu0
        %v2738 = vadd.f32 %v2649, %v2737
        %2739 = vmatmul.bf16.gmra.mxu0 %v1917
        %v2740 = vpop.f32.mrf.mxu0
        %v2741 = vadd.f32 %v2652, %v2740
        %v2742 = vpop.f32.mrf.mxu0
        %v2743 = vadd.f32 %v2654, %v2742
        %2744 = vmatmul.bf16.gmra.mxu0 %v1926
        %v2745 = vpop.f32.mrf.mxu0
        %v2746 = vadd.f32 %v2657, %v2745
        %v2747 = vpop.f32.mrf.mxu0
        %v2748 = vadd.f32 %v2659, %v2747
        %2749 = vmatmul.bf16.gmra.mxu0 %v1932
        %v2750 = vpop.f32.mrf.mxu0
        %v2751 = vadd.f32 %v2662, %v2750
        %v2752 = vpop.f32.mrf.mxu0
        %v2753 = vadd.f32 %v2664, %v2752
        %2754 = vmatmul.bf16.gmra.mxu0 %v1938
        %v2755 = vpop.f32.mrf.mxu0
        %v2756 = vadd.f32 %v2667, %v2755
        %v2757 = vpop.f32.mrf.mxu0
        %v2758 = vadd.f32 %v2669, %v2757
        %2759 = vmatmul.bf16.gmra.mxu0 %v1944
        %v2760 = vpop.f32.mrf.mxu0
        %v2761 = vadd.f32 %v2672, %v2760
        %v2762 = vpop.f32.mrf.mxu0
        %v2763 = vadd.f32 %v2674, %v2762
        %2764 = vmatmul.bf16.gmra.mxu0 %v1953
        %v2765 = vpop.f32.mrf.mxu0
        %v2766 = vadd.f32 %v2677, %v2765
        %v2767 = vpop.f32.mrf.mxu0
        %v2768 = vadd.f32 %v2679, %v2767
        %2769 = vmatmul.bf16.gmra.mxu0 %v1959
        %v2770 = vpop.f32.mrf.mxu0
        %v2771 = vadd.f32 %v2682, %v2770
        %v2772 = vpop.f32.mrf.mxu0
        %v2773 = vadd.f32 %v2684, %v2772
        %2774 = vmatmul.bf16.gmra.mxu0 %v1965
        %v2775 = vpop.f32.mrf.mxu0
        %v2776 = vadd.f32 %v2687, %v2775
        %v2777 = vpop.f32.mrf.mxu0
        %v2778 = vadd.f32 %v2689, %v2777
        %2779 = vmatmul.bf16.gmra.mxu0 %v1971
        %v2780 = vpop.f32.mrf.mxu0
        %v2781 = vadd.f32 %v2692, %v2780
        %v2782 = vpop.f32.mrf.mxu0
        %v2783 = vadd.f32 %v2694, %v2782
        %2784 = vdwg.mxu0
        %2785 = vmatpush.bf16.msra.mxu0 %v2405
        %2786 = vmatpush.bf16.msra.mxu0 %v2404
        %2787 = vmatpush.bf16.msra.mxu0 %v2403
        %2788 = vmatpush.bf16.msra.mxu0 %v2402
        %2789 = vmatpush.bf16.msra.mxu0 %v2401
        %2790 = vmatpush.bf16.msra.mxu0 %v2400
        %2791 = vmatpush.bf16.msra.mxu0 %v2399
        %2792 = vmatpush.bf16.msra.mxu0 %v2398
        %2793 = vmatmul.bf16.gmra.mxu0 %v1873
        %v2794 = vpop.f32.mrf.mxu0
        %v2795 = vadd.f32 %v2706, %v2794
        %v2796 = vpop.f32.mrf.mxu0
        %v2797 = vadd.f32 %v2708, %v2796
        %2798 = vmatmul.bf16.gmra.mxu0 %v1879
        %v2799 = vpop.f32.mrf.mxu0
        %v2800 = vadd.f32 %v2711, %v2799
        %v2801 = vpop.f32.mrf.mxu0
        %v2802 = vadd.f32 %v2713, %v2801
        %2803 = vmatmul.bf16.gmra.mxu0 %v1885
        %v2804 = vpop.f32.mrf.mxu0
        %v2805 = vadd.f32 %v2716, %v2804
        %v2806 = vpop.f32.mrf.mxu0
        %v2807 = vadd.f32 %v2718, %v2806
        %2808 = vmatmul.bf16.gmra.mxu0 %v1891
        %v2809 = vpop.f32.mrf.mxu0
        %v2810 = vadd.f32 %v2721, %v2809
        %v2811 = vpop.f32.mrf.mxu0
        %v2812 = vadd.f32 %v2723, %v2811
        %2813 = vmatmul.bf16.gmra.mxu0 %v1900
        %v2814 = vpop.f32.mrf.mxu0
        %v2815 = vadd.f32 %v2726, %v2814
        %v2816 = vpop.f32.mrf.mxu0
        %v2817 = vadd.f32 %v2728, %v2816
        %2818 = vmatmul.bf16.gmra.mxu0 %v1906
        %v2819 = vpop.f32.mrf.mxu0
        %v2820 = vadd.f32 %v2731, %v2819
        %v2821 = vpop.f32.mrf.mxu0
        %v2822 = vadd.f32 %v2733, %v2821
        %2823 = vmatmul.bf16.gmra.mxu0 %v1912
        %v2824 = vpop.f32.mrf.mxu0
        %v2825 = vadd.f32 %v2736, %v2824
        %v2826 = vpop.f32.mrf.mxu0
        %v2827 = vadd.f32 %v2738, %v2826
        %2828 = vmatmul.bf16.gmra.mxu0 %v1918
        %v2829 = vpop.f32.mrf.mxu0
        %v2830 = vadd.f32 %v2741, %v2829
        %v2831 = vpop.f32.mrf.mxu0
        %v2832 = vadd.f32 %v2743, %v2831
        %2833 = vmatmul.bf16.gmra.mxu0 %v1927
        %v2834 = vpop.f32.mrf.mxu0
        %v2835 = vadd.f32 %v2746, %v2834
        %v2836 = vpop.f32.mrf.mxu0
        %v2837 = vadd.f32 %v2748, %v2836
        %2838 = vmatmul.bf16.gmra.mxu0 %v1933
        %v2839 = vpop.f32.mrf.mxu0
        %v2840 = vadd.f32 %v2751, %v2839
        %v2841 = vpop.f32.mrf.mxu0
        %v2842 = vadd.f32 %v2753, %v2841
        %2843 = vmatmul.bf16.gmra.mxu0 %v1939
        %v2844 = vpop.f32.mrf.mxu0
        %v2845 = vadd.f32 %v2756, %v2844
        %v2846 = vpop.f32.mrf.mxu0
        %v2847 = vadd.f32 %v2758, %v2846
        %2848 = vmatmul.bf16.gmra.mxu0 %v1945
        %v2849 = vpop.f32.mrf.mxu0
        %v2850 = vadd.f32 %v2761, %v2849
        %v2851 = vpop.f32.mrf.mxu0
        %v2852 = vadd.f32 %v2763, %v2851
        %2853 = vmatmul.bf16.gmra.mxu0 %v1954
        %v2854 = vpop.f32.mrf.mxu0
        %v2855 = vadd.f32 %v2766, %v2854
        %v2856 = vpop.f32.mrf.mxu0
        %v2857 = vadd.f32 %v2768, %v2856
        %2858 = vmatmul.bf16.gmra.mxu0 %v1960
        %v2859 = vpop.f32.mrf.mxu0
        %v2860 = vadd.f32 %v2771, %v2859
        %v2861 = vpop.f32.mrf.mxu0
        %v2862 = vadd.f32 %v2773, %v2861
        %2863 = vmatmul.bf16.gmra.mxu0 %v1966
        %v2864 = vpop.f32.mrf.mxu0
        %v2865 = vadd.f32 %v2776, %v2864
        %v2866 = vpop.f32.mrf.mxu0
        %v2867 = vadd.f32 %v2778, %v2866
        %2868 = vmatmul.bf16.gmra.mxu0 %v1972
        %v2869 = vpop.f32.mrf.mxu0
        %v2870 = vadd.f32 %v2781, %v2869
        %v2871 = vpop.f32.mrf.mxu0
        %v2872 = vadd.f32 %v2783, %v2871
        %2873 = vdwg.mxu0
        %2874 = vmatpush.bf16.msra.mxu0 %v2413
        %2875 = vmatpush.bf16.msra.mxu0 %v2412
        %2876 = vmatpush.bf16.msra.mxu0 %v2411
        %2877 = vmatpush.bf16.msra.mxu0 %v2410
        %2878 = vmatpush.bf16.msra.mxu0 %v2409
        %2879 = vmatpush.bf16.msra.mxu0 %v2408
        %2880 = vmatpush.bf16.msra.mxu0 %v2407
        %2881 = vmatpush.bf16.msra.mxu0 %v2406
        %2882 = vmatmul.bf16.gmra.mxu0 %v1874
        %v2883 = vpop.f32.mrf.mxu0
        %v2884 = vadd.f32 %v2795, %v2883
        %v2885 = vpop.f32.mrf.mxu0
        %v2886 = vadd.f32 %v2797, %v2885
        %2887 = vmatmul.bf16.gmra.mxu0 %v1880
        %v2888 = vpop.f32.mrf.mxu0
        %v2889 = vadd.f32 %v2800, %v2888
        %v2890 = vpop.f32.mrf.mxu0
        %v2891 = vadd.f32 %v2802, %v2890
        %2892 = vmatmul.bf16.gmra.mxu0 %v1886
        %v2893 = vpop.f32.mrf.mxu0
        %v2894 = vadd.f32 %v2805, %v2893
        %v2895 = vpop.f32.mrf.mxu0
        %v2896 = vadd.f32 %v2807, %v2895
        %2897 = vmatmul.bf16.gmra.mxu0 %v1892
        %v2898 = vpop.f32.mrf.mxu0
        %v2899 = vadd.f32 %v2810, %v2898
        %v2900 = vpop.f32.mrf.mxu0
        %v2901 = vadd.f32 %v2812, %v2900
        %2902 = vmatmul.bf16.gmra.mxu0 %v1901
        %v2903 = vpop.f32.mrf.mxu0
        %v2904 = vadd.f32 %v2815, %v2903
        %v2905 = vpop.f32.mrf.mxu0
        %v2906 = vadd.f32 %v2817, %v2905
        %2907 = vmatmul.bf16.gmra.mxu0 %v1907
        %v2908 = vpop.f32.mrf.mxu0
        %v2909 = vadd.f32 %v2820, %v2908
        %v2910 = vpop.f32.mrf.mxu0
        %v2911 = vadd.f32 %v2822, %v2910
        %2912 = vmatmul.bf16.gmra.mxu0 %v1913
        %v2913 = vpop.f32.mrf.mxu0
        %v2914 = vadd.f32 %v2825, %v2913
        %v2915 = vpop.f32.mrf.mxu0
        %v2916 = vadd.f32 %v2827, %v2915
        %2917 = vmatmul.bf16.gmra.mxu0 %v1919
        %v2918 = vpop.f32.mrf.mxu0
        %v2919 = vadd.f32 %v2830, %v2918
        %v2920 = vpop.f32.mrf.mxu0
        %v2921 = vadd.f32 %v2832, %v2920
        %2922 = vmatmul.bf16.gmra.mxu0 %v1928
        %v2923 = vpop.f32.mrf.mxu0
        %v2924 = vadd.f32 %v2835, %v2923
        %v2925 = vpop.f32.mrf.mxu0
        %v2926 = vadd.f32 %v2837, %v2925
        %2927 = vmatmul.bf16.gmra.mxu0 %v1934
        %v2928 = vpop.f32.mrf.mxu0
        %v2929 = vadd.f32 %v2840, %v2928
        %v2930 = vpop.f32.mrf.mxu0
        %v2931 = vadd.f32 %v2842, %v2930
        %2932 = vmatmul.bf16.gmra.mxu0 %v1940
        %v2933 = vpop.f32.mrf.mxu0
        %v2934 = vadd.f32 %v2845, %v2933
        %v2935 = vpop.f32.mrf.mxu0
        %v2936 = vadd.f32 %v2847, %v2935
        %2937 = vmatmul.bf16.gmra.mxu0 %v1946
        %v2938 = vpop.f32.mrf.mxu0
        %v2939 = vadd.f32 %v2850, %v2938
        %v2940 = vpop.f32.mrf.mxu0
        %v2941 = vadd.f32 %v2852, %v2940
        %2942 = vmatmul.bf16.gmra.mxu0 %v1955
        %v2943 = vpop.f32.mrf.mxu0
        %v2944 = vadd.f32 %v2855, %v2943
        %v2945 = vpop.f32.mrf.mxu0
        %v2946 = vadd.f32 %v2857, %v2945
        %2947 = vmatmul.bf16.gmra.mxu0 %v1961
        %v2948 = vpop.f32.mrf.mxu0
        %v2949 = vadd.f32 %v2860, %v2948
        %v2950 = vpop.f32.mrf.mxu0
        %v2951 = vadd.f32 %v2862, %v2950
        %2952 = vmatmul.bf16.gmra.mxu0 %v1967
        %v2953 = vpop.f32.mrf.mxu0
        %v2954 = vadd.f32 %v2865, %v2953
        %v2955 = vpop.f32.mrf.mxu0
        %v2956 = vadd.f32 %v2867, %v2955
        %2957 = vmatmul.bf16.gmra.mxu0 %v1973
        %v2958 = vpop.f32.mrf.mxu0
        %v2959 = vadd.f32 %v2870, %v2958
        %v2960 = vpop.f32.mrf.mxu0
        %v2961 = vadd.f32 %v2872, %v2960
        %2962 = vdwg.mxu0
        %2963 = vmatpush.bf16.msra.mxu0 %v2421
        %2964 = vmatpush.bf16.msra.mxu0 %v2420
        %2965 = vmatpush.bf16.msra.mxu0 %v2419
        %2966 = vmatpush.bf16.msra.mxu0 %v2418
        %2967 = vmatpush.bf16.msra.mxu0 %v2417
        %2968 = vmatpush.bf16.msra.mxu0 %v2416
        %2969 = vmatpush.bf16.msra.mxu0 %v2415
        %2970 = vmatpush.bf16.msra.mxu0 %v2414
        %2971 = vmatmul.bf16.gmra.mxu0 %v1875
        %v2972 = vpop.f32.mrf.mxu0
        %v2973 = vadd.f32 %v2884, %v2972
        %v2974 = vpop.f32.mrf.mxu0
        %v2975 = vadd.f32 %v2886, %v2974
        %2976 = vmatmul.bf16.gmra.mxu0 %v1881
        %v2977 = vpop.f32.mrf.mxu0
        %v2978 = vadd.f32 %v2889, %v2977
        %v2979 = vpop.f32.mrf.mxu0
        %v2980 = vadd.f32 %v2891, %v2979
        %2981 = vmatmul.bf16.gmra.mxu0 %v1887
        %v2982 = vpop.f32.mrf.mxu0
        %v2983 = vadd.f32 %v2894, %v2982
        %v2984 = vpop.f32.mrf.mxu0
        %v2985 = vadd.f32 %v2896, %v2984
        %2986 = vmatmul.bf16.gmra.mxu0 %v1893
        %v2987 = vpop.f32.mrf.mxu0
        %v2988 = vadd.f32 %v2899, %v2987
        %v2989 = vpop.f32.mrf.mxu0
        %v2990 = vadd.f32 %v2901, %v2989
        %2991 = vmatmul.bf16.gmra.mxu0 %v1902
        %v2992 = vpop.f32.mrf.mxu0
        %v2993 = vadd.f32 %v2904, %v2992
        %v2994 = vpop.f32.mrf.mxu0
        %v2995 = vadd.f32 %v2906, %v2994
        %2996 = vmatmul.bf16.gmra.mxu0 %v1908
        %v2997 = vpop.f32.mrf.mxu0
        %v2998 = vadd.f32 %v2909, %v2997
        %v2999 = vpop.f32.mrf.mxu0
        %v3000 = vadd.f32 %v2911, %v2999
        %3001 = vmatmul.bf16.gmra.mxu0 %v1914
        %v3002 = vpop.f32.mrf.mxu0
        %v3003 = vadd.f32 %v2914, %v3002
        %v3004 = vpop.f32.mrf.mxu0
        %v3005 = vadd.f32 %v2916, %v3004
        %3006 = vmatmul.bf16.gmra.mxu0 %v1920
        %v3007 = vpop.f32.mrf.mxu0
        %v3008 = vadd.f32 %v2919, %v3007
        %v3009 = vpop.f32.mrf.mxu0
        %v3010 = vadd.f32 %v2921, %v3009
        %3011 = vmatmul.bf16.gmra.mxu0 %v1929
        %v3012 = vpop.f32.mrf.mxu0
        %v3013 = vadd.f32 %v2924, %v3012
        %v3014 = vpop.f32.mrf.mxu0
        %v3015 = vadd.f32 %v2926, %v3014
        %3016 = vmatmul.bf16.gmra.mxu0 %v1935
        %v3017 = vpop.f32.mrf.mxu0
        %v3018 = vadd.f32 %v2929, %v3017
        %v3019 = vpop.f32.mrf.mxu0
        %v3020 = vadd.f32 %v2931, %v3019
        %3021 = vmatmul.bf16.gmra.mxu0 %v1941
        %v3022 = vpop.f32.mrf.mxu0
        %v3023 = vadd.f32 %v2934, %v3022
        %v3024 = vpop.f32.mrf.mxu0
        %v3025 = vadd.f32 %v2936, %v3024
        %3026 = vmatmul.bf16.gmra.mxu0 %v1947
        %v3027 = vpop.f32.mrf.mxu0
        %v3028 = vadd.f32 %v2939, %v3027
        %v3029 = vpop.f32.mrf.mxu0
        %v3030 = vadd.f32 %v2941, %v3029
        %3031 = vmatmul.bf16.gmra.mxu0 %v1956
        %v3032 = vpop.f32.mrf.mxu0
        %v3033 = vadd.f32 %v2944, %v3032
        %v3034 = vpop.f32.mrf.mxu0
        %v3035 = vadd.f32 %v2946, %v3034
        %3036 = vmatmul.bf16.gmra.mxu0 %v1962
        %v3037 = vpop.f32.mrf.mxu0
        %v3038 = vadd.f32 %v2949, %v3037
        %v3039 = vpop.f32.mrf.mxu0
        %v3040 = vadd.f32 %v2951, %v3039
        %3041 = vmatmul.bf16.gmra.mxu0 %v1968
        %v3042 = vpop.f32.mrf.mxu0
        %v3043 = vadd.f32 %v2954, %v3042
        %v3044 = vpop.f32.mrf.mxu0
        %v3045 = vadd.f32 %v2956, %v3044
        %3046 = vmatmul.bf16.gmra.mxu0 %v1974
        %v3047 = vpop.f32.mrf.mxu0
        %v3048 = vadd.f32 %v2959, %v3047
        %v3049 = vpop.f32.mrf.mxu0
        %v3050 = vadd.f32 %v2961, %v3049
        %3051 = vdwg.mxu0
        %3052 = vmatpush.bf16.msra.mxu0 %v2429
        %3053 = vmatpush.bf16.msra.mxu0 %v2428
        %3054 = vmatpush.bf16.msra.mxu0 %v2427
        %3055 = vmatpush.bf16.msra.mxu0 %v2426
        %3056 = vmatpush.bf16.msra.mxu0 %v2425
        %3057 = vmatpush.bf16.msra.mxu0 %v2424
        %3058 = vmatpush.bf16.msra.mxu0 %v2423
        %3059 = vmatpush.bf16.msra.mxu0 %v2422
        %3060 = vmatmul.bf16.gmra.mxu0 %v1876
        %v3061 = vpop.f32.mrf.mxu0
        %v3062 = vadd.f32 %v2973, %v3061
        %v3063 = vpop.f32.mrf.mxu0
        %v3064 = vadd.f32 %v2975, %v3063
        %3065 = vmatmul.bf16.gmra.mxu0 %v1882
        %v3066 = vpop.f32.mrf.mxu0
        %v3067 = vadd.f32 %v2978, %v3066
        %v3068 = vpop.f32.mrf.mxu0
        %v3069 = vadd.f32 %v2980, %v3068
        %3070 = vmatmul.bf16.gmra.mxu0 %v1888
        %v3071 = vpop.f32.mrf.mxu0
        %v3072 = vadd.f32 %v2983, %v3071
        %v3073 = vpop.f32.mrf.mxu0
        %v3074 = vadd.f32 %v2985, %v3073
        %3075 = vmatmul.bf16.gmra.mxu0 %v1894
        %v3076 = vpop.f32.mrf.mxu0
        %v3077 = vadd.f32 %v2988, %v3076
        %v3078 = vpop.f32.mrf.mxu0
        %v3079 = vadd.f32 %v2990, %v3078
        %3080 = vmatmul.bf16.gmra.mxu0 %v1903
        %v3081 = vpop.f32.mrf.mxu0
        %v3082 = vadd.f32 %v2993, %v3081
        %v3083 = vpop.f32.mrf.mxu0
        %v3084 = vadd.f32 %v2995, %v3083
        %3085 = vmatmul.bf16.gmra.mxu0 %v1909
        %v3086 = vpop.f32.mrf.mxu0
        %v3087 = vadd.f32 %v2998, %v3086
        %v3088 = vpop.f32.mrf.mxu0
        %v3089 = vadd.f32 %v3000, %v3088
        %3090 = vmatmul.bf16.gmra.mxu0 %v1915
        %v3091 = vpop.f32.mrf.mxu0
        %v3092 = vadd.f32 %v3003, %v3091
        %v3093 = vpop.f32.mrf.mxu0
        %v3094 = vadd.f32 %v3005, %v3093
        %3095 = vmatmul.bf16.gmra.mxu0 %v1921
        %v3096 = vpop.f32.mrf.mxu0
        %v3097 = vadd.f32 %v3008, %v3096
        %v3098 = vpop.f32.mrf.mxu0
        %v3099 = vadd.f32 %v3010, %v3098
        %3100 = vmatmul.bf16.gmra.mxu0 %v1930
        %v3101 = vpop.f32.mrf.mxu0
        %v3102 = vadd.f32 %v3013, %v3101
        %v3103 = vpop.f32.mrf.mxu0
        %v3104 = vadd.f32 %v3015, %v3103
        %3105 = vmatmul.bf16.gmra.mxu0 %v1936
        %v3106 = vpop.f32.mrf.mxu0
        %v3107 = vadd.f32 %v3018, %v3106
        %v3108 = vpop.f32.mrf.mxu0
        %v3109 = vadd.f32 %v3020, %v3108
        %3110 = vmatmul.bf16.gmra.mxu0 %v1942
        %v3111 = vpop.f32.mrf.mxu0
        %v3112 = vadd.f32 %v3023, %v3111
        %v3113 = vpop.f32.mrf.mxu0
        %v3114 = vadd.f32 %v3025, %v3113
        %3115 = vmatmul.bf16.gmra.mxu0 %v1948
        %v3116 = vpop.f32.mrf.mxu0
        %v3117 = vadd.f32 %v3028, %v3116
        %v3118 = vpop.f32.mrf.mxu0
        %v3119 = vadd.f32 %v3030, %v3118
        %3120 = vmatmul.bf16.gmra.mxu0 %v1957
        %v3121 = vpop.f32.mrf.mxu0
        %v3122 = vadd.f32 %v3033, %v3121
        %v3123 = vpop.f32.mrf.mxu0
        %v3124 = vadd.f32 %v3035, %v3123
        %3125 = vmatmul.bf16.gmra.mxu0 %v1963
        %v3126 = vpop.f32.mrf.mxu0
        %v3127 = vadd.f32 %v3038, %v3126
        %v3128 = vpop.f32.mrf.mxu0
        %v3129 = vadd.f32 %v3040, %v3128
        %3130 = vmatmul.bf16.gmra.mxu0 %v1969
        %v3131 = vpop.f32.mrf.mxu0
        %v3132 = vadd.f32 %v3043, %v3131
        %v3133 = vpop.f32.mrf.mxu0
        %v3134 = vadd.f32 %v3045, %v3133
        %3135 = vmatmul.bf16.gmra.mxu0 %v1975
        %v3136 = vpop.f32.mrf.mxu0
        %v3137 = vadd.f32 %v3048, %v3136
        %v3138 = vpop.f32.mrf.mxu0
        %v3139 = vadd.f32 %v3050, %v3138
        %3140 = vdwg.mxu0
        %3141 = vmatpush.bf16.msra.mxu0 %v2437
        %3142 = vmatpush.bf16.msra.mxu0 %v2436
        %3143 = vmatpush.bf16.msra.mxu0 %v2435
        %3144 = vmatpush.bf16.msra.mxu0 %v2434
        %3145 = vmatpush.bf16.msra.mxu0 %v2433
        %3146 = vmatpush.bf16.msra.mxu0 %v2432
        %3147 = vmatpush.bf16.msra.mxu0 %v2431
        %3148 = vmatpush.bf16.msra.mxu0 %v2430
        %3149 = vmatmul.bf16.gmra.mxu0 %v1877
        %v3150 = vpop.f32.mrf.mxu0
        %v3151 = vadd.f32 %v3062, %v3150
        %v3152 = vpop.f32.mrf.mxu0
        %v3153 = vadd.f32 %v3064, %v3152
        %3154 = vmatmul.bf16.gmra.mxu0 %v1883
        %v3155 = vpop.f32.mrf.mxu0
        %v3156 = vadd.f32 %v3067, %v3155
        %v3157 = vpop.f32.mrf.mxu0
        %v3158 = vadd.f32 %v3069, %v3157
        %3159 = vmatmul.bf16.gmra.mxu0 %v1889
        %v3160 = vpop.f32.mrf.mxu0
        %v3161 = vadd.f32 %v3072, %v3160
        %v3162 = vpop.f32.mrf.mxu0
        %v3163 = vadd.f32 %v3074, %v3162
        %3164 = vmatmul.bf16.gmra.mxu0 %v1895
        %v3165 = vpop.f32.mrf.mxu0
        %v3166 = vadd.f32 %v3077, %v3165
        %v3167 = vpop.f32.mrf.mxu0
        %v3168 = vadd.f32 %v3079, %v3167
        %3169 = vmatmul.bf16.gmra.mxu0 %v1904
        %v3170 = vpop.f32.mrf.mxu0
        %v3171 = vadd.f32 %v3082, %v3170
        %v3172 = vpop.f32.mrf.mxu0
        %v3173 = vadd.f32 %v3084, %v3172
        %3174 = vmatmul.bf16.gmra.mxu0 %v1910
        %v3175 = vpop.f32.mrf.mxu0
        %v3176 = vadd.f32 %v3087, %v3175
        %v3177 = vpop.f32.mrf.mxu0
        %v3178 = vadd.f32 %v3089, %v3177
        %3179 = vmatmul.bf16.gmra.mxu0 %v1916
        %v3180 = vpop.f32.mrf.mxu0
        %v3181 = vadd.f32 %v3092, %v3180
        %v3182 = vpop.f32.mrf.mxu0
        %v3183 = vadd.f32 %v3094, %v3182
        %3184 = vmatmul.bf16.gmra.mxu0 %v1922
        %v3185 = vpop.f32.mrf.mxu0
        %v3186 = vadd.f32 %v3097, %v3185
        %v3187 = vpop.f32.mrf.mxu0
        %v3188 = vadd.f32 %v3099, %v3187
        %3189 = vmatmul.bf16.gmra.mxu0 %v1931
        %v3190 = vpop.f32.mrf.mxu0
        %v3191 = vadd.f32 %v3102, %v3190
        %v3192 = vpop.f32.mrf.mxu0
        %v3193 = vadd.f32 %v3104, %v3192
        %3194 = vmatmul.bf16.gmra.mxu0 %v1937
        %v3195 = vpop.f32.mrf.mxu0
        %v3196 = vadd.f32 %v3107, %v3195
        %v3197 = vpop.f32.mrf.mxu0
        %v3198 = vadd.f32 %v3109, %v3197
        %3199 = vmatmul.bf16.gmra.mxu0 %v1943
        %v3200 = vpop.f32.mrf.mxu0
        %v3201 = vadd.f32 %v3112, %v3200
        %v3202 = vpop.f32.mrf.mxu0
        %v3203 = vadd.f32 %v3114, %v3202
        %3204 = vmatmul.bf16.gmra.mxu0 %v1949
        %v3205 = vpop.f32.mrf.mxu0
        %v3206 = vadd.f32 %v3117, %v3205
        %v3207 = vpop.f32.mrf.mxu0
        %v3208 = vadd.f32 %v3119, %v3207
        %3209 = vmatmul.bf16.gmra.mxu0 %v1958
        %v3210 = vpop.f32.mrf.mxu0
        %v3211 = vadd.f32 %v3122, %v3210
        %v3212 = vpop.f32.mrf.mxu0
        %v3213 = vadd.f32 %v3124, %v3212
        %3214 = vmatmul.bf16.gmra.mxu0 %v1964
        %v3215 = vpop.f32.mrf.mxu0
        %v3216 = vadd.f32 %v3127, %v3215
        %v3217 = vpop.f32.mrf.mxu0
        %v3218 = vadd.f32 %v3129, %v3217
        %3219 = vmatmul.bf16.gmra.mxu0 %v1970
        %v3220 = vpop.f32.mrf.mxu0
        %v3221 = vadd.f32 %v3132, %v3220
        %v3222 = vpop.f32.mrf.mxu0
        %v3223 = vadd.f32 %v3134, %v3222
        %3224 = vmatmul.bf16.gmra.mxu0 %v1976
        %v3225 = vpop.f32.mrf.mxu0
        %v3226 = vadd.f32 %v3137, %v3225
        %v3227 = vpop.f32.mrf.mxu0
        %v3228 = vadd.f32 %v3139, %v3227
        %3229 = vdwg.mxu0
        %3230 = vmatpush.bf16.msra.mxu0 %v2445
        %3231 = vmatpush.bf16.msra.mxu0 %v2444
        %3232 = vmatpush.bf16.msra.mxu0 %v2443
        %3233 = vmatpush.bf16.msra.mxu0 %v2442
        %3234 = vmatpush.bf16.msra.mxu0 %v2441
        %3235 = vmatpush.bf16.msra.mxu0 %v2440
        %3236 = vmatpush.bf16.msra.mxu0 %v2439
        %3237 = vmatpush.bf16.msra.mxu0 %v2438
        %3238 = vmatmul.bf16.gmra.mxu0 %v1878
        %v3239 = vpop.f32.mrf.mxu0
        %v3240 = vadd.f32 %v3151, %v3239
        %v3241 = vpop.f32.mrf.mxu0
        %v3242 = vadd.f32 %v3153, %v3241
        %3243 = vmatmul.bf16.gmra.mxu0 %v1884
        %v3244 = vpop.f32.mrf.mxu0
        %v3245 = vadd.f32 %v3156, %v3244
        %v3246 = vpop.f32.mrf.mxu0
        %v3247 = vadd.f32 %v3158, %v3246
        %3248 = vmatmul.bf16.gmra.mxu0 %v1890
        %v3249 = vpop.f32.mrf.mxu0
        %v3250 = vadd.f32 %v3161, %v3249
        %v3251 = vpop.f32.mrf.mxu0
        %v3252 = vadd.f32 %v3163, %v3251
        %3253 = vmatmul.bf16.gmra.mxu0 %v1896
        %v3254 = vpop.f32.mrf.mxu0
        %v3255 = vadd.f32 %v3166, %v3254
        %v3256 = vpop.f32.mrf.mxu0
        %v3257 = vadd.f32 %v3168, %v3256
        %3258 = vmatmul.bf16.gmra.mxu0 %v1905
        %v3259 = vpop.f32.mrf.mxu0
        %v3260 = vadd.f32 %v3171, %v3259
        %v3261 = vpop.f32.mrf.mxu0
        %v3262 = vadd.f32 %v3173, %v3261
        %3263 = vmatmul.bf16.gmra.mxu0 %v1911
        %v3264 = vpop.f32.mrf.mxu0
        %v3265 = vadd.f32 %v3176, %v3264
        %v3266 = vpop.f32.mrf.mxu0
        %v3267 = vadd.f32 %v3178, %v3266
        %3268 = vmatmul.bf16.gmra.mxu0 %v1917
        %v3269 = vpop.f32.mrf.mxu0
        %v3270 = vadd.f32 %v3181, %v3269
        %v3271 = vpop.f32.mrf.mxu0
        %v3272 = vadd.f32 %v3183, %v3271
        %3273 = vmatmul.bf16.gmra.mxu0 %v1923
        %v3274 = vpop.f32.mrf.mxu0
        %v3275 = vadd.f32 %v3186, %v3274
        %v3276 = vpop.f32.mrf.mxu0
        %v3277 = vadd.f32 %v3188, %v3276
        %3278 = vmatmul.bf16.gmra.mxu0 %v1932
        %v3279 = vpop.f32.mrf.mxu0
        %v3280 = vadd.f32 %v3191, %v3279
        %v3281 = vpop.f32.mrf.mxu0
        %v3282 = vadd.f32 %v3193, %v3281
        %3283 = vmatmul.bf16.gmra.mxu0 %v1938
        %v3284 = vpop.f32.mrf.mxu0
        %v3285 = vadd.f32 %v3196, %v3284
        %v3286 = vpop.f32.mrf.mxu0
        %v3287 = vadd.f32 %v3198, %v3286
        %3288 = vmatmul.bf16.gmra.mxu0 %v1944
        %v3289 = vpop.f32.mrf.mxu0
        %v3290 = vadd.f32 %v3201, %v3289
        %v3291 = vpop.f32.mrf.mxu0
        %v3292 = vadd.f32 %v3203, %v3291
        %3293 = vmatmul.bf16.gmra.mxu0 %v1950
        %v3294 = vpop.f32.mrf.mxu0
        %v3295 = vadd.f32 %v3206, %v3294
        %v3296 = vpop.f32.mrf.mxu0
        %v3297 = vadd.f32 %v3208, %v3296
        %3298 = vmatmul.bf16.gmra.mxu0 %v1959
        %v3299 = vpop.f32.mrf.mxu0
        %v3300 = vadd.f32 %v3211, %v3299
        %v3301 = vpop.f32.mrf.mxu0
        %v3302 = vadd.f32 %v3213, %v3301
        %3303 = vmatmul.bf16.gmra.mxu0 %v1965
        %v3304 = vpop.f32.mrf.mxu0
        %v3305 = vadd.f32 %v3216, %v3304
        %v3306 = vpop.f32.mrf.mxu0
        %v3307 = vadd.f32 %v3218, %v3306
        %3308 = vmatmul.bf16.gmra.mxu0 %v1971
        %v3309 = vpop.f32.mrf.mxu0
        %v3310 = vadd.f32 %v3221, %v3309
        %v3311 = vpop.f32.mrf.mxu0
        %v3312 = vadd.f32 %v3223, %v3311
        %3313 = vmatmul.bf16.gmra.mxu0 %v1977
        %v3314 = vpop.f32.mrf.mxu0
        %v3315 = vadd.f32 %v3226, %v3314
        %v3316 = vpop.f32.mrf.mxu0
        %v3317 = vadd.f32 %v3228, %v3316
        %3318 = vdwg.mxu0
        %v3319 = vpack.c.b16 %v622, %v620
        %v3320 = vpack.c.b16 %v1627, %v1625
        %v3321 = vpack.c.b16 %v1628, %v1626
        %v3322 = vpack.c.b16 %v624, %v622
        %v3323 = vpack.c.b16 %v1629, %v1627
        %v3324 = vpack.c.b16 %v1630, %v1628
        %v3325 = vpack.c.b16 %v626, %v624
        %v3326 = vpack.c.b16 %v1631, %v1629
        %v3327 = vpack.c.b16 %v1632, %v1630
        %v3328 = vpack.c.b16 %v628, %v626
        %v3329 = vpack.c.b16 %v1633, %v1631
        %v3330 = vpack.c.b16 %v1634, %v1632
        %v3331 = vpack.c.b16 %v630, %v628
        %v3332 = vpack.c.b16 %v1635, %v1633
        %v3333 = vpack.c.b16 %v1636, %v1634
        %v3334 = vpack.c.b16 %v632, %v630
        %v3335 = vpack.c.b16 %v1637, %v1635
        %v3336 = vpack.c.b16 %v1638, %v1636
        %v3337 = vpack.c.b16 %v634, %v632
        %v3338 = vpack.c.b16 %v1639, %v1637
        %v3339 = vpack.c.b16 %v1640, %v1638
        %v3340 = vpack.c.b16 %v636, %v634
        %v3341 = vpack.c.b16 %v1641, %v1639
        %v3342 = vpack.c.b16 %v1642, %v1640
        %v3343 = vpack.c.b16 %v638, %v636
        %v3344 = vpack.c.b16 %v1643, %v1641
        %v3345 = vpack.c.b16 %v1644, %v1642
        %v3517 = vunpack.c.l.b16 %v1481
        %v3518 = vunpack.c.l.b16 %v1482
        %v3519 = vunpack.c.l.b16 %v1483
        %v3520 = vunpack.c.l.b16 %v1484
        %v3521 = vunpack.c.l.b16 %v1485
        %v3522 = vunpack.c.l.b16 %v1486
        %v3523 = vunpack.c.l.b16 %v1487
        %v3524 = vunpack.c.l.b16 %v1488
        %v3525 = vunpack.c.l.b16 %v1489
        %v3526 = vunpack.c.l.b16 %v1490
        %v3527 = vunpack.c.l.b16 %v1491
        %v3528 = vunpack.c.l.b16 %v1492
        %v3529 = vunpack.c.l.b16 %v1493
        %v3530 = vunpack.c.l.b16 %v1494
        %v3531 = vunpack.c.l.b16 %v1495
        %v3532 = vunpack.c.l.b16 %v1496
        %v3533 = vunpack.c.l.b16 %v1497
        %v3534 = vunpack.c.l.b16 %v1498
        %v3535 = vunpack.c.l.b16 %v1499
        %v3536 = vunpack.c.l.b16 %v1500
        %v3537 = vunpack.c.l.b16 %v1501
        %v3538 = vunpack.c.l.b16 %v1502
        %v3539 = vunpack.c.l.b16 %v1503
        %v3540 = vunpack.c.l.b16 %v1504
        %v3541 = vunpack.c.l.b16 %v1505
        %v3542 = vunpack.c.l.b16 %v1506
        %v3543 = vunpack.c.l.b16 %v1507
        %v3544 = vunpack.c.l.b16 %v1508
        %v3545 = vunpack.c.l.b16 %v1509
        %v3546 = vunpack.c.l.b16 %v1510
        %v3547 = vunpack.c.l.b16 %v1511
        %v3548 = vunpack.c.l.b16 %v1512
        %v3549 = vunpack.c.l.b16 %v1513
        %v3550 = vunpack.c.l.b16 %v1514
        %v3551 = vunpack.c.l.b16 %v1515
        %v3552 = vunpack.c.l.b16 %v1516
        %v3553 = vunpack.c.l.b16 %v1517
        %v3554 = vunpack.c.l.b16 %v1518
        %v3555 = vunpack.c.l.b16 %v1519
        %v3556 = vunpack.c.l.b16 %v1520
        %v3557 = vunpack.c.l.b16 %v1521
        %v3558 = vunpack.c.l.b16 %v1522
        %v3559 = vunpack.c.l.b16 %v1523
        %v3560 = vunpack.c.l.b16 %v1524
        %v3561 = vunpack.c.l.b16 %v1525
        %v3562 = vunpack.c.l.b16 %v1526
        %v3563 = vunpack.c.l.b16 %v1527
        %v3564 = vunpack.c.l.b16 %v1528
        %v3565 = vunpack.c.l.b16 %v1529
        %v3566 = vunpack.c.l.b16 %v1530
        %v3567 = vunpack.c.l.b16 %v1531
        %v3568 = vunpack.c.l.b16 %v1532
        %v3569 = vunpack.c.l.b16 %v1533
        %v3570 = vunpack.c.l.b16 %v1534
        %v3571 = vunpack.c.l.b16 %v1535
        %v3572 = vunpack.c.l.b16 %v1536
        %v3573 = vunpack.c.l.b16 %v1537
        %v3574 = vunpack.c.l.b16 %v1538
        %v3575 = vunpack.c.l.b16 %v1539
        %v3576 = vunpack.c.l.b16 %v1540
        %v3577 = vunpack.c.l.b16 %v1541
        %v3578 = vunpack.c.l.b16 %v1542
        %v3579 = vunpack.c.l.b16 %v1543
        %v3580 = vunpack.c.l.b16 %v1544
        %v3581 = vunpack.c.l.b16 %v1545
        %v3582 = vunpack.c.l.b16 %v1546
        %v3583 = vunpack.c.l.b16 %v1547
        %v3584 = vunpack.c.l.b16 %v1548
        %v3585 = vunpack.c.l.b16 %v1549
        %v3586 = vunpack.c.l.b16 %v1550
        %v3587 = vunpack.c.l.b16 %v1551
        %v3588 = vunpack.c.l.b16 %v1552
        %v3589 = vunpack.c.l.b16 %v1553
        %v3590 = vunpack.c.l.b16 %v1554
        %v3591 = vunpack.c.l.b16 %v1555
        %v3592 = vunpack.c.l.b16 %v1556
        %v3593 = vunpack.c.l.b16 %v1557
        %v3594 = vunpack.c.l.b16 %v1558
        %v3595 = vunpack.c.l.b16 %v1559
        %v3596 = vunpack.c.l.b16 %v1560
        %v3597 = vunpack.c.l.b16 %v1561
        %v3598 = vunpack.c.l.b16 %v1562
        %v3599 = vunpack.c.l.b16 %v1563
        %v3600 = vunpack.c.l.b16 %v1564
        %v3601 = vunpack.c.l.b16 %v1565
        %v3602 = vunpack.c.l.b16 %v1566
        %v3603 = vunpack.c.l.b16 %v1567
        %v3604 = vunpack.c.l.b16 %v1568
        %v3605 = vunpack.c.l.b16 %v1569
        %v3606 = vunpack.c.l.b16 %v1570
        %v3607 = vunpack.c.l.b16 %v1571
        %v3608 = vunpack.c.l.b16 %v1572
        %v3609 = vunpack.c.l.b16 %v1573
        %v3610 = vunpack.c.l.b16 %v1574
        %v3611 = vunpack.c.l.b16 %v1575
        %v3612 = vunpack.c.l.b16 %v1576
        %v3613 = vunpack.c.l.b16 %v1577
        %v3614 = vunpack.c.l.b16 %v1578
        %v3615 = vunpack.c.l.b16 %v1579
        %v3616 = vunpack.c.l.b16 %v1580
        %v3617 = vunpack.c.l.b16 %v1581
        %v3618 = vunpack.c.l.b16 %v1582
        %v3619 = vunpack.c.l.b16 %v1583
        %v3620 = vunpack.c.l.b16 %v1584
        %v3621 = vunpack.c.l.b16 %v1585
        %v3622 = vunpack.c.l.b16 %v1586
        %v3623 = vunpack.c.l.b16 %v1587
        %v3624 = vunpack.c.l.b16 %v1588
        %v3625 = vunpack.c.l.b16 %v1589
        %v3626 = vunpack.c.l.b16 %v1590
        %v3627 = vunpack.c.l.b16 %v1591
        %v3628 = vunpack.c.l.b16 %v1592
        %v3629 = vunpack.c.l.b16 %v1593
        %v3630 = vunpack.c.l.b16 %v1594
        %v3631 = vunpack.c.l.b16 %v1595
        %v3632 = vunpack.c.l.b16 %v1596
        %v3633 = vunpack.c.l.b16 %v1597
        %v3634 = vunpack.c.l.b16 %v1598
        %v3635 = vunpack.c.l.b16 %v1599
        %v3636 = vunpack.c.l.b16 %v1600
        %v3637 = vunpack.c.l.b16 %v1601
        %v3638 = vunpack.c.l.b16 %v1602
        %v3639 = vunpack.c.l.b16 %v1603
        %v3640 = vunpack.c.l.b16 %v1604
        %v3641 = vunpack.c.l.b16 %v1605
        %v3642 = vunpack.c.l.b16 %v1606
        %v3643 = vunpack.c.l.b16 %v1607
        %v3644 = vunpack.c.l.b16 %v1608
        %v3645 = vunpack.c.l.b16 %v1609
        %v3646 = vunpack.c.l.b16 %v1610
        %v3647 = vunpack.c.l.b16 %v1611
        %v3648 = vunpack.c.l.b16 %v1612
        %v3649 = vunpack.c.l.b16 %v1613
        %v3650 = vunpack.c.l.b16 %v1614
        %v3651 = vunpack.c.l.b16 %v1615
        %v3652 = vunpack.c.l.b16 %v1616
        %v3653 = vunpack.c.l.b16 %v1617
        %v3654 = vunpack.c.l.b16 %v1618
        %v3655 = vunpack.c.l.b16 %v1619
        %v3656 = vunpack.c.l.b16 %v1620
        %v3657 = vunpack.c.l.b16 %v1621
        %v3658 = vunpack.c.l.b16 %v1622
        %v3659 = vunpack.c.l.b16 %v1623
        %v3660 = vunpack.c.l.b16 %v1624
        %v3661 = vpack.c.b16 %v3518, %v3517
        %v3662 = vpack.c.b16 %v3520, %v3519
        %v3663 = vpack.c.b16 %v3522, %v3521
        %v3664 = vpack.c.b16 %v3524, %v3523
        %v3665 = vpack.c.b16 %v3526, %v3525
        %v3666 = vpack.c.b16 %v3528, %v3527
        %v3667 = vpack.c.b16 %v3530, %v3529
        %v3668 = vpack.c.b16 %v3532, %v3531
        %v3669 = vpack.c.b16 %v3534, %v3533
        %v3670 = vpack.c.b16 %v3536, %v3535
        %v3671 = vpack.c.b16 %v3538, %v3537
        %v3672 = vpack.c.b16 %v3540, %v3539
        %v3673 = vpack.c.b16 %v3542, %v3541
        %v3674 = vpack.c.b16 %v3544, %v3543
        %v3675 = vpack.c.b16 %v3546, %v3545
        %v3676 = vpack.c.b16 %v3548, %v3547
        %v3677 = vpack.c.b16 %v3550, %v3549
        %v3678 = vpack.c.b16 %v3552, %v3551
        %v3679 = vpack.c.b16 %v3554, %v3553
        %v3680 = vpack.c.b16 %v3556, %v3555
        %v3681 = vpack.c.b16 %v3558, %v3557
        %v3682 = vpack.c.b16 %v3560, %v3559
        %v3683 = vpack.c.b16 %v3562, %v3561
        %v3684 = vpack.c.b16 %v3564, %v3563
        %v3685 = vpack.c.b16 %v3566, %v3565
        %v3686 = vpack.c.b16 %v3568, %v3567
        %v3687 = vpack.c.b16 %v3570, %v3569
        %v3688 = vpack.c.b16 %v3572, %v3571
        %v3689 = vpack.c.b16 %v3574, %v3573
        %v3690 = vpack.c.b16 %v3576, %v3575
        %v3691 = vpack.c.b16 %v3578, %v3577
        %v3692 = vpack.c.b16 %v3580, %v3579
        %v3693 = vpack.c.b16 %v3582, %v3581
        %v3694 = vpack.c.b16 %v3584, %v3583
        %v3695 = vpack.c.b16 %v3586, %v3585
        %v3696 = vpack.c.b16 %v3588, %v3587
        %v3697 = vpack.c.b16 %v3590, %v3589
        %v3698 = vpack.c.b16 %v3592, %v3591
        %v3699 = vpack.c.b16 %v3594, %v3593
        %v3700 = vpack.c.b16 %v3596, %v3595
        %v3701 = vpack.c.b16 %v3598, %v3597
        %v3702 = vpack.c.b16 %v3600, %v3599
        %v3703 = vpack.c.b16 %v3602, %v3601
        %v3704 = vpack.c.b16 %v3604, %v3603
        %v3705 = vpack.c.b16 %v3606, %v3605
        %v3706 = vpack.c.b16 %v3608, %v3607
        %v3707 = vpack.c.b16 %v3610, %v3609
        %v3708 = vpack.c.b16 %v3612, %v3611
        %v3709 = vpack.c.b16 %v3614, %v3613
        %v3710 = vpack.c.b16 %v3616, %v3615
        %v3711 = vpack.c.b16 %v3618, %v3617
        %v3712 = vpack.c.b16 %v3620, %v3619
        %v3713 = vpack.c.b16 %v3622, %v3621
        %v3714 = vpack.c.b16 %v3624, %v3623
        %v3715 = vpack.c.b16 %v3626, %v3625
        %v3716 = vpack.c.b16 %v3628, %v3627
        %v3717 = vpack.c.b16 %v3630, %v3629
        %v3718 = vpack.c.b16 %v3632, %v3631
        %v3719 = vpack.c.b16 %v3634, %v3633
        %v3720 = vpack.c.b16 %v3636, %v3635
        %v3721 = vpack.c.b16 %v3638, %v3637
        %v3722 = vpack.c.b16 %v3640, %v3639
        %v3723 = vpack.c.b16 %v3642, %v3641
        %v3724 = vpack.c.b16 %v3644, %v3643
        %v3725 = vpack.c.b16 %v3646, %v3645
        %v3726 = vpack.c.b16 %v3648, %v3647
        %v3727 = vpack.c.b16 %v3650, %v3649
        %v3728 = vpack.c.b16 %v3652, %v3651
        %v3729 = vpack.c.b16 %v3654, %v3653
        %v3730 = vpack.c.b16 %v3656, %v3655
        %v3731 = vpack.c.b16 %v3658, %v3657
        %v3732 = vpack.c.b16 %v3660, %v3659
        %3805 = vmatpush.bf16.msra.mxu0 %v3668
        %3806 = vmatpush.bf16.msra.mxu0 %v3667
        %3807 = vmatpush.bf16.msra.mxu0 %v3666
        %3808 = vmatpush.bf16.msra.mxu0 %v3665
        %3809 = vmatpush.bf16.msra.mxu0 %v3664
        %3810 = vmatpush.bf16.msra.mxu0 %v3663
        %3811 = vmatpush.bf16.msra.mxu0 %v3662
        %3812 = vmatpush.bf16.msra.mxu0 %v3661
        %3813 = vmatmul.bf16.gmra.mxu0 %v3319
        %v3814 = vpop.f32.mrf.mxu0
        %v3815 = vadd.f32 %v3240, %v3814
        %v3816 = vpop.f32.mrf.mxu0
        %v3817 = vadd.f32 %v3242, %v3816
        %3818 = vmatmul.bf16.gmra.mxu0 %v3325
        %v3819 = vpop.f32.mrf.mxu0
        %v3820 = vadd.f32 %v3245, %v3819
        %v3821 = vpop.f32.mrf.mxu0
        %v3822 = vadd.f32 %v3247, %v3821
        %3823 = vmatmul.bf16.gmra.mxu0 %v3331
        %v3824 = vpop.f32.mrf.mxu0
        %v3825 = vadd.f32 %v3250, %v3824
        %v3826 = vpop.f32.mrf.mxu0
        %v3827 = vadd.f32 %v3252, %v3826
        %3828 = vmatmul.bf16.gmra.mxu0 %v3337
        %v3829 = vpop.f32.mrf.mxu0
        %v3830 = vadd.f32 %v3255, %v3829
        %v3831 = vpop.f32.mrf.mxu0
        %v3832 = vadd.f32 %v3257, %v3831
        %3833 = vmatmul.bf16.gmra.mxu0 %v1870
        %v3834 = vpop.f32.mrf.mxu0
        %v3835 = vadd.f32 %v3260, %v3834
        %v3836 = vpop.f32.mrf.mxu0
        %v3837 = vadd.f32 %v3262, %v3836
        %3838 = vmatmul.bf16.gmra.mxu0 %v1876
        %v3839 = vpop.f32.mrf.mxu0
        %v3840 = vadd.f32 %v3265, %v3839
        %v3841 = vpop.f32.mrf.mxu0
        %v3842 = vadd.f32 %v3267, %v3841
        %3843 = vmatmul.bf16.gmra.mxu0 %v1882
        %v3844 = vpop.f32.mrf.mxu0
        %v3845 = vadd.f32 %v3270, %v3844
        %v3846 = vpop.f32.mrf.mxu0
        %v3847 = vadd.f32 %v3272, %v3846
        %3848 = vmatmul.bf16.gmra.mxu0 %v1888
        %v3849 = vpop.f32.mrf.mxu0
        %v3850 = vadd.f32 %v3275, %v3849
        %v3851 = vpop.f32.mrf.mxu0
        %v3852 = vadd.f32 %v3277, %v3851
        %3853 = vmatmul.bf16.gmra.mxu0 %v1897
        %v3854 = vpop.f32.mrf.mxu0
        %v3855 = vadd.f32 %v3280, %v3854
        %v3856 = vpop.f32.mrf.mxu0
        %v3857 = vadd.f32 %v3282, %v3856
        %3858 = vmatmul.bf16.gmra.mxu0 %v1903
        %v3859 = vpop.f32.mrf.mxu0
        %v3860 = vadd.f32 %v3285, %v3859
        %v3861 = vpop.f32.mrf.mxu0
        %v3862 = vadd.f32 %v3287, %v3861
        %3863 = vmatmul.bf16.gmra.mxu0 %v1909
        %v3864 = vpop.f32.mrf.mxu0
        %v3865 = vadd.f32 %v3290, %v3864
        %v3866 = vpop.f32.mrf.mxu0
        %v3867 = vadd.f32 %v3292, %v3866
        %3868 = vmatmul.bf16.gmra.mxu0 %v1915
        %v3869 = vpop.f32.mrf.mxu0
        %v3870 = vadd.f32 %v3295, %v3869
        %v3871 = vpop.f32.mrf.mxu0
        %v3872 = vadd.f32 %v3297, %v3871
        %3873 = vmatmul.bf16.gmra.mxu0 %v1924
        %v3874 = vpop.f32.mrf.mxu0
        %v3875 = vadd.f32 %v3300, %v3874
        %v3876 = vpop.f32.mrf.mxu0
        %v3877 = vadd.f32 %v3302, %v3876
        %3878 = vmatmul.bf16.gmra.mxu0 %v1930
        %v3879 = vpop.f32.mrf.mxu0
        %v3880 = vadd.f32 %v3305, %v3879
        %v3881 = vpop.f32.mrf.mxu0
        %v3882 = vadd.f32 %v3307, %v3881
        %3883 = vmatmul.bf16.gmra.mxu0 %v1936
        %v3884 = vpop.f32.mrf.mxu0
        %v3885 = vadd.f32 %v3310, %v3884
        %v3886 = vpop.f32.mrf.mxu0
        %v3887 = vadd.f32 %v3312, %v3886
        %3888 = vmatmul.bf16.gmra.mxu0 %v1942
        %v3889 = vpop.f32.mrf.mxu0
        %v3890 = vadd.f32 %v3315, %v3889
        %v3891 = vpop.f32.mrf.mxu0
        %v3892 = vadd.f32 %v3317, %v3891
        %3893 = vdwg.mxu0
        %3894 = vmatpush.bf16.msra.mxu0 %v3676
        %3895 = vmatpush.bf16.msra.mxu0 %v3675
        %3896 = vmatpush.bf16.msra.mxu0 %v3674
        %3897 = vmatpush.bf16.msra.mxu0 %v3673
        %3898 = vmatpush.bf16.msra.mxu0 %v3672
        %3899 = vmatpush.bf16.msra.mxu0 %v3671
        %3900 = vmatpush.bf16.msra.mxu0 %v3670
        %3901 = vmatpush.bf16.msra.mxu0 %v3669
        %3902 = vmatmul.bf16.gmra.mxu0 %v3320
        %v3903 = vpop.f32.mrf.mxu0
        %v3904 = vadd.f32 %v3815, %v3903
        %v3905 = vpop.f32.mrf.mxu0
        %v3906 = vadd.f32 %v3817, %v3905
        %3907 = vmatmul.bf16.gmra.mxu0 %v3326
        %v3908 = vpop.f32.mrf.mxu0
        %v3909 = vadd.f32 %v3820, %v3908
        %v3910 = vpop.f32.mrf.mxu0
        %v3911 = vadd.f32 %v3822, %v3910
        %3912 = vmatmul.bf16.gmra.mxu0 %v3332
        %v3913 = vpop.f32.mrf.mxu0
        %v3914 = vadd.f32 %v3825, %v3913
        %v3915 = vpop.f32.mrf.mxu0
        %v3916 = vadd.f32 %v3827, %v3915
        %3917 = vmatmul.bf16.gmra.mxu0 %v3338
        %v3918 = vpop.f32.mrf.mxu0
        %v3919 = vadd.f32 %v3830, %v3918
        %v3920 = vpop.f32.mrf.mxu0
        %v3921 = vadd.f32 %v3832, %v3920
        %3922 = vmatmul.bf16.gmra.mxu0 %v1871
        %v3923 = vpop.f32.mrf.mxu0
        %v3924 = vadd.f32 %v3835, %v3923
        %v3925 = vpop.f32.mrf.mxu0
        %v3926 = vadd.f32 %v3837, %v3925
        %3927 = vmatmul.bf16.gmra.mxu0 %v1877
        %v3928 = vpop.f32.mrf.mxu0
        %v3929 = vadd.f32 %v3840, %v3928
        %v3930 = vpop.f32.mrf.mxu0
        %v3931 = vadd.f32 %v3842, %v3930
        %3932 = vmatmul.bf16.gmra.mxu0 %v1883
        %v3933 = vpop.f32.mrf.mxu0
        %v3934 = vadd.f32 %v3845, %v3933
        %v3935 = vpop.f32.mrf.mxu0
        %v3936 = vadd.f32 %v3847, %v3935
        %3937 = vmatmul.bf16.gmra.mxu0 %v1889
        %v3938 = vpop.f32.mrf.mxu0
        %v3939 = vadd.f32 %v3850, %v3938
        %v3940 = vpop.f32.mrf.mxu0
        %v3941 = vadd.f32 %v3852, %v3940
        %3942 = vmatmul.bf16.gmra.mxu0 %v1898
        %v3943 = vpop.f32.mrf.mxu0
        %v3944 = vadd.f32 %v3855, %v3943
        %v3945 = vpop.f32.mrf.mxu0
        %v3946 = vadd.f32 %v3857, %v3945
        %3947 = vmatmul.bf16.gmra.mxu0 %v1904
        %v3948 = vpop.f32.mrf.mxu0
        %v3949 = vadd.f32 %v3860, %v3948
        %v3950 = vpop.f32.mrf.mxu0
        %v3951 = vadd.f32 %v3862, %v3950
        %3952 = vmatmul.bf16.gmra.mxu0 %v1910
        %v3953 = vpop.f32.mrf.mxu0
        %v3954 = vadd.f32 %v3865, %v3953
        %v3955 = vpop.f32.mrf.mxu0
        %v3956 = vadd.f32 %v3867, %v3955
        %3957 = vmatmul.bf16.gmra.mxu0 %v1916
        %v3958 = vpop.f32.mrf.mxu0
        %v3959 = vadd.f32 %v3870, %v3958
        %v3960 = vpop.f32.mrf.mxu0
        %v3961 = vadd.f32 %v3872, %v3960
        %3962 = vmatmul.bf16.gmra.mxu0 %v1925
        %v3963 = vpop.f32.mrf.mxu0
        %v3964 = vadd.f32 %v3875, %v3963
        %v3965 = vpop.f32.mrf.mxu0
        %v3966 = vadd.f32 %v3877, %v3965
        %3967 = vmatmul.bf16.gmra.mxu0 %v1931
        %v3968 = vpop.f32.mrf.mxu0
        %v3969 = vadd.f32 %v3880, %v3968
        %v3970 = vpop.f32.mrf.mxu0
        %v3971 = vadd.f32 %v3882, %v3970
        %3972 = vmatmul.bf16.gmra.mxu0 %v1937
        %v3973 = vpop.f32.mrf.mxu0
        %v3974 = vadd.f32 %v3885, %v3973
        %v3975 = vpop.f32.mrf.mxu0
        %v3976 = vadd.f32 %v3887, %v3975
        %3977 = vmatmul.bf16.gmra.mxu0 %v1943
        %v3978 = vpop.f32.mrf.mxu0
        %v3979 = vadd.f32 %v3890, %v3978
        %v3980 = vpop.f32.mrf.mxu0
        %v3981 = vadd.f32 %v3892, %v3980
        %3982 = vdwg.mxu0
        %3983 = vmatpush.bf16.msra.mxu0 %v3684
        %3984 = vmatpush.bf16.msra.mxu0 %v3683
        %3985 = vmatpush.bf16.msra.mxu0 %v3682
        %3986 = vmatpush.bf16.msra.mxu0 %v3681
        %3987 = vmatpush.bf16.msra.mxu0 %v3680
        %3988 = vmatpush.bf16.msra.mxu0 %v3679
        %3989 = vmatpush.bf16.msra.mxu0 %v3678
        %3990 = vmatpush.bf16.msra.mxu0 %v3677
        %3991 = vmatmul.bf16.gmra.mxu0 %v3321
        %v3992 = vpop.f32.mrf.mxu0
        %v3993 = vadd.f32 %v3904, %v3992
        %v3994 = vpop.f32.mrf.mxu0
        %v3995 = vadd.f32 %v3906, %v3994
        %3996 = vmatmul.bf16.gmra.mxu0 %v3327
        %v3997 = vpop.f32.mrf.mxu0
        %v3998 = vadd.f32 %v3909, %v3997
        %v3999 = vpop.f32.mrf.mxu0
        %v4000 = vadd.f32 %v3911, %v3999
        %4001 = vmatmul.bf16.gmra.mxu0 %v3333
        %v4002 = vpop.f32.mrf.mxu0
        %v4003 = vadd.f32 %v3914, %v4002
        %v4004 = vpop.f32.mrf.mxu0
        %v4005 = vadd.f32 %v3916, %v4004
        %4006 = vmatmul.bf16.gmra.mxu0 %v3339
        %v4007 = vpop.f32.mrf.mxu0
        %v4008 = vadd.f32 %v3919, %v4007
        %v4009 = vpop.f32.mrf.mxu0
        %v4010 = vadd.f32 %v3921, %v4009
        %4011 = vmatmul.bf16.gmra.mxu0 %v1872
        %v4012 = vpop.f32.mrf.mxu0
        %v4013 = vadd.f32 %v3924, %v4012
        %v4014 = vpop.f32.mrf.mxu0
        %v4015 = vadd.f32 %v3926, %v4014
        %4016 = vmatmul.bf16.gmra.mxu0 %v1878
        %v4017 = vpop.f32.mrf.mxu0
        %v4018 = vadd.f32 %v3929, %v4017
        %v4019 = vpop.f32.mrf.mxu0
        %v4020 = vadd.f32 %v3931, %v4019
        %4021 = vmatmul.bf16.gmra.mxu0 %v1884
        %v4022 = vpop.f32.mrf.mxu0
        %v4023 = vadd.f32 %v3934, %v4022
        %v4024 = vpop.f32.mrf.mxu0
        %v4025 = vadd.f32 %v3936, %v4024
        %4026 = vmatmul.bf16.gmra.mxu0 %v1890
        %v4027 = vpop.f32.mrf.mxu0
        %v4028 = vadd.f32 %v3939, %v4027
        %v4029 = vpop.f32.mrf.mxu0
        %v4030 = vadd.f32 %v3941, %v4029
        %4031 = vmatmul.bf16.gmra.mxu0 %v1899
        %v4032 = vpop.f32.mrf.mxu0
        %v4033 = vadd.f32 %v3944, %v4032
        %v4034 = vpop.f32.mrf.mxu0
        %v4035 = vadd.f32 %v3946, %v4034
        %4036 = vmatmul.bf16.gmra.mxu0 %v1905
        %v4037 = vpop.f32.mrf.mxu0
        %v4038 = vadd.f32 %v3949, %v4037
        %v4039 = vpop.f32.mrf.mxu0
        %v4040 = vadd.f32 %v3951, %v4039
        %4041 = vmatmul.bf16.gmra.mxu0 %v1911
        %v4042 = vpop.f32.mrf.mxu0
        %v4043 = vadd.f32 %v3954, %v4042
        %v4044 = vpop.f32.mrf.mxu0
        %v4045 = vadd.f32 %v3956, %v4044
        %4046 = vmatmul.bf16.gmra.mxu0 %v1917
        %v4047 = vpop.f32.mrf.mxu0
        %v4048 = vadd.f32 %v3959, %v4047
        %v4049 = vpop.f32.mrf.mxu0
        %v4050 = vadd.f32 %v3961, %v4049
        %4051 = vmatmul.bf16.gmra.mxu0 %v1926
        %v4052 = vpop.f32.mrf.mxu0
        %v4053 = vadd.f32 %v3964, %v4052
        %v4054 = vpop.f32.mrf.mxu0
        %v4055 = vadd.f32 %v3966, %v4054
        %4056 = vmatmul.bf16.gmra.mxu0 %v1932
        %v4057 = vpop.f32.mrf.mxu0
        %v4058 = vadd.f32 %v3969, %v4057
        %v4059 = vpop.f32.mrf.mxu0
        %v4060 = vadd.f32 %v3971, %v4059
        %4061 = vmatmul.bf16.gmra.mxu0 %v1938
        %v4062 = vpop.f32.mrf.mxu0
        %v4063 = vadd.f32 %v3974, %v4062
        %v4064 = vpop.f32.mrf.mxu0
        %v4065 = vadd.f32 %v3976, %v4064
        %4066 = vmatmul.bf16.gmra.mxu0 %v1944
        %v4067 = vpop.f32.mrf.mxu0
        %v4068 = vadd.f32 %v3979, %v4067
        %v4069 = vpop.f32.mrf.mxu0
        %v4070 = vadd.f32 %v3981, %v4069
        %4071 = vdwg.mxu0
        %4072 = vmatpush.bf16.msra.mxu0 %v3692
        %4073 = vmatpush.bf16.msra.mxu0 %v3691
        %4074 = vmatpush.bf16.msra.mxu0 %v3690
        %4075 = vmatpush.bf16.msra.mxu0 %v3689
        %4076 = vmatpush.bf16.msra.mxu0 %v3688
        %4077 = vmatpush.bf16.msra.mxu0 %v3687
        %4078 = vmatpush.bf16.msra.mxu0 %v3686
        %4079 = vmatpush.bf16.msra.mxu0 %v3685
        %4080 = vmatmul.bf16.gmra.mxu0 %v3322
        %v4081 = vpop.f32.mrf.mxu0
        %v4082 = vadd.f32 %v3993, %v4081
        %v4083 = vpop.f32.mrf.mxu0
        %v4084 = vadd.f32 %v3995, %v4083
        %4085 = vmatmul.bf16.gmra.mxu0 %v3328
        %v4086 = vpop.f32.mrf.mxu0
        %v4087 = vadd.f32 %v3998, %v4086
        %v4088 = vpop.f32.mrf.mxu0
        %v4089 = vadd.f32 %v4000, %v4088
        %4090 = vmatmul.bf16.gmra.mxu0 %v3334
        %v4091 = vpop.f32.mrf.mxu0
        %v4092 = vadd.f32 %v4003, %v4091
        %v4093 = vpop.f32.mrf.mxu0
        %v4094 = vadd.f32 %v4005, %v4093
        %4095 = vmatmul.bf16.gmra.mxu0 %v3340
        %v4096 = vpop.f32.mrf.mxu0
        %v4097 = vadd.f32 %v4008, %v4096
        %v4098 = vpop.f32.mrf.mxu0
        %v4099 = vadd.f32 %v4010, %v4098
        %4100 = vmatmul.bf16.gmra.mxu0 %v1873
        %v4101 = vpop.f32.mrf.mxu0
        %v4102 = vadd.f32 %v4013, %v4101
        %v4103 = vpop.f32.mrf.mxu0
        %v4104 = vadd.f32 %v4015, %v4103
        %4105 = vmatmul.bf16.gmra.mxu0 %v1879
        %v4106 = vpop.f32.mrf.mxu0
        %v4107 = vadd.f32 %v4018, %v4106
        %v4108 = vpop.f32.mrf.mxu0
        %v4109 = vadd.f32 %v4020, %v4108
        %4110 = vmatmul.bf16.gmra.mxu0 %v1885
        %v4111 = vpop.f32.mrf.mxu0
        %v4112 = vadd.f32 %v4023, %v4111
        %v4113 = vpop.f32.mrf.mxu0
        %v4114 = vadd.f32 %v4025, %v4113
        %4115 = vmatmul.bf16.gmra.mxu0 %v1891
        %v4116 = vpop.f32.mrf.mxu0
        %v4117 = vadd.f32 %v4028, %v4116
        %v4118 = vpop.f32.mrf.mxu0
        %v4119 = vadd.f32 %v4030, %v4118
        %4120 = vmatmul.bf16.gmra.mxu0 %v1900
        %v4121 = vpop.f32.mrf.mxu0
        %v4122 = vadd.f32 %v4033, %v4121
        %v4123 = vpop.f32.mrf.mxu0
        %v4124 = vadd.f32 %v4035, %v4123
        %4125 = vmatmul.bf16.gmra.mxu0 %v1906
        %v4126 = vpop.f32.mrf.mxu0
        %v4127 = vadd.f32 %v4038, %v4126
        %v4128 = vpop.f32.mrf.mxu0
        %v4129 = vadd.f32 %v4040, %v4128
        %4130 = vmatmul.bf16.gmra.mxu0 %v1912
        %v4131 = vpop.f32.mrf.mxu0
        %v4132 = vadd.f32 %v4043, %v4131
        %v4133 = vpop.f32.mrf.mxu0
        %v4134 = vadd.f32 %v4045, %v4133
        %4135 = vmatmul.bf16.gmra.mxu0 %v1918
        %v4136 = vpop.f32.mrf.mxu0
        %v4137 = vadd.f32 %v4048, %v4136
        %v4138 = vpop.f32.mrf.mxu0
        %v4139 = vadd.f32 %v4050, %v4138
        %4140 = vmatmul.bf16.gmra.mxu0 %v1927
        %v4141 = vpop.f32.mrf.mxu0
        %v4142 = vadd.f32 %v4053, %v4141
        %v4143 = vpop.f32.mrf.mxu0
        %v4144 = vadd.f32 %v4055, %v4143
        %4145 = vmatmul.bf16.gmra.mxu0 %v1933
        %v4146 = vpop.f32.mrf.mxu0
        %v4147 = vadd.f32 %v4058, %v4146
        %v4148 = vpop.f32.mrf.mxu0
        %v4149 = vadd.f32 %v4060, %v4148
        %4150 = vmatmul.bf16.gmra.mxu0 %v1939
        %v4151 = vpop.f32.mrf.mxu0
        %v4152 = vadd.f32 %v4063, %v4151
        %v4153 = vpop.f32.mrf.mxu0
        %v4154 = vadd.f32 %v4065, %v4153
        %4155 = vmatmul.bf16.gmra.mxu0 %v1945
        %v4156 = vpop.f32.mrf.mxu0
        %v4157 = vadd.f32 %v4068, %v4156
        %v4158 = vpop.f32.mrf.mxu0
        %v4159 = vadd.f32 %v4070, %v4158
        %4160 = vdwg.mxu0
        %4161 = vmatpush.bf16.msra.mxu0 %v3700
        %4162 = vmatpush.bf16.msra.mxu0 %v3699
        %4163 = vmatpush.bf16.msra.mxu0 %v3698
        %4164 = vmatpush.bf16.msra.mxu0 %v3697
        %4165 = vmatpush.bf16.msra.mxu0 %v3696
        %4166 = vmatpush.bf16.msra.mxu0 %v3695
        %4167 = vmatpush.bf16.msra.mxu0 %v3694
        %4168 = vmatpush.bf16.msra.mxu0 %v3693
        %4169 = vmatmul.bf16.gmra.mxu0 %v3323
        %v4170 = vpop.f32.mrf.mxu0
        %v4171 = vadd.f32 %v4082, %v4170
        %v4172 = vpop.f32.mrf.mxu0
        %v4173 = vadd.f32 %v4084, %v4172
        %4174 = vmatmul.bf16.gmra.mxu0 %v3329
        %v4175 = vpop.f32.mrf.mxu0
        %v4176 = vadd.f32 %v4087, %v4175
        %v4177 = vpop.f32.mrf.mxu0
        %v4178 = vadd.f32 %v4089, %v4177
        %4179 = vmatmul.bf16.gmra.mxu0 %v3335
        %v4180 = vpop.f32.mrf.mxu0
        %v4181 = vadd.f32 %v4092, %v4180
        %v4182 = vpop.f32.mrf.mxu0
        %v4183 = vadd.f32 %v4094, %v4182
        %4184 = vmatmul.bf16.gmra.mxu0 %v3341
        %v4185 = vpop.f32.mrf.mxu0
        %v4186 = vadd.f32 %v4097, %v4185
        %v4187 = vpop.f32.mrf.mxu0
        %v4188 = vadd.f32 %v4099, %v4187
        %4189 = vmatmul.bf16.gmra.mxu0 %v1874
        %v4190 = vpop.f32.mrf.mxu0
        %v4191 = vadd.f32 %v4102, %v4190
        %v4192 = vpop.f32.mrf.mxu0
        %v4193 = vadd.f32 %v4104, %v4192
        %4194 = vmatmul.bf16.gmra.mxu0 %v1880
        %v4195 = vpop.f32.mrf.mxu0
        %v4196 = vadd.f32 %v4107, %v4195
        %v4197 = vpop.f32.mrf.mxu0
        %v4198 = vadd.f32 %v4109, %v4197
        %4199 = vmatmul.bf16.gmra.mxu0 %v1886
        %v4200 = vpop.f32.mrf.mxu0
        %v4201 = vadd.f32 %v4112, %v4200
        %v4202 = vpop.f32.mrf.mxu0
        %v4203 = vadd.f32 %v4114, %v4202
        %4204 = vmatmul.bf16.gmra.mxu0 %v1892
        %v4205 = vpop.f32.mrf.mxu0
        %v4206 = vadd.f32 %v4117, %v4205
        %v4207 = vpop.f32.mrf.mxu0
        %v4208 = vadd.f32 %v4119, %v4207
        %4209 = vmatmul.bf16.gmra.mxu0 %v1901
        %v4210 = vpop.f32.mrf.mxu0
        %v4211 = vadd.f32 %v4122, %v4210
        %v4212 = vpop.f32.mrf.mxu0
        %v4213 = vadd.f32 %v4124, %v4212
        %4214 = vmatmul.bf16.gmra.mxu0 %v1907
        %v4215 = vpop.f32.mrf.mxu0
        %v4216 = vadd.f32 %v4127, %v4215
        %v4217 = vpop.f32.mrf.mxu0
        %v4218 = vadd.f32 %v4129, %v4217
        %4219 = vmatmul.bf16.gmra.mxu0 %v1913
        %v4220 = vpop.f32.mrf.mxu0
        %v4221 = vadd.f32 %v4132, %v4220
        %v4222 = vpop.f32.mrf.mxu0
        %v4223 = vadd.f32 %v4134, %v4222
        %4224 = vmatmul.bf16.gmra.mxu0 %v1919
        %v4225 = vpop.f32.mrf.mxu0
        %v4226 = vadd.f32 %v4137, %v4225
        %v4227 = vpop.f32.mrf.mxu0
        %v4228 = vadd.f32 %v4139, %v4227
        %4229 = vmatmul.bf16.gmra.mxu0 %v1928
        %v4230 = vpop.f32.mrf.mxu0
        %v4231 = vadd.f32 %v4142, %v4230
        %v4232 = vpop.f32.mrf.mxu0
        %v4233 = vadd.f32 %v4144, %v4232
        %4234 = vmatmul.bf16.gmra.mxu0 %v1934
        %v4235 = vpop.f32.mrf.mxu0
        %v4236 = vadd.f32 %v4147, %v4235
        %v4237 = vpop.f32.mrf.mxu0
        %v4238 = vadd.f32 %v4149, %v4237
        %4239 = vmatmul.bf16.gmra.mxu0 %v1940
        %v4240 = vpop.f32.mrf.mxu0
        %v4241 = vadd.f32 %v4152, %v4240
        %v4242 = vpop.f32.mrf.mxu0
        %v4243 = vadd.f32 %v4154, %v4242
        %4244 = vmatmul.bf16.gmra.mxu0 %v1946
        %v4245 = vpop.f32.mrf.mxu0
        %v4246 = vadd.f32 %v4157, %v4245
        %v4247 = vpop.f32.mrf.mxu0
        %v4248 = vadd.f32 %v4159, %v4247
        %4249 = vdwg.mxu0
        %4250 = vmatpush.bf16.msra.mxu0 %v3708
        %4251 = vmatpush.bf16.msra.mxu0 %v3707
        %4252 = vmatpush.bf16.msra.mxu0 %v3706
        %4253 = vmatpush.bf16.msra.mxu0 %v3705
        %4254 = vmatpush.bf16.msra.mxu0 %v3704
        %4255 = vmatpush.bf16.msra.mxu0 %v3703
        %4256 = vmatpush.bf16.msra.mxu0 %v3702
        %4257 = vmatpush.bf16.msra.mxu0 %v3701
        %4258 = vmatmul.bf16.gmra.mxu0 %v3324
        %v4259 = vpop.f32.mrf.mxu0
        %v4260 = vadd.f32 %v4171, %v4259
        %v4261 = vpop.f32.mrf.mxu0
        %v4262 = vadd.f32 %v4173, %v4261
        %4263 = vmatmul.bf16.gmra.mxu0 %v3330
        %v4264 = vpop.f32.mrf.mxu0
        %v4265 = vadd.f32 %v4176, %v4264
        %v4266 = vpop.f32.mrf.mxu0
        %v4267 = vadd.f32 %v4178, %v4266
        %4268 = vmatmul.bf16.gmra.mxu0 %v3336
        %v4269 = vpop.f32.mrf.mxu0
        %v4270 = vadd.f32 %v4181, %v4269
        %v4271 = vpop.f32.mrf.mxu0
        %v4272 = vadd.f32 %v4183, %v4271
        %4273 = vmatmul.bf16.gmra.mxu0 %v3342
        %v4274 = vpop.f32.mrf.mxu0
        %v4275 = vadd.f32 %v4186, %v4274
        %v4276 = vpop.f32.mrf.mxu0
        %v4277 = vadd.f32 %v4188, %v4276
        %4278 = vmatmul.bf16.gmra.mxu0 %v1875
        %v4279 = vpop.f32.mrf.mxu0
        %v4280 = vadd.f32 %v4191, %v4279
        %v4281 = vpop.f32.mrf.mxu0
        %v4282 = vadd.f32 %v4193, %v4281
        %4283 = vmatmul.bf16.gmra.mxu0 %v1881
        %v4284 = vpop.f32.mrf.mxu0
        %v4285 = vadd.f32 %v4196, %v4284
        %v4286 = vpop.f32.mrf.mxu0
        %v4287 = vadd.f32 %v4198, %v4286
        %4288 = vmatmul.bf16.gmra.mxu0 %v1887
        %v4289 = vpop.f32.mrf.mxu0
        %v4290 = vadd.f32 %v4201, %v4289
        %v4291 = vpop.f32.mrf.mxu0
        %v4292 = vadd.f32 %v4203, %v4291
        %4293 = vmatmul.bf16.gmra.mxu0 %v1893
        %v4294 = vpop.f32.mrf.mxu0
        %v4295 = vadd.f32 %v4206, %v4294
        %v4296 = vpop.f32.mrf.mxu0
        %v4297 = vadd.f32 %v4208, %v4296
        %4298 = vmatmul.bf16.gmra.mxu0 %v1902
        %v4299 = vpop.f32.mrf.mxu0
        %v4300 = vadd.f32 %v4211, %v4299
        %v4301 = vpop.f32.mrf.mxu0
        %v4302 = vadd.f32 %v4213, %v4301
        %4303 = vmatmul.bf16.gmra.mxu0 %v1908
        %v4304 = vpop.f32.mrf.mxu0
        %v4305 = vadd.f32 %v4216, %v4304
        %v4306 = vpop.f32.mrf.mxu0
        %v4307 = vadd.f32 %v4218, %v4306
        %4308 = vmatmul.bf16.gmra.mxu0 %v1914
        %v4309 = vpop.f32.mrf.mxu0
        %v4310 = vadd.f32 %v4221, %v4309
        %v4311 = vpop.f32.mrf.mxu0
        %v4312 = vadd.f32 %v4223, %v4311
        %4313 = vmatmul.bf16.gmra.mxu0 %v1920
        %v4314 = vpop.f32.mrf.mxu0
        %v4315 = vadd.f32 %v4226, %v4314
        %v4316 = vpop.f32.mrf.mxu0
        %v4317 = vadd.f32 %v4228, %v4316
        %4318 = vmatmul.bf16.gmra.mxu0 %v1929
        %v4319 = vpop.f32.mrf.mxu0
        %v4320 = vadd.f32 %v4231, %v4319
        %v4321 = vpop.f32.mrf.mxu0
        %v4322 = vadd.f32 %v4233, %v4321
        %4323 = vmatmul.bf16.gmra.mxu0 %v1935
        %v4324 = vpop.f32.mrf.mxu0
        %v4325 = vadd.f32 %v4236, %v4324
        %v4326 = vpop.f32.mrf.mxu0
        %v4327 = vadd.f32 %v4238, %v4326
        %4328 = vmatmul.bf16.gmra.mxu0 %v1941
        %v4329 = vpop.f32.mrf.mxu0
        %v4330 = vadd.f32 %v4241, %v4329
        %v4331 = vpop.f32.mrf.mxu0
        %v4332 = vadd.f32 %v4243, %v4331
        %4333 = vmatmul.bf16.gmra.mxu0 %v1947
        %v4334 = vpop.f32.mrf.mxu0
        %v4335 = vadd.f32 %v4246, %v4334
        %v4336 = vpop.f32.mrf.mxu0
        %v4337 = vadd.f32 %v4248, %v4336
        %4338 = vdwg.mxu0
        %4339 = vmatpush.bf16.msra.mxu0 %v3716
        %4340 = vmatpush.bf16.msra.mxu0 %v3715
        %4341 = vmatpush.bf16.msra.mxu0 %v3714
        %4342 = vmatpush.bf16.msra.mxu0 %v3713
        %4343 = vmatpush.bf16.msra.mxu0 %v3712
        %4344 = vmatpush.bf16.msra.mxu0 %v3711
        %4345 = vmatpush.bf16.msra.mxu0 %v3710
        %4346 = vmatpush.bf16.msra.mxu0 %v3709
        %4347 = vmatmul.bf16.gmra.mxu0 %v3325
        %v4348 = vpop.f32.mrf.mxu0
        %v4349 = vadd.f32 %v4260, %v4348
        %v4350 = vpop.f32.mrf.mxu0
        %v4351 = vadd.f32 %v4262, %v4350
        %4352 = vmatmul.bf16.gmra.mxu0 %v3331
        %v4353 = vpop.f32.mrf.mxu0
        %v4354 = vadd.f32 %v4265, %v4353
        %v4355 = vpop.f32.mrf.mxu0
        %v4356 = vadd.f32 %v4267, %v4355
        %4357 = vmatmul.bf16.gmra.mxu0 %v3337
        %v4358 = vpop.f32.mrf.mxu0
        %v4359 = vadd.f32 %v4270, %v4358
        %v4360 = vpop.f32.mrf.mxu0
        %v4361 = vadd.f32 %v4272, %v4360
        %4362 = vmatmul.bf16.gmra.mxu0 %v3343
        %v4363 = vpop.f32.mrf.mxu0
        %v4364 = vadd.f32 %v4275, %v4363
        %v4365 = vpop.f32.mrf.mxu0
        %v4366 = vadd.f32 %v4277, %v4365
        %4367 = vmatmul.bf16.gmra.mxu0 %v1876
        %v4368 = vpop.f32.mrf.mxu0
        %v4369 = vadd.f32 %v4280, %v4368
        %v4370 = vpop.f32.mrf.mxu0
        %v4371 = vadd.f32 %v4282, %v4370
        %4372 = vmatmul.bf16.gmra.mxu0 %v1882
        %v4373 = vpop.f32.mrf.mxu0
        %v4374 = vadd.f32 %v4285, %v4373
        %v4375 = vpop.f32.mrf.mxu0
        %v4376 = vadd.f32 %v4287, %v4375
        %4377 = vmatmul.bf16.gmra.mxu0 %v1888
        %v4378 = vpop.f32.mrf.mxu0
        %v4379 = vadd.f32 %v4290, %v4378
        %v4380 = vpop.f32.mrf.mxu0
        %v4381 = vadd.f32 %v4292, %v4380
        %4382 = vmatmul.bf16.gmra.mxu0 %v1894
        %v4383 = vpop.f32.mrf.mxu0
        %v4384 = vadd.f32 %v4295, %v4383
        %v4385 = vpop.f32.mrf.mxu0
        %v4386 = vadd.f32 %v4297, %v4385
        %4387 = vmatmul.bf16.gmra.mxu0 %v1903
        %v4388 = vpop.f32.mrf.mxu0
        %v4389 = vadd.f32 %v4300, %v4388
        %v4390 = vpop.f32.mrf.mxu0
        %v4391 = vadd.f32 %v4302, %v4390
        %4392 = vmatmul.bf16.gmra.mxu0 %v1909
        %v4393 = vpop.f32.mrf.mxu0
        %v4394 = vadd.f32 %v4305, %v4393
        %v4395 = vpop.f32.mrf.mxu0
        %v4396 = vadd.f32 %v4307, %v4395
        %4397 = vmatmul.bf16.gmra.mxu0 %v1915
        %v4398 = vpop.f32.mrf.mxu0
        %v4399 = vadd.f32 %v4310, %v4398
        %v4400 = vpop.f32.mrf.mxu0
        %v4401 = vadd.f32 %v4312, %v4400
        %4402 = vmatmul.bf16.gmra.mxu0 %v1921
        %v4403 = vpop.f32.mrf.mxu0
        %v4404 = vadd.f32 %v4315, %v4403
        %v4405 = vpop.f32.mrf.mxu0
        %v4406 = vadd.f32 %v4317, %v4405
        %4407 = vmatmul.bf16.gmra.mxu0 %v1930
        %v4408 = vpop.f32.mrf.mxu0
        %v4409 = vadd.f32 %v4320, %v4408
        %v4410 = vpop.f32.mrf.mxu0
        %v4411 = vadd.f32 %v4322, %v4410
        %4412 = vmatmul.bf16.gmra.mxu0 %v1936
        %v4413 = vpop.f32.mrf.mxu0
        %v4414 = vadd.f32 %v4325, %v4413
        %v4415 = vpop.f32.mrf.mxu0
        %v4416 = vadd.f32 %v4327, %v4415
        %4417 = vmatmul.bf16.gmra.mxu0 %v1942
        %v4418 = vpop.f32.mrf.mxu0
        %v4419 = vadd.f32 %v4330, %v4418
        %v4420 = vpop.f32.mrf.mxu0
        %v4421 = vadd.f32 %v4332, %v4420
        %4422 = vmatmul.bf16.gmra.mxu0 %v1948
        %v4423 = vpop.f32.mrf.mxu0
        %v4424 = vadd.f32 %v4335, %v4423
        %v4425 = vpop.f32.mrf.mxu0
        %v4426 = vadd.f32 %v4337, %v4425
        %4427 = vdwg.mxu0
        %4428 = vmatpush.bf16.msra.mxu0 %v3724
        %4429 = vmatpush.bf16.msra.mxu0 %v3723
        %4430 = vmatpush.bf16.msra.mxu0 %v3722
        %4431 = vmatpush.bf16.msra.mxu0 %v3721
        %4432 = vmatpush.bf16.msra.mxu0 %v3720
        %4433 = vmatpush.bf16.msra.mxu0 %v3719
        %4434 = vmatpush.bf16.msra.mxu0 %v3718
        %4435 = vmatpush.bf16.msra.mxu0 %v3717
        %4436 = vmatmul.bf16.gmra.mxu0 %v3326
        %v4437 = vpop.f32.mrf.mxu0
        %v4438 = vadd.f32 %v4349, %v4437
        %v4439 = vpop.f32.mrf.mxu0
        %v4440 = vadd.f32 %v4351, %v4439
        %4441 = vmatmul.bf16.gmra.mxu0 %v3332
        %v4442 = vpop.f32.mrf.mxu0
        %v4443 = vadd.f32 %v4354, %v4442
        %v4444 = vpop.f32.mrf.mxu0
        %v4445 = vadd.f32 %v4356, %v4444
        %4446 = vmatmul.bf16.gmra.mxu0 %v3338
        %v4447 = vpop.f32.mrf.mxu0
        %v4448 = vadd.f32 %v4359, %v4447
        %v4449 = vpop.f32.mrf.mxu0
        %v4450 = vadd.f32 %v4361, %v4449
        %4451 = vmatmul.bf16.gmra.mxu0 %v3344
        %v4452 = vpop.f32.mrf.mxu0
        %v4453 = vadd.f32 %v4364, %v4452
        %v4454 = vpop.f32.mrf.mxu0
        %v4455 = vadd.f32 %v4366, %v4454
        %4456 = vmatmul.bf16.gmra.mxu0 %v1877
        %v4457 = vpop.f32.mrf.mxu0
        %v4458 = vadd.f32 %v4369, %v4457
        %v4459 = vpop.f32.mrf.mxu0
        %v4460 = vadd.f32 %v4371, %v4459
        %4461 = vmatmul.bf16.gmra.mxu0 %v1883
        %v4462 = vpop.f32.mrf.mxu0
        %v4463 = vadd.f32 %v4374, %v4462
        %v4464 = vpop.f32.mrf.mxu0
        %v4465 = vadd.f32 %v4376, %v4464
        %4466 = vmatmul.bf16.gmra.mxu0 %v1889
        %v4467 = vpop.f32.mrf.mxu0
        %v4468 = vadd.f32 %v4379, %v4467
        %v4469 = vpop.f32.mrf.mxu0
        %v4470 = vadd.f32 %v4381, %v4469
        %4471 = vmatmul.bf16.gmra.mxu0 %v1895
        %v4472 = vpop.f32.mrf.mxu0
        %v4473 = vadd.f32 %v4384, %v4472
        %v4474 = vpop.f32.mrf.mxu0
        %v4475 = vadd.f32 %v4386, %v4474
        %4476 = vmatmul.bf16.gmra.mxu0 %v1904
        %v4477 = vpop.f32.mrf.mxu0
        %v4478 = vadd.f32 %v4389, %v4477
        %v4479 = vpop.f32.mrf.mxu0
        %v4480 = vadd.f32 %v4391, %v4479
        %4481 = vmatmul.bf16.gmra.mxu0 %v1910
        %v4482 = vpop.f32.mrf.mxu0
        %v4483 = vadd.f32 %v4394, %v4482
        %v4484 = vpop.f32.mrf.mxu0
        %v4485 = vadd.f32 %v4396, %v4484
        %4486 = vmatmul.bf16.gmra.mxu0 %v1916
        %v4487 = vpop.f32.mrf.mxu0
        %v4488 = vadd.f32 %v4399, %v4487
        %v4489 = vpop.f32.mrf.mxu0
        %v4490 = vadd.f32 %v4401, %v4489
        %4491 = vmatmul.bf16.gmra.mxu0 %v1922
        %v4492 = vpop.f32.mrf.mxu0
        %v4493 = vadd.f32 %v4404, %v4492
        %v4494 = vpop.f32.mrf.mxu0
        %v4495 = vadd.f32 %v4406, %v4494
        %4496 = vmatmul.bf16.gmra.mxu0 %v1931
        %v4497 = vpop.f32.mrf.mxu0
        %v4498 = vadd.f32 %v4409, %v4497
        %v4499 = vpop.f32.mrf.mxu0
        %v4500 = vadd.f32 %v4411, %v4499
        %4501 = vmatmul.bf16.gmra.mxu0 %v1937
        %v4502 = vpop.f32.mrf.mxu0
        %v4503 = vadd.f32 %v4414, %v4502
        %v4504 = vpop.f32.mrf.mxu0
        %v4505 = vadd.f32 %v4416, %v4504
        %4506 = vmatmul.bf16.gmra.mxu0 %v1943
        %v4507 = vpop.f32.mrf.mxu0
        %v4508 = vadd.f32 %v4419, %v4507
        %v4509 = vpop.f32.mrf.mxu0
        %v4510 = vadd.f32 %v4421, %v4509
        %4511 = vmatmul.bf16.gmra.mxu0 %v1949
        %v4512 = vpop.f32.mrf.mxu0
        %v4513 = vadd.f32 %v4424, %v4512
        %v4514 = vpop.f32.mrf.mxu0
        %v4515 = vadd.f32 %v4426, %v4514
        %4516 = vdwg.mxu0
        %4517 = vmatpush.bf16.msra.mxu0 %v3732
        %4518 = vmatpush.bf16.msra.mxu0 %v3731
        %4519 = vmatpush.bf16.msra.mxu0 %v3730
        %4520 = vmatpush.bf16.msra.mxu0 %v3729
        %4521 = vmatpush.bf16.msra.mxu0 %v3728
        %4522 = vmatpush.bf16.msra.mxu0 %v3727
        %4523 = vmatpush.bf16.msra.mxu0 %v3726
        %4524 = vmatpush.bf16.msra.mxu0 %v3725
        %4525 = vmatmul.bf16.gmra.mxu0 %v3327
        %v4526 = vpop.f32.mrf.mxu0
        %v4527 = vadd.f32 %v4438, %v4526
        %v4528 = vpop.f32.mrf.mxu0
        %v4529 = vadd.f32 %v4440, %v4528
        %4530 = vmatmul.bf16.gmra.mxu0 %v3333
        %v4531 = vpop.f32.mrf.mxu0
        %v4532 = vadd.f32 %v4443, %v4531
        %v4533 = vpop.f32.mrf.mxu0
        %v4534 = vadd.f32 %v4445, %v4533
        %4535 = vmatmul.bf16.gmra.mxu0 %v3339
        %v4536 = vpop.f32.mrf.mxu0
        %v4537 = vadd.f32 %v4448, %v4536
        %v4538 = vpop.f32.mrf.mxu0
        %v4539 = vadd.f32 %v4450, %v4538
        %4540 = vmatmul.bf16.gmra.mxu0 %v3345
        %v4541 = vpop.f32.mrf.mxu0
        %v4542 = vadd.f32 %v4453, %v4541
        %v4543 = vpop.f32.mrf.mxu0
        %v4544 = vadd.f32 %v4455, %v4543
        %4545 = vmatmul.bf16.gmra.mxu0 %v1878
        %v4546 = vpop.f32.mrf.mxu0
        %v4547 = vadd.f32 %v4458, %v4546
        %v4548 = vpop.f32.mrf.mxu0
        %v4549 = vadd.f32 %v4460, %v4548
        %4550 = vmatmul.bf16.gmra.mxu0 %v1884
        %v4551 = vpop.f32.mrf.mxu0
        %v4552 = vadd.f32 %v4463, %v4551
        %v4553 = vpop.f32.mrf.mxu0
        %v4554 = vadd.f32 %v4465, %v4553
        %4555 = vmatmul.bf16.gmra.mxu0 %v1890
        %v4556 = vpop.f32.mrf.mxu0
        %v4557 = vadd.f32 %v4468, %v4556
        %v4558 = vpop.f32.mrf.mxu0
        %v4559 = vadd.f32 %v4470, %v4558
        %4560 = vmatmul.bf16.gmra.mxu0 %v1896
        %v4561 = vpop.f32.mrf.mxu0
        %v4562 = vadd.f32 %v4473, %v4561
        %v4563 = vpop.f32.mrf.mxu0
        %v4564 = vadd.f32 %v4475, %v4563
        %4565 = vmatmul.bf16.gmra.mxu0 %v1905
        %v4566 = vpop.f32.mrf.mxu0
        %v4567 = vadd.f32 %v4478, %v4566
        %v4568 = vpop.f32.mrf.mxu0
        %v4569 = vadd.f32 %v4480, %v4568
        %4570 = vmatmul.bf16.gmra.mxu0 %v1911
        %v4571 = vpop.f32.mrf.mxu0
        %v4572 = vadd.f32 %v4483, %v4571
        %v4573 = vpop.f32.mrf.mxu0
        %v4574 = vadd.f32 %v4485, %v4573
        %4575 = vmatmul.bf16.gmra.mxu0 %v1917
        %v4576 = vpop.f32.mrf.mxu0
        %v4577 = vadd.f32 %v4488, %v4576
        %v4578 = vpop.f32.mrf.mxu0
        %v4579 = vadd.f32 %v4490, %v4578
        %4580 = vmatmul.bf16.gmra.mxu0 %v1923
        %v4581 = vpop.f32.mrf.mxu0
        %v4582 = vadd.f32 %v4493, %v4581
        %v4583 = vpop.f32.mrf.mxu0
        %v4584 = vadd.f32 %v4495, %v4583
        %4585 = vmatmul.bf16.gmra.mxu0 %v1932
        %v4586 = vpop.f32.mrf.mxu0
        %v4587 = vadd.f32 %v4498, %v4586
        %v4588 = vpop.f32.mrf.mxu0
        %v4589 = vadd.f32 %v4500, %v4588
        %4590 = vmatmul.bf16.gmra.mxu0 %v1938
        %v4591 = vpop.f32.mrf.mxu0
        %v4592 = vadd.f32 %v4503, %v4591
        %v4593 = vpop.f32.mrf.mxu0
        %v4594 = vadd.f32 %v4505, %v4593
        %4595 = vmatmul.bf16.gmra.mxu0 %v1944
        %v4596 = vpop.f32.mrf.mxu0
        %v4597 = vadd.f32 %v4508, %v4596
        %v4598 = vpop.f32.mrf.mxu0
        %v4599 = vadd.f32 %v4510, %v4598
        %4600 = vmatmul.bf16.gmra.mxu0 %v1950
        %v4601 = vpop.f32.mrf.mxu0
        %v4602 = vadd.f32 %v4513, %v4601
        %v4603 = vpop.f32.mrf.mxu0
        %v4604 = vadd.f32 %v4515, %v4603
        %4605 = vdwg.mxu0
        %s4606 = scalar_lea.vmem %s6, 1152
        %v4607 = vld [vmem:[%s4606] sm:$0xf]
        %v4608 = vld [vmem:[%s4606 + $0x4] sm:$0xf]
        %v4609 = vld [vmem:[%s4606 + $0x8] sm:$0xf]
        %v4610 = vld [vmem:[%s4606 + $0xc] sm:$0xf]
        %v4611 = vld [vmem:[%s4606 + $0x10] sm:$0xf]
        %v4612 = vld [vmem:[%s4606 + $0x14] sm:$0xf]
        %v4613 = vld [vmem:[%s4606 + $0x18] sm:$0xf]
        %v4614 = vld [vmem:[%s4606 + $0x1c] sm:$0xf]
        %v4615 = vld [vmem:[%s4606 + $0x20] sm:$0xf]
        %v4616 = vld [vmem:[%s4606 + $0x24] sm:$0xf]
        %v4617 = vld [vmem:[%s4606 + $0x28] sm:$0xf]
        %v4618 = vld [vmem:[%s4606 + $0x2c] sm:$0xf]
        %v4619 = vld [vmem:[%s4606 + $0x30] sm:$0xf]
        %v4620 = vld [vmem:[%s4606 + $0x34] sm:$0xf]
        %v4621 = vld [vmem:[%s4606 + $0x38] sm:$0xf]
        %v4622 = vld [vmem:[%s4606 + $0x3c] sm:$0xf]
        %v4623 = vld [vmem:[%s4606 + $0x40] sm:$0xf]
        %v4624 = vld [vmem:[%s4606 + $0x44] sm:$0xf]
        %v4625 = vld [vmem:[%s4606 + $0x48] sm:$0xf]
        %v4626 = vld [vmem:[%s4606 + $0x4c] sm:$0xf]
        %v4627 = vld [vmem:[%s4606 + $0x50] sm:$0xf]
        %v4628 = vld [vmem:[%s4606 + $0x54] sm:$0xf]
        %v4629 = vld [vmem:[%s4606 + $0x58] sm:$0xf]
        %v4630 = vld [vmem:[%s4606 + $0x5c] sm:$0xf]
        %v4631 = vld [vmem:[%s4606 + $0x60] sm:$0xf]
        %v4632 = vld [vmem:[%s4606 + $0x64] sm:$0xf]
        %v4633 = vld [vmem:[%s4606 + $0x68] sm:$0xf]
        %v4634 = vld [vmem:[%s4606 + $0x6c] sm:$0xf]
        %v4635 = vld [vmem:[%s4606 + $0x70] sm:$0xf]
        %v4636 = vld [vmem:[%s4606 + $0x74] sm:$0xf]
        %v4637 = vld [vmem:[%s4606 + $0x78] sm:$0xf]
        %v4638 = vld [vmem:[%s4606 + $0x7c] sm:$0xf]
        %v4639 = vld [vmem:[%s4606 + $0x80] sm:$0xf]
        %v4640 = vld [vmem:[%s4606 + $0x84] sm:$0xf]
        %v4641 = vld [vmem:[%s4606 + $0x88] sm:$0xf]
        %v4642 = vld [vmem:[%s4606 + $0x8c] sm:$0xf]
        %v4643 = vld [vmem:[%s4606 + $0x90] sm:$0xf]
        %v4644 = vld [vmem:[%s4606 + $0x94] sm:$0xf]
        %v4645 = vld [vmem:[%s4606 + $0x98] sm:$0xf]
        %v4646 = vld [vmem:[%s4606 + $0x9c] sm:$0xf]
        %v4647 = vld [vmem:[%s4606 + $0xa0] sm:$0xf]
        %v4648 = vld [vmem:[%s4606 + $0xa4] sm:$0xf]
        %v4649 = vld [vmem:[%s4606 + $0xa8] sm:$0xf]
        %v4650 = vld [vmem:[%s4606 + $0xac] sm:$0xf]
        %v4651 = vld [vmem:[%s4606 + $0xb0] sm:$0xf]
        %v4652 = vld [vmem:[%s4606 + $0xb4] sm:$0xf]
        %v4653 = vld [vmem:[%s4606 + $0xb8] sm:$0xf]
        %v4654 = vld [vmem:[%s4606 + $0xbc] sm:$0xf]
        %v4655 = vld [vmem:[%s4606 + $0xc0] sm:$0xf]
        %v4656 = vld [vmem:[%s4606 + $0xc4] sm:$0xf]
        %v4657 = vld [vmem:[%s4606 + $0xc8] sm:$0xf]
        %v4658 = vld [vmem:[%s4606 + $0xcc] sm:$0xf]
        %v4659 = vld [vmem:[%s4606 + $0xd0] sm:$0xf]
        %v4660 = vld [vmem:[%s4606 + $0xd4] sm:$0xf]
        %v4661 = vld [vmem:[%s4606 + $0xd8] sm:$0xf]
        %v4662 = vld [vmem:[%s4606 + $0xdc] sm:$0xf]
        %v4663 = vld [vmem:[%s4606 + $0xe0] sm:$0xf]
        %v4664 = vld [vmem:[%s4606 + $0xe4] sm:$0xf]
        %v4665 = vld [vmem:[%s4606 + $0xe8] sm:$0xf]
        %v4666 = vld [vmem:[%s4606 + $0xec] sm:$0xf]
        %v4667 = vld [vmem:[%s4606 + $0xf0] sm:$0xf]
        %v4668 = vld [vmem:[%s4606 + $0xf4] sm:$0xf]
        %v4669 = vld [vmem:[%s4606 + $0xf8] sm:$0xf]
        %v4670 = vld [vmem:[%s4606 + $0xfc] sm:$0xf]
        %v4671 = vld [vmem:[%s4606 + $0x100] sm:$0xf]
        %v4672 = vld [vmem:[%s4606 + $0x104] sm:$0xf]
        %v4673 = vld [vmem:[%s4606 + $0x108] sm:$0xf]
        %v4674 = vld [vmem:[%s4606 + $0x10c] sm:$0xf]
        %v4675 = vld [vmem:[%s4606 + $0x110] sm:$0xf]
        %v4676 = vld [vmem:[%s4606 + $0x114] sm:$0xf]
        %v4677 = vld [vmem:[%s4606 + $0x118] sm:$0xf]
        %v4678 = vld [vmem:[%s4606 + $0x11c] sm:$0xf]
        %v4679 = vld [vmem:[%s4606 + $0x120] sm:$0xf]
        %v4680 = vld [vmem:[%s4606 + $0x124] sm:$0xf]
        %v4681 = vld [vmem:[%s4606 + $0x128] sm:$0xf]
        %v4682 = vld [vmem:[%s4606 + $0x12c] sm:$0xf]
        %v4683 = vld [vmem:[%s4606 + $0x130] sm:$0xf]
        %v4684 = vld [vmem:[%s4606 + $0x134] sm:$0xf]
        %v4685 = vld [vmem:[%s4606 + $0x138] sm:$0xf]
        %v4686 = vld [vmem:[%s4606 + $0x13c] sm:$0xf]
        %v4687 = vld [vmem:[%s4606 + $0x140] sm:$0xf]
        %v4688 = vld [vmem:[%s4606 + $0x144] sm:$0xf]
        %v4689 = vld [vmem:[%s4606 + $0x148] sm:$0xf]
        %v4690 = vld [vmem:[%s4606 + $0x14c] sm:$0xf]
        %v4691 = vld [vmem:[%s4606 + $0x150] sm:$0xf]
        %v4692 = vld [vmem:[%s4606 + $0x154] sm:$0xf]
        %v4693 = vld [vmem:[%s4606 + $0x158] sm:$0xf]
        %v4694 = vld [vmem:[%s4606 + $0x15c] sm:$0xf]
        %v4695 = vld [vmem:[%s4606 + $0x160] sm:$0xf]
        %v4696 = vld [vmem:[%s4606 + $0x164] sm:$0xf]
        %v4697 = vld [vmem:[%s4606 + $0x168] sm:$0xf]
        %v4698 = vld [vmem:[%s4606 + $0x16c] sm:$0xf]
        %v4699 = vld [vmem:[%s4606 + $0x170] sm:$0xf]
        %v4700 = vld [vmem:[%s4606 + $0x174] sm:$0xf]
        %v4701 = vld [vmem:[%s4606 + $0x178] sm:$0xf]
        %v4702 = vld [vmem:[%s4606 + $0x17c] sm:$0xf]
        %v4703 = vld [vmem:[%s4606 + $0x180] sm:$0xf]
        %v4704 = vld [vmem:[%s4606 + $0x184] sm:$0xf]
        %v4705 = vld [vmem:[%s4606 + $0x188] sm:$0xf]
        %v4706 = vld [vmem:[%s4606 + $0x18c] sm:$0xf]
        %v4707 = vld [vmem:[%s4606 + $0x190] sm:$0xf]
        %v4708 = vld [vmem:[%s4606 + $0x194] sm:$0xf]
        %v4709 = vld [vmem:[%s4606 + $0x198] sm:$0xf]
        %v4710 = vld [vmem:[%s4606 + $0x19c] sm:$0xf]
        %v4711 = vld [vmem:[%s4606 + $0x1a0] sm:$0xf]
        %v4712 = vld [vmem:[%s4606 + $0x1a4] sm:$0xf]
        %v4713 = vld [vmem:[%s4606 + $0x1a8] sm:$0xf]
        %v4714 = vld [vmem:[%s4606 + $0x1ac] sm:$0xf]
        %v4715 = vld [vmem:[%s4606 + $0x1b0] sm:$0xf]
        %v4716 = vld [vmem:[%s4606 + $0x1b4] sm:$0xf]
        %v4717 = vld [vmem:[%s4606 + $0x1b8] sm:$0xf]
        %v4718 = vld [vmem:[%s4606 + $0x1bc] sm:$0xf]
        %v4719 = vld [vmem:[%s4606 + $0x1c0] sm:$0xf]
        %v4720 = vld [vmem:[%s4606 + $0x1c4] sm:$0xf]
        %v4721 = vld [vmem:[%s4606 + $0x1c8] sm:$0xf]
        %v4722 = vld [vmem:[%s4606 + $0x1cc] sm:$0xf]
        %v4723 = vld [vmem:[%s4606 + $0x1d0] sm:$0xf]
        %v4724 = vld [vmem:[%s4606 + $0x1d4] sm:$0xf]
        %v4725 = vld [vmem:[%s4606 + $0x1d8] sm:$0xf]
        %v4726 = vld [vmem:[%s4606 + $0x1dc] sm:$0xf]
        %v4727 = vld [vmem:[%s4606 + $0x1e0] sm:$0xf]
        %v4728 = vld [vmem:[%s4606 + $0x1e4] sm:$0xf]
        %v4729 = vld [vmem:[%s4606 + $0x1e8] sm:$0xf]
        %v4730 = vld [vmem:[%s4606 + $0x1ec] sm:$0xf]
        %v4731 = vld [vmem:[%s4606 + $0x1f0] sm:$0xf]
        %v4732 = vld [vmem:[%s4606 + $0x1f4] sm:$0xf]
        %v4733 = vld [vmem:[%s4606 + $0x1f8] sm:$0xf]
        %v4734 = vld [vmem:[%s4606 + $0x1fc] sm:$0xf]
        %v4735 = vld [vmem:[%s4606 + $0x200] sm:$0xf]
        %v4736 = vld [vmem:[%s4606 + $0x204] sm:$0xf]
        %v4737 = vld [vmem:[%s4606 + $0x208] sm:$0xf]
        %v4738 = vld [vmem:[%s4606 + $0x20c] sm:$0xf]
        %v4739 = vld [vmem:[%s4606 + $0x210] sm:$0xf]
        %v4740 = vld [vmem:[%s4606 + $0x214] sm:$0xf]
        %v4741 = vld [vmem:[%s4606 + $0x218] sm:$0xf]
        %v4742 = vld [vmem:[%s4606 + $0x21c] sm:$0xf]
        %v4743 = vld [vmem:[%s4606 + $0x220] sm:$0xf]
        %v4744 = vld [vmem:[%s4606 + $0x224] sm:$0xf]
        %v4745 = vld [vmem:[%s4606 + $0x228] sm:$0xf]
        %v4746 = vld [vmem:[%s4606 + $0x22c] sm:$0xf]
        %v4747 = vld [vmem:[%s4606 + $0x230] sm:$0xf]
        %v4748 = vld [vmem:[%s4606 + $0x234] sm:$0xf]
        %v4749 = vld [vmem:[%s4606 + $0x238] sm:$0xf]
        %v4750 = vld [vmem:[%s4606 + $0x23c] sm:$0xf]
        %v4751 = vunpack.c.l.b16 %v1406
        %v4752 = vunpack.c.l.b16 %v1470
        %v4753 = vunpack.c.l.b16 %v1413
        %v4754 = vunpack.c.l.b16 %v1471
        %v4755 = vunpack.c.l.b16 %v1420
        %v4756 = vunpack.c.l.b16 %v1472
        %v4757 = vunpack.c.l.b16 %v1427
        %v4758 = vunpack.c.l.b16 %v1473
        %v4759 = vunpack.c.l.b16 %v1434
        %v4760 = vunpack.c.l.b16 %v1474
        %v4761 = vunpack.c.l.b16 %v1441
        %v4762 = vunpack.c.l.b16 %v1475
        %v4763 = vunpack.c.l.b16 %v1448
        %v4764 = vunpack.c.l.b16 %v1476
        %v4765 = vunpack.c.l.b16 %v1455
        %v4766 = vunpack.c.l.b16 %v1477
        %v4767 = vunpack.c.l.b16 %v1462
        %v4768 = vunpack.c.l.b16 %v1478
        %v4769 = vunpack.c.l.b16 %v1469
        %v4770 = vunpack.c.l.b16 %v1479
        %v4771 = vpack.c.b16 %v1372, %v1370
        %v4772 = vpack.c.b16 %v4753, %v4751
        %v4773 = vpack.c.b16 %v4754, %v4752
        %v4774 = vpack.c.b16 %v1374, %v1372
        %v4775 = vpack.c.b16 %v4755, %v4753
        %v4776 = vpack.c.b16 %v4756, %v4754
        %v4777 = vpack.c.b16 %v1376, %v1374
        %v4778 = vpack.c.b16 %v4757, %v4755
        %v4779 = vpack.c.b16 %v4758, %v4756
        %v4780 = vpack.c.b16 %v1378, %v1376
        %v4781 = vpack.c.b16 %v4759, %v4757
        %v4782 = vpack.c.b16 %v4760, %v4758
        %v4783 = vpack.c.b16 %v1380, %v1378
        %v4784 = vpack.c.b16 %v4761, %v4759
        %v4785 = vpack.c.b16 %v4762, %v4760
        %v4786 = vpack.c.b16 %v1382, %v1380
        %v4787 = vpack.c.b16 %v4763, %v4761
        %v4788 = vpack.c.b16 %v4764, %v4762
        %v4789 = vpack.c.b16 %v1384, %v1382
        %v4790 = vpack.c.b16 %v4765, %v4763
        %v4791 = vpack.c.b16 %v4766, %v4764
        %v4792 = vpack.c.b16 %v1386, %v1384
        %v4793 = vpack.c.b16 %v4767, %v4765
        %v4794 = vpack.c.b16 %v4768, %v4766
        %v4795 = vpack.c.b16 %v1388, %v1386
        %v4796 = vpack.c.b16 %v4769, %v4767
        %v4797 = vpack.c.b16 %v4770, %v4768
        %v4969 = vunpack.c.l.b16 %v4607
        %v4970 = vunpack.c.l.b16 %v4608
        %v4971 = vunpack.c.l.b16 %v4609
        %v4972 = vunpack.c.l.b16 %v4610
        %v4973 = vunpack.c.l.b16 %v4611
        %v4974 = vunpack.c.l.b16 %v4612
        %v4975 = vunpack.c.l.b16 %v4613
        %v4976 = vunpack.c.l.b16 %v4614
        %v4977 = vunpack.c.l.b16 %v4615
        %v4978 = vunpack.c.l.b16 %v4616
        %v4979 = vunpack.c.l.b16 %v4617
        %v4980 = vunpack.c.l.b16 %v4618
        %v4981 = vunpack.c.l.b16 %v4619
        %v4982 = vunpack.c.l.b16 %v4620
        %v4983 = vunpack.c.l.b16 %v4621
        %v4984 = vunpack.c.l.b16 %v4622
        %v4985 = vunpack.c.l.b16 %v4623
        %v4986 = vunpack.c.l.b16 %v4624
        %v4987 = vunpack.c.l.b16 %v4625
        %v4988 = vunpack.c.l.b16 %v4626
        %v4989 = vunpack.c.l.b16 %v4627
        %v4990 = vunpack.c.l.b16 %v4628
        %v4991 = vunpack.c.l.b16 %v4629
        %v4992 = vunpack.c.l.b16 %v4630
        %v4993 = vunpack.c.l.b16 %v4631
        %v4994 = vunpack.c.l.b16 %v4632
        %v4995 = vunpack.c.l.b16 %v4633
        %v4996 = vunpack.c.l.b16 %v4634
        %v4997 = vunpack.c.l.b16 %v4635
        %v4998 = vunpack.c.l.b16 %v4636
        %v4999 = vunpack.c.l.b16 %v4637
        %v5000 = vunpack.c.l.b16 %v4638
        %v5001 = vunpack.c.l.b16 %v4639
        %v5002 = vunpack.c.l.b16 %v4640
        %v5003 = vunpack.c.l.b16 %v4641
        %v5004 = vunpack.c.l.b16 %v4642
        %v5005 = vunpack.c.l.b16 %v4643
        %v5006 = vunpack.c.l.b16 %v4644
        %v5007 = vunpack.c.l.b16 %v4645
        %v5008 = vunpack.c.l.b16 %v4646
        %v5009 = vunpack.c.l.b16 %v4647
        %v5010 = vunpack.c.l.b16 %v4648
        %v5011 = vunpack.c.l.b16 %v4649
        %v5012 = vunpack.c.l.b16 %v4650
        %v5013 = vunpack.c.l.b16 %v4651
        %v5014 = vunpack.c.l.b16 %v4652
        %v5015 = vunpack.c.l.b16 %v4653
        %v5016 = vunpack.c.l.b16 %v4654
        %v5017 = vunpack.c.l.b16 %v4655
        %v5018 = vunpack.c.l.b16 %v4656
        %v5019 = vunpack.c.l.b16 %v4657
        %v5020 = vunpack.c.l.b16 %v4658
        %v5021 = vunpack.c.l.b16 %v4659
        %v5022 = vunpack.c.l.b16 %v4660
        %v5023 = vunpack.c.l.b16 %v4661
        %v5024 = vunpack.c.l.b16 %v4662
        %v5025 = vunpack.c.l.b16 %v4663
        %v5026 = vunpack.c.l.b16 %v4664
        %v5027 = vunpack.c.l.b16 %v4665
        %v5028 = vunpack.c.l.b16 %v4666
        %v5029 = vunpack.c.l.b16 %v4667
        %v5030 = vunpack.c.l.b16 %v4668
        %v5031 = vunpack.c.l.b16 %v4669
        %v5032 = vunpack.c.l.b16 %v4670
        %v5033 = vunpack.c.l.b16 %v4671
        %v5034 = vunpack.c.l.b16 %v4672
        %v5035 = vunpack.c.l.b16 %v4673
        %v5036 = vunpack.c.l.b16 %v4674
        %v5037 = vunpack.c.l.b16 %v4675
        %v5038 = vunpack.c.l.b16 %v4676
        %v5039 = vunpack.c.l.b16 %v4677
        %v5040 = vunpack.c.l.b16 %v4678
        %v5041 = vunpack.c.l.b16 %v4679
        %v5042 = vunpack.c.l.b16 %v4680
        %v5043 = vunpack.c.l.b16 %v4681
        %v5044 = vunpack.c.l.b16 %v4682
        %v5045 = vunpack.c.l.b16 %v4683
        %v5046 = vunpack.c.l.b16 %v4684
        %v5047 = vunpack.c.l.b16 %v4685
        %v5048 = vunpack.c.l.b16 %v4686
        %v5049 = vunpack.c.l.b16 %v4687
        %v5050 = vunpack.c.l.b16 %v4688
        %v5051 = vunpack.c.l.b16 %v4689
        %v5052 = vunpack.c.l.b16 %v4690
        %v5053 = vunpack.c.l.b16 %v4691
        %v5054 = vunpack.c.l.b16 %v4692
        %v5055 = vunpack.c.l.b16 %v4693
        %v5056 = vunpack.c.l.b16 %v4694
        %v5057 = vunpack.c.l.b16 %v4695
        %v5058 = vunpack.c.l.b16 %v4696
        %v5059 = vunpack.c.l.b16 %v4697
        %v5060 = vunpack.c.l.b16 %v4698
        %v5061 = vunpack.c.l.b16 %v4699
        %v5062 = vunpack.c.l.b16 %v4700
        %v5063 = vunpack.c.l.b16 %v4701
        %v5064 = vunpack.c.l.b16 %v4702
        %v5065 = vunpack.c.l.b16 %v4703
        %v5066 = vunpack.c.l.b16 %v4704
        %v5067 = vunpack.c.l.b16 %v4705
        %v5068 = vunpack.c.l.b16 %v4706
        %v5069 = vunpack.c.l.b16 %v4707
        %v5070 = vunpack.c.l.b16 %v4708
        %v5071 = vunpack.c.l.b16 %v4709
        %v5072 = vunpack.c.l.b16 %v4710
        %v5073 = vunpack.c.l.b16 %v4711
        %v5074 = vunpack.c.l.b16 %v4712
        %v5075 = vunpack.c.l.b16 %v4713
        %v5076 = vunpack.c.l.b16 %v4714
        %v5077 = vunpack.c.l.b16 %v4715
        %v5078 = vunpack.c.l.b16 %v4716
        %v5079 = vunpack.c.l.b16 %v4717
        %v5080 = vunpack.c.l.b16 %v4718
        %v5081 = vunpack.c.l.b16 %v4719
        %v5082 = vunpack.c.l.b16 %v4720
        %v5083 = vunpack.c.l.b16 %v4721
        %v5084 = vunpack.c.l.b16 %v4722
        %v5085 = vunpack.c.l.b16 %v4723
        %v5086 = vunpack.c.l.b16 %v4724
        %v5087 = vunpack.c.l.b16 %v4725
        %v5088 = vunpack.c.l.b16 %v4726
        %v5089 = vunpack.c.l.b16 %v4727
        %v5090 = vunpack.c.l.b16 %v4728
        %v5091 = vunpack.c.l.b16 %v4729
        %v5092 = vunpack.c.l.b16 %v4730
        %v5093 = vunpack.c.l.b16 %v4731
        %v5094 = vunpack.c.l.b16 %v4732
        %v5095 = vunpack.c.l.b16 %v4733
        %v5096 = vunpack.c.l.b16 %v4734
        %v5097 = vunpack.c.l.b16 %v4735
        %v5098 = vunpack.c.l.b16 %v4736
        %v5099 = vunpack.c.l.b16 %v4737
        %v5100 = vunpack.c.l.b16 %v4738
        %v5101 = vunpack.c.l.b16 %v4739
        %v5102 = vunpack.c.l.b16 %v4740
        %v5103 = vunpack.c.l.b16 %v4741
        %v5104 = vunpack.c.l.b16 %v4742
        %v5105 = vunpack.c.l.b16 %v4743
        %v5106 = vunpack.c.l.b16 %v4744
        %v5107 = vunpack.c.l.b16 %v4745
        %v5108 = vunpack.c.l.b16 %v4746
        %v5109 = vunpack.c.l.b16 %v4747
        %v5110 = vunpack.c.l.b16 %v4748
        %v5111 = vunpack.c.l.b16 %v4749
        %v5112 = vunpack.c.l.b16 %v4750
        %v5113 = vpack.c.b16 %v4970, %v4969
        %v5114 = vpack.c.b16 %v4972, %v4971
        %v5115 = vpack.c.b16 %v4974, %v4973
        %v5116 = vpack.c.b16 %v4976, %v4975
        %v5117 = vpack.c.b16 %v4978, %v4977
        %v5118 = vpack.c.b16 %v4980, %v4979
        %v5119 = vpack.c.b16 %v4982, %v4981
        %v5120 = vpack.c.b16 %v4984, %v4983
        %v5121 = vpack.c.b16 %v4986, %v4985
        %v5122 = vpack.c.b16 %v4988, %v4987
        %v5123 = vpack.c.b16 %v4990, %v4989
        %v5124 = vpack.c.b16 %v4992, %v4991
        %v5125 = vpack.c.b16 %v4994, %v4993
        %v5126 = vpack.c.b16 %v4996, %v4995
        %v5127 = vpack.c.b16 %v4998, %v4997
        %v5128 = vpack.c.b16 %v5000, %v4999
        %v5129 = vpack.c.b16 %v5002, %v5001
        %v5130 = vpack.c.b16 %v5004, %v5003
        %v5131 = vpack.c.b16 %v5006, %v5005
        %v5132 = vpack.c.b16 %v5008, %v5007
        %v5133 = vpack.c.b16 %v5010, %v5009
        %v5134 = vpack.c.b16 %v5012, %v5011
        %v5135 = vpack.c.b16 %v5014, %v5013
        %v5136 = vpack.c.b16 %v5016, %v5015
        %v5137 = vpack.c.b16 %v5018, %v5017
        %v5138 = vpack.c.b16 %v5020, %v5019
        %v5139 = vpack.c.b16 %v5022, %v5021
        %v5140 = vpack.c.b16 %v5024, %v5023
        %v5141 = vpack.c.b16 %v5026, %v5025
        %v5142 = vpack.c.b16 %v5028, %v5027
        %v5143 = vpack.c.b16 %v5030, %v5029
        %v5144 = vpack.c.b16 %v5032, %v5031
        %v5145 = vpack.c.b16 %v5034, %v5033
        %v5146 = vpack.c.b16 %v5036, %v5035
        %v5147 = vpack.c.b16 %v5038, %v5037
        %v5148 = vpack.c.b16 %v5040, %v5039
        %v5149 = vpack.c.b16 %v5042, %v5041
        %v5150 = vpack.c.b16 %v5044, %v5043
        %v5151 = vpack.c.b16 %v5046, %v5045
        %v5152 = vpack.c.b16 %v5048, %v5047
        %v5153 = vpack.c.b16 %v5050, %v5049
        %v5154 = vpack.c.b16 %v5052, %v5051
        %v5155 = vpack.c.b16 %v5054, %v5053
        %v5156 = vpack.c.b16 %v5056, %v5055
        %v5157 = vpack.c.b16 %v5058, %v5057
        %v5158 = vpack.c.b16 %v5060, %v5059
        %v5159 = vpack.c.b16 %v5062, %v5061
        %v5160 = vpack.c.b16 %v5064, %v5063
        %v5161 = vpack.c.b16 %v5066, %v5065
        %v5162 = vpack.c.b16 %v5068, %v5067
        %v5163 = vpack.c.b16 %v5070, %v5069
        %v5164 = vpack.c.b16 %v5072, %v5071
        %v5165 = vpack.c.b16 %v5074, %v5073
        %v5166 = vpack.c.b16 %v5076, %v5075
        %v5167 = vpack.c.b16 %v5078, %v5077
        %v5168 = vpack.c.b16 %v5080, %v5079
        %v5169 = vpack.c.b16 %v5082, %v5081
        %v5170 = vpack.c.b16 %v5084, %v5083
        %v5171 = vpack.c.b16 %v5086, %v5085
        %v5172 = vpack.c.b16 %v5088, %v5087
        %v5173 = vpack.c.b16 %v5090, %v5089
        %v5174 = vpack.c.b16 %v5092, %v5091
        %v5175 = vpack.c.b16 %v5094, %v5093
        %v5176 = vpack.c.b16 %v5096, %v5095
        %v5177 = vpack.c.b16 %v5098, %v5097
        %v5178 = vpack.c.b16 %v5100, %v5099
        %v5179 = vpack.c.b16 %v5102, %v5101
        %v5180 = vpack.c.b16 %v5104, %v5103
        %v5181 = vpack.c.b16 %v5106, %v5105
        %v5182 = vpack.c.b16 %v5108, %v5107
        %v5183 = vpack.c.b16 %v5110, %v5109
        %v5184 = vpack.c.b16 %v5112, %v5111
        %5257 = vmatpush.bf16.msra.mxu0 %v5120
        %5258 = vmatpush.bf16.msra.mxu0 %v5119
        %5259 = vmatpush.bf16.msra.mxu0 %v5118
        %5260 = vmatpush.bf16.msra.mxu0 %v5117
        %5261 = vmatpush.bf16.msra.mxu0 %v5116
        %5262 = vmatpush.bf16.msra.mxu0 %v5115
        %5263 = vmatpush.bf16.msra.mxu0 %v5114
        %5264 = vmatpush.bf16.msra.mxu0 %v5113
        %5265 = vmatmul.bf16.gmra.mxu0 %v1897
        %v5266 = vpop.f32.mrf.mxu0
        %v5267 = vadd.f32 0.0, %v5266
        %v5268 = vpop.f32.mrf.mxu0
        %v5269 = vadd.f32 0.0, %v5268
        %5270 = vmatmul.bf16.gmra.mxu0 %v1903
        %v5271 = vpop.f32.mrf.mxu0
        %v5272 = vadd.f32 0.0, %v5271
        %v5273 = vpop.f32.mrf.mxu0
        %v5274 = vadd.f32 0.0, %v5273
        %5275 = vmatmul.bf16.gmra.mxu0 %v1909
        %v5276 = vpop.f32.mrf.mxu0
        %v5277 = vadd.f32 0.0, %v5276
        %v5278 = vpop.f32.mrf.mxu0
        %v5279 = vadd.f32 0.0, %v5278
        %5280 = vmatmul.bf16.gmra.mxu0 %v1915
        %v5281 = vpop.f32.mrf.mxu0
        %v5282 = vadd.f32 0.0, %v5281
        %v5283 = vpop.f32.mrf.mxu0
        %v5284 = vadd.f32 0.0, %v5283
        %5285 = vmatmul.bf16.gmra.mxu0 %v1924
        %v5286 = vpop.f32.mrf.mxu0
        %v5287 = vadd.f32 0.0, %v5286
        %v5288 = vpop.f32.mrf.mxu0
        %v5289 = vadd.f32 0.0, %v5288
        %5290 = vmatmul.bf16.gmra.mxu0 %v1930
        %v5291 = vpop.f32.mrf.mxu0
        %v5292 = vadd.f32 0.0, %v5291
        %v5293 = vpop.f32.mrf.mxu0
        %v5294 = vadd.f32 0.0, %v5293
        %5295 = vmatmul.bf16.gmra.mxu0 %v1936
        %v5296 = vpop.f32.mrf.mxu0
        %v5297 = vadd.f32 0.0, %v5296
        %v5298 = vpop.f32.mrf.mxu0
        %v5299 = vadd.f32 0.0, %v5298
        %5300 = vmatmul.bf16.gmra.mxu0 %v1942
        %v5301 = vpop.f32.mrf.mxu0
        %v5302 = vadd.f32 0.0, %v5301
        %v5303 = vpop.f32.mrf.mxu0
        %v5304 = vadd.f32 0.0, %v5303
        %5305 = vmatmul.bf16.gmra.mxu0 %v1951
        %v5306 = vpop.f32.mrf.mxu0
        %v5307 = vadd.f32 0.0, %v5306
        %v5308 = vpop.f32.mrf.mxu0
        %v5309 = vadd.f32 0.0, %v5308
        %5310 = vmatmul.bf16.gmra.mxu0 %v1957
        %v5311 = vpop.f32.mrf.mxu0
        %v5312 = vadd.f32 0.0, %v5311
        %v5313 = vpop.f32.mrf.mxu0
        %v5314 = vadd.f32 0.0, %v5313
        %5315 = vmatmul.bf16.gmra.mxu0 %v1963
        %v5316 = vpop.f32.mrf.mxu0
        %v5317 = vadd.f32 0.0, %v5316
        %v5318 = vpop.f32.mrf.mxu0
        %v5319 = vadd.f32 0.0, %v5318
        %5320 = vmatmul.bf16.gmra.mxu0 %v1969
        %v5321 = vpop.f32.mrf.mxu0
        %v5322 = vadd.f32 0.0, %v5321
        %v5323 = vpop.f32.mrf.mxu0
        %v5324 = vadd.f32 0.0, %v5323
        %5325 = vmatmul.bf16.gmra.mxu0 %v4771
        %v5326 = vpop.f32.mrf.mxu0
        %v5327 = vadd.f32 0.0, %v5326
        %v5328 = vpop.f32.mrf.mxu0
        %v5329 = vadd.f32 0.0, %v5328
        %5330 = vmatmul.bf16.gmra.mxu0 %v4777
        %v5331 = vpop.f32.mrf.mxu0
        %v5332 = vadd.f32 0.0, %v5331
        %v5333 = vpop.f32.mrf.mxu0
        %v5334 = vadd.f32 0.0, %v5333
        %5335 = vmatmul.bf16.gmra.mxu0 %v4783
        %v5336 = vpop.f32.mrf.mxu0
        %v5337 = vadd.f32 0.0, %v5336
        %v5338 = vpop.f32.mrf.mxu0
        %v5339 = vadd.f32 0.0, %v5338
        %5340 = vmatmul.bf16.gmra.mxu0 %v4789
        %v5341 = vpop.f32.mrf.mxu0
        %v5342 = vadd.f32 0.0, %v5341
        %v5343 = vpop.f32.mrf.mxu0
        %v5344 = vadd.f32 0.0, %v5343
        %5345 = vdwg.mxu0
        %5346 = vmatpush.bf16.msra.mxu0 %v5128
        %5347 = vmatpush.bf16.msra.mxu0 %v5127
        %5348 = vmatpush.bf16.msra.mxu0 %v5126
        %5349 = vmatpush.bf16.msra.mxu0 %v5125
        %5350 = vmatpush.bf16.msra.mxu0 %v5124
        %5351 = vmatpush.bf16.msra.mxu0 %v5123
        %5352 = vmatpush.bf16.msra.mxu0 %v5122
        %5353 = vmatpush.bf16.msra.mxu0 %v5121
        %5354 = vmatmul.bf16.gmra.mxu0 %v1898
        %v5355 = vpop.f32.mrf.mxu0
        %v5356 = vadd.f32 %v5267, %v5355
        %v5357 = vpop.f32.mrf.mxu0
        %v5358 = vadd.f32 %v5269, %v5357
        %5359 = vmatmul.bf16.gmra.mxu0 %v1904
        %v5360 = vpop.f32.mrf.mxu0
        %v5361 = vadd.f32 %v5272, %v5360
        %v5362 = vpop.f32.mrf.mxu0
        %v5363 = vadd.f32 %v5274, %v5362
        %5364 = vmatmul.bf16.gmra.mxu0 %v1910
        %v5365 = vpop.f32.mrf.mxu0
        %v5366 = vadd.f32 %v5277, %v5365
        %v5367 = vpop.f32.mrf.mxu0
        %v5368 = vadd.f32 %v5279, %v5367
        %5369 = vmatmul.bf16.gmra.mxu0 %v1916
        %v5370 = vpop.f32.mrf.mxu0
        %v5371 = vadd.f32 %v5282, %v5370
        %v5372 = vpop.f32.mrf.mxu0
        %v5373 = vadd.f32 %v5284, %v5372
        %5374 = vmatmul.bf16.gmra.mxu0 %v1925
        %v5375 = vpop.f32.mrf.mxu0
        %v5376 = vadd.f32 %v5287, %v5375
        %v5377 = vpop.f32.mrf.mxu0
        %v5378 = vadd.f32 %v5289, %v5377
        %5379 = vmatmul.bf16.gmra.mxu0 %v1931
        %v5380 = vpop.f32.mrf.mxu0
        %v5381 = vadd.f32 %v5292, %v5380
        %v5382 = vpop.f32.mrf.mxu0
        %v5383 = vadd.f32 %v5294, %v5382
        %5384 = vmatmul.bf16.gmra.mxu0 %v1937
        %v5385 = vpop.f32.mrf.mxu0
        %v5386 = vadd.f32 %v5297, %v5385
        %v5387 = vpop.f32.mrf.mxu0
        %v5388 = vadd.f32 %v5299, %v5387
        %5389 = vmatmul.bf16.gmra.mxu0 %v1943
        %v5390 = vpop.f32.mrf.mxu0
        %v5391 = vadd.f32 %v5302, %v5390
        %v5392 = vpop.f32.mrf.mxu0
        %v5393 = vadd.f32 %v5304, %v5392
        %5394 = vmatmul.bf16.gmra.mxu0 %v1952
        %v5395 = vpop.f32.mrf.mxu0
        %v5396 = vadd.f32 %v5307, %v5395
        %v5397 = vpop.f32.mrf.mxu0
        %v5398 = vadd.f32 %v5309, %v5397
        %5399 = vmatmul.bf16.gmra.mxu0 %v1958
        %v5400 = vpop.f32.mrf.mxu0
        %v5401 = vadd.f32 %v5312, %v5400
        %v5402 = vpop.f32.mrf.mxu0
        %v5403 = vadd.f32 %v5314, %v5402
        %5404 = vmatmul.bf16.gmra.mxu0 %v1964
        %v5405 = vpop.f32.mrf.mxu0
        %v5406 = vadd.f32 %v5317, %v5405
        %v5407 = vpop.f32.mrf.mxu0
        %v5408 = vadd.f32 %v5319, %v5407
        %5409 = vmatmul.bf16.gmra.mxu0 %v1970
        %v5410 = vpop.f32.mrf.mxu0
        %v5411 = vadd.f32 %v5322, %v5410
        %v5412 = vpop.f32.mrf.mxu0
        %v5413 = vadd.f32 %v5324, %v5412
        %5414 = vmatmul.bf16.gmra.mxu0 %v4772
        %v5415 = vpop.f32.mrf.mxu0
        %v5416 = vadd.f32 %v5327, %v5415
        %v5417 = vpop.f32.mrf.mxu0
        %v5418 = vadd.f32 %v5329, %v5417
        %5419 = vmatmul.bf16.gmra.mxu0 %v4778
        %v5420 = vpop.f32.mrf.mxu0
        %v5421 = vadd.f32 %v5332, %v5420
        %v5422 = vpop.f32.mrf.mxu0
        %v5423 = vadd.f32 %v5334, %v5422
        %5424 = vmatmul.bf16.gmra.mxu0 %v4784
        %v5425 = vpop.f32.mrf.mxu0
        %v5426 = vadd.f32 %v5337, %v5425
        %v5427 = vpop.f32.mrf.mxu0
        %v5428 = vadd.f32 %v5339, %v5427
        %5429 = vmatmul.bf16.gmra.mxu0 %v4790
        %v5430 = vpop.f32.mrf.mxu0
        %v5431 = vadd.f32 %v5342, %v5430
        %v5432 = vpop.f32.mrf.mxu0
        %v5433 = vadd.f32 %v5344, %v5432
        %5434 = vdwg.mxu0
        %5435 = vmatpush.bf16.msra.mxu0 %v5136
        %5436 = vmatpush.bf16.msra.mxu0 %v5135
        %5437 = vmatpush.bf16.msra.mxu0 %v5134
        %5438 = vmatpush.bf16.msra.mxu0 %v5133
        %5439 = vmatpush.bf16.msra.mxu0 %v5132
        %5440 = vmatpush.bf16.msra.mxu0 %v5131
        %5441 = vmatpush.bf16.msra.mxu0 %v5130
        %5442 = vmatpush.bf16.msra.mxu0 %v5129
        %5443 = vmatmul.bf16.gmra.mxu0 %v1899
        %v5444 = vpop.f32.mrf.mxu0
        %v5445 = vadd.f32 %v5356, %v5444
        %v5446 = vpop.f32.mrf.mxu0
        %v5447 = vadd.f32 %v5358, %v5446
        %5448 = vmatmul.bf16.gmra.mxu0 %v1905
        %v5449 = vpop.f32.mrf.mxu0
        %v5450 = vadd.f32 %v5361, %v5449
        %v5451 = vpop.f32.mrf.mxu0
        %v5452 = vadd.f32 %v5363, %v5451
        %5453 = vmatmul.bf16.gmra.mxu0 %v1911
        %v5454 = vpop.f32.mrf.mxu0
        %v5455 = vadd.f32 %v5366, %v5454
        %v5456 = vpop.f32.mrf.mxu0
        %v5457 = vadd.f32 %v5368, %v5456
        %5458 = vmatmul.bf16.gmra.mxu0 %v1917
        %v5459 = vpop.f32.mrf.mxu0
        %v5460 = vadd.f32 %v5371, %v5459
        %v5461 = vpop.f32.mrf.mxu0
        %v5462 = vadd.f32 %v5373, %v5461
        %5463 = vmatmul.bf16.gmra.mxu0 %v1926
        %v5464 = vpop.f32.mrf.mxu0
        %v5465 = vadd.f32 %v5376, %v5464
        %v5466 = vpop.f32.mrf.mxu0
        %v5467 = vadd.f32 %v5378, %v5466
        %5468 = vmatmul.bf16.gmra.mxu0 %v1932
        %v5469 = vpop.f32.mrf.mxu0
        %v5470 = vadd.f32 %v5381, %v5469
        %v5471 = vpop.f32.mrf.mxu0
        %v5472 = vadd.f32 %v5383, %v5471
        %5473 = vmatmul.bf16.gmra.mxu0 %v1938
        %v5474 = vpop.f32.mrf.mxu0
        %v5475 = vadd.f32 %v5386, %v5474
        %v5476 = vpop.f32.mrf.mxu0
        %v5477 = vadd.f32 %v5388, %v5476
        %5478 = vmatmul.bf16.gmra.mxu0 %v1944
        %v5479 = vpop.f32.mrf.mxu0
        %v5480 = vadd.f32 %v5391, %v5479
        %v5481 = vpop.f32.mrf.mxu0
        %v5482 = vadd.f32 %v5393, %v5481
        %5483 = vmatmul.bf16.gmra.mxu0 %v1953
        %v5484 = vpop.f32.mrf.mxu0
        %v5485 = vadd.f32 %v5396, %v5484
        %v5486 = vpop.f32.mrf.mxu0
        %v5487 = vadd.f32 %v5398, %v5486
        %5488 = vmatmul.bf16.gmra.mxu0 %v1959
        %v5489 = vpop.f32.mrf.mxu0
        %v5490 = vadd.f32 %v5401, %v5489
        %v5491 = vpop.f32.mrf.mxu0
        %v5492 = vadd.f32 %v5403, %v5491
        %5493 = vmatmul.bf16.gmra.mxu0 %v1965
        %v5494 = vpop.f32.mrf.mxu0
        %v5495 = vadd.f32 %v5406, %v5494
        %v5496 = vpop.f32.mrf.mxu0
        %v5497 = vadd.f32 %v5408, %v5496
        %5498 = vmatmul.bf16.gmra.mxu0 %v1971
        %v5499 = vpop.f32.mrf.mxu0
        %v5500 = vadd.f32 %v5411, %v5499
        %v5501 = vpop.f32.mrf.mxu0
        %v5502 = vadd.f32 %v5413, %v5501
        %5503 = vmatmul.bf16.gmra.mxu0 %v4773
        %v5504 = vpop.f32.mrf.mxu0
        %v5505 = vadd.f32 %v5416, %v5504
        %v5506 = vpop.f32.mrf.mxu0
        %v5507 = vadd.f32 %v5418, %v5506
        %5508 = vmatmul.bf16.gmra.mxu0 %v4779
        %v5509 = vpop.f32.mrf.mxu0
        %v5510 = vadd.f32 %v5421, %v5509
        %v5511 = vpop.f32.mrf.mxu0
        %v5512 = vadd.f32 %v5423, %v5511
        %5513 = vmatmul.bf16.gmra.mxu0 %v4785
        %v5514 = vpop.f32.mrf.mxu0
        %v5515 = vadd.f32 %v5426, %v5514
        %v5516 = vpop.f32.mrf.mxu0
        %v5517 = vadd.f32 %v5428, %v5516
        %5518 = vmatmul.bf16.gmra.mxu0 %v4791
        %v5519 = vpop.f32.mrf.mxu0
        %v5520 = vadd.f32 %v5431, %v5519
        %v5521 = vpop.f32.mrf.mxu0
        %v5522 = vadd.f32 %v5433, %v5521
        %5523 = vdwg.mxu0
        %5524 = vmatpush.bf16.msra.mxu0 %v5144
        %5525 = vmatpush.bf16.msra.mxu0 %v5143
        %5526 = vmatpush.bf16.msra.mxu0 %v5142
        %5527 = vmatpush.bf16.msra.mxu0 %v5141
        %5528 = vmatpush.bf16.msra.mxu0 %v5140
        %5529 = vmatpush.bf16.msra.mxu0 %v5139
        %5530 = vmatpush.bf16.msra.mxu0 %v5138
        %5531 = vmatpush.bf16.msra.mxu0 %v5137
        %5532 = vmatmul.bf16.gmra.mxu0 %v1900
        %v5533 = vpop.f32.mrf.mxu0
        %v5534 = vadd.f32 %v5445, %v5533
        %v5535 = vpop.f32.mrf.mxu0
        %v5536 = vadd.f32 %v5447, %v5535
        %5537 = vmatmul.bf16.gmra.mxu0 %v1906
        %v5538 = vpop.f32.mrf.mxu0
        %v5539 = vadd.f32 %v5450, %v5538
        %v5540 = vpop.f32.mrf.mxu0
        %v5541 = vadd.f32 %v5452, %v5540
        %5542 = vmatmul.bf16.gmra.mxu0 %v1912
        %v5543 = vpop.f32.mrf.mxu0
        %v5544 = vadd.f32 %v5455, %v5543
        %v5545 = vpop.f32.mrf.mxu0
        %v5546 = vadd.f32 %v5457, %v5545
        %5547 = vmatmul.bf16.gmra.mxu0 %v1918
        %v5548 = vpop.f32.mrf.mxu0
        %v5549 = vadd.f32 %v5460, %v5548
        %v5550 = vpop.f32.mrf.mxu0
        %v5551 = vadd.f32 %v5462, %v5550
        %5552 = vmatmul.bf16.gmra.mxu0 %v1927
        %v5553 = vpop.f32.mrf.mxu0
        %v5554 = vadd.f32 %v5465, %v5553
        %v5555 = vpop.f32.mrf.mxu0
        %v5556 = vadd.f32 %v5467, %v5555
        %5557 = vmatmul.bf16.gmra.mxu0 %v1933
        %v5558 = vpop.f32.mrf.mxu0
        %v5559 = vadd.f32 %v5470, %v5558
        %v5560 = vpop.f32.mrf.mxu0
        %v5561 = vadd.f32 %v5472, %v5560
        %5562 = vmatmul.bf16.gmra.mxu0 %v1939
        %v5563 = vpop.f32.mrf.mxu0
        %v5564 = vadd.f32 %v5475, %v5563
        %v5565 = vpop.f32.mrf.mxu0
        %v5566 = vadd.f32 %v5477, %v5565
        %5567 = vmatmul.bf16.gmra.mxu0 %v1945
        %v5568 = vpop.f32.mrf.mxu0
        %v5569 = vadd.f32 %v5480, %v5568
        %v5570 = vpop.f32.mrf.mxu0
        %v5571 = vadd.f32 %v5482, %v5570
        %5572 = vmatmul.bf16.gmra.mxu0 %v1954
        %v5573 = vpop.f32.mrf.mxu0
        %v5574 = vadd.f32 %v5485, %v5573
        %v5575 = vpop.f32.mrf.mxu0
        %v5576 = vadd.f32 %v5487, %v5575
        %5577 = vmatmul.bf16.gmra.mxu0 %v1960
        %v5578 = vpop.f32.mrf.mxu0
        %v5579 = vadd.f32 %v5490, %v5578
        %v5580 = vpop.f32.mrf.mxu0
        %v5581 = vadd.f32 %v5492, %v5580
        %5582 = vmatmul.bf16.gmra.mxu0 %v1966
        %v5583 = vpop.f32.mrf.mxu0
        %v5584 = vadd.f32 %v5495, %v5583
        %v5585 = vpop.f32.mrf.mxu0
        %v5586 = vadd.f32 %v5497, %v5585
        %5587 = vmatmul.bf16.gmra.mxu0 %v1972
        %v5588 = vpop.f32.mrf.mxu0
        %v5589 = vadd.f32 %v5500, %v5588
        %v5590 = vpop.f32.mrf.mxu0
        %v5591 = vadd.f32 %v5502, %v5590
        %5592 = vmatmul.bf16.gmra.mxu0 %v4774
        %v5593 = vpop.f32.mrf.mxu0
        %v5594 = vadd.f32 %v5505, %v5593
        %v5595 = vpop.f32.mrf.mxu0
        %v5596 = vadd.f32 %v5507, %v5595
        %5597 = vmatmul.bf16.gmra.mxu0 %v4780
        %v5598 = vpop.f32.mrf.mxu0
        %v5599 = vadd.f32 %v5510, %v5598
        %v5600 = vpop.f32.mrf.mxu0
        %v5601 = vadd.f32 %v5512, %v5600
        %5602 = vmatmul.bf16.gmra.mxu0 %v4786
        %v5603 = vpop.f32.mrf.mxu0
        %v5604 = vadd.f32 %v5515, %v5603
        %v5605 = vpop.f32.mrf.mxu0
        %v5606 = vadd.f32 %v5517, %v5605
        %5607 = vmatmul.bf16.gmra.mxu0 %v4792
        %v5608 = vpop.f32.mrf.mxu0
        %v5609 = vadd.f32 %v5520, %v5608
        %v5610 = vpop.f32.mrf.mxu0
        %v5611 = vadd.f32 %v5522, %v5610
        %5612 = vdwg.mxu0
        %5613 = vmatpush.bf16.msra.mxu0 %v5152
        %5614 = vmatpush.bf16.msra.mxu0 %v5151
        %5615 = vmatpush.bf16.msra.mxu0 %v5150
        %5616 = vmatpush.bf16.msra.mxu0 %v5149
        %5617 = vmatpush.bf16.msra.mxu0 %v5148
        %5618 = vmatpush.bf16.msra.mxu0 %v5147
        %5619 = vmatpush.bf16.msra.mxu0 %v5146
        %5620 = vmatpush.bf16.msra.mxu0 %v5145
        %5621 = vmatmul.bf16.gmra.mxu0 %v1901
        %v5622 = vpop.f32.mrf.mxu0
        %v5623 = vadd.f32 %v5534, %v5622
        %v5624 = vpop.f32.mrf.mxu0
        %v5625 = vadd.f32 %v5536, %v5624
        %5626 = vmatmul.bf16.gmra.mxu0 %v1907
        %v5627 = vpop.f32.mrf.mxu0
        %v5628 = vadd.f32 %v5539, %v5627
        %v5629 = vpop.f32.mrf.mxu0
        %v5630 = vadd.f32 %v5541, %v5629
        %5631 = vmatmul.bf16.gmra.mxu0 %v1913
        %v5632 = vpop.f32.mrf.mxu0
        %v5633 = vadd.f32 %v5544, %v5632
        %v5634 = vpop.f32.mrf.mxu0
        %v5635 = vadd.f32 %v5546, %v5634
        %5636 = vmatmul.bf16.gmra.mxu0 %v1919
        %v5637 = vpop.f32.mrf.mxu0
        %v5638 = vadd.f32 %v5549, %v5637
        %v5639 = vpop.f32.mrf.mxu0
        %v5640 = vadd.f32 %v5551, %v5639
        %5641 = vmatmul.bf16.gmra.mxu0 %v1928
        %v5642 = vpop.f32.mrf.mxu0
        %v5643 = vadd.f32 %v5554, %v5642
        %v5644 = vpop.f32.mrf.mxu0
        %v5645 = vadd.f32 %v5556, %v5644
        %5646 = vmatmul.bf16.gmra.mxu0 %v1934
        %v5647 = vpop.f32.mrf.mxu0
        %v5648 = vadd.f32 %v5559, %v5647
        %v5649 = vpop.f32.mrf.mxu0
        %v5650 = vadd.f32 %v5561, %v5649
        %5651 = vmatmul.bf16.gmra.mxu0 %v1940
        %v5652 = vpop.f32.mrf.mxu0
        %v5653 = vadd.f32 %v5564, %v5652
        %v5654 = vpop.f32.mrf.mxu0
        %v5655 = vadd.f32 %v5566, %v5654
        %5656 = vmatmul.bf16.gmra.mxu0 %v1946
        %v5657 = vpop.f32.mrf.mxu0
        %v5658 = vadd.f32 %v5569, %v5657
        %v5659 = vpop.f32.mrf.mxu0
        %v5660 = vadd.f32 %v5571, %v5659
        %5661 = vmatmul.bf16.gmra.mxu0 %v1955
        %v5662 = vpop.f32.mrf.mxu0
        %v5663 = vadd.f32 %v5574, %v5662
        %v5664 = vpop.f32.mrf.mxu0
        %v5665 = vadd.f32 %v5576, %v5664
        %5666 = vmatmul.bf16.gmra.mxu0 %v1961
        %v5667 = vpop.f32.mrf.mxu0
        %v5668 = vadd.f32 %v5579, %v5667
        %v5669 = vpop.f32.mrf.mxu0
        %v5670 = vadd.f32 %v5581, %v5669
        %5671 = vmatmul.bf16.gmra.mxu0 %v1967
        %v5672 = vpop.f32.mrf.mxu0
        %v5673 = vadd.f32 %v5584, %v5672
        %v5674 = vpop.f32.mrf.mxu0
        %v5675 = vadd.f32 %v5586, %v5674
        %5676 = vmatmul.bf16.gmra.mxu0 %v1973
        %v5677 = vpop.f32.mrf.mxu0
        %v5678 = vadd.f32 %v5589, %v5677
        %v5679 = vpop.f32.mrf.mxu0
        %v5680 = vadd.f32 %v5591, %v5679
        %5681 = vmatmul.bf16.gmra.mxu0 %v4775
        %v5682 = vpop.f32.mrf.mxu0
        %v5683 = vadd.f32 %v5594, %v5682
        %v5684 = vpop.f32.mrf.mxu0
        %v5685 = vadd.f32 %v5596, %v5684
        %5686 = vmatmul.bf16.gmra.mxu0 %v4781
        %v5687 = vpop.f32.mrf.mxu0
        %v5688 = vadd.f32 %v5599, %v5687
        %v5689 = vpop.f32.mrf.mxu0
        %v5690 = vadd.f32 %v5601, %v5689
        %5691 = vmatmul.bf16.gmra.mxu0 %v4787
        %v5692 = vpop.f32.mrf.mxu0
        %v5693 = vadd.f32 %v5604, %v5692
        %v5694 = vpop.f32.mrf.mxu0
        %v5695 = vadd.f32 %v5606, %v5694
        %5696 = vmatmul.bf16.gmra.mxu0 %v4793
        %v5697 = vpop.f32.mrf.mxu0
        %v5698 = vadd.f32 %v5609, %v5697
        %v5699 = vpop.f32.mrf.mxu0
        %v5700 = vadd.f32 %v5611, %v5699
        %5701 = vdwg.mxu0
        %5702 = vmatpush.bf16.msra.mxu0 %v5160
        %5703 = vmatpush.bf16.msra.mxu0 %v5159
        %5704 = vmatpush.bf16.msra.mxu0 %v5158
        %5705 = vmatpush.bf16.msra.mxu0 %v5157
        %5706 = vmatpush.bf16.msra.mxu0 %v5156
        %5707 = vmatpush.bf16.msra.mxu0 %v5155
        %5708 = vmatpush.bf16.msra.mxu0 %v5154
        %5709 = vmatpush.bf16.msra.mxu0 %v5153
        %5710 = vmatmul.bf16.gmra.mxu0 %v1902
        %v5711 = vpop.f32.mrf.mxu0
        %v5712 = vadd.f32 %v5623, %v5711
        %v5713 = vpop.f32.mrf.mxu0
        %v5714 = vadd.f32 %v5625, %v5713
        %5715 = vmatmul.bf16.gmra.mxu0 %v1908
        %v5716 = vpop.f32.mrf.mxu0
        %v5717 = vadd.f32 %v5628, %v5716
        %v5718 = vpop.f32.mrf.mxu0
        %v5719 = vadd.f32 %v5630, %v5718
        %5720 = vmatmul.bf16.gmra.mxu0 %v1914
        %v5721 = vpop.f32.mrf.mxu0
        %v5722 = vadd.f32 %v5633, %v5721
        %v5723 = vpop.f32.mrf.mxu0
        %v5724 = vadd.f32 %v5635, %v5723
        %5725 = vmatmul.bf16.gmra.mxu0 %v1920
        %v5726 = vpop.f32.mrf.mxu0
        %v5727 = vadd.f32 %v5638, %v5726
        %v5728 = vpop.f32.mrf.mxu0
        %v5729 = vadd.f32 %v5640, %v5728
        %5730 = vmatmul.bf16.gmra.mxu0 %v1929
        %v5731 = vpop.f32.mrf.mxu0
        %v5732 = vadd.f32 %v5643, %v5731
        %v5733 = vpop.f32.mrf.mxu0
        %v5734 = vadd.f32 %v5645, %v5733
        %5735 = vmatmul.bf16.gmra.mxu0 %v1935
        %v5736 = vpop.f32.mrf.mxu0
        %v5737 = vadd.f32 %v5648, %v5736
        %v5738 = vpop.f32.mrf.mxu0
        %v5739 = vadd.f32 %v5650, %v5738
        %5740 = vmatmul.bf16.gmra.mxu0 %v1941
        %v5741 = vpop.f32.mrf.mxu0
        %v5742 = vadd.f32 %v5653, %v5741
        %v5743 = vpop.f32.mrf.mxu0
        %v5744 = vadd.f32 %v5655, %v5743
        %5745 = vmatmul.bf16.gmra.mxu0 %v1947
        %v5746 = vpop.f32.mrf.mxu0
        %v5747 = vadd.f32 %v5658, %v5746
        %v5748 = vpop.f32.mrf.mxu0
        %v5749 = vadd.f32 %v5660, %v5748
        %5750 = vmatmul.bf16.gmra.mxu0 %v1956
        %v5751 = vpop.f32.mrf.mxu0
        %v5752 = vadd.f32 %v5663, %v5751
        %v5753 = vpop.f32.mrf.mxu0
        %v5754 = vadd.f32 %v5665, %v5753
        %5755 = vmatmul.bf16.gmra.mxu0 %v1962
        %v5756 = vpop.f32.mrf.mxu0
        %v5757 = vadd.f32 %v5668, %v5756
        %v5758 = vpop.f32.mrf.mxu0
        %v5759 = vadd.f32 %v5670, %v5758
        %5760 = vmatmul.bf16.gmra.mxu0 %v1968
        %v5761 = vpop.f32.mrf.mxu0
        %v5762 = vadd.f32 %v5673, %v5761
        %v5763 = vpop.f32.mrf.mxu0
        %v5764 = vadd.f32 %v5675, %v5763
        %5765 = vmatmul.bf16.gmra.mxu0 %v1974
        %v5766 = vpop.f32.mrf.mxu0
        %v5767 = vadd.f32 %v5678, %v5766
        %v5768 = vpop.f32.mrf.mxu0
        %v5769 = vadd.f32 %v5680, %v5768
        %5770 = vmatmul.bf16.gmra.mxu0 %v4776
        %v5771 = vpop.f32.mrf.mxu0
        %v5772 = vadd.f32 %v5683, %v5771
        %v5773 = vpop.f32.mrf.mxu0
        %v5774 = vadd.f32 %v5685, %v5773
        %5775 = vmatmul.bf16.gmra.mxu0 %v4782
        %v5776 = vpop.f32.mrf.mxu0
        %v5777 = vadd.f32 %v5688, %v5776
        %v5778 = vpop.f32.mrf.mxu0
        %v5779 = vadd.f32 %v5690, %v5778
        %5780 = vmatmul.bf16.gmra.mxu0 %v4788
        %v5781 = vpop.f32.mrf.mxu0
        %v5782 = vadd.f32 %v5693, %v5781
        %v5783 = vpop.f32.mrf.mxu0
        %v5784 = vadd.f32 %v5695, %v5783
        %5785 = vmatmul.bf16.gmra.mxu0 %v4794
        %v5786 = vpop.f32.mrf.mxu0
        %v5787 = vadd.f32 %v5698, %v5786
        %v5788 = vpop.f32.mrf.mxu0
        %v5789 = vadd.f32 %v5700, %v5788
        %5790 = vdwg.mxu0
        %5791 = vmatpush.bf16.msra.mxu0 %v5168
        %5792 = vmatpush.bf16.msra.mxu0 %v5167
        %5793 = vmatpush.bf16.msra.mxu0 %v5166
        %5794 = vmatpush.bf16.msra.mxu0 %v5165
        %5795 = vmatpush.bf16.msra.mxu0 %v5164
        %5796 = vmatpush.bf16.msra.mxu0 %v5163
        %5797 = vmatpush.bf16.msra.mxu0 %v5162
        %5798 = vmatpush.bf16.msra.mxu0 %v5161
        %5799 = vmatmul.bf16.gmra.mxu0 %v1903
        %v5800 = vpop.f32.mrf.mxu0
        %v5801 = vadd.f32 %v5712, %v5800
        %v5802 = vpop.f32.mrf.mxu0
        %v5803 = vadd.f32 %v5714, %v5802
        %5804 = vmatmul.bf16.gmra.mxu0 %v1909
        %v5805 = vpop.f32.mrf.mxu0
        %v5806 = vadd.f32 %v5717, %v5805
        %v5807 = vpop.f32.mrf.mxu0
        %v5808 = vadd.f32 %v5719, %v5807
        %5809 = vmatmul.bf16.gmra.mxu0 %v1915
        %v5810 = vpop.f32.mrf.mxu0
        %v5811 = vadd.f32 %v5722, %v5810
        %v5812 = vpop.f32.mrf.mxu0
        %v5813 = vadd.f32 %v5724, %v5812
        %5814 = vmatmul.bf16.gmra.mxu0 %v1921
        %v5815 = vpop.f32.mrf.mxu0
        %v5816 = vadd.f32 %v5727, %v5815
        %v5817 = vpop.f32.mrf.mxu0
        %v5818 = vadd.f32 %v5729, %v5817
        %5819 = vmatmul.bf16.gmra.mxu0 %v1930
        %v5820 = vpop.f32.mrf.mxu0
        %v5821 = vadd.f32 %v5732, %v5820
        %v5822 = vpop.f32.mrf.mxu0
        %v5823 = vadd.f32 %v5734, %v5822
        %5824 = vmatmul.bf16.gmra.mxu0 %v1936
        %v5825 = vpop.f32.mrf.mxu0
        %v5826 = vadd.f32 %v5737, %v5825
        %v5827 = vpop.f32.mrf.mxu0
        %v5828 = vadd.f32 %v5739, %v5827
        %5829 = vmatmul.bf16.gmra.mxu0 %v1942
        %v5830 = vpop.f32.mrf.mxu0
        %v5831 = vadd.f32 %v5742, %v5830
        %v5832 = vpop.f32.mrf.mxu0
        %v5833 = vadd.f32 %v5744, %v5832
        %5834 = vmatmul.bf16.gmra.mxu0 %v1948
        %v5835 = vpop.f32.mrf.mxu0
        %v5836 = vadd.f32 %v5747, %v5835
        %v5837 = vpop.f32.mrf.mxu0
        %v5838 = vadd.f32 %v5749, %v5837
        %5839 = vmatmul.bf16.gmra.mxu0 %v1957
        %v5840 = vpop.f32.mrf.mxu0
        %v5841 = vadd.f32 %v5752, %v5840
        %v5842 = vpop.f32.mrf.mxu0
        %v5843 = vadd.f32 %v5754, %v5842
        %5844 = vmatmul.bf16.gmra.mxu0 %v1963
        %v5845 = vpop.f32.mrf.mxu0
        %v5846 = vadd.f32 %v5757, %v5845
        %v5847 = vpop.f32.mrf.mxu0
        %v5848 = vadd.f32 %v5759, %v5847
        %5849 = vmatmul.bf16.gmra.mxu0 %v1969
        %v5850 = vpop.f32.mrf.mxu0
        %v5851 = vadd.f32 %v5762, %v5850
        %v5852 = vpop.f32.mrf.mxu0
        %v5853 = vadd.f32 %v5764, %v5852
        %5854 = vmatmul.bf16.gmra.mxu0 %v1975
        %v5855 = vpop.f32.mrf.mxu0
        %v5856 = vadd.f32 %v5767, %v5855
        %v5857 = vpop.f32.mrf.mxu0
        %v5858 = vadd.f32 %v5769, %v5857
        %5859 = vmatmul.bf16.gmra.mxu0 %v4777
        %v5860 = vpop.f32.mrf.mxu0
        %v5861 = vadd.f32 %v5772, %v5860
        %v5862 = vpop.f32.mrf.mxu0
        %v5863 = vadd.f32 %v5774, %v5862
        %5864 = vmatmul.bf16.gmra.mxu0 %v4783
        %v5865 = vpop.f32.mrf.mxu0
        %v5866 = vadd.f32 %v5777, %v5865
        %v5867 = vpop.f32.mrf.mxu0
        %v5868 = vadd.f32 %v5779, %v5867
        %5869 = vmatmul.bf16.gmra.mxu0 %v4789
        %v5870 = vpop.f32.mrf.mxu0
        %v5871 = vadd.f32 %v5782, %v5870
        %v5872 = vpop.f32.mrf.mxu0
        %v5873 = vadd.f32 %v5784, %v5872
        %5874 = vmatmul.bf16.gmra.mxu0 %v4795
        %v5875 = vpop.f32.mrf.mxu0
        %v5876 = vadd.f32 %v5787, %v5875
        %v5877 = vpop.f32.mrf.mxu0
        %v5878 = vadd.f32 %v5789, %v5877
        %5879 = vdwg.mxu0
        %5880 = vmatpush.bf16.msra.mxu0 %v5176
        %5881 = vmatpush.bf16.msra.mxu0 %v5175
        %5882 = vmatpush.bf16.msra.mxu0 %v5174
        %5883 = vmatpush.bf16.msra.mxu0 %v5173
        %5884 = vmatpush.bf16.msra.mxu0 %v5172
        %5885 = vmatpush.bf16.msra.mxu0 %v5171
        %5886 = vmatpush.bf16.msra.mxu0 %v5170
        %5887 = vmatpush.bf16.msra.mxu0 %v5169
        %5888 = vmatmul.bf16.gmra.mxu0 %v1904
        %v5889 = vpop.f32.mrf.mxu0
        %v5890 = vadd.f32 %v5801, %v5889
        %v5891 = vpop.f32.mrf.mxu0
        %v5892 = vadd.f32 %v5803, %v5891
        %5893 = vmatmul.bf16.gmra.mxu0 %v1910
        %v5894 = vpop.f32.mrf.mxu0
        %v5895 = vadd.f32 %v5806, %v5894
        %v5896 = vpop.f32.mrf.mxu0
        %v5897 = vadd.f32 %v5808, %v5896
        %5898 = vmatmul.bf16.gmra.mxu0 %v1916
        %v5899 = vpop.f32.mrf.mxu0
        %v5900 = vadd.f32 %v5811, %v5899
        %v5901 = vpop.f32.mrf.mxu0
        %v5902 = vadd.f32 %v5813, %v5901
        %5903 = vmatmul.bf16.gmra.mxu0 %v1922
        %v5904 = vpop.f32.mrf.mxu0
        %v5905 = vadd.f32 %v5816, %v5904
        %v5906 = vpop.f32.mrf.mxu0
        %v5907 = vadd.f32 %v5818, %v5906
        %5908 = vmatmul.bf16.gmra.mxu0 %v1931
        %v5909 = vpop.f32.mrf.mxu0
        %v5910 = vadd.f32 %v5821, %v5909
        %v5911 = vpop.f32.mrf.mxu0
        %v5912 = vadd.f32 %v5823, %v5911
        %5913 = vmatmul.bf16.gmra.mxu0 %v1937
        %v5914 = vpop.f32.mrf.mxu0
        %v5915 = vadd.f32 %v5826, %v5914
        %v5916 = vpop.f32.mrf.mxu0
        %v5917 = vadd.f32 %v5828, %v5916
        %5918 = vmatmul.bf16.gmra.mxu0 %v1943
        %v5919 = vpop.f32.mrf.mxu0
        %v5920 = vadd.f32 %v5831, %v5919
        %v5921 = vpop.f32.mrf.mxu0
        %v5922 = vadd.f32 %v5833, %v5921
        %5923 = vmatmul.bf16.gmra.mxu0 %v1949
        %v5924 = vpop.f32.mrf.mxu0
        %v5925 = vadd.f32 %v5836, %v5924
        %v5926 = vpop.f32.mrf.mxu0
        %v5927 = vadd.f32 %v5838, %v5926
        %5928 = vmatmul.bf16.gmra.mxu0 %v1958
        %v5929 = vpop.f32.mrf.mxu0
        %v5930 = vadd.f32 %v5841, %v5929
        %v5931 = vpop.f32.mrf.mxu0
        %v5932 = vadd.f32 %v5843, %v5931
        %5933 = vmatmul.bf16.gmra.mxu0 %v1964
        %v5934 = vpop.f32.mrf.mxu0
        %v5935 = vadd.f32 %v5846, %v5934
        %v5936 = vpop.f32.mrf.mxu0
        %v5937 = vadd.f32 %v5848, %v5936
        %5938 = vmatmul.bf16.gmra.mxu0 %v1970
        %v5939 = vpop.f32.mrf.mxu0
        %v5940 = vadd.f32 %v5851, %v5939
        %v5941 = vpop.f32.mrf.mxu0
        %v5942 = vadd.f32 %v5853, %v5941
        %5943 = vmatmul.bf16.gmra.mxu0 %v1976
        %v5944 = vpop.f32.mrf.mxu0
        %v5945 = vadd.f32 %v5856, %v5944
        %v5946 = vpop.f32.mrf.mxu0
        %v5947 = vadd.f32 %v5858, %v5946
        %5948 = vmatmul.bf16.gmra.mxu0 %v4778
        %v5949 = vpop.f32.mrf.mxu0
        %v5950 = vadd.f32 %v5861, %v5949
        %v5951 = vpop.f32.mrf.mxu0
        %v5952 = vadd.f32 %v5863, %v5951
        %5953 = vmatmul.bf16.gmra.mxu0 %v4784
        %v5954 = vpop.f32.mrf.mxu0
        %v5955 = vadd.f32 %v5866, %v5954
        %v5956 = vpop.f32.mrf.mxu0
        %v5957 = vadd.f32 %v5868, %v5956
        %5958 = vmatmul.bf16.gmra.mxu0 %v4790
        %v5959 = vpop.f32.mrf.mxu0
        %v5960 = vadd.f32 %v5871, %v5959
        %v5961 = vpop.f32.mrf.mxu0
        %v5962 = vadd.f32 %v5873, %v5961
        %5963 = vmatmul.bf16.gmra.mxu0 %v4796
        %v5964 = vpop.f32.mrf.mxu0
        %v5965 = vadd.f32 %v5876, %v5964
        %v5966 = vpop.f32.mrf.mxu0
        %v5967 = vadd.f32 %v5878, %v5966
        %5968 = vdwg.mxu0
        %5969 = vmatpush.bf16.msra.mxu0 %v5184
        %5970 = vmatpush.bf16.msra.mxu0 %v5183
        %5971 = vmatpush.bf16.msra.mxu0 %v5182
        %5972 = vmatpush.bf16.msra.mxu0 %v5181
        %5973 = vmatpush.bf16.msra.mxu0 %v5180
        %5974 = vmatpush.bf16.msra.mxu0 %v5179
        %5975 = vmatpush.bf16.msra.mxu0 %v5178
        %5976 = vmatpush.bf16.msra.mxu0 %v5177
        %5977 = vmatmul.bf16.gmra.mxu0 %v1905
        %v5978 = vpop.f32.mrf.mxu0
        %v5979 = vadd.f32 %v5890, %v5978
        %v5980 = vpop.f32.mrf.mxu0
        %v5981 = vadd.f32 %v5892, %v5980
        %5982 = vmatmul.bf16.gmra.mxu0 %v1911
        %v5983 = vpop.f32.mrf.mxu0
        %v5984 = vadd.f32 %v5895, %v5983
        %v5985 = vpop.f32.mrf.mxu0
        %v5986 = vadd.f32 %v5897, %v5985
        %5987 = vmatmul.bf16.gmra.mxu0 %v1917
        %v5988 = vpop.f32.mrf.mxu0
        %v5989 = vadd.f32 %v5900, %v5988
        %v5990 = vpop.f32.mrf.mxu0
        %v5991 = vadd.f32 %v5902, %v5990
        %5992 = vmatmul.bf16.gmra.mxu0 %v1923
        %v5993 = vpop.f32.mrf.mxu0
        %v5994 = vadd.f32 %v5905, %v5993
        %v5995 = vpop.f32.mrf.mxu0
        %v5996 = vadd.f32 %v5907, %v5995
        %5997 = vmatmul.bf16.gmra.mxu0 %v1932
        %v5998 = vpop.f32.mrf.mxu0
        %v5999 = vadd.f32 %v5910, %v5998
        %v6000 = vpop.f32.mrf.mxu0
        %v6001 = vadd.f32 %v5912, %v6000
        %6002 = vmatmul.bf16.gmra.mxu0 %v1938
        %v6003 = vpop.f32.mrf.mxu0
        %v6004 = vadd.f32 %v5915, %v6003
        %v6005 = vpop.f32.mrf.mxu0
        %v6006 = vadd.f32 %v5917, %v6005
        %6007 = vmatmul.bf16.gmra.mxu0 %v1944
        %v6008 = vpop.f32.mrf.mxu0
        %v6009 = vadd.f32 %v5920, %v6008
        %v6010 = vpop.f32.mrf.mxu0
        %v6011 = vadd.f32 %v5922, %v6010
        %6012 = vmatmul.bf16.gmra.mxu0 %v1950
        %v6013 = vpop.f32.mrf.mxu0
        %v6014 = vadd.f32 %v5925, %v6013
        %v6015 = vpop.f32.mrf.mxu0
        %v6016 = vadd.f32 %v5927, %v6015
        %6017 = vmatmul.bf16.gmra.mxu0 %v1959
        %v6018 = vpop.f32.mrf.mxu0
        %v6019 = vadd.f32 %v5930, %v6018
        %v6020 = vpop.f32.mrf.mxu0
        %v6021 = vadd.f32 %v5932, %v6020
        %6022 = vmatmul.bf16.gmra.mxu0 %v1965
        %v6023 = vpop.f32.mrf.mxu0
        %v6024 = vadd.f32 %v5935, %v6023
        %v6025 = vpop.f32.mrf.mxu0
        %v6026 = vadd.f32 %v5937, %v6025
        %6027 = vmatmul.bf16.gmra.mxu0 %v1971
        %v6028 = vpop.f32.mrf.mxu0
        %v6029 = vadd.f32 %v5940, %v6028
        %v6030 = vpop.f32.mrf.mxu0
        %v6031 = vadd.f32 %v5942, %v6030
        %6032 = vmatmul.bf16.gmra.mxu0 %v1977
        %v6033 = vpop.f32.mrf.mxu0
        %v6034 = vadd.f32 %v5945, %v6033
        %v6035 = vpop.f32.mrf.mxu0
        %v6036 = vadd.f32 %v5947, %v6035
        %6037 = vmatmul.bf16.gmra.mxu0 %v4779
        %v6038 = vpop.f32.mrf.mxu0
        %v6039 = vadd.f32 %v5950, %v6038
        %v6040 = vpop.f32.mrf.mxu0
        %v6041 = vadd.f32 %v5952, %v6040
        %6042 = vmatmul.bf16.gmra.mxu0 %v4785
        %v6043 = vpop.f32.mrf.mxu0
        %v6044 = vadd.f32 %v5955, %v6043
        %v6045 = vpop.f32.mrf.mxu0
        %v6046 = vadd.f32 %v5957, %v6045
        %6047 = vmatmul.bf16.gmra.mxu0 %v4791
        %v6048 = vpop.f32.mrf.mxu0
        %v6049 = vadd.f32 %v5960, %v6048
        %v6050 = vpop.f32.mrf.mxu0
        %v6051 = vadd.f32 %v5962, %v6050
        %6052 = vmatmul.bf16.gmra.mxu0 %v4797
        %v6053 = vpop.f32.mrf.mxu0
        %v6054 = vadd.f32 %v5965, %v6053
        %v6055 = vpop.f32.mrf.mxu0
        %v6056 = vadd.f32 %v5967, %v6055
        %6057 = vdwg.mxu0
        %v6058 = vadd.f32 %v4527, %v5979
        %v6059 = vadd.f32 %v4529, %v5981
        %v6060 = vadd.f32 %v4532, %v5984
        %v6061 = vadd.f32 %v4534, %v5986
        %v6062 = vadd.f32 %v4537, %v5989
        %v6063 = vadd.f32 %v4539, %v5991
        %v6064 = vadd.f32 %v4542, %v5994
        %v6065 = vadd.f32 %v4544, %v5996
        %v6066 = vadd.f32 %v4547, %v5999
        %v6067 = vadd.f32 %v4549, %v6001
        %v6068 = vadd.f32 %v4552, %v6004
        %v6069 = vadd.f32 %v4554, %v6006
        %v6070 = vadd.f32 %v4557, %v6009
        %v6071 = vadd.f32 %v4559, %v6011
        %v6072 = vadd.f32 %v4562, %v6014
        %v6073 = vadd.f32 %v4564, %v6016
        %v6074 = vadd.f32 %v4567, %v6019
        %v6075 = vadd.f32 %v4569, %v6021
        %v6076 = vadd.f32 %v4572, %v6024
        %v6077 = vadd.f32 %v4574, %v6026
        %v6078 = vadd.f32 %v4577, %v6029
        %v6079 = vadd.f32 %v4579, %v6031
        %v6080 = vadd.f32 %v4582, %v6034
        %v6081 = vadd.f32 %v4584, %v6036
        %v6082 = vadd.f32 %v4587, %v6039
        %v6083 = vadd.f32 %v4589, %v6041
        %v6084 = vadd.f32 %v4592, %v6044
        %v6085 = vadd.f32 %v4594, %v6046
        %v6086 = vadd.f32 %v4597, %v6049
        %v6087 = vadd.f32 %v4599, %v6051
        %v6088 = vadd.f32 %v4602, %v6054
        %v6089 = vadd.f32 %v4604, %v6056
        %v6091 = vperm.slane %v1480, 0
        %v6093 = vadd.f32 %v6058, %v6091
        %v6094 = vadd.f32 %v6059, %v6091
        %v6095 = vadd.f32 %v6060, %v6091
        %v6096 = vadd.f32 %v6061, %v6091
        %v6097 = vadd.f32 %v6062, %v6091
        %v6098 = vadd.f32 %v6063, %v6091
        %v6099 = vadd.f32 %v6064, %v6091
        %v6100 = vadd.f32 %v6065, %v6091
        %v6101 = vadd.f32 %v6066, %v6091
        %v6102 = vadd.f32 %v6067, %v6091
        %v6103 = vadd.f32 %v6068, %v6091
        %v6104 = vadd.f32 %v6069, %v6091
        %v6105 = vadd.f32 %v6070, %v6091
        %v6106 = vadd.f32 %v6071, %v6091
        %v6107 = vadd.f32 %v6072, %v6091
        %v6108 = vadd.f32 %v6073, %v6091
        %v6109 = vadd.f32 %v6074, %v6091
        %v6110 = vadd.f32 %v6075, %v6091
        %v6111 = vadd.f32 %v6076, %v6091
        %v6112 = vadd.f32 %v6077, %v6091
        %v6113 = vadd.f32 %v6078, %v6091
        %v6114 = vadd.f32 %v6079, %v6091
        %v6115 = vadd.f32 %v6080, %v6091
        %v6116 = vadd.f32 %v6081, %v6091
        %v6117 = vadd.f32 %v6082, %v6091
        %v6118 = vadd.f32 %v6083, %v6091
        %v6119 = vadd.f32 %v6084, %v6091
        %v6120 = vadd.f32 %v6085, %v6091
        %v6121 = vadd.f32 %v6086, %v6091
        %v6122 = vadd.f32 %v6087, %v6091
        %v6123 = vadd.f32 %v6088, %v6091
        %v6124 = vadd.f32 %v6089, %v6091
        %6125 = vst [vmem:[%s502] sm:$0xff] %v6093
        %6126 = vst [vmem:[%s502 + $0x8] sm:$0xff] %v6094
        %6127 = vst [vmem:[%s502 + $0x10] sm:$0xff] %v6095
        %6128 = vst [vmem:[%s502 + $0x18] sm:$0xff] %v6096
        %6129 = vst [vmem:[%s502 + $0x20] sm:$0xff] %v6097
        %6130 = vst [vmem:[%s502 + $0x28] sm:$0xff] %v6098
        %6131 = vst [vmem:[%s502 + $0x30] sm:$0xff] %v6099
        %6132 = vst [vmem:[%s502 + $0x38] sm:$0xff] %v6100
        %6133 = vst [vmem:[%s502 + $0x40] sm:$0xff] %v6101
        %6134 = vst [vmem:[%s502 + $0x48] sm:$0xff] %v6102
        %6135 = vst [vmem:[%s502 + $0x50] sm:$0xff] %v6103
        %6136 = vst [vmem:[%s502 + $0x58] sm:$0xff] %v6104
        %6137 = vst [vmem:[%s502 + $0x60] sm:$0xff] %v6105
        %6138 = vst [vmem:[%s502 + $0x68] sm:$0xff] %v6106
        %6139 = vst [vmem:[%s502 + $0x70] sm:$0xff] %v6107
        %6140 = vst [vmem:[%s502 + $0x78] sm:$0xff] %v6108
        %6141 = vst [vmem:[%s502 + $0x80] sm:$0xff] %v6109
        %6142 = vst [vmem:[%s502 + $0x88] sm:$0xff] %v6110
        %6143 = vst [vmem:[%s502 + $0x90] sm:$0xff] %v6111
        %6144 = vst [vmem:[%s502 + $0x98] sm:$0xff] %v6112
        %6145 = vst [vmem:[%s502 + $0xa0] sm:$0xff] %v6113
        %6146 = vst [vmem:[%s502 + $0xa8] sm:$0xff] %v6114
        %6147 = vst [vmem:[%s502 + $0xb0] sm:$0xff] %v6115
        %6148 = vst [vmem:[%s502 + $0xb8] sm:$0xff] %v6116
        %6149 = vst [vmem:[%s502 + $0xc0] sm:$0xff] %v6117
        %6150 = vst [vmem:[%s502 + $0xc8] sm:$0xff] %v6118
        %6151 = vst [vmem:[%s502 + $0xd0] sm:$0xff] %v6119
        %6152 = vst [vmem:[%s502 + $0xd8] sm:$0xff] %v6120
        %6153 = vst [vmem:[%s502 + $0xe0] sm:$0xff] %v6121
        %6154 = vst [vmem:[%s502 + $0xe8] sm:$0xff] %v6122
        %6155 = vst [vmem:[%s502 + $0xf0] sm:$0xff] %v6123
        %6156 = vst [vmem:[%s502 + $0xf8] sm:$0xff] %v6124
        %s6157 = sand.u32 %s276, 1
        %s6158 = scalar_lea.sflag [#allocation3], %s6157
        %s6159 = sand.u32 %s276, 1
        %s6160 = smul.addr %s6159, 256
        %s6161 = scalar_lea.vmem [#allocation2], %s6160
        // Predicated region
        $region53: #{conv3d_one_input.3} parent=51 // pred_check
          %p6162 = pneg %p286
        $region54: #{conv3d_one_input.3} parent=51 // pred_check_branch
          %6164 = sbr.rel (%p6162) target = $region56
        $region55: #{conv3d_one_input.3} parent=51 // pred_region
          %s6165 = smul.u32 4, %s27
          %6167 = vsyncadd %s6158, 0
          %s6168 = smul.addr %s6165, 8
          %s6169 = smul.addr %s26, 64
          %s6170 = sadd.s32 %s6168, %s6169
          %s6171 = smul.addr %s6170, 8
          %s6172 = scalar_lea.hbm %s8, %s6171
          %s6173 = sshll.u32 %s6161, 4
          %s6174 = int_to_ptr.vmem [resolvable:$true] %s6173
          %s6175 = sshll.u32 %s6172, 4
          %s6176 = int_to_ptr.hbm [resolvable:$true] %s6175
          %6181 = dma.vmem_to_hbm [thread:$0]  %s6174, 4096, %s6176, %s6158, 128, 128, 8
        $region56: #{conv3d_one_input.3} parent=51 // pred_fallthru
          _
      $region52: #{conv3d_one_input.3} parent=5 // pred_fallthru
        _
      %p6182 = scmp.le.s32.totalorder 2, %s17
      // Predicated region
      $region57: #{conv3d_one_input.3} parent=5 // pred_check
        %p6183 = pneg %p6182
      $region58: #{conv3d_one_input.3} parent=5 // pred_check_branch
        %6185 = sbr.rel (%p6183) target = $region60
      $region59: #{conv3d_one_input.3} parent=5 // pred_region
        %s6186 = ssub.s32 %s17, 2
        // Predicated region
        $region61: #{conv3d_one_input.3} parent=59 // pred_check
          %p6187 = pneg %p292
        $region62: #{conv3d_one_input.3} parent=59 // pred_check_branch
          %6189 = sbr.rel (%p6187) target = $region64
        $region63: #{conv3d_one_input.3} parent=59 // pred_region
          %s6190 = sand.u32 %s277, 1
          %s6191 = scalar_lea.sflag [#allocation3], %s6190
          %s6192 = sand.u32 %s277, 1
          %s6193 = smul.addr %s6192, 256
          %s6194 = scalar_lea.vmem [#allocation2], %s6193
          %6196 = dma.done %s6191, 4096
        $region64: #{conv3d_one_input.3} parent=59 // pred_fallthru
          _
      $region60: #{conv3d_one_input.3} parent=5 // pred_fallthru
        _
    $region6: #{conv3d_one_input.3} parent=1 // loop_footer
      %s21 = sadd.s32 1, %s17
    $region7: #{conv3d_one_input.3} parent=1 // loop_footer_branch
      %16 = sbr.rel target = $region3
    $region8: #{conv3d_one_input.3} parent=1 // loop_exit
      _
    %6197 = vsyncpa [#allocation3], 1
    %s6198 = scalar_lea.sflag [#allocation3], 1
    %6199 = vsyncpa %s6198, 1

// kernel: conv3d_one_input.2
$region0: #{conv3d_one_input.2}
  #allocation0 [shape = 'u32[]', space=smem, size = 0x4, offset = 0x4, fixed_abs, tag = 'smem constant byte address 0x4 - core index']
  #allocation1 [shape = 'u32[72,128]{1,0:T(1,128)}', space=vmem, size = 0x9000, scoped, tag = 'internal scratch']
  %s0 = inlined_call_operand.vmem [shape: bf16[2,10,10,10,128], index: 0, kind: input, shape index: {}, may-alias: {0,1,2,3,4,5}]
  %s1 = inlined_call_operand.vmem [shape: bf16[2,10,10,10,128], index: 1, kind: input, shape index: {}, may-alias: {0,1,2,3,4,5}]
  %s2 = inlined_call_operand.vmem [shape: bf16[2,10,10,10,128], index: 2, kind: input, shape index: {}, may-alias: {0,1,2,3,4,5}]
  %s3 = inlined_call_operand.vmem [shape: bf16[2,10,10,10,128], index: 3, kind: input, shape index: {}, may-alias: {0,1,2,3,4,5}]
  %s4 = inlined_call_operand.vmem [shape: bf16[2,10,10,10,128], index: 4, kind: input, shape index: {}, may-alias: {0,1,2,3,4,5}]
  %s5 = inlined_call_operand.vmem [shape: bf16[2,10,10,10,128], index: 5, kind: input, shape index: {}, may-alias: {0,1,2,3,4,5}]
  %s6 = inlined_call_operand.vmem [shape: bf16[3,1152,128], index: 6, kind: input, shape index: {}]
  %s7 = inlined_call_operand.vmem [shape: f32[1,128], index: 7, kind: input, shape index: {}]
  %s8 = inlined_call_operand.vmem [shape: bf16[2,8,8,8,128], index: 8, kind: output, shape index: {}]
  %s9 = sld [smem:[#allocation0]]
  $region65: #{conv3d_one_input.2} parent=0
    _
  %s11 = ssub.s32 1, %s9
  %s12 = scalar_select 0, %s11, %s9
  loop: start=0, step=1, limit=6
  $region2: #{conv3d_one_input.2} parent=0 // loop_pre_header
    _
  $region3: #{conv3d_one_input.2} parent=0 // loop_header
    %s14 = sphi 0, %s18
    %p15 = scmp.ge.s32.totalorder %s14, 6
    %s21 = sphi 0, %s33
    %s22 = sphi 0, %s29
    %s23 = sphi 0, %s21
    %s24 = sphi 0, %s22
    %s25 = sphi 0, %s23
    %s26 = sphi 0, %s24
    %s40 = sphi 0, %s42
    %s43 = sphi 0, %s40
    %s44 = sphi 0, %s43
    %s60 = sphi 0, %s44
    %s72 = sphi 0, %s74
    %s75 = sphi 0, %s72
    %s76 = sphi 0, %s75
    %s92 = sphi 0, %s76
    %s104 = sphi 0, %s106
    %s107 = sphi 0, %s104
    %s108 = sphi 0, %s107
    %s124 = sphi 0, %s108
    %s136 = sphi 0, %s138
    %s139 = sphi 0, %s136
    %s140 = sphi 0, %s139
    %s156 = sphi 0, %s140
    %s168 = sphi 0, %s170
    %s171 = sphi 0, %s168
    %s172 = sphi 0, %s171
    %s188 = sphi 0, %s172
    %s200 = sphi 0, %s202
    %s203 = sphi 0, %s200
    %s204 = sphi 0, %s203
    %s220 = sphi 0, %s204
    %s224 = sphi 0, %s224
    %s226 = sphi 0, %s224
    %s227 = sphi 0, %s226
    %s241 = sphi 0, %s227
    %s245 = sphi 0, %s245
    %s247 = sphi 0, %s245
    %s248 = sphi 0, %s247
    %s262 = sphi 0, %s248
    %s270 = sphi 0, %s272
    %s273 = sphi 0, %s270
    %s274 = sphi 0, %s273
    %s290 = sphi 0, %s274
  $region4: #{conv3d_one_input.2} parent=0 // loop_header_branch
    %17 = sbr.rel (%p15) target = $region8
  $region5: #{conv3d_one_input.2} parent=0 // loop_body
    %s19 = ssub.s32 %s14, 1
    %s20 = ssub.s32 %s14, 2
    %s27 = sadd.s32 1, %s22
    %p28 = scmp.ge.s32.totalorder %s27, 2
    %s29 = scalar_select %p28, 0, %s27
    %s30 = sadd.s32 1, %s21
    %s31 = scalar_select %p28, %s30, %s21
    %p32 = scmp.ge.s32.totalorder %s31, 2
    %s33 = scalar_select %p32, 0, %s31
    %s34 = smul.u32 %s22, 4
    %s35 = smul.u32 %s29, 4
    %s36 = ssub.s32 %s21, %s33
    %s37 = ssub.s32 %s34, %s35
    %s38 = sor.u32 %s36, %s37
    %p39 = scmp.eq.s32.totalorder %s38, 0
    %s41 = sadd.s32 %s40, 1
    %s42 = scalar_select %p39, %s40, %s41
    %p45 = pneg %p39
    %p46 = scmp.eq.s32.totalorder %s14, 3
    %p47 = por %p45, %p46
    %p48 = scmp.ne.s32.totalorder %s40, %s43
    %p49 = scmp.eq.s32.totalorder %s14, 0
    %p50 = por %p48, %p49
    %p51 = scmp.ne.s32.totalorder %s40, %s43
    %p52 = scmp.eq.s32.totalorder %s19, 3
    %p53 = por %p51, %p52
    %p54 = scmp.ne.s32.totalorder %s43, %s44
    %p55 = scmp.eq.s32.totalorder %s19, 0
    %p56 = por %p54, %p55
    %p57 = scmp.ne.s32.totalorder %s43, %s44
    %p58 = scmp.eq.s32.totalorder %s20, 3
    %p59 = por %p57, %p58
    %p61 = scmp.ne.s32.totalorder %s44, %s60
    %p62 = scmp.eq.s32.totalorder %s20, 0
    %p63 = por %p61, %p62
    %s64 = smul.u32 %s22, 4
    %s65 = sadd.s32 %s64, 1
    %s66 = smul.u32 %s29, 4
    %s67 = sadd.s32 %s66, 1
    %s68 = ssub.s32 %s21, %s33
    %s69 = ssub.s32 %s65, %s67
    %s70 = sor.u32 %s68, %s69
    %p71 = scmp.eq.s32.totalorder %s70, 0
    %s73 = sadd.s32 %s72, 1
    %s74 = scalar_select %p71, %s72, %s73
    %p77 = pneg %p71
    %p78 = scmp.eq.s32.totalorder %s14, 3
    %p79 = por %p77, %p78
    %p80 = scmp.ne.s32.totalorder %s72, %s75
    %p81 = scmp.eq.s32.totalorder %s14, 0
    %p82 = por %p80, %p81
    %p83 = scmp.ne.s32.totalorder %s72, %s75
    %p84 = scmp.eq.s32.totalorder %s19, 3
    %p85 = por %p83, %p84
    %p86 = scmp.ne.s32.totalorder %s75, %s76
    %p87 = scmp.eq.s32.totalorder %s19, 0
    %p88 = por %p86, %p87
    %p89 = scmp.ne.s32.totalorder %s75, %s76
    %p90 = scmp.eq.s32.totalorder %s20, 3
    %p91 = por %p89, %p90
    %p93 = scmp.ne.s32.totalorder %s76, %s92
    %p94 = scmp.eq.s32.totalorder %s20, 0
    %p95 = por %p93, %p94
    %s96 = smul.u32 %s22, 4
    %s97 = sadd.s32 %s96, 2
    %s98 = smul.u32 %s29, 4
    %s99 = sadd.s32 %s98, 2
    %s100 = ssub.s32 %s21, %s33
    %s101 = ssub.s32 %s97, %s99
    %s102 = sor.u32 %s100, %s101
    %p103 = scmp.eq.s32.totalorder %s102, 0
    %s105 = sadd.s32 %s104, 1
    %s106 = scalar_select %p103, %s104, %s105
    %p109 = pneg %p103
    %p110 = scmp.eq.s32.totalorder %s14, 3
    %p111 = por %p109, %p110
    %p112 = scmp.ne.s32.totalorder %s104, %s107
    %p113 = scmp.eq.s32.totalorder %s14, 0
    %p114 = por %p112, %p113
    %p115 = scmp.ne.s32.totalorder %s104, %s107
    %p116 = scmp.eq.s32.totalorder %s19, 3
    %p117 = por %p115, %p116
    %p118 = scmp.ne.s32.totalorder %s107, %s108
    %p119 = scmp.eq.s32.totalorder %s19, 0
    %p120 = por %p118, %p119
    %p121 = scmp.ne.s32.totalorder %s107, %s108
    %p122 = scmp.eq.s32.totalorder %s20, 3
    %p123 = por %p121, %p122
    %p125 = scmp.ne.s32.totalorder %s108, %s124
    %p126 = scmp.eq.s32.totalorder %s20, 0
    %p127 = por %p125, %p126
    %s128 = smul.u32 %s22, 4
    %s129 = sadd.s32 %s128, 3
    %s130 = smul.u32 %s29, 4
    %s131 = sadd.s32 %s130, 3
    %s132 = ssub.s32 %s21, %s33
    %s133 = ssub.s32 %s129, %s131
    %s134 = sor.u32 %s132, %s133
    %p135 = scmp.eq.s32.totalorder %s134, 0
    %s137 = sadd.s32 %s136, 1
    %s138 = scalar_select %p135, %s136, %s137
    %p141 = pneg %p135
    %p142 = scmp.eq.s32.totalorder %s14, 3
    %p143 = por %p141, %p142
    %p144 = scmp.ne.s32.totalorder %s136, %s139
    %p145 = scmp.eq.s32.totalorder %s14, 0
    %p146 = por %p144, %p145
    %p147 = scmp.ne.s32.totalorder %s136, %s139
    %p148 = scmp.eq.s32.totalorder %s19, 3
    %p149 = por %p147, %p148
    %p150 = scmp.ne.s32.totalorder %s139, %s140
    %p151 = scmp.eq.s32.totalorder %s19, 0
    %p152 = por %p150, %p151
    %p153 = scmp.ne.s32.totalorder %s139, %s140
    %p154 = scmp.eq.s32.totalorder %s20, 3
    %p155 = por %p153, %p154
    %p157 = scmp.ne.s32.totalorder %s140, %s156
    %p158 = scmp.eq.s32.totalorder %s20, 0
    %p159 = por %p157, %p158
    %s160 = smul.u32 %s22, 4
    %s161 = sadd.s32 %s160, 4
    %s162 = smul.u32 %s29, 4
    %s163 = sadd.s32 %s162, 4
    %s164 = ssub.s32 %s21, %s33
    %s165 = ssub.s32 %s161, %s163
    %s166 = sor.u32 %s164, %s165
    %p167 = scmp.eq.s32.totalorder %s166, 0
    %s169 = sadd.s32 %s168, 1
    %s170 = scalar_select %p167, %s168, %s169
    %p173 = pneg %p167
    %p174 = scmp.eq.s32.totalorder %s14, 3
    %p175 = por %p173, %p174
    %p176 = scmp.ne.s32.totalorder %s168, %s171
    %p177 = scmp.eq.s32.totalorder %s14, 0
    %p178 = por %p176, %p177
    %p179 = scmp.ne.s32.totalorder %s168, %s171
    %p180 = scmp.eq.s32.totalorder %s19, 3
    %p181 = por %p179, %p180
    %p182 = scmp.ne.s32.totalorder %s171, %s172
    %p183 = scmp.eq.s32.totalorder %s19, 0
    %p184 = por %p182, %p183
    %p185 = scmp.ne.s32.totalorder %s171, %s172
    %p186 = scmp.eq.s32.totalorder %s20, 3
    %p187 = por %p185, %p186
    %p189 = scmp.ne.s32.totalorder %s172, %s188
    %p190 = scmp.eq.s32.totalorder %s20, 0
    %p191 = por %p189, %p190
    %s192 = smul.u32 %s22, 4
    %s193 = sadd.s32 %s192, 5
    %s194 = smul.u32 %s29, 4
    %s195 = sadd.s32 %s194, 5
    %s196 = ssub.s32 %s21, %s33
    %s197 = ssub.s32 %s193, %s195
    %s198 = sor.u32 %s196, %s197
    %p199 = scmp.eq.s32.totalorder %s198, 0
    %s201 = sadd.s32 %s200, 1
    %s202 = scalar_select %p199, %s200, %s201
    %p205 = pneg %p199
    %p206 = scmp.eq.s32.totalorder %s14, 3
    %p207 = por %p205, %p206
    %p208 = scmp.ne.s32.totalorder %s200, %s203
    %p209 = scmp.eq.s32.totalorder %s14, 0
    %p210 = por %p208, %p209
    %p211 = scmp.ne.s32.totalorder %s200, %s203
    %p212 = scmp.eq.s32.totalorder %s19, 3
    %p213 = por %p211, %p212
    %p214 = scmp.ne.s32.totalorder %s203, %s204
    %p215 = scmp.eq.s32.totalorder %s19, 0
    %p216 = por %p214, %p215
    %p217 = scmp.ne.s32.totalorder %s203, %s204
    %p218 = scmp.eq.s32.totalorder %s20, 3
    %p219 = por %p217, %p218
    %p221 = scmp.ne.s32.totalorder %s204, %s220
    %p222 = scmp.eq.s32.totalorder %s20, 0
    %p223 = por %p221, %p222
    %s225 = sadd.s32 %s224, 1
    %p228 = scmp.eq.s32.totalorder %s14, 3
    %p229 = scmp.ne.s32.totalorder %s224, %s226
    %p230 = scmp.eq.s32.totalorder %s14, 0
    %p231 = por %p229, %p230
    %p232 = scmp.ne.s32.totalorder %s224, %s226
    %p233 = scmp.eq.s32.totalorder %s19, 3
    %p234 = por %p232, %p233
    %p235 = scmp.ne.s32.totalorder %s226, %s227
    %p236 = scmp.eq.s32.totalorder %s19, 0
    %p237 = por %p235, %p236
    %p238 = scmp.ne.s32.totalorder %s226, %s227
    %p239 = scmp.eq.s32.totalorder %s20, 3
    %p240 = por %p238, %p239
    %p242 = scmp.ne.s32.totalorder %s227, %s241
    %p243 = scmp.eq.s32.totalorder %s20, 0
    %p244 = por %p242, %p243
    %s246 = sadd.s32 %s245, 1
    %p249 = scmp.eq.s32.totalorder %s14, 3
    %p250 = scmp.ne.s32.totalorder %s245, %s247
    %p251 = scmp.eq.s32.totalorder %s14, 0
    %p252 = por %p250, %p251
    %p253 = scmp.ne.s32.totalorder %s245, %s247
    %p254 = scmp.eq.s32.totalorder %s19, 3
    %p255 = por %p253, %p254
    %p256 = scmp.ne.s32.totalorder %s247, %s248
    %p257 = scmp.eq.s32.totalorder %s19, 0
    %p258 = por %p256, %p257
    %p259 = scmp.ne.s32.totalorder %s247, %s248
    %p260 = scmp.eq.s32.totalorder %s20, 3
    %p261 = por %p259, %p260
    %p263 = scmp.ne.s32.totalorder %s248, %s262
    %p264 = scmp.eq.s32.totalorder %s20, 0
    %p265 = por %p263, %p264
    %s266 = ssub.s32 %s21, %s33
    %s267 = ssub.s32 %s22, %s29
    %s268 = sor.u32 %s266, %s267
    %p269 = scmp.eq.s32.totalorder %s268, 0
    %s271 = sadd.s32 %s270, 1
    %s272 = scalar_select %p269, %s270, %s271
    %p275 = pneg %p269
    %p276 = scmp.eq.s32.totalorder %s14, 3
    %p277 = por %p275, %p276
    %p278 = scmp.ne.s32.totalorder %s270, %s273
    %p279 = scmp.eq.s32.totalorder %s14, 0
    %p280 = por %p278, %p279
    %p281 = scmp.ne.s32.totalorder %s270, %s273
    %p282 = scmp.eq.s32.totalorder %s19, 3
    %p283 = por %p281, %p282
    %p284 = scmp.ne.s32.totalorder %s273, %s274
    %p285 = scmp.eq.s32.totalorder %s19, 0
    %p286 = por %p284, %p285
    %p287 = scmp.ne.s32.totalorder %s273, %s274
    %p288 = scmp.eq.s32.totalorder %s20, 3
    %p289 = por %p287, %p288
    %p291 = scmp.ne.s32.totalorder %s274, %s290
    %p292 = scmp.eq.s32.totalorder %s20, 0
    %p293 = por %p291, %p292
    %p294 = scmp.le.s32.totalorder 1, %s14
    %p295 = scmp.lt.s32.totalorder %s14, 5
    %p296 = pnand %p294, %p295
    %p297 = pneg %p296
    // Predicated region
    $region9: #{conv3d_one_input.2} parent=5 // pred_check
      _
    $region10: #{conv3d_one_input.2} parent=5 // pred_check_branch
      %299 = sbr.rel (%p296) target = $region12
    $region11: #{conv3d_one_input.2} parent=5 // pred_region
      %s300 = ssub.s32 %s14, 1
      // Predicated region
      $region13: #{conv3d_one_input.2} parent=11 // pred_check
        %p301 = pneg %p237
      $region14: #{conv3d_one_input.2} parent=11 // pred_check_branch
        %303 = sbr.rel (%p301) target = $region16
      $region15: #{conv3d_one_input.2} parent=11 // pred_region
        _
      $region16: #{conv3d_one_input.2} parent=11 // pred_fallthru
        _
      // Predicated region
      $region17: #{conv3d_one_input.2} parent=11 // pred_check
        %p304 = pneg %p258
      $region18: #{conv3d_one_input.2} parent=11 // pred_check_branch
        %306 = sbr.rel (%p304) target = $region20
      $region19: #{conv3d_one_input.2} parent=11 // pred_region
        _
      $region20: #{conv3d_one_input.2} parent=11 // pred_fallthru
        _
    $region12: #{conv3d_one_input.2} parent=5 // pred_fallthru
      _
    %p307 = scmp.lt.s32.totalorder %s14, 4
    // Predicated region
    $region21: #{conv3d_one_input.2} parent=5 // pred_check
      %p308 = pneg %p307
    $region22: #{conv3d_one_input.2} parent=5 // pred_check_branch
      %310 = sbr.rel (%p308) target = $region24
    $region23: #{conv3d_one_input.2} parent=5 // pred_region
      // Predicated region
      $region25: #{conv3d_one_input.2} parent=23 // pred_check
        %p311 = pneg %p50
      $region26: #{conv3d_one_input.2} parent=23 // pred_check_branch
        %313 = sbr.rel (%p311) target = $region28
      $region27: #{conv3d_one_input.2} parent=23 // pred_region
        %s314 = smul.u32 %s22, 4
        %p315 = scmp.lt.s32.totalorder %s21, 1
        %s316 = scalar_select %p315, %s21, 1
        %p317 = scmp.lt.s32.totalorder %s314, 9
        %s318 = scalar_select %p317, %s314, 9
        %s319 = smul.addr %s318, 20
        %s320 = smul.addr %s316, 200
        %s321 = sadd.s32 %s319, %s320
        %s322 = smul.addr %s321, 4
        %s323 = scalar_lea.vmem %s0, %s322
        %s324 = smul.u32 %s22, 4
      $region28: #{conv3d_one_input.2} parent=23 // pred_fallthru
        _
      // Predicated region
      $region29: #{conv3d_one_input.2} parent=23 // pred_check
        %p325 = pneg %p82
      $region30: #{conv3d_one_input.2} parent=23 // pred_check_branch
        %327 = sbr.rel (%p325) target = $region32
      $region31: #{conv3d_one_input.2} parent=23 // pred_region
        %s328 = smul.u32 %s22, 4
        %s329 = sadd.s32 %s328, 1
        %p330 = scmp.lt.s32.totalorder %s21, 1
        %s331 = scalar_select %p330, %s21, 1
        %p332 = scmp.lt.s32.totalorder %s329, 9
        %s333 = scalar_select %p332, %s329, 9
        %s334 = smul.addr %s333, 20
        %s335 = smul.addr %s331, 200
        %s336 = sadd.s32 %s334, %s335
        %s337 = smul.addr %s336, 4
        %s338 = scalar_lea.vmem %s1, %s337
        %s339 = smul.u32 %s22, 4
        %s340 = sadd.s32 %s339, 1
      $region32: #{conv3d_one_input.2} parent=23 // pred_fallthru
        _
      // Predicated region
      $region33: #{conv3d_one_input.2} parent=23 // pred_check
        %p341 = pneg %p114
      $region34: #{conv3d_one_input.2} parent=23 // pred_check_branch
        %343 = sbr.rel (%p341) target = $region36
      $region35: #{conv3d_one_input.2} parent=23 // pred_region
        %s344 = smul.u32 %s22, 4
        %s345 = sadd.s32 %s344, 2
        %p346 = scmp.lt.s32.totalorder %s21, 1
        %s347 = scalar_select %p346, %s21, 1
        %p348 = scmp.lt.s32.totalorder %s345, 9
        %s349 = scalar_select %p348, %s345, 9
        %s350 = smul.addr %s349, 20
        %s351 = smul.addr %s347, 200
        %s352 = sadd.s32 %s350, %s351
        %s353 = smul.addr %s352, 4
        %s354 = scalar_lea.vmem %s2, %s353
        %s355 = smul.u32 %s22, 4
        %s356 = sadd.s32 %s355, 2
      $region36: #{conv3d_one_input.2} parent=23 // pred_fallthru
        _
      // Predicated region
      $region37: #{conv3d_one_input.2} parent=23 // pred_check
        %p357 = pneg %p146
      $region38: #{conv3d_one_input.2} parent=23 // pred_check_branch
        %359 = sbr.rel (%p357) target = $region40
      $region39: #{conv3d_one_input.2} parent=23 // pred_region
        %s360 = smul.u32 %s22, 4
        %s361 = sadd.s32 %s360, 3
        %p362 = scmp.lt.s32.totalorder %s21, 1
        %s363 = scalar_select %p362, %s21, 1
        %p364 = scmp.lt.s32.totalorder %s361, 9
        %s365 = scalar_select %p364, %s361, 9
        %s366 = smul.addr %s365, 20
        %s367 = smul.addr %s363, 200
        %s368 = sadd.s32 %s366, %s367
        %s369 = smul.addr %s368, 4
        %s370 = scalar_lea.vmem %s3, %s369
        %s371 = smul.u32 %s22, 4
        %s372 = sadd.s32 %s371, 3
      $region40: #{conv3d_one_input.2} parent=23 // pred_fallthru
        _
      // Predicated region
      $region41: #{conv3d_one_input.2} parent=23 // pred_check
        %p373 = pneg %p178
      $region42: #{conv3d_one_input.2} parent=23 // pred_check_branch
        %375 = sbr.rel (%p373) target = $region44
      $region43: #{conv3d_one_input.2} parent=23 // pred_region
        %s376 = smul.u32 %s22, 4
        %s377 = sadd.s32 %s376, 4
        %p378 = scmp.lt.s32.totalorder %s21, 1
        %s379 = scalar_select %p378, %s21, 1
        %p380 = scmp.lt.s32.totalorder %s377, 9
        %s381 = scalar_select %p380, %s377, 9
        %s382 = smul.addr %s381, 20
        %s383 = smul.addr %s379, 200
        %s384 = sadd.s32 %s382, %s383
        %s385 = smul.addr %s384, 4
        %s386 = scalar_lea.vmem %s4, %s385
        %s387 = smul.u32 %s22, 4
        %s388 = sadd.s32 %s387, 4
      $region44: #{conv3d_one_input.2} parent=23 // pred_fallthru
        _
      // Predicated region
      $region45: #{conv3d_one_input.2} parent=23 // pred_check
        %p389 = pneg %p210
      $region46: #{conv3d_one_input.2} parent=23 // pred_check_branch
        %391 = sbr.rel (%p389) target = $region48
      $region47: #{conv3d_one_input.2} parent=23 // pred_region
        %s392 = smul.u32 %s22, 4
        %s393 = sadd.s32 %s392, 5
        %p394 = scmp.lt.s32.totalorder %s21, 1
        %s395 = scalar_select %p394, %s21, 1
        %p396 = scmp.lt.s32.totalorder %s393, 9
        %s397 = scalar_select %p396, %s393, 9
        %s398 = smul.addr %s397, 20
        %s399 = smul.addr %s395, 200
        %s400 = sadd.s32 %s398, %s399
        %s401 = smul.addr %s400, 4
        %s402 = scalar_lea.vmem %s5, %s401
        %s403 = smul.u32 %s22, 4
        %s404 = sadd.s32 %s403, 5
      $region48: #{conv3d_one_input.2} parent=23 // pred_fallthru
        _
    $region24: #{conv3d_one_input.2} parent=5 // pred_fallthru
      _
    %p405 = scmp.le.s32.totalorder 1, %s14
    %p406 = scmp.lt.s32.totalorder %s14, 5
    %p407 = pnand %p405, %p406
    %p408 = pneg %p407
    // Predicated region
    $region49: #{conv3d_one_input.2} parent=5 // pred_check
      _
    $region50: #{conv3d_one_input.2} parent=5 // pred_check_branch
      %410 = sbr.rel (%p407) target = $region52
    $region51: #{conv3d_one_input.2} parent=5 // pred_region
      %s411 = ssub.s32 %s14, 1
      %s412 = smul.u32 %s24, 4
      %p413 = scmp.lt.s32.totalorder %s23, 1
      %s414 = scalar_select %p413, %s23, 1
      %p415 = scmp.lt.s32.totalorder %s412, 9
      %s416 = scalar_select %p415, %s412, 9
      %s417 = smul.addr %s416, 20
      %s418 = smul.addr %s414, 200
      %s419 = sadd.s32 %s417, %s418
      %s420 = smul.addr %s419, 4
      %s421 = scalar_lea.vmem %s0, %s420
      %p422 = pneg %p56
      %p423 = pneg %p53
      %s424 = smul.u32 %s24, 4
      %s425 = sadd.s32 %s424, 1
      %p426 = scmp.lt.s32.totalorder %s23, 1
      %s427 = scalar_select %p426, %s23, 1
      %p428 = scmp.lt.s32.totalorder %s425, 9
      %s429 = scalar_select %p428, %s425, 9
      %s430 = smul.addr %s429, 20
      %s431 = smul.addr %s427, 200
      %s432 = sadd.s32 %s430, %s431
      %s433 = smul.addr %s432, 4
      %s434 = scalar_lea.vmem %s1, %s433
      %p435 = pneg %p88
      %p436 = pneg %p85
      %s437 = smul.u32 %s24, 4
      %s438 = sadd.s32 %s437, 2
      %p439 = scmp.lt.s32.totalorder %s23, 1
      %s440 = scalar_select %p439, %s23, 1
      %p441 = scmp.lt.s32.totalorder %s438, 9
      %s442 = scalar_select %p441, %s438, 9
      %s443 = smul.addr %s442, 20
      %s444 = smul.addr %s440, 200
      %s445 = sadd.s32 %s443, %s444
      %s446 = smul.addr %s445, 4
      %s447 = scalar_lea.vmem %s2, %s446
      %p448 = pneg %p120
      %p449 = pneg %p117
      %s450 = smul.u32 %s24, 4
      %s451 = sadd.s32 %s450, 3
      %p452 = scmp.lt.s32.totalorder %s23, 1
      %s453 = scalar_select %p452, %s23, 1
      %p454 = scmp.lt.s32.totalorder %s451, 9
      %s455 = scalar_select %p454, %s451, 9
      %s456 = smul.addr %s455, 20
      %s457 = smul.addr %s453, 200
      %s458 = sadd.s32 %s456, %s457
      %s459 = smul.addr %s458, 4
      %s460 = scalar_lea.vmem %s3, %s459
      %p461 = pneg %p152
      %p462 = pneg %p149
      %s463 = smul.u32 %s24, 4
      %s464 = sadd.s32 %s463, 4
      %p465 = scmp.lt.s32.totalorder %s23, 1
      %s466 = scalar_select %p465, %s23, 1
      %p467 = scmp.lt.s32.totalorder %s464, 9
      %s468 = scalar_select %p467, %s464, 9
      %s469 = smul.addr %s468, 20
      %s470 = smul.addr %s466, 200
      %s471 = sadd.s32 %s469, %s470
      %s472 = smul.addr %s471, 4
      %s473 = scalar_lea.vmem %s4, %s472
      %p474 = pneg %p184
      %p475 = pneg %p181
      %s476 = smul.u32 %s24, 4
      %s477 = sadd.s32 %s476, 5
      %p478 = scmp.lt.s32.totalorder %s23, 1
      %s479 = scalar_select %p478, %s23, 1
      %p480 = scmp.lt.s32.totalorder %s477, 9
      %s481 = scalar_select %p480, %s477, 9
      %s482 = smul.addr %s481, 20
      %s483 = smul.addr %s479, 200
      %s484 = sadd.s32 %s482, %s483
      %s485 = smul.addr %s484, 4
      %s486 = scalar_lea.vmem %s5, %s485
      %p487 = pneg %p216
      %p488 = pneg %p213
      %p489 = pneg %p237
      %p490 = pneg %p234
      %p491 = pneg %p258
      %p492 = pneg %p255
      %p493 = pneg %p286
      %p494 = pneg %p283
      %s495 = smul.u32 4, %s24
      %p496 = scmp.lt.s32.totalorder %s23, 1
      %s497 = scalar_select %p496, %s23, 1
      %p498 = scmp.lt.s32.totalorder %s495, 7
      %s499 = scalar_select %p498, %s495, 7
      %s500 = smul.addr %s499, 8
      %s501 = smul.addr %s497, 64
      %s502 = sadd.s32 %s500, %s501
      %s503 = smul.addr %s502, 4
      %s504 = scalar_lea.vmem %s8, %s503
      %s505 = smul.u32 %s24, 4
      %p506 = scmp.lt.s32.totalorder %s23, 1
      %s507 = scalar_select %p506, %s23, 1
      %p508 = scmp.lt.s32.totalorder %s505, 9
      %s509 = scalar_select %p508, %s505, 9
      %s510 = smul.addr %s509, 20
      %s511 = smul.addr %s507, 200
      %s512 = sadd.s32 %s510, %s511
      %s513 = smul.addr %s512, 4
      %s514 = scalar_lea.vmem %s0, %s513
      %s515 = smul.u32 %s24, 4
      %s516 = smul.u32 %s24, 4
      %s517 = sadd.s32 %s516, 1
      %p518 = scmp.lt.s32.totalorder %s23, 1
      %s519 = scalar_select %p518, %s23, 1
      %p520 = scmp.lt.s32.totalorder %s517, 9
      %s521 = scalar_select %p520, %s517, 9
      %s522 = smul.addr %s521, 20
      %s523 = smul.addr %s519, 200
      %s524 = sadd.s32 %s522, %s523
      %s525 = smul.addr %s524, 4
      %s526 = scalar_lea.vmem %s1, %s525
      %s527 = smul.u32 %s24, 4
      %s528 = sadd.s32 %s527, 1
      %s529 = smul.u32 %s24, 4
      %s530 = sadd.s32 %s529, 2
      %p531 = scmp.lt.s32.totalorder %s23, 1
      %s532 = scalar_select %p531, %s23, 1
      %p533 = scmp.lt.s32.totalorder %s530, 9
      %s534 = scalar_select %p533, %s530, 9
      %s535 = smul.addr %s534, 20
      %s536 = smul.addr %s532, 200
      %s537 = sadd.s32 %s535, %s536
      %s538 = smul.addr %s537, 4
      %s539 = scalar_lea.vmem %s2, %s538
      %s540 = smul.u32 %s24, 4
      %s541 = sadd.s32 %s540, 2
      %s542 = smul.u32 %s24, 4
      %s543 = sadd.s32 %s542, 3
      %p544 = scmp.lt.s32.totalorder %s23, 1
      %s545 = scalar_select %p544, %s23, 1
      %p546 = scmp.lt.s32.totalorder %s543, 9
      %s547 = scalar_select %p546, %s543, 9
      %s548 = smul.addr %s547, 20
      %s549 = smul.addr %s545, 200
      %s550 = sadd.s32 %s548, %s549
      %s551 = smul.addr %s550, 4
      %s552 = scalar_lea.vmem %s3, %s551
      %s553 = smul.u32 %s24, 4
      %s554 = sadd.s32 %s553, 3
      %s555 = smul.u32 %s24, 4
      %s556 = sadd.s32 %s555, 4
      %p557 = scmp.lt.s32.totalorder %s23, 1
      %s558 = scalar_select %p557, %s23, 1
      %p559 = scmp.lt.s32.totalorder %s556, 9
      %s560 = scalar_select %p559, %s556, 9
      %s561 = smul.addr %s560, 20
      %s562 = smul.addr %s558, 200
      %s563 = sadd.s32 %s561, %s562
      %s564 = smul.addr %s563, 4
      %s565 = scalar_lea.vmem %s4, %s564
      %s566 = smul.u32 %s24, 4
      %s567 = sadd.s32 %s566, 4
      %s568 = smul.u32 %s24, 4
      %s569 = sadd.s32 %s568, 5
      %p570 = scmp.lt.s32.totalorder %s23, 1
      %s571 = scalar_select %p570, %s23, 1
      %p572 = scmp.lt.s32.totalorder %s569, 9
      %s573 = scalar_select %p572, %s569, 9
      %s574 = smul.addr %s573, 20
      %s575 = smul.addr %s571, 200
      %s576 = sadd.s32 %s574, %s575
      %s577 = smul.addr %s576, 4
      %s578 = scalar_lea.vmem %s5, %s577
      %s579 = smul.u32 %s24, 4
      %s580 = sadd.s32 %s579, 5
      %s581 = smul.u32 4, %s24
      %p582 = scmp.lt.s32.totalorder %s23, 1
      %s583 = scalar_select %p582, %s23, 1
      %p584 = scmp.lt.s32.totalorder %s581, 7
      %s585 = scalar_select %p584, %s581, 7
      %s586 = smul.addr %s585, 8
      %s587 = smul.addr %s583, 64
      %s588 = sadd.s32 %s586, %s587
      %s589 = smul.addr %s588, 4
      %s590 = scalar_lea.vmem %s8, %s589
      %s591 = smul.u32 4, %s24
      %v592 = vld [vmem:[%s514] sm:$0xf]
      %v593 = vld [vmem:[%s514 + $0x4] sm:$0x1]
      %v594 = vld [vmem:[%s514 + $0x8] sm:$0xf]
      %v595 = vld [vmem:[%s514 + $0xc] sm:$0x1]
      %v596 = vld [vmem:[%s514 + $0x10] sm:$0xf]
      %v597 = vld [vmem:[%s514 + $0x14] sm:$0x1]
      %v598 = vld [vmem:[%s514 + $0x18] sm:$0xf]
      %v599 = vld [vmem:[%s514 + $0x1c] sm:$0x1]
      %v600 = vld [vmem:[%s514 + $0x20] sm:$0xf]
      %v601 = vld [vmem:[%s514 + $0x24] sm:$0x1]
      %v602 = vld [vmem:[%s514 + $0x28] sm:$0xf]
      %v603 = vld [vmem:[%s514 + $0x2c] sm:$0x1]
      %v604 = vld [vmem:[%s514 + $0x30] sm:$0xf]
      %v605 = vld [vmem:[%s514 + $0x34] sm:$0x1]
      %v606 = vld [vmem:[%s514 + $0x38] sm:$0xf]
      %v607 = vld [vmem:[%s514 + $0x3c] sm:$0x1]
      %v608 = vld [vmem:[%s514 + $0x40] sm:$0xf]
      %v609 = vld [vmem:[%s514 + $0x44] sm:$0x1]
      %v610 = vld [vmem:[%s514 + $0x48] sm:$0xf]
      %v611 = vld [vmem:[%s514 + $0x4c] sm:$0x1]
      %v632 = vunpack.c.l.b16 %v592
      %v633 = vunpack.c.l.b16 %v593
      %v634 = vunpack.c.l.b16 %v594
      %v635 = vunpack.c.l.b16 %v595
      %v636 = vunpack.c.l.b16 %v596
      %v637 = vunpack.c.l.b16 %v597
      %v638 = vunpack.c.l.b16 %v598
      %v639 = vunpack.c.l.b16 %v599
      %v640 = vunpack.c.l.b16 %v600
      %v641 = vunpack.c.l.b16 %v601
      %v642 = vunpack.c.l.b16 %v602
      %v643 = vunpack.c.l.b16 %v603
      %v644 = vunpack.c.l.b16 %v604
      %v645 = vunpack.c.l.b16 %v605
      %v646 = vunpack.c.l.b16 %v606
      %v647 = vunpack.c.l.b16 %v607
      %v648 = vunpack.c.l.b16 %v608
      %v649 = vunpack.c.l.b16 %v609
      %v650 = vunpack.c.l.b16 %v610
      %v651 = vunpack.c.l.b16 %v611
      %v652 = vpack.c.b16 %v633, %v632
      %v653 = vpack.c.b16 %v635, %v634
      %v654 = vpack.c.b16 %v637, %v636
      %v655 = vpack.c.b16 %v639, %v638
      %v656 = vpack.c.b16 %v641, %v640
      %v657 = vpack.c.b16 %v643, %v642
      %v658 = vpack.c.b16 %v645, %v644
      %v659 = vpack.c.b16 %v647, %v646
      %v660 = vpack.c.b16 %v649, %v648
      %v661 = vpack.c.b16 %v651, %v650
      %v663 = vshrl.u32 %v652, 16
      %v665 = vshll.u32 %v652, 16
      %v667 = vrot.slane %v665, 1
      %v668 = vor.u32 %v663, %v667
      %v670 = vshrl.u32 %v653, 16
      %v672 = vshll.u32 %v653, 16
      %v674 = vrot.slane %v672, 1
      %v675 = vor.u32 %v670, %v674
      %v677 = vshrl.u32 %v654, 16
      %v679 = vshll.u32 %v654, 16
      %v681 = vrot.slane %v679, 1
      %v682 = vor.u32 %v677, %v681
      %v684 = vshrl.u32 %v655, 16
      %v686 = vshll.u32 %v655, 16
      %v688 = vrot.slane %v686, 1
      %v689 = vor.u32 %v684, %v688
      %v691 = vshrl.u32 %v656, 16
      %v693 = vshll.u32 %v656, 16
      %v695 = vrot.slane %v693, 1
      %v696 = vor.u32 %v691, %v695
      %v698 = vshrl.u32 %v657, 16
      %v700 = vshll.u32 %v657, 16
      %v702 = vrot.slane %v700, 1
      %v703 = vor.u32 %v698, %v702
      %v705 = vshrl.u32 %v658, 16
      %v707 = vshll.u32 %v658, 16
      %v709 = vrot.slane %v707, 1
      %v710 = vor.u32 %v705, %v709
      %v712 = vshrl.u32 %v659, 16
      %v714 = vshll.u32 %v659, 16
      %v716 = vrot.slane %v714, 1
      %v717 = vor.u32 %v712, %v716
      %v719 = vshrl.u32 %v660, 16
      %v721 = vshll.u32 %v660, 16
      %v723 = vrot.slane %v721, 1
      %v724 = vor.u32 %v719, %v723
      %v726 = vshrl.u32 %v661, 16
      %v728 = vshll.u32 %v661, 16
      %v730 = vrot.slane %v728, 1
      %v731 = vor.u32 %v726, %v730
      %v732 = vrot.slane %v652, 1
      %v733 = vrot.slane %v653, 1
      %v734 = vrot.slane %v654, 1
      %v735 = vrot.slane %v655, 1
      %v736 = vrot.slane %v656, 1
      %v737 = vrot.slane %v657, 1
      %v738 = vrot.slane %v658, 1
      %v739 = vrot.slane %v659, 1
      %v740 = vrot.slane %v660, 1
      %v741 = vrot.slane %v661, 1
      %v742 = vld [vmem:[%s526] sm:$0xf]
      %v743 = vld [vmem:[%s526 + $0x4] sm:$0x1]
      %v744 = vld [vmem:[%s526 + $0x8] sm:$0xf]
      %v745 = vld [vmem:[%s526 + $0xc] sm:$0x1]
      %v746 = vld [vmem:[%s526 + $0x10] sm:$0xf]
      %v747 = vld [vmem:[%s526 + $0x14] sm:$0x1]
      %v748 = vld [vmem:[%s526 + $0x18] sm:$0xf]
      %v749 = vld [vmem:[%s526 + $0x1c] sm:$0x1]
      %v750 = vld [vmem:[%s526 + $0x20] sm:$0xf]
      %v751 = vld [vmem:[%s526 + $0x24] sm:$0x1]
      %v752 = vld [vmem:[%s526 + $0x28] sm:$0xf]
      %v753 = vld [vmem:[%s526 + $0x2c] sm:$0x1]
      %v754 = vld [vmem:[%s526 + $0x30] sm:$0xf]
      %v755 = vld [vmem:[%s526 + $0x34] sm:$0x1]
      %v756 = vld [vmem:[%s526 + $0x38] sm:$0xf]
      %v757 = vld [vmem:[%s526 + $0x3c] sm:$0x1]
      %v758 = vld [vmem:[%s526 + $0x40] sm:$0xf]
      %v759 = vld [vmem:[%s526 + $0x44] sm:$0x1]
      %v760 = vld [vmem:[%s526 + $0x48] sm:$0xf]
      %v761 = vld [vmem:[%s526 + $0x4c] sm:$0x1]
      %v782 = vunpack.c.l.b16 %v742
      %v783 = vunpack.c.l.b16 %v743
      %v784 = vunpack.c.l.b16 %v744
      %v785 = vunpack.c.l.b16 %v745
      %v786 = vunpack.c.l.b16 %v746
      %v787 = vunpack.c.l.b16 %v747
      %v788 = vunpack.c.l.b16 %v748
      %v789 = vunpack.c.l.b16 %v749
      %v790 = vunpack.c.l.b16 %v750
      %v791 = vunpack.c.l.b16 %v751
      %v792 = vunpack.c.l.b16 %v752
      %v793 = vunpack.c.l.b16 %v753
      %v794 = vunpack.c.l.b16 %v754
      %v795 = vunpack.c.l.b16 %v755
      %v796 = vunpack.c.l.b16 %v756
      %v797 = vunpack.c.l.b16 %v757
      %v798 = vunpack.c.l.b16 %v758
      %v799 = vunpack.c.l.b16 %v759
      %v800 = vunpack.c.l.b16 %v760
      %v801 = vunpack.c.l.b16 %v761
      %v802 = vpack.c.b16 %v783, %v782
      %v803 = vpack.c.b16 %v785, %v784
      %v804 = vpack.c.b16 %v787, %v786
      %v805 = vpack.c.b16 %v789, %v788
      %v806 = vpack.c.b16 %v791, %v790
      %v807 = vpack.c.b16 %v793, %v792
      %v808 = vpack.c.b16 %v795, %v794
      %v809 = vpack.c.b16 %v797, %v796
      %v810 = vpack.c.b16 %v799, %v798
      %v811 = vpack.c.b16 %v801, %v800
      %v813 = vshrl.u32 %v802, 16
      %v815 = vshll.u32 %v802, 16
      %v817 = vrot.slane %v815, 1
      %v818 = vor.u32 %v813, %v817
      %v820 = vshrl.u32 %v803, 16
      %v822 = vshll.u32 %v803, 16
      %v824 = vrot.slane %v822, 1
      %v825 = vor.u32 %v820, %v824
      %v827 = vshrl.u32 %v804, 16
      %v829 = vshll.u32 %v804, 16
      %v831 = vrot.slane %v829, 1
      %v832 = vor.u32 %v827, %v831
      %v834 = vshrl.u32 %v805, 16
      %v836 = vshll.u32 %v805, 16
      %v838 = vrot.slane %v836, 1
      %v839 = vor.u32 %v834, %v838
      %v841 = vshrl.u32 %v806, 16
      %v843 = vshll.u32 %v806, 16
      %v845 = vrot.slane %v843, 1
      %v846 = vor.u32 %v841, %v845
      %v848 = vshrl.u32 %v807, 16
      %v850 = vshll.u32 %v807, 16
      %v852 = vrot.slane %v850, 1
      %v853 = vor.u32 %v848, %v852
      %v855 = vshrl.u32 %v808, 16
      %v857 = vshll.u32 %v808, 16
      %v859 = vrot.slane %v857, 1
      %v860 = vor.u32 %v855, %v859
      %v862 = vshrl.u32 %v809, 16
      %v864 = vshll.u32 %v809, 16
      %v866 = vrot.slane %v864, 1
      %v867 = vor.u32 %v862, %v866
      %v869 = vshrl.u32 %v810, 16
      %v871 = vshll.u32 %v810, 16
      %v873 = vrot.slane %v871, 1
      %v874 = vor.u32 %v869, %v873
      %v876 = vshrl.u32 %v811, 16
      %v878 = vshll.u32 %v811, 16
      %v880 = vrot.slane %v878, 1
      %v881 = vor.u32 %v876, %v880
      %v882 = vrot.slane %v802, 1
      %v883 = vrot.slane %v803, 1
      %v884 = vrot.slane %v804, 1
      %v885 = vrot.slane %v805, 1
      %v886 = vrot.slane %v806, 1
      %v887 = vrot.slane %v807, 1
      %v888 = vrot.slane %v808, 1
      %v889 = vrot.slane %v809, 1
      %v890 = vrot.slane %v810, 1
      %v891 = vrot.slane %v811, 1
      %v892 = vld [vmem:[%s539] sm:$0xf]
      %v893 = vld [vmem:[%s539 + $0x4] sm:$0x1]
      %v894 = vld [vmem:[%s539 + $0x8] sm:$0xf]
      %v895 = vld [vmem:[%s539 + $0xc] sm:$0x1]
      %v896 = vld [vmem:[%s539 + $0x10] sm:$0xf]
      %v897 = vld [vmem:[%s539 + $0x14] sm:$0x1]
      %v898 = vld [vmem:[%s539 + $0x18] sm:$0xf]
      %v899 = vld [vmem:[%s539 + $0x1c] sm:$0x1]
      %v900 = vld [vmem:[%s539 + $0x20] sm:$0xf]
      %v901 = vld [vmem:[%s539 + $0x24] sm:$0x1]
      %v902 = vld [vmem:[%s539 + $0x28] sm:$0xf]
      %v903 = vld [vmem:[%s539 + $0x2c] sm:$0x1]
      %v904 = vld [vmem:[%s539 + $0x30] sm:$0xf]
      %v905 = vld [vmem:[%s539 + $0x34] sm:$0x1]
      %v906 = vld [vmem:[%s539 + $0x38] sm:$0xf]
      %v907 = vld [vmem:[%s539 + $0x3c] sm:$0x1]
      %v908 = vld [vmem:[%s539 + $0x40] sm:$0xf]
      %v909 = vld [vmem:[%s539 + $0x44] sm:$0x1]
      %v910 = vld [vmem:[%s539 + $0x48] sm:$0xf]
      %v911 = vld [vmem:[%s539 + $0x4c] sm:$0x1]
      %v932 = vunpack.c.l.b16 %v892
      %v933 = vunpack.c.l.b16 %v893
      %v934 = vunpack.c.l.b16 %v894
      %v935 = vunpack.c.l.b16 %v895
      %v936 = vunpack.c.l.b16 %v896
      %v937 = vunpack.c.l.b16 %v897
      %v938 = vunpack.c.l.b16 %v898
      %v939 = vunpack.c.l.b16 %v899
      %v940 = vunpack.c.l.b16 %v900
      %v941 = vunpack.c.l.b16 %v901
      %v942 = vunpack.c.l.b16 %v902
      %v943 = vunpack.c.l.b16 %v903
      %v944 = vunpack.c.l.b16 %v904
      %v945 = vunpack.c.l.b16 %v905
      %v946 = vunpack.c.l.b16 %v906
      %v947 = vunpack.c.l.b16 %v907
      %v948 = vunpack.c.l.b16 %v908
      %v949 = vunpack.c.l.b16 %v909
      %v950 = vunpack.c.l.b16 %v910
      %v951 = vunpack.c.l.b16 %v911
      %v952 = vpack.c.b16 %v933, %v932
      %v953 = vpack.c.b16 %v935, %v934
      %v954 = vpack.c.b16 %v937, %v936
      %v955 = vpack.c.b16 %v939, %v938
      %v956 = vpack.c.b16 %v941, %v940
      %v957 = vpack.c.b16 %v943, %v942
      %v958 = vpack.c.b16 %v945, %v944
      %v959 = vpack.c.b16 %v947, %v946
      %v960 = vpack.c.b16 %v949, %v948
      %v961 = vpack.c.b16 %v951, %v950
      %v963 = vshrl.u32 %v952, 16
      %v965 = vshll.u32 %v952, 16
      %v967 = vrot.slane %v965, 1
      %v968 = vor.u32 %v963, %v967
      %v970 = vshrl.u32 %v953, 16
      %v972 = vshll.u32 %v953, 16
      %v974 = vrot.slane %v972, 1
      %v975 = vor.u32 %v970, %v974
      %v977 = vshrl.u32 %v954, 16
      %v979 = vshll.u32 %v954, 16
      %v981 = vrot.slane %v979, 1
      %v982 = vor.u32 %v977, %v981
      %v984 = vshrl.u32 %v955, 16
      %v986 = vshll.u32 %v955, 16
      %v988 = vrot.slane %v986, 1
      %v989 = vor.u32 %v984, %v988
      %v991 = vshrl.u32 %v956, 16
      %v993 = vshll.u32 %v956, 16
      %v995 = vrot.slane %v993, 1
      %v996 = vor.u32 %v991, %v995
      %v998 = vshrl.u32 %v957, 16
      %v1000 = vshll.u32 %v957, 16
      %v1002 = vrot.slane %v1000, 1
      %v1003 = vor.u32 %v998, %v1002
      %v1005 = vshrl.u32 %v958, 16
      %v1007 = vshll.u32 %v958, 16
      %v1009 = vrot.slane %v1007, 1
      %v1010 = vor.u32 %v1005, %v1009
      %v1012 = vshrl.u32 %v959, 16
      %v1014 = vshll.u32 %v959, 16
      %v1016 = vrot.slane %v1014, 1
      %v1017 = vor.u32 %v1012, %v1016
      %v1019 = vshrl.u32 %v960, 16
      %v1021 = vshll.u32 %v960, 16
      %v1023 = vrot.slane %v1021, 1
      %v1024 = vor.u32 %v1019, %v1023
      %v1026 = vshrl.u32 %v961, 16
      %v1028 = vshll.u32 %v961, 16
      %v1030 = vrot.slane %v1028, 1
      %v1031 = vor.u32 %v1026, %v1030
      %v1032 = vrot.slane %v952, 1
      %v1033 = vrot.slane %v953, 1
      %v1034 = vrot.slane %v954, 1
      %v1035 = vrot.slane %v955, 1
      %v1036 = vrot.slane %v956, 1
      %v1037 = vrot.slane %v957, 1
      %v1038 = vrot.slane %v958, 1
      %v1039 = vrot.slane %v959, 1
      %v1040 = vrot.slane %v960, 1
      %v1041 = vrot.slane %v961, 1
      %v1042 = vld [vmem:[%s552] sm:$0xf]
      %v1043 = vld [vmem:[%s552 + $0x4] sm:$0x1]
      %v1044 = vld [vmem:[%s552 + $0x8] sm:$0xf]
      %v1045 = vld [vmem:[%s552 + $0xc] sm:$0x1]
      %v1046 = vld [vmem:[%s552 + $0x10] sm:$0xf]
      %v1047 = vld [vmem:[%s552 + $0x14] sm:$0x1]
      %v1048 = vld [vmem:[%s552 + $0x18] sm:$0xf]
      %v1049 = vld [vmem:[%s552 + $0x1c] sm:$0x1]
      %v1050 = vld [vmem:[%s552 + $0x20] sm:$0xf]
      %v1051 = vld [vmem:[%s552 + $0x24] sm:$0x1]
      %v1052 = vld [vmem:[%s552 + $0x28] sm:$0xf]
      %v1053 = vld [vmem:[%s552 + $0x2c] sm:$0x1]
      %v1054 = vld [vmem:[%s552 + $0x30] sm:$0xf]
      %v1055 = vld [vmem:[%s552 + $0x34] sm:$0x1]
      %v1056 = vld [vmem:[%s552 + $0x38] sm:$0xf]
      %v1057 = vld [vmem:[%s552 + $0x3c] sm:$0x1]
      %v1058 = vld [vmem:[%s552 + $0x40] sm:$0xf]
      %v1059 = vld [vmem:[%s552 + $0x44] sm:$0x1]
      %v1060 = vld [vmem:[%s552 + $0x48] sm:$0xf]
      %v1061 = vld [vmem:[%s552 + $0x4c] sm:$0x1]
      %v1082 = vunpack.c.l.b16 %v1042
      %v1083 = vunpack.c.l.b16 %v1043
      %v1084 = vunpack.c.l.b16 %v1044
      %v1085 = vunpack.c.l.b16 %v1045
      %v1086 = vunpack.c.l.b16 %v1046
      %v1087 = vunpack.c.l.b16 %v1047
      %v1088 = vunpack.c.l.b16 %v1048
      %v1089 = vunpack.c.l.b16 %v1049
      %v1090 = vunpack.c.l.b16 %v1050
      %v1091 = vunpack.c.l.b16 %v1051
      %v1092 = vunpack.c.l.b16 %v1052
      %v1093 = vunpack.c.l.b16 %v1053
      %v1094 = vunpack.c.l.b16 %v1054
      %v1095 = vunpack.c.l.b16 %v1055
      %v1096 = vunpack.c.l.b16 %v1056
      %v1097 = vunpack.c.l.b16 %v1057
      %v1098 = vunpack.c.l.b16 %v1058
      %v1099 = vunpack.c.l.b16 %v1059
      %v1100 = vunpack.c.l.b16 %v1060
      %v1101 = vunpack.c.l.b16 %v1061
      %v1102 = vpack.c.b16 %v1083, %v1082
      %v1103 = vpack.c.b16 %v1085, %v1084
      %v1104 = vpack.c.b16 %v1087, %v1086
      %v1105 = vpack.c.b16 %v1089, %v1088
      %v1106 = vpack.c.b16 %v1091, %v1090
      %v1107 = vpack.c.b16 %v1093, %v1092
      %v1108 = vpack.c.b16 %v1095, %v1094
      %v1109 = vpack.c.b16 %v1097, %v1096
      %v1110 = vpack.c.b16 %v1099, %v1098
      %v1111 = vpack.c.b16 %v1101, %v1100
      %v1113 = vshrl.u32 %v1102, 16
      %v1115 = vshll.u32 %v1102, 16
      %v1117 = vrot.slane %v1115, 1
      %v1118 = vor.u32 %v1113, %v1117
      %v1120 = vshrl.u32 %v1103, 16
      %v1122 = vshll.u32 %v1103, 16
      %v1124 = vrot.slane %v1122, 1
      %v1125 = vor.u32 %v1120, %v1124
      %v1127 = vshrl.u32 %v1104, 16
      %v1129 = vshll.u32 %v1104, 16
      %v1131 = vrot.slane %v1129, 1
      %v1132 = vor.u32 %v1127, %v1131
      %v1134 = vshrl.u32 %v1105, 16
      %v1136 = vshll.u32 %v1105, 16
      %v1138 = vrot.slane %v1136, 1
      %v1139 = vor.u32 %v1134, %v1138
      %v1141 = vshrl.u32 %v1106, 16
      %v1143 = vshll.u32 %v1106, 16
      %v1145 = vrot.slane %v1143, 1
      %v1146 = vor.u32 %v1141, %v1145
      %v1148 = vshrl.u32 %v1107, 16
      %v1150 = vshll.u32 %v1107, 16
      %v1152 = vrot.slane %v1150, 1
      %v1153 = vor.u32 %v1148, %v1152
      %v1155 = vshrl.u32 %v1108, 16
      %v1157 = vshll.u32 %v1108, 16
      %v1159 = vrot.slane %v1157, 1
      %v1160 = vor.u32 %v1155, %v1159
      %v1162 = vshrl.u32 %v1109, 16
      %v1164 = vshll.u32 %v1109, 16
      %v1166 = vrot.slane %v1164, 1
      %v1167 = vor.u32 %v1162, %v1166
      %v1169 = vshrl.u32 %v1110, 16
      %v1171 = vshll.u32 %v1110, 16
      %v1173 = vrot.slane %v1171, 1
      %v1174 = vor.u32 %v1169, %v1173
      %v1176 = vshrl.u32 %v1111, 16
      %v1178 = vshll.u32 %v1111, 16
      %v1180 = vrot.slane %v1178, 1
      %v1181 = vor.u32 %v1176, %v1180
      %v1182 = vrot.slane %v1102, 1
      %v1183 = vrot.slane %v1103, 1
      %v1184 = vrot.slane %v1104, 1
      %v1185 = vrot.slane %v1105, 1
      %v1186 = vrot.slane %v1106, 1
      %v1187 = vrot.slane %v1107, 1
      %v1188 = vrot.slane %v1108, 1
      %v1189 = vrot.slane %v1109, 1
      %v1190 = vrot.slane %v1110, 1
      %v1191 = vrot.slane %v1111, 1
      %v1192 = vld [vmem:[%s565] sm:$0xf]
      %v1193 = vld [vmem:[%s565 + $0x4] sm:$0x1]
      %v1194 = vld [vmem:[%s565 + $0x8] sm:$0xf]
      %v1195 = vld [vmem:[%s565 + $0xc] sm:$0x1]
      %v1196 = vld [vmem:[%s565 + $0x10] sm:$0xf]
      %v1197 = vld [vmem:[%s565 + $0x14] sm:$0x1]
      %v1198 = vld [vmem:[%s565 + $0x18] sm:$0xf]
      %v1199 = vld [vmem:[%s565 + $0x1c] sm:$0x1]
      %v1200 = vld [vmem:[%s565 + $0x20] sm:$0xf]
      %v1201 = vld [vmem:[%s565 + $0x24] sm:$0x1]
      %v1202 = vld [vmem:[%s565 + $0x28] sm:$0xf]
      %v1203 = vld [vmem:[%s565 + $0x2c] sm:$0x1]
      %v1204 = vld [vmem:[%s565 + $0x30] sm:$0xf]
      %v1205 = vld [vmem:[%s565 + $0x34] sm:$0x1]
      %v1206 = vld [vmem:[%s565 + $0x38] sm:$0xf]
      %v1207 = vld [vmem:[%s565 + $0x3c] sm:$0x1]
      %v1208 = vld [vmem:[%s565 + $0x40] sm:$0xf]
      %v1209 = vld [vmem:[%s565 + $0x44] sm:$0x1]
      %v1210 = vld [vmem:[%s565 + $0x48] sm:$0xf]
      %v1211 = vld [vmem:[%s565 + $0x4c] sm:$0x1]
      %v1232 = vunpack.c.l.b16 %v1192
      %v1233 = vunpack.c.l.b16 %v1193
      %v1234 = vunpack.c.l.b16 %v1194
      %v1235 = vunpack.c.l.b16 %v1195
      %v1236 = vunpack.c.l.b16 %v1196
      %v1237 = vunpack.c.l.b16 %v1197
      %v1238 = vunpack.c.l.b16 %v1198
      %v1239 = vunpack.c.l.b16 %v1199
      %v1240 = vunpack.c.l.b16 %v1200
      %v1241 = vunpack.c.l.b16 %v1201
      %v1242 = vunpack.c.l.b16 %v1202
      %v1243 = vunpack.c.l.b16 %v1203
      %v1244 = vunpack.c.l.b16 %v1204
      %v1245 = vunpack.c.l.b16 %v1205
      %v1246 = vunpack.c.l.b16 %v1206
      %v1247 = vunpack.c.l.b16 %v1207
      %v1248 = vunpack.c.l.b16 %v1208
      %v1249 = vunpack.c.l.b16 %v1209
      %v1250 = vunpack.c.l.b16 %v1210
      %v1251 = vunpack.c.l.b16 %v1211
      %v1252 = vpack.c.b16 %v1233, %v1232
      %v1253 = vpack.c.b16 %v1235, %v1234
      %v1254 = vpack.c.b16 %v1237, %v1236
      %v1255 = vpack.c.b16 %v1239, %v1238
      %v1256 = vpack.c.b16 %v1241, %v1240
      %v1257 = vpack.c.b16 %v1243, %v1242
      %v1258 = vpack.c.b16 %v1245, %v1244
      %v1259 = vpack.c.b16 %v1247, %v1246
      %v1260 = vpack.c.b16 %v1249, %v1248
      %v1261 = vpack.c.b16 %v1251, %v1250
      %v1263 = vshrl.u32 %v1252, 16
      %v1265 = vshll.u32 %v1252, 16
      %v1267 = vrot.slane %v1265, 1
      %v1268 = vor.u32 %v1263, %v1267
      %v1270 = vshrl.u32 %v1253, 16
      %v1272 = vshll.u32 %v1253, 16
      %v1274 = vrot.slane %v1272, 1
      %v1275 = vor.u32 %v1270, %v1274
      %v1277 = vshrl.u32 %v1254, 16
      %v1279 = vshll.u32 %v1254, 16
      %v1281 = vrot.slane %v1279, 1
      %v1282 = vor.u32 %v1277, %v1281
      %v1284 = vshrl.u32 %v1255, 16
      %v1286 = vshll.u32 %v1255, 16
      %v1288 = vrot.slane %v1286, 1
      %v1289 = vor.u32 %v1284, %v1288
      %v1291 = vshrl.u32 %v1256, 16
      %v1293 = vshll.u32 %v1256, 16
      %v1295 = vrot.slane %v1293, 1
      %v1296 = vor.u32 %v1291, %v1295
      %v1298 = vshrl.u32 %v1257, 16
      %v1300 = vshll.u32 %v1257, 16
      %v1302 = vrot.slane %v1300, 1
      %v1303 = vor.u32 %v1298, %v1302
      %v1305 = vshrl.u32 %v1258, 16
      %v1307 = vshll.u32 %v1258, 16
      %v1309 = vrot.slane %v1307, 1
      %v1310 = vor.u32 %v1305, %v1309
      %v1312 = vshrl.u32 %v1259, 16
      %v1314 = vshll.u32 %v1259, 16
      %v1316 = vrot.slane %v1314, 1
      %v1317 = vor.u32 %v1312, %v1316
      %v1319 = vshrl.u32 %v1260, 16
      %v1321 = vshll.u32 %v1260, 16
      %v1323 = vrot.slane %v1321, 1
      %v1324 = vor.u32 %v1319, %v1323
      %v1326 = vshrl.u32 %v1261, 16
      %v1328 = vshll.u32 %v1261, 16
      %v1330 = vrot.slane %v1328, 1
      %v1331 = vor.u32 %v1326, %v1330
      %v1332 = vrot.slane %v1252, 1
      %v1333 = vrot.slane %v1253, 1
      %v1334 = vrot.slane %v1254, 1
      %v1335 = vrot.slane %v1255, 1
      %v1336 = vrot.slane %v1256, 1
      %v1337 = vrot.slane %v1257, 1
      %v1338 = vrot.slane %v1258, 1
      %v1339 = vrot.slane %v1259, 1
      %v1340 = vrot.slane %v1260, 1
      %v1341 = vrot.slane %v1261, 1
      %v1342 = vld [vmem:[%s578] sm:$0xf]
      %v1343 = vld [vmem:[%s578 + $0x4] sm:$0x1]
      %v1344 = vld [vmem:[%s578 + $0x8] sm:$0xf]
      %v1345 = vld [vmem:[%s578 + $0xc] sm:$0x1]
      %v1346 = vld [vmem:[%s578 + $0x10] sm:$0xf]
      %v1347 = vld [vmem:[%s578 + $0x14] sm:$0x1]
      %v1348 = vld [vmem:[%s578 + $0x18] sm:$0xf]
      %v1349 = vld [vmem:[%s578 + $0x1c] sm:$0x1]
      %v1350 = vld [vmem:[%s578 + $0x20] sm:$0xf]
      %v1351 = vld [vmem:[%s578 + $0x24] sm:$0x1]
      %v1352 = vld [vmem:[%s578 + $0x28] sm:$0xf]
      %v1353 = vld [vmem:[%s578 + $0x2c] sm:$0x1]
      %v1354 = vld [vmem:[%s578 + $0x30] sm:$0xf]
      %v1355 = vld [vmem:[%s578 + $0x34] sm:$0x1]
      %v1356 = vld [vmem:[%s578 + $0x38] sm:$0xf]
      %v1357 = vld [vmem:[%s578 + $0x3c] sm:$0x1]
      %v1358 = vld [vmem:[%s578 + $0x40] sm:$0xf]
      %v1359 = vld [vmem:[%s578 + $0x44] sm:$0x1]
      %v1360 = vld [vmem:[%s578 + $0x48] sm:$0xf]
      %v1361 = vld [vmem:[%s578 + $0x4c] sm:$0x1]
      %v1382 = vunpack.c.l.b16 %v1342
      %v1383 = vunpack.c.l.b16 %v1343
      %v1384 = vunpack.c.l.b16 %v1344
      %v1385 = vunpack.c.l.b16 %v1345
      %v1386 = vunpack.c.l.b16 %v1346
      %v1387 = vunpack.c.l.b16 %v1347
      %v1388 = vunpack.c.l.b16 %v1348
      %v1389 = vunpack.c.l.b16 %v1349
      %v1390 = vunpack.c.l.b16 %v1350
      %v1391 = vunpack.c.l.b16 %v1351
      %v1392 = vunpack.c.l.b16 %v1352
      %v1393 = vunpack.c.l.b16 %v1353
      %v1394 = vunpack.c.l.b16 %v1354
      %v1395 = vunpack.c.l.b16 %v1355
      %v1396 = vunpack.c.l.b16 %v1356
      %v1397 = vunpack.c.l.b16 %v1357
      %v1398 = vunpack.c.l.b16 %v1358
      %v1399 = vunpack.c.l.b16 %v1359
      %v1400 = vunpack.c.l.b16 %v1360
      %v1401 = vunpack.c.l.b16 %v1361
      %v1402 = vpack.c.b16 %v1383, %v1382
      %v1403 = vpack.c.b16 %v1385, %v1384
      %v1404 = vpack.c.b16 %v1387, %v1386
      %v1405 = vpack.c.b16 %v1389, %v1388
      %v1406 = vpack.c.b16 %v1391, %v1390
      %v1407 = vpack.c.b16 %v1393, %v1392
      %v1408 = vpack.c.b16 %v1395, %v1394
      %v1409 = vpack.c.b16 %v1397, %v1396
      %v1410 = vpack.c.b16 %v1399, %v1398
      %v1411 = vpack.c.b16 %v1401, %v1400
      %v1413 = vshrl.u32 %v1402, 16
      %v1415 = vshll.u32 %v1402, 16
      %v1417 = vrot.slane %v1415, 1
      %v1418 = vor.u32 %v1413, %v1417
      %v1420 = vshrl.u32 %v1403, 16
      %v1422 = vshll.u32 %v1403, 16
      %v1424 = vrot.slane %v1422, 1
      %v1425 = vor.u32 %v1420, %v1424
      %v1427 = vshrl.u32 %v1404, 16
      %v1429 = vshll.u32 %v1404, 16
      %v1431 = vrot.slane %v1429, 1
      %v1432 = vor.u32 %v1427, %v1431
      %v1434 = vshrl.u32 %v1405, 16
      %v1436 = vshll.u32 %v1405, 16
      %v1438 = vrot.slane %v1436, 1
      %v1439 = vor.u32 %v1434, %v1438
      %v1441 = vshrl.u32 %v1406, 16
      %v1443 = vshll.u32 %v1406, 16
      %v1445 = vrot.slane %v1443, 1
      %v1446 = vor.u32 %v1441, %v1445
      %v1448 = vshrl.u32 %v1407, 16
      %v1450 = vshll.u32 %v1407, 16
      %v1452 = vrot.slane %v1450, 1
      %v1453 = vor.u32 %v1448, %v1452
      %v1455 = vshrl.u32 %v1408, 16
      %v1457 = vshll.u32 %v1408, 16
      %v1459 = vrot.slane %v1457, 1
      %v1460 = vor.u32 %v1455, %v1459
      %v1462 = vshrl.u32 %v1409, 16
      %v1464 = vshll.u32 %v1409, 16
      %v1466 = vrot.slane %v1464, 1
      %v1467 = vor.u32 %v1462, %v1466
      %v1469 = vshrl.u32 %v1410, 16
      %v1471 = vshll.u32 %v1410, 16
      %v1473 = vrot.slane %v1471, 1
      %v1474 = vor.u32 %v1469, %v1473
      %v1476 = vshrl.u32 %v1411, 16
      %v1478 = vshll.u32 %v1411, 16
      %v1480 = vrot.slane %v1478, 1
      %v1481 = vor.u32 %v1476, %v1480
      %v1482 = vrot.slane %v1402, 1
      %v1483 = vrot.slane %v1403, 1
      %v1484 = vrot.slane %v1404, 1
      %v1485 = vrot.slane %v1405, 1
      %v1486 = vrot.slane %v1406, 1
      %v1487 = vrot.slane %v1407, 1
      %v1488 = vrot.slane %v1408, 1
      %v1489 = vrot.slane %v1409, 1
      %v1490 = vrot.slane %v1410, 1
      %v1491 = vrot.slane %v1411, 1
      %v1492 = vld [vmem:[%s7] sm:$0x1]
      %v1493 = vld [vmem:[%s6] sm:$0xf]
      %v1494 = vld [vmem:[%s6 + $0x4] sm:$0xf]
      %v1495 = vld [vmem:[%s6 + $0x8] sm:$0xf]
      %v1496 = vld [vmem:[%s6 + $0xc] sm:$0xf]
      %v1497 = vld [vmem:[%s6 + $0x10] sm:$0xf]
      %v1498 = vld [vmem:[%s6 + $0x14] sm:$0xf]
      %v1499 = vld [vmem:[%s6 + $0x18] sm:$0xf]
      %v1500 = vld [vmem:[%s6 + $0x1c] sm:$0xf]
      %v1501 = vld [vmem:[%s6 + $0x20] sm:$0xf]
      %v1502 = vld [vmem:[%s6 + $0x24] sm:$0xf]
      %v1503 = vld [vmem:[%s6 + $0x28] sm:$0xf]
      %v1504 = vld [vmem:[%s6 + $0x2c] sm:$0xf]
      %v1505 = vld [vmem:[%s6 + $0x30] sm:$0xf]
      %v1506 = vld [vmem:[%s6 + $0x34] sm:$0xf]
      %v1507 = vld [vmem:[%s6 + $0x38] sm:$0xf]
      %v1508 = vld [vmem:[%s6 + $0x3c] sm:$0xf]
      %v1509 = vld [vmem:[%s6 + $0x40] sm:$0xf]
      %v1510 = vld [vmem:[%s6 + $0x44] sm:$0xf]
      %v1511 = vld [vmem:[%s6 + $0x48] sm:$0xf]
      %v1512 = vld [vmem:[%s6 + $0x4c] sm:$0xf]
      %v1513 = vld [vmem:[%s6 + $0x50] sm:$0xf]
      %v1514 = vld [vmem:[%s6 + $0x54] sm:$0xf]
      %v1515 = vld [vmem:[%s6 + $0x58] sm:$0xf]
      %v1516 = vld [vmem:[%s6 + $0x5c] sm:$0xf]
      %v1517 = vld [vmem:[%s6 + $0x60] sm:$0xf]
      %v1518 = vld [vmem:[%s6 + $0x64] sm:$0xf]
      %v1519 = vld [vmem:[%s6 + $0x68] sm:$0xf]
      %v1520 = vld [vmem:[%s6 + $0x6c] sm:$0xf]
      %v1521 = vld [vmem:[%s6 + $0x70] sm:$0xf]
      %v1522 = vld [vmem:[%s6 + $0x74] sm:$0xf]
      %v1523 = vld [vmem:[%s6 + $0x78] sm:$0xf]
      %v1524 = vld [vmem:[%s6 + $0x7c] sm:$0xf]
      %v1525 = vld [vmem:[%s6 + $0x80] sm:$0xf]
      %v1526 = vld [vmem:[%s6 + $0x84] sm:$0xf]
      %v1527 = vld [vmem:[%s6 + $0x88] sm:$0xf]
      %v1528 = vld [vmem:[%s6 + $0x8c] sm:$0xf]
      %v1529 = vld [vmem:[%s6 + $0x90] sm:$0xf]
      %v1530 = vld [vmem:[%s6 + $0x94] sm:$0xf]
      %v1531 = vld [vmem:[%s6 + $0x98] sm:$0xf]
      %v1532 = vld [vmem:[%s6 + $0x9c] sm:$0xf]
      %v1533 = vld [vmem:[%s6 + $0xa0] sm:$0xf]
      %v1534 = vld [vmem:[%s6 + $0xa4] sm:$0xf]
      %v1535 = vld [vmem:[%s6 + $0xa8] sm:$0xf]
      %v1536 = vld [vmem:[%s6 + $0xac] sm:$0xf]
      %v1537 = vld [vmem:[%s6 + $0xb0] sm:$0xf]
      %v1538 = vld [vmem:[%s6 + $0xb4] sm:$0xf]
      %v1539 = vld [vmem:[%s6 + $0xb8] sm:$0xf]
      %v1540 = vld [vmem:[%s6 + $0xbc] sm:$0xf]
      %v1541 = vld [vmem:[%s6 + $0xc0] sm:$0xf]
      %v1542 = vld [vmem:[%s6 + $0xc4] sm:$0xf]
      %v1543 = vld [vmem:[%s6 + $0xc8] sm:$0xf]
      %v1544 = vld [vmem:[%s6 + $0xcc] sm:$0xf]
      %v1545 = vld [vmem:[%s6 + $0xd0] sm:$0xf]
      %v1546 = vld [vmem:[%s6 + $0xd4] sm:$0xf]
      %v1547 = vld [vmem:[%s6 + $0xd8] sm:$0xf]
      %v1548 = vld [vmem:[%s6 + $0xdc] sm:$0xf]
      %v1549 = vld [vmem:[%s6 + $0xe0] sm:$0xf]
      %v1550 = vld [vmem:[%s6 + $0xe4] sm:$0xf]
      %v1551 = vld [vmem:[%s6 + $0xe8] sm:$0xf]
      %v1552 = vld [vmem:[%s6 + $0xec] sm:$0xf]
      %v1553 = vld [vmem:[%s6 + $0xf0] sm:$0xf]
      %v1554 = vld [vmem:[%s6 + $0xf4] sm:$0xf]
      %v1555 = vld [vmem:[%s6 + $0xf8] sm:$0xf]
      %v1556 = vld [vmem:[%s6 + $0xfc] sm:$0xf]
      %v1557 = vld [vmem:[%s6 + $0x100] sm:$0xf]
      %v1558 = vld [vmem:[%s6 + $0x104] sm:$0xf]
      %v1559 = vld [vmem:[%s6 + $0x108] sm:$0xf]
      %v1560 = vld [vmem:[%s6 + $0x10c] sm:$0xf]
      %v1561 = vld [vmem:[%s6 + $0x110] sm:$0xf]
      %v1562 = vld [vmem:[%s6 + $0x114] sm:$0xf]
      %v1563 = vld [vmem:[%s6 + $0x118] sm:$0xf]
      %v1564 = vld [vmem:[%s6 + $0x11c] sm:$0xf]
      %v1565 = vld [vmem:[%s6 + $0x120] sm:$0xf]
      %v1566 = vld [vmem:[%s6 + $0x124] sm:$0xf]
      %v1567 = vld [vmem:[%s6 + $0x128] sm:$0xf]
      %v1568 = vld [vmem:[%s6 + $0x12c] sm:$0xf]
      %v1569 = vld [vmem:[%s6 + $0x130] sm:$0xf]
      %v1570 = vld [vmem:[%s6 + $0x134] sm:$0xf]
      %v1571 = vld [vmem:[%s6 + $0x138] sm:$0xf]
      %v1572 = vld [vmem:[%s6 + $0x13c] sm:$0xf]
      %v1573 = vld [vmem:[%s6 + $0x140] sm:$0xf]
      %v1574 = vld [vmem:[%s6 + $0x144] sm:$0xf]
      %v1575 = vld [vmem:[%s6 + $0x148] sm:$0xf]
      %v1576 = vld [vmem:[%s6 + $0x14c] sm:$0xf]
      %v1577 = vld [vmem:[%s6 + $0x150] sm:$0xf]
      %v1578 = vld [vmem:[%s6 + $0x154] sm:$0xf]
      %v1579 = vld [vmem:[%s6 + $0x158] sm:$0xf]
      %v1580 = vld [vmem:[%s6 + $0x15c] sm:$0xf]
      %v1581 = vld [vmem:[%s6 + $0x160] sm:$0xf]
      %v1582 = vld [vmem:[%s6 + $0x164] sm:$0xf]
      %v1583 = vld [vmem:[%s6 + $0x168] sm:$0xf]
      %v1584 = vld [vmem:[%s6 + $0x16c] sm:$0xf]
      %v1585 = vld [vmem:[%s6 + $0x170] sm:$0xf]
      %v1586 = vld [vmem:[%s6 + $0x174] sm:$0xf]
      %v1587 = vld [vmem:[%s6 + $0x178] sm:$0xf]
      %v1588 = vld [vmem:[%s6 + $0x17c] sm:$0xf]
      %v1589 = vld [vmem:[%s6 + $0x180] sm:$0xf]
      %v1590 = vld [vmem:[%s6 + $0x184] sm:$0xf]
      %v1591 = vld [vmem:[%s6 + $0x188] sm:$0xf]
      %v1592 = vld [vmem:[%s6 + $0x18c] sm:$0xf]
      %v1593 = vld [vmem:[%s6 + $0x190] sm:$0xf]
      %v1594 = vld [vmem:[%s6 + $0x194] sm:$0xf]
      %v1595 = vld [vmem:[%s6 + $0x198] sm:$0xf]
      %v1596 = vld [vmem:[%s6 + $0x19c] sm:$0xf]
      %v1597 = vld [vmem:[%s6 + $0x1a0] sm:$0xf]
      %v1598 = vld [vmem:[%s6 + $0x1a4] sm:$0xf]
      %v1599 = vld [vmem:[%s6 + $0x1a8] sm:$0xf]
      %v1600 = vld [vmem:[%s6 + $0x1ac] sm:$0xf]
      %v1601 = vld [vmem:[%s6 + $0x1b0] sm:$0xf]
      %v1602 = vld [vmem:[%s6 + $0x1b4] sm:$0xf]
      %v1603 = vld [vmem:[%s6 + $0x1b8] sm:$0xf]
      %v1604 = vld [vmem:[%s6 + $0x1bc] sm:$0xf]
      %v1605 = vld [vmem:[%s6 + $0x1c0] sm:$0xf]
      %v1606 = vld [vmem:[%s6 + $0x1c4] sm:$0xf]
      %v1607 = vld [vmem:[%s6 + $0x1c8] sm:$0xf]
      %v1608 = vld [vmem:[%s6 + $0x1cc] sm:$0xf]
      %v1609 = vld [vmem:[%s6 + $0x1d0] sm:$0xf]
      %v1610 = vld [vmem:[%s6 + $0x1d4] sm:$0xf]
      %v1611 = vld [vmem:[%s6 + $0x1d8] sm:$0xf]
      %v1612 = vld [vmem:[%s6 + $0x1dc] sm:$0xf]
      %v1613 = vld [vmem:[%s6 + $0x1e0] sm:$0xf]
      %v1614 = vld [vmem:[%s6 + $0x1e4] sm:$0xf]
      %v1615 = vld [vmem:[%s6 + $0x1e8] sm:$0xf]
      %v1616 = vld [vmem:[%s6 + $0x1ec] sm:$0xf]
      %v1617 = vld [vmem:[%s6 + $0x1f0] sm:$0xf]
      %v1618 = vld [vmem:[%s6 + $0x1f4] sm:$0xf]
      %v1619 = vld [vmem:[%s6 + $0x1f8] sm:$0xf]
      %v1620 = vld [vmem:[%s6 + $0x1fc] sm:$0xf]
      %v1621 = vld [vmem:[%s6 + $0x200] sm:$0xf]
      %v1622 = vld [vmem:[%s6 + $0x204] sm:$0xf]
      %v1623 = vld [vmem:[%s6 + $0x208] sm:$0xf]
      %v1624 = vld [vmem:[%s6 + $0x20c] sm:$0xf]
      %v1625 = vld [vmem:[%s6 + $0x210] sm:$0xf]
      %v1626 = vld [vmem:[%s6 + $0x214] sm:$0xf]
      %v1627 = vld [vmem:[%s6 + $0x218] sm:$0xf]
      %v1628 = vld [vmem:[%s6 + $0x21c] sm:$0xf]
      %v1629 = vld [vmem:[%s6 + $0x220] sm:$0xf]
      %v1630 = vld [vmem:[%s6 + $0x224] sm:$0xf]
      %v1631 = vld [vmem:[%s6 + $0x228] sm:$0xf]
      %v1632 = vld [vmem:[%s6 + $0x22c] sm:$0xf]
      %v1633 = vld [vmem:[%s6 + $0x230] sm:$0xf]
      %v1634 = vld [vmem:[%s6 + $0x234] sm:$0xf]
      %v1635 = vld [vmem:[%s6 + $0x238] sm:$0xf]
      %v1636 = vld [vmem:[%s6 + $0x23c] sm:$0xf]
      %v1637 = vunpack.c.l.b16 %v668
      %v1638 = vunpack.c.l.b16 %v732
      %v1639 = vunpack.c.l.b16 %v675
      %v1640 = vunpack.c.l.b16 %v733
      %v1641 = vunpack.c.l.b16 %v682
      %v1642 = vunpack.c.l.b16 %v734
      %v1643 = vunpack.c.l.b16 %v689
      %v1644 = vunpack.c.l.b16 %v735
      %v1645 = vunpack.c.l.b16 %v696
      %v1646 = vunpack.c.l.b16 %v736
      %v1647 = vunpack.c.l.b16 %v703
      %v1648 = vunpack.c.l.b16 %v737
      %v1649 = vunpack.c.l.b16 %v710
      %v1650 = vunpack.c.l.b16 %v738
      %v1651 = vunpack.c.l.b16 %v717
      %v1652 = vunpack.c.l.b16 %v739
      %v1653 = vunpack.c.l.b16 %v724
      %v1654 = vunpack.c.l.b16 %v740
      %v1655 = vunpack.c.l.b16 %v731
      %v1656 = vunpack.c.l.b16 %v741
      %v1657 = vunpack.c.l.b16 %v818
      %v1658 = vunpack.c.l.b16 %v882
      %v1659 = vunpack.c.l.b16 %v825
      %v1660 = vunpack.c.l.b16 %v883
      %v1661 = vunpack.c.l.b16 %v832
      %v1662 = vunpack.c.l.b16 %v884
      %v1663 = vunpack.c.l.b16 %v839
      %v1664 = vunpack.c.l.b16 %v885
      %v1665 = vunpack.c.l.b16 %v846
      %v1666 = vunpack.c.l.b16 %v886
      %v1667 = vunpack.c.l.b16 %v853
      %v1668 = vunpack.c.l.b16 %v887
      %v1669 = vunpack.c.l.b16 %v860
      %v1670 = vunpack.c.l.b16 %v888
      %v1671 = vunpack.c.l.b16 %v867
      %v1672 = vunpack.c.l.b16 %v889
      %v1673 = vunpack.c.l.b16 %v874
      %v1674 = vunpack.c.l.b16 %v890
      %v1675 = vunpack.c.l.b16 %v881
      %v1676 = vunpack.c.l.b16 %v891
      %v1677 = vunpack.c.l.b16 %v968
      %v1678 = vunpack.c.l.b16 %v1032
      %v1679 = vunpack.c.l.b16 %v975
      %v1680 = vunpack.c.l.b16 %v1033
      %v1681 = vunpack.c.l.b16 %v982
      %v1682 = vunpack.c.l.b16 %v1034
      %v1683 = vunpack.c.l.b16 %v989
      %v1684 = vunpack.c.l.b16 %v1035
      %v1685 = vunpack.c.l.b16 %v996
      %v1686 = vunpack.c.l.b16 %v1036
      %v1687 = vunpack.c.l.b16 %v1003
      %v1688 = vunpack.c.l.b16 %v1037
      %v1689 = vunpack.c.l.b16 %v1010
      %v1690 = vunpack.c.l.b16 %v1038
      %v1691 = vunpack.c.l.b16 %v1017
      %v1692 = vunpack.c.l.b16 %v1039
      %v1693 = vunpack.c.l.b16 %v1024
      %v1694 = vunpack.c.l.b16 %v1040
      %v1695 = vunpack.c.l.b16 %v1031
      %v1696 = vunpack.c.l.b16 %v1041
      %v1697 = vunpack.c.l.b16 %v1118
      %v1698 = vunpack.c.l.b16 %v1182
      %v1699 = vunpack.c.l.b16 %v1125
      %v1700 = vunpack.c.l.b16 %v1183
      %v1701 = vunpack.c.l.b16 %v1132
      %v1702 = vunpack.c.l.b16 %v1184
      %v1703 = vunpack.c.l.b16 %v1139
      %v1704 = vunpack.c.l.b16 %v1185
      %v1705 = vunpack.c.l.b16 %v1146
      %v1706 = vunpack.c.l.b16 %v1186
      %v1707 = vunpack.c.l.b16 %v1153
      %v1708 = vunpack.c.l.b16 %v1187
      %v1709 = vunpack.c.l.b16 %v1160
      %v1710 = vunpack.c.l.b16 %v1188
      %v1711 = vunpack.c.l.b16 %v1167
      %v1712 = vunpack.c.l.b16 %v1189
      %v1713 = vunpack.c.l.b16 %v1174
      %v1714 = vunpack.c.l.b16 %v1190
      %v1715 = vunpack.c.l.b16 %v1181
      %v1716 = vunpack.c.l.b16 %v1191
      %s1717 = scalar_lea.vmem %s6, 576
      %v1718 = vld [vmem:[%s1717] sm:$0xf]
      %v1719 = vld [vmem:[%s1717 + $0x4] sm:$0xf]
      %v1720 = vld [vmem:[%s1717 + $0x8] sm:$0xf]
      %v1721 = vld [vmem:[%s1717 + $0xc] sm:$0xf]
      %v1722 = vld [vmem:[%s1717 + $0x10] sm:$0xf]
      %v1723 = vld [vmem:[%s1717 + $0x14] sm:$0xf]
      %v1724 = vld [vmem:[%s1717 + $0x18] sm:$0xf]
      %v1725 = vld [vmem:[%s1717 + $0x1c] sm:$0xf]
      %v1726 = vld [vmem:[%s1717 + $0x20] sm:$0xf]
      %v1727 = vld [vmem:[%s1717 + $0x24] sm:$0xf]
      %v1728 = vld [vmem:[%s1717 + $0x28] sm:$0xf]
      %v1729 = vld [vmem:[%s1717 + $0x2c] sm:$0xf]
      %v1730 = vld [vmem:[%s1717 + $0x30] sm:$0xf]
      %v1731 = vld [vmem:[%s1717 + $0x34] sm:$0xf]
      %v1732 = vld [vmem:[%s1717 + $0x38] sm:$0xf]
      %v1733 = vld [vmem:[%s1717 + $0x3c] sm:$0xf]
      %v1734 = vld [vmem:[%s1717 + $0x40] sm:$0xf]
      %v1735 = vld [vmem:[%s1717 + $0x44] sm:$0xf]
      %v1736 = vld [vmem:[%s1717 + $0x48] sm:$0xf]
      %v1737 = vld [vmem:[%s1717 + $0x4c] sm:$0xf]
      %v1738 = vld [vmem:[%s1717 + $0x50] sm:$0xf]
      %v1739 = vld [vmem:[%s1717 + $0x54] sm:$0xf]
      %v1740 = vld [vmem:[%s1717 + $0x58] sm:$0xf]
      %v1741 = vld [vmem:[%s1717 + $0x5c] sm:$0xf]
      %v1742 = vld [vmem:[%s1717 + $0x60] sm:$0xf]
      %v1743 = vld [vmem:[%s1717 + $0x64] sm:$0xf]
      %v1744 = vld [vmem:[%s1717 + $0x68] sm:$0xf]
      %v1745 = vld [vmem:[%s1717 + $0x6c] sm:$0xf]
      %v1746 = vld [vmem:[%s1717 + $0x70] sm:$0xf]
      %v1747 = vld [vmem:[%s1717 + $0x74] sm:$0xf]
      %v1748 = vld [vmem:[%s1717 + $0x78] sm:$0xf]
      %v1749 = vld [vmem:[%s1717 + $0x7c] sm:$0xf]
      %v1750 = vld [vmem:[%s1717 + $0x80] sm:$0xf]
      %v1751 = vld [vmem:[%s1717 + $0x84] sm:$0xf]
      %v1752 = vld [vmem:[%s1717 + $0x88] sm:$0xf]
      %v1753 = vld [vmem:[%s1717 + $0x8c] sm:$0xf]
      %v1754 = vld [vmem:[%s1717 + $0x90] sm:$0xf]
      %v1755 = vld [vmem:[%s1717 + $0x94] sm:$0xf]
      %v1756 = vld [vmem:[%s1717 + $0x98] sm:$0xf]
      %v1757 = vld [vmem:[%s1717 + $0x9c] sm:$0xf]
      %v1758 = vld [vmem:[%s1717 + $0xa0] sm:$0xf]
      %v1759 = vld [vmem:[%s1717 + $0xa4] sm:$0xf]
      %v1760 = vld [vmem:[%s1717 + $0xa8] sm:$0xf]
      %v1761 = vld [vmem:[%s1717 + $0xac] sm:$0xf]
      %v1762 = vld [vmem:[%s1717 + $0xb0] sm:$0xf]
      %v1763 = vld [vmem:[%s1717 + $0xb4] sm:$0xf]
      %v1764 = vld [vmem:[%s1717 + $0xb8] sm:$0xf]
      %v1765 = vld [vmem:[%s1717 + $0xbc] sm:$0xf]
      %v1766 = vld [vmem:[%s1717 + $0xc0] sm:$0xf]
      %v1767 = vld [vmem:[%s1717 + $0xc4] sm:$0xf]
      %v1768 = vld [vmem:[%s1717 + $0xc8] sm:$0xf]
      %v1769 = vld [vmem:[%s1717 + $0xcc] sm:$0xf]
      %v1770 = vld [vmem:[%s1717 + $0xd0] sm:$0xf]
      %v1771 = vld [vmem:[%s1717 + $0xd4] sm:$0xf]
      %v1772 = vld [vmem:[%s1717 + $0xd8] sm:$0xf]
      %v1773 = vld [vmem:[%s1717 + $0xdc] sm:$0xf]
      %v1774 = vld [vmem:[%s1717 + $0xe0] sm:$0xf]
      %v1775 = vld [vmem:[%s1717 + $0xe4] sm:$0xf]
      %v1776 = vld [vmem:[%s1717 + $0xe8] sm:$0xf]
      %v1777 = vld [vmem:[%s1717 + $0xec] sm:$0xf]
      %v1778 = vld [vmem:[%s1717 + $0xf0] sm:$0xf]
      %v1779 = vld [vmem:[%s1717 + $0xf4] sm:$0xf]
      %v1780 = vld [vmem:[%s1717 + $0xf8] sm:$0xf]
      %v1781 = vld [vmem:[%s1717 + $0xfc] sm:$0xf]
      %v1782 = vld [vmem:[%s1717 + $0x100] sm:$0xf]
      %v1783 = vld [vmem:[%s1717 + $0x104] sm:$0xf]
      %v1784 = vld [vmem:[%s1717 + $0x108] sm:$0xf]
      %v1785 = vld [vmem:[%s1717 + $0x10c] sm:$0xf]
      %v1786 = vld [vmem:[%s1717 + $0x110] sm:$0xf]
      %v1787 = vld [vmem:[%s1717 + $0x114] sm:$0xf]
      %v1788 = vld [vmem:[%s1717 + $0x118] sm:$0xf]
      %v1789 = vld [vmem:[%s1717 + $0x11c] sm:$0xf]
      %v1790 = vld [vmem:[%s1717 + $0x120] sm:$0xf]
      %v1791 = vld [vmem:[%s1717 + $0x124] sm:$0xf]
      %v1792 = vld [vmem:[%s1717 + $0x128] sm:$0xf]
      %v1793 = vld [vmem:[%s1717 + $0x12c] sm:$0xf]
      %v1794 = vld [vmem:[%s1717 + $0x130] sm:$0xf]
      %v1795 = vld [vmem:[%s1717 + $0x134] sm:$0xf]
      %v1796 = vld [vmem:[%s1717 + $0x138] sm:$0xf]
      %v1797 = vld [vmem:[%s1717 + $0x13c] sm:$0xf]
      %v1798 = vld [vmem:[%s1717 + $0x140] sm:$0xf]
      %v1799 = vld [vmem:[%s1717 + $0x144] sm:$0xf]
      %v1800 = vld [vmem:[%s1717 + $0x148] sm:$0xf]
      %v1801 = vld [vmem:[%s1717 + $0x14c] sm:$0xf]
      %v1802 = vld [vmem:[%s1717 + $0x150] sm:$0xf]
      %v1803 = vld [vmem:[%s1717 + $0x154] sm:$0xf]
      %v1804 = vld [vmem:[%s1717 + $0x158] sm:$0xf]
      %v1805 = vld [vmem:[%s1717 + $0x15c] sm:$0xf]
      %v1806 = vld [vmem:[%s1717 + $0x160] sm:$0xf]
      %v1807 = vld [vmem:[%s1717 + $0x164] sm:$0xf]
      %v1808 = vld [vmem:[%s1717 + $0x168] sm:$0xf]
      %v1809 = vld [vmem:[%s1717 + $0x16c] sm:$0xf]
      %v1810 = vld [vmem:[%s1717 + $0x170] sm:$0xf]
      %v1811 = vld [vmem:[%s1717 + $0x174] sm:$0xf]
      %v1812 = vld [vmem:[%s1717 + $0x178] sm:$0xf]
      %v1813 = vld [vmem:[%s1717 + $0x17c] sm:$0xf]
      %v1814 = vld [vmem:[%s1717 + $0x180] sm:$0xf]
      %v1815 = vld [vmem:[%s1717 + $0x184] sm:$0xf]
      %v1816 = vld [vmem:[%s1717 + $0x188] sm:$0xf]
      %v1817 = vld [vmem:[%s1717 + $0x18c] sm:$0xf]
      %v1818 = vld [vmem:[%s1717 + $0x190] sm:$0xf]
      %v1819 = vld [vmem:[%s1717 + $0x194] sm:$0xf]
      %v1820 = vld [vmem:[%s1717 + $0x198] sm:$0xf]
      %v1821 = vld [vmem:[%s1717 + $0x19c] sm:$0xf]
      %v1822 = vld [vmem:[%s1717 + $0x1a0] sm:$0xf]
      %v1823 = vld [vmem:[%s1717 + $0x1a4] sm:$0xf]
      %v1824 = vld [vmem:[%s1717 + $0x1a8] sm:$0xf]
      %v1825 = vld [vmem:[%s1717 + $0x1ac] sm:$0xf]
      %v1826 = vld [vmem:[%s1717 + $0x1b0] sm:$0xf]
      %v1827 = vld [vmem:[%s1717 + $0x1b4] sm:$0xf]
      %v1828 = vld [vmem:[%s1717 + $0x1b8] sm:$0xf]
      %v1829 = vld [vmem:[%s1717 + $0x1bc] sm:$0xf]
      %v1830 = vld [vmem:[%s1717 + $0x1c0] sm:$0xf]
      %v1831 = vld [vmem:[%s1717 + $0x1c4] sm:$0xf]
      %v1832 = vld [vmem:[%s1717 + $0x1c8] sm:$0xf]
      %v1833 = vld [vmem:[%s1717 + $0x1cc] sm:$0xf]
      %v1834 = vld [vmem:[%s1717 + $0x1d0] sm:$0xf]
      %v1835 = vld [vmem:[%s1717 + $0x1d4] sm:$0xf]
      %v1836 = vld [vmem:[%s1717 + $0x1d8] sm:$0xf]
      %v1837 = vld [vmem:[%s1717 + $0x1dc] sm:$0xf]
      %v1838 = vld [vmem:[%s1717 + $0x1e0] sm:$0xf]
      %v1839 = vld [vmem:[%s1717 + $0x1e4] sm:$0xf]
      %v1840 = vld [vmem:[%s1717 + $0x1e8] sm:$0xf]
      %v1841 = vld [vmem:[%s1717 + $0x1ec] sm:$0xf]
      %v1842 = vld [vmem:[%s1717 + $0x1f0] sm:$0xf]
      %v1843 = vld [vmem:[%s1717 + $0x1f4] sm:$0xf]
      %v1844 = vld [vmem:[%s1717 + $0x1f8] sm:$0xf]
      %v1845 = vld [vmem:[%s1717 + $0x1fc] sm:$0xf]
      %v1846 = vld [vmem:[%s1717 + $0x200] sm:$0xf]
      %v1847 = vld [vmem:[%s1717 + $0x204] sm:$0xf]
      %v1848 = vld [vmem:[%s1717 + $0x208] sm:$0xf]
      %v1849 = vld [vmem:[%s1717 + $0x20c] sm:$0xf]
      %v1850 = vld [vmem:[%s1717 + $0x210] sm:$0xf]
      %v1851 = vld [vmem:[%s1717 + $0x214] sm:$0xf]
      %v1852 = vld [vmem:[%s1717 + $0x218] sm:$0xf]
      %v1853 = vld [vmem:[%s1717 + $0x21c] sm:$0xf]
      %v1854 = vld [vmem:[%s1717 + $0x220] sm:$0xf]
      %v1855 = vld [vmem:[%s1717 + $0x224] sm:$0xf]
      %v1856 = vld [vmem:[%s1717 + $0x228] sm:$0xf]
      %v1857 = vld [vmem:[%s1717 + $0x22c] sm:$0xf]
      %v1858 = vld [vmem:[%s1717 + $0x230] sm:$0xf]
      %v1859 = vld [vmem:[%s1717 + $0x234] sm:$0xf]
      %v1860 = vld [vmem:[%s1717 + $0x238] sm:$0xf]
      %v1861 = vld [vmem:[%s1717 + $0x23c] sm:$0xf]
      %v1862 = vunpack.c.l.b16 %v1268
      %v1863 = vunpack.c.l.b16 %v1332
      %v1864 = vunpack.c.l.b16 %v1275
      %v1865 = vunpack.c.l.b16 %v1333
      %v1866 = vunpack.c.l.b16 %v1282
      %v1867 = vunpack.c.l.b16 %v1334
      %v1868 = vunpack.c.l.b16 %v1289
      %v1869 = vunpack.c.l.b16 %v1335
      %v1870 = vunpack.c.l.b16 %v1296
      %v1871 = vunpack.c.l.b16 %v1336
      %v1872 = vunpack.c.l.b16 %v1303
      %v1873 = vunpack.c.l.b16 %v1337
      %v1874 = vunpack.c.l.b16 %v1310
      %v1875 = vunpack.c.l.b16 %v1338
      %v1876 = vunpack.c.l.b16 %v1317
      %v1877 = vunpack.c.l.b16 %v1339
      %v1878 = vunpack.c.l.b16 %v1324
      %v1879 = vunpack.c.l.b16 %v1340
      %v1880 = vunpack.c.l.b16 %v1331
      %v1881 = vunpack.c.l.b16 %v1341
      %v1882 = vpack.c.b16 %v784, %v782
      %v1883 = vpack.c.b16 %v1659, %v1657
      %v1884 = vpack.c.b16 %v1660, %v1658
      %v1885 = vpack.c.b16 %v786, %v784
      %v1886 = vpack.c.b16 %v1661, %v1659
      %v1887 = vpack.c.b16 %v1662, %v1660
      %v1888 = vpack.c.b16 %v788, %v786
      %v1889 = vpack.c.b16 %v1663, %v1661
      %v1890 = vpack.c.b16 %v1664, %v1662
      %v1891 = vpack.c.b16 %v790, %v788
      %v1892 = vpack.c.b16 %v1665, %v1663
      %v1893 = vpack.c.b16 %v1666, %v1664
      %v1894 = vpack.c.b16 %v792, %v790
      %v1895 = vpack.c.b16 %v1667, %v1665
      %v1896 = vpack.c.b16 %v1668, %v1666
      %v1897 = vpack.c.b16 %v794, %v792
      %v1898 = vpack.c.b16 %v1669, %v1667
      %v1899 = vpack.c.b16 %v1670, %v1668
      %v1900 = vpack.c.b16 %v796, %v794
      %v1901 = vpack.c.b16 %v1671, %v1669
      %v1902 = vpack.c.b16 %v1672, %v1670
      %v1903 = vpack.c.b16 %v798, %v796
      %v1904 = vpack.c.b16 %v1673, %v1671
      %v1905 = vpack.c.b16 %v1674, %v1672
      %v1906 = vpack.c.b16 %v800, %v798
      %v1907 = vpack.c.b16 %v1675, %v1673
      %v1908 = vpack.c.b16 %v1676, %v1674
      %v1909 = vpack.c.b16 %v934, %v932
      %v1910 = vpack.c.b16 %v1679, %v1677
      %v1911 = vpack.c.b16 %v1680, %v1678
      %v1912 = vpack.c.b16 %v936, %v934
      %v1913 = vpack.c.b16 %v1681, %v1679
      %v1914 = vpack.c.b16 %v1682, %v1680
      %v1915 = vpack.c.b16 %v938, %v936
      %v1916 = vpack.c.b16 %v1683, %v1681
      %v1917 = vpack.c.b16 %v1684, %v1682
      %v1918 = vpack.c.b16 %v940, %v938
      %v1919 = vpack.c.b16 %v1685, %v1683
      %v1920 = vpack.c.b16 %v1686, %v1684
      %v1921 = vpack.c.b16 %v942, %v940
      %v1922 = vpack.c.b16 %v1687, %v1685
      %v1923 = vpack.c.b16 %v1688, %v1686
      %v1924 = vpack.c.b16 %v944, %v942
      %v1925 = vpack.c.b16 %v1689, %v1687
      %v1926 = vpack.c.b16 %v1690, %v1688
      %v1927 = vpack.c.b16 %v946, %v944
      %v1928 = vpack.c.b16 %v1691, %v1689
      %v1929 = vpack.c.b16 %v1692, %v1690
      %v1930 = vpack.c.b16 %v948, %v946
      %v1931 = vpack.c.b16 %v1693, %v1691
      %v1932 = vpack.c.b16 %v1694, %v1692
      %v1933 = vpack.c.b16 %v950, %v948
      %v1934 = vpack.c.b16 %v1695, %v1693
      %v1935 = vpack.c.b16 %v1696, %v1694
      %v1936 = vpack.c.b16 %v1084, %v1082
      %v1937 = vpack.c.b16 %v1699, %v1697
      %v1938 = vpack.c.b16 %v1700, %v1698
      %v1939 = vpack.c.b16 %v1086, %v1084
      %v1940 = vpack.c.b16 %v1701, %v1699
      %v1941 = vpack.c.b16 %v1702, %v1700
      %v1942 = vpack.c.b16 %v1088, %v1086
      %v1943 = vpack.c.b16 %v1703, %v1701
      %v1944 = vpack.c.b16 %v1704, %v1702
      %v1945 = vpack.c.b16 %v1090, %v1088
      %v1946 = vpack.c.b16 %v1705, %v1703
      %v1947 = vpack.c.b16 %v1706, %v1704
      %v1948 = vpack.c.b16 %v1092, %v1090
      %v1949 = vpack.c.b16 %v1707, %v1705
      %v1950 = vpack.c.b16 %v1708, %v1706
      %v1951 = vpack.c.b16 %v1094, %v1092
      %v1952 = vpack.c.b16 %v1709, %v1707
      %v1953 = vpack.c.b16 %v1710, %v1708
      %v1954 = vpack.c.b16 %v1096, %v1094
      %v1955 = vpack.c.b16 %v1711, %v1709
      %v1956 = vpack.c.b16 %v1712, %v1710
      %v1957 = vpack.c.b16 %v1098, %v1096
      %v1958 = vpack.c.b16 %v1713, %v1711
      %v1959 = vpack.c.b16 %v1714, %v1712
      %v1960 = vpack.c.b16 %v1100, %v1098
      %v1961 = vpack.c.b16 %v1715, %v1713
      %v1962 = vpack.c.b16 %v1716, %v1714
      %v1963 = vpack.c.b16 %v1234, %v1232
      %v1964 = vpack.c.b16 %v1864, %v1862
      %v1965 = vpack.c.b16 %v1865, %v1863
      %v1966 = vpack.c.b16 %v1236, %v1234
      %v1967 = vpack.c.b16 %v1866, %v1864
      %v1968 = vpack.c.b16 %v1867, %v1865
      %v1969 = vpack.c.b16 %v1238, %v1236
      %v1970 = vpack.c.b16 %v1868, %v1866
      %v1971 = vpack.c.b16 %v1869, %v1867
      %v1972 = vpack.c.b16 %v1240, %v1238
      %v1973 = vpack.c.b16 %v1870, %v1868
      %v1974 = vpack.c.b16 %v1871, %v1869
      %v1975 = vpack.c.b16 %v1242, %v1240
      %v1976 = vpack.c.b16 %v1872, %v1870
      %v1977 = vpack.c.b16 %v1873, %v1871
      %v1978 = vpack.c.b16 %v1244, %v1242
      %v1979 = vpack.c.b16 %v1874, %v1872
      %v1980 = vpack.c.b16 %v1875, %v1873
      %v1981 = vpack.c.b16 %v1246, %v1244
      %v1982 = vpack.c.b16 %v1876, %v1874
      %v1983 = vpack.c.b16 %v1877, %v1875
      %v1984 = vpack.c.b16 %v1248, %v1246
      %v1985 = vpack.c.b16 %v1878, %v1876
      %v1986 = vpack.c.b16 %v1879, %v1877
      %v1987 = vpack.c.b16 %v1250, %v1248
      %v1988 = vpack.c.b16 %v1880, %v1878
      %v1989 = vpack.c.b16 %v1881, %v1879
      %v2242 = vunpack.c.l.b16 %v1718
      %v2243 = vunpack.c.l.b16 %v1719
      %v2244 = vunpack.c.l.b16 %v1720
      %v2245 = vunpack.c.l.b16 %v1721
      %v2246 = vunpack.c.l.b16 %v1722
      %v2247 = vunpack.c.l.b16 %v1723
      %v2248 = vunpack.c.l.b16 %v1724
      %v2249 = vunpack.c.l.b16 %v1725
      %v2250 = vunpack.c.l.b16 %v1726
      %v2251 = vunpack.c.l.b16 %v1727
      %v2252 = vunpack.c.l.b16 %v1728
      %v2253 = vunpack.c.l.b16 %v1729
      %v2254 = vunpack.c.l.b16 %v1730
      %v2255 = vunpack.c.l.b16 %v1731
      %v2256 = vunpack.c.l.b16 %v1732
      %v2257 = vunpack.c.l.b16 %v1733
      %v2258 = vunpack.c.l.b16 %v1734
      %v2259 = vunpack.c.l.b16 %v1735
      %v2260 = vunpack.c.l.b16 %v1736
      %v2261 = vunpack.c.l.b16 %v1737
      %v2262 = vunpack.c.l.b16 %v1738
      %v2263 = vunpack.c.l.b16 %v1739
      %v2264 = vunpack.c.l.b16 %v1740
      %v2265 = vunpack.c.l.b16 %v1741
      %v2266 = vunpack.c.l.b16 %v1742
      %v2267 = vunpack.c.l.b16 %v1743
      %v2268 = vunpack.c.l.b16 %v1744
      %v2269 = vunpack.c.l.b16 %v1745
      %v2270 = vunpack.c.l.b16 %v1746
      %v2271 = vunpack.c.l.b16 %v1747
      %v2272 = vunpack.c.l.b16 %v1748
      %v2273 = vunpack.c.l.b16 %v1749
      %v2274 = vunpack.c.l.b16 %v1750
      %v2275 = vunpack.c.l.b16 %v1751
      %v2276 = vunpack.c.l.b16 %v1752
      %v2277 = vunpack.c.l.b16 %v1753
      %v2278 = vunpack.c.l.b16 %v1754
      %v2279 = vunpack.c.l.b16 %v1755
      %v2280 = vunpack.c.l.b16 %v1756
      %v2281 = vunpack.c.l.b16 %v1757
      %v2282 = vunpack.c.l.b16 %v1758
      %v2283 = vunpack.c.l.b16 %v1759
      %v2284 = vunpack.c.l.b16 %v1760
      %v2285 = vunpack.c.l.b16 %v1761
      %v2286 = vunpack.c.l.b16 %v1762
      %v2287 = vunpack.c.l.b16 %v1763
      %v2288 = vunpack.c.l.b16 %v1764
      %v2289 = vunpack.c.l.b16 %v1765
      %v2290 = vunpack.c.l.b16 %v1766
      %v2291 = vunpack.c.l.b16 %v1767
      %v2292 = vunpack.c.l.b16 %v1768
      %v2293 = vunpack.c.l.b16 %v1769
      %v2294 = vunpack.c.l.b16 %v1770
      %v2295 = vunpack.c.l.b16 %v1771
      %v2296 = vunpack.c.l.b16 %v1772
      %v2297 = vunpack.c.l.b16 %v1773
      %v2298 = vunpack.c.l.b16 %v1774
      %v2299 = vunpack.c.l.b16 %v1775
      %v2300 = vunpack.c.l.b16 %v1776
      %v2301 = vunpack.c.l.b16 %v1777
      %v2302 = vunpack.c.l.b16 %v1778
      %v2303 = vunpack.c.l.b16 %v1779
      %v2304 = vunpack.c.l.b16 %v1780
      %v2305 = vunpack.c.l.b16 %v1781
      %v2306 = vunpack.c.l.b16 %v1782
      %v2307 = vunpack.c.l.b16 %v1783
      %v2308 = vunpack.c.l.b16 %v1784
      %v2309 = vunpack.c.l.b16 %v1785
      %v2310 = vunpack.c.l.b16 %v1786
      %v2311 = vunpack.c.l.b16 %v1787
      %v2312 = vunpack.c.l.b16 %v1788
      %v2313 = vunpack.c.l.b16 %v1789
      %v2314 = vunpack.c.l.b16 %v1790
      %v2315 = vunpack.c.l.b16 %v1791
      %v2316 = vunpack.c.l.b16 %v1792
      %v2317 = vunpack.c.l.b16 %v1793
      %v2318 = vunpack.c.l.b16 %v1794
      %v2319 = vunpack.c.l.b16 %v1795
      %v2320 = vunpack.c.l.b16 %v1796
      %v2321 = vunpack.c.l.b16 %v1797
      %v2322 = vunpack.c.l.b16 %v1798
      %v2323 = vunpack.c.l.b16 %v1799
      %v2324 = vunpack.c.l.b16 %v1800
      %v2325 = vunpack.c.l.b16 %v1801
      %v2326 = vunpack.c.l.b16 %v1802
      %v2327 = vunpack.c.l.b16 %v1803
      %v2328 = vunpack.c.l.b16 %v1804
      %v2329 = vunpack.c.l.b16 %v1805
      %v2330 = vunpack.c.l.b16 %v1806
      %v2331 = vunpack.c.l.b16 %v1807
      %v2332 = vunpack.c.l.b16 %v1808
      %v2333 = vunpack.c.l.b16 %v1809
      %v2334 = vunpack.c.l.b16 %v1810
      %v2335 = vunpack.c.l.b16 %v1811
      %v2336 = vunpack.c.l.b16 %v1812
      %v2337 = vunpack.c.l.b16 %v1813
      %v2338 = vunpack.c.l.b16 %v1814
      %v2339 = vunpack.c.l.b16 %v1815
      %v2340 = vunpack.c.l.b16 %v1816
      %v2341 = vunpack.c.l.b16 %v1817
      %v2342 = vunpack.c.l.b16 %v1818
      %v2343 = vunpack.c.l.b16 %v1819
      %v2344 = vunpack.c.l.b16 %v1820
      %v2345 = vunpack.c.l.b16 %v1821
      %v2346 = vunpack.c.l.b16 %v1822
      %v2347 = vunpack.c.l.b16 %v1823
      %v2348 = vunpack.c.l.b16 %v1824
      %v2349 = vunpack.c.l.b16 %v1825
      %v2350 = vunpack.c.l.b16 %v1826
      %v2351 = vunpack.c.l.b16 %v1827
      %v2352 = vunpack.c.l.b16 %v1828
      %v2353 = vunpack.c.l.b16 %v1829
      %v2354 = vunpack.c.l.b16 %v1830
      %v2355 = vunpack.c.l.b16 %v1831
      %v2356 = vunpack.c.l.b16 %v1832
      %v2357 = vunpack.c.l.b16 %v1833
      %v2358 = vunpack.c.l.b16 %v1834
      %v2359 = vunpack.c.l.b16 %v1835
      %v2360 = vunpack.c.l.b16 %v1836
      %v2361 = vunpack.c.l.b16 %v1837
      %v2362 = vunpack.c.l.b16 %v1838
      %v2363 = vunpack.c.l.b16 %v1839
      %v2364 = vunpack.c.l.b16 %v1840
      %v2365 = vunpack.c.l.b16 %v1841
      %v2366 = vunpack.c.l.b16 %v1842
      %v2367 = vunpack.c.l.b16 %v1843
      %v2368 = vunpack.c.l.b16 %v1844
      %v2369 = vunpack.c.l.b16 %v1845
      %v2370 = vunpack.c.l.b16 %v1846
      %v2371 = vunpack.c.l.b16 %v1847
      %v2372 = vunpack.c.l.b16 %v1848
      %v2373 = vunpack.c.l.b16 %v1849
      %v2374 = vunpack.c.l.b16 %v1850
      %v2375 = vunpack.c.l.b16 %v1851
      %v2376 = vunpack.c.l.b16 %v1852
      %v2377 = vunpack.c.l.b16 %v1853
      %v2378 = vunpack.c.l.b16 %v1854
      %v2379 = vunpack.c.l.b16 %v1855
      %v2380 = vunpack.c.l.b16 %v1856
      %v2381 = vunpack.c.l.b16 %v1857
      %v2382 = vunpack.c.l.b16 %v1858
      %v2383 = vunpack.c.l.b16 %v1859
      %v2384 = vunpack.c.l.b16 %v1860
      %v2385 = vunpack.c.l.b16 %v1861
      %v2386 = vpack.c.b16 %v2243, %v2242
      %v2387 = vpack.c.b16 %v2245, %v2244
      %v2388 = vpack.c.b16 %v2247, %v2246
      %v2389 = vpack.c.b16 %v2249, %v2248
      %v2390 = vpack.c.b16 %v2251, %v2250
      %v2391 = vpack.c.b16 %v2253, %v2252
      %v2392 = vpack.c.b16 %v2255, %v2254
      %v2393 = vpack.c.b16 %v2257, %v2256
      %v2394 = vpack.c.b16 %v2259, %v2258
      %v2395 = vpack.c.b16 %v2261, %v2260
      %v2396 = vpack.c.b16 %v2263, %v2262
      %v2397 = vpack.c.b16 %v2265, %v2264
      %v2398 = vpack.c.b16 %v2267, %v2266
      %v2399 = vpack.c.b16 %v2269, %v2268
      %v2400 = vpack.c.b16 %v2271, %v2270
      %v2401 = vpack.c.b16 %v2273, %v2272
      %v2402 = vpack.c.b16 %v2275, %v2274
      %v2403 = vpack.c.b16 %v2277, %v2276
      %v2404 = vpack.c.b16 %v2279, %v2278
      %v2405 = vpack.c.b16 %v2281, %v2280
      %v2406 = vpack.c.b16 %v2283, %v2282
      %v2407 = vpack.c.b16 %v2285, %v2284
      %v2408 = vpack.c.b16 %v2287, %v2286
      %v2409 = vpack.c.b16 %v2289, %v2288
      %v2410 = vpack.c.b16 %v2291, %v2290
      %v2411 = vpack.c.b16 %v2293, %v2292
      %v2412 = vpack.c.b16 %v2295, %v2294
      %v2413 = vpack.c.b16 %v2297, %v2296
      %v2414 = vpack.c.b16 %v2299, %v2298
      %v2415 = vpack.c.b16 %v2301, %v2300
      %v2416 = vpack.c.b16 %v2303, %v2302
      %v2417 = vpack.c.b16 %v2305, %v2304
      %v2418 = vpack.c.b16 %v2307, %v2306
      %v2419 = vpack.c.b16 %v2309, %v2308
      %v2420 = vpack.c.b16 %v2311, %v2310
      %v2421 = vpack.c.b16 %v2313, %v2312
      %v2422 = vpack.c.b16 %v2315, %v2314
      %v2423 = vpack.c.b16 %v2317, %v2316
      %v2424 = vpack.c.b16 %v2319, %v2318
      %v2425 = vpack.c.b16 %v2321, %v2320
      %v2426 = vpack.c.b16 %v2323, %v2322
      %v2427 = vpack.c.b16 %v2325, %v2324
      %v2428 = vpack.c.b16 %v2327, %v2326
      %v2429 = vpack.c.b16 %v2329, %v2328
      %v2430 = vpack.c.b16 %v2331, %v2330
      %v2431 = vpack.c.b16 %v2333, %v2332
      %v2432 = vpack.c.b16 %v2335, %v2334
      %v2433 = vpack.c.b16 %v2337, %v2336
      %v2434 = vpack.c.b16 %v2339, %v2338
      %v2435 = vpack.c.b16 %v2341, %v2340
      %v2436 = vpack.c.b16 %v2343, %v2342
      %v2437 = vpack.c.b16 %v2345, %v2344
      %v2438 = vpack.c.b16 %v2347, %v2346
      %v2439 = vpack.c.b16 %v2349, %v2348
      %v2440 = vpack.c.b16 %v2351, %v2350
      %v2441 = vpack.c.b16 %v2353, %v2352
      %v2442 = vpack.c.b16 %v2355, %v2354
      %v2443 = vpack.c.b16 %v2357, %v2356
      %v2444 = vpack.c.b16 %v2359, %v2358
      %v2445 = vpack.c.b16 %v2361, %v2360
      %v2446 = vpack.c.b16 %v2363, %v2362
      %v2447 = vpack.c.b16 %v2365, %v2364
      %v2448 = vpack.c.b16 %v2367, %v2366
      %v2449 = vpack.c.b16 %v2369, %v2368
      %v2450 = vpack.c.b16 %v2371, %v2370
      %v2451 = vpack.c.b16 %v2373, %v2372
      %v2452 = vpack.c.b16 %v2375, %v2374
      %v2453 = vpack.c.b16 %v2377, %v2376
      %v2454 = vpack.c.b16 %v2379, %v2378
      %v2455 = vpack.c.b16 %v2381, %v2380
      %v2456 = vpack.c.b16 %v2383, %v2382
      %v2457 = vpack.c.b16 %v2385, %v2384
      %2530 = vmatpush.bf16.msra.mxu0 %v2393
      %2531 = vmatpush.bf16.msra.mxu0 %v2392
      %2532 = vmatpush.bf16.msra.mxu0 %v2391
      %2533 = vmatpush.bf16.msra.mxu0 %v2390
      %2534 = vmatpush.bf16.msra.mxu0 %v2389
      %2535 = vmatpush.bf16.msra.mxu0 %v2388
      %2536 = vmatpush.bf16.msra.mxu0 %v2387
      %2537 = vmatpush.bf16.msra.mxu0 %v2386
      %2538 = vmatmul.bf16.gmra.mxu0 %v1882
      %v2539 = vpop.f32.mrf.mxu0
      %v2540 = vadd.f32 0.0, %v2539
      %v2541 = vpop.f32.mrf.mxu0
      %v2542 = vadd.f32 0.0, %v2541
      %2543 = vmatmul.bf16.gmra.mxu0 %v1888
      %v2544 = vpop.f32.mrf.mxu0
      %v2545 = vadd.f32 0.0, %v2544
      %v2546 = vpop.f32.mrf.mxu0
      %v2547 = vadd.f32 0.0, %v2546
      %2548 = vmatmul.bf16.gmra.mxu0 %v1894
      %v2549 = vpop.f32.mrf.mxu0
      %v2550 = vadd.f32 0.0, %v2549
      %v2551 = vpop.f32.mrf.mxu0
      %v2552 = vadd.f32 0.0, %v2551
      %2553 = vmatmul.bf16.gmra.mxu0 %v1900
      %v2554 = vpop.f32.mrf.mxu0
      %v2555 = vadd.f32 0.0, %v2554
      %v2556 = vpop.f32.mrf.mxu0
      %v2557 = vadd.f32 0.0, %v2556
      %2558 = vmatmul.bf16.gmra.mxu0 %v1909
      %v2559 = vpop.f32.mrf.mxu0
      %v2560 = vadd.f32 0.0, %v2559
      %v2561 = vpop.f32.mrf.mxu0
      %v2562 = vadd.f32 0.0, %v2561
      %2563 = vmatmul.bf16.gmra.mxu0 %v1915
      %v2564 = vpop.f32.mrf.mxu0
      %v2565 = vadd.f32 0.0, %v2564
      %v2566 = vpop.f32.mrf.mxu0
      %v2567 = vadd.f32 0.0, %v2566
      %2568 = vmatmul.bf16.gmra.mxu0 %v1921
      %v2569 = vpop.f32.mrf.mxu0
      %v2570 = vadd.f32 0.0, %v2569
      %v2571 = vpop.f32.mrf.mxu0
      %v2572 = vadd.f32 0.0, %v2571
      %2573 = vmatmul.bf16.gmra.mxu0 %v1927
      %v2574 = vpop.f32.mrf.mxu0
      %v2575 = vadd.f32 0.0, %v2574
      %v2576 = vpop.f32.mrf.mxu0
      %v2577 = vadd.f32 0.0, %v2576
      %2578 = vmatmul.bf16.gmra.mxu0 %v1936
      %v2579 = vpop.f32.mrf.mxu0
      %v2580 = vadd.f32 0.0, %v2579
      %v2581 = vpop.f32.mrf.mxu0
      %v2582 = vadd.f32 0.0, %v2581
      %2583 = vmatmul.bf16.gmra.mxu0 %v1942
      %v2584 = vpop.f32.mrf.mxu0
      %v2585 = vadd.f32 0.0, %v2584
      %v2586 = vpop.f32.mrf.mxu0
      %v2587 = vadd.f32 0.0, %v2586
      %2588 = vmatmul.bf16.gmra.mxu0 %v1948
      %v2589 = vpop.f32.mrf.mxu0
      %v2590 = vadd.f32 0.0, %v2589
      %v2591 = vpop.f32.mrf.mxu0
      %v2592 = vadd.f32 0.0, %v2591
      %2593 = vmatmul.bf16.gmra.mxu0 %v1954
      %v2594 = vpop.f32.mrf.mxu0
      %v2595 = vadd.f32 0.0, %v2594
      %v2596 = vpop.f32.mrf.mxu0
      %v2597 = vadd.f32 0.0, %v2596
      %2598 = vmatmul.bf16.gmra.mxu0 %v1963
      %v2599 = vpop.f32.mrf.mxu0
      %v2600 = vadd.f32 0.0, %v2599
      %v2601 = vpop.f32.mrf.mxu0
      %v2602 = vadd.f32 0.0, %v2601
      %2603 = vmatmul.bf16.gmra.mxu0 %v1969
      %v2604 = vpop.f32.mrf.mxu0
      %v2605 = vadd.f32 0.0, %v2604
      %v2606 = vpop.f32.mrf.mxu0
      %v2607 = vadd.f32 0.0, %v2606
      %2608 = vmatmul.bf16.gmra.mxu0 %v1975
      %v2609 = vpop.f32.mrf.mxu0
      %v2610 = vadd.f32 0.0, %v2609
      %v2611 = vpop.f32.mrf.mxu0
      %v2612 = vadd.f32 0.0, %v2611
      %2613 = vmatmul.bf16.gmra.mxu0 %v1981
      %v2614 = vpop.f32.mrf.mxu0
      %v2615 = vadd.f32 0.0, %v2614
      %v2616 = vpop.f32.mrf.mxu0
      %v2617 = vadd.f32 0.0, %v2616
      %2618 = vdwg.mxu0
      %2619 = vmatpush.bf16.msra.mxu0 %v2401
      %2620 = vmatpush.bf16.msra.mxu0 %v2400
      %2621 = vmatpush.bf16.msra.mxu0 %v2399
      %2622 = vmatpush.bf16.msra.mxu0 %v2398
      %2623 = vmatpush.bf16.msra.mxu0 %v2397
      %2624 = vmatpush.bf16.msra.mxu0 %v2396
      %2625 = vmatpush.bf16.msra.mxu0 %v2395
      %2626 = vmatpush.bf16.msra.mxu0 %v2394
      %2627 = vmatmul.bf16.gmra.mxu0 %v1883
      %v2628 = vpop.f32.mrf.mxu0
      %v2629 = vadd.f32 %v2540, %v2628
      %v2630 = vpop.f32.mrf.mxu0
      %v2631 = vadd.f32 %v2542, %v2630
      %2632 = vmatmul.bf16.gmra.mxu0 %v1889
      %v2633 = vpop.f32.mrf.mxu0
      %v2634 = vadd.f32 %v2545, %v2633
      %v2635 = vpop.f32.mrf.mxu0
      %v2636 = vadd.f32 %v2547, %v2635
      %2637 = vmatmul.bf16.gmra.mxu0 %v1895
      %v2638 = vpop.f32.mrf.mxu0
      %v2639 = vadd.f32 %v2550, %v2638
      %v2640 = vpop.f32.mrf.mxu0
      %v2641 = vadd.f32 %v2552, %v2640
      %2642 = vmatmul.bf16.gmra.mxu0 %v1901
      %v2643 = vpop.f32.mrf.mxu0
      %v2644 = vadd.f32 %v2555, %v2643
      %v2645 = vpop.f32.mrf.mxu0
      %v2646 = vadd.f32 %v2557, %v2645
      %2647 = vmatmul.bf16.gmra.mxu0 %v1910
      %v2648 = vpop.f32.mrf.mxu0
      %v2649 = vadd.f32 %v2560, %v2648
      %v2650 = vpop.f32.mrf.mxu0
      %v2651 = vadd.f32 %v2562, %v2650
      %2652 = vmatmul.bf16.gmra.mxu0 %v1916
      %v2653 = vpop.f32.mrf.mxu0
      %v2654 = vadd.f32 %v2565, %v2653
      %v2655 = vpop.f32.mrf.mxu0
      %v2656 = vadd.f32 %v2567, %v2655
      %2657 = vmatmul.bf16.gmra.mxu0 %v1922
      %v2658 = vpop.f32.mrf.mxu0
      %v2659 = vadd.f32 %v2570, %v2658
      %v2660 = vpop.f32.mrf.mxu0
      %v2661 = vadd.f32 %v2572, %v2660
      %2662 = vmatmul.bf16.gmra.mxu0 %v1928
      %v2663 = vpop.f32.mrf.mxu0
      %v2664 = vadd.f32 %v2575, %v2663
      %v2665 = vpop.f32.mrf.mxu0
      %v2666 = vadd.f32 %v2577, %v2665
      %2667 = vmatmul.bf16.gmra.mxu0 %v1937
      %v2668 = vpop.f32.mrf.mxu0
      %v2669 = vadd.f32 %v2580, %v2668
      %v2670 = vpop.f32.mrf.mxu0
      %v2671 = vadd.f32 %v2582, %v2670
      %2672 = vmatmul.bf16.gmra.mxu0 %v1943
      %v2673 = vpop.f32.mrf.mxu0
      %v2674 = vadd.f32 %v2585, %v2673
      %v2675 = vpop.f32.mrf.mxu0
      %v2676 = vadd.f32 %v2587, %v2675
      %2677 = vmatmul.bf16.gmra.mxu0 %v1949
      %v2678 = vpop.f32.mrf.mxu0
      %v2679 = vadd.f32 %v2590, %v2678
      %v2680 = vpop.f32.mrf.mxu0
      %v2681 = vadd.f32 %v2592, %v2680
      %2682 = vmatmul.bf16.gmra.mxu0 %v1955
      %v2683 = vpop.f32.mrf.mxu0
      %v2684 = vadd.f32 %v2595, %v2683
      %v2685 = vpop.f32.mrf.mxu0
      %v2686 = vadd.f32 %v2597, %v2685
      %2687 = vmatmul.bf16.gmra.mxu0 %v1964
      %v2688 = vpop.f32.mrf.mxu0
      %v2689 = vadd.f32 %v2600, %v2688
      %v2690 = vpop.f32.mrf.mxu0
      %v2691 = vadd.f32 %v2602, %v2690
      %2692 = vmatmul.bf16.gmra.mxu0 %v1970
      %v2693 = vpop.f32.mrf.mxu0
      %v2694 = vadd.f32 %v2605, %v2693
      %v2695 = vpop.f32.mrf.mxu0
      %v2696 = vadd.f32 %v2607, %v2695
      %2697 = vmatmul.bf16.gmra.mxu0 %v1976
      %v2698 = vpop.f32.mrf.mxu0
      %v2699 = vadd.f32 %v2610, %v2698
      %v2700 = vpop.f32.mrf.mxu0
      %v2701 = vadd.f32 %v2612, %v2700
      %2702 = vmatmul.bf16.gmra.mxu0 %v1982
      %v2703 = vpop.f32.mrf.mxu0
      %v2704 = vadd.f32 %v2615, %v2703
      %v2705 = vpop.f32.mrf.mxu0
      %v2706 = vadd.f32 %v2617, %v2705
      %2707 = vdwg.mxu0
      %2708 = vmatpush.bf16.msra.mxu0 %v2409
      %2709 = vmatpush.bf16.msra.mxu0 %v2408
      %2710 = vmatpush.bf16.msra.mxu0 %v2407
      %2711 = vmatpush.bf16.msra.mxu0 %v2406
      %2712 = vmatpush.bf16.msra.mxu0 %v2405
      %2713 = vmatpush.bf16.msra.mxu0 %v2404
      %2714 = vmatpush.bf16.msra.mxu0 %v2403
      %2715 = vmatpush.bf16.msra.mxu0 %v2402
      %2716 = vmatmul.bf16.gmra.mxu0 %v1884
      %v2717 = vpop.f32.mrf.mxu0
      %v2718 = vadd.f32 %v2629, %v2717
      %v2719 = vpop.f32.mrf.mxu0
      %v2720 = vadd.f32 %v2631, %v2719
      %2721 = vmatmul.bf16.gmra.mxu0 %v1890
      %v2722 = vpop.f32.mrf.mxu0
      %v2723 = vadd.f32 %v2634, %v2722
      %v2724 = vpop.f32.mrf.mxu0
      %v2725 = vadd.f32 %v2636, %v2724
      %2726 = vmatmul.bf16.gmra.mxu0 %v1896
      %v2727 = vpop.f32.mrf.mxu0
      %v2728 = vadd.f32 %v2639, %v2727
      %v2729 = vpop.f32.mrf.mxu0
      %v2730 = vadd.f32 %v2641, %v2729
      %2731 = vmatmul.bf16.gmra.mxu0 %v1902
      %v2732 = vpop.f32.mrf.mxu0
      %v2733 = vadd.f32 %v2644, %v2732
      %v2734 = vpop.f32.mrf.mxu0
      %v2735 = vadd.f32 %v2646, %v2734
      %2736 = vmatmul.bf16.gmra.mxu0 %v1911
      %v2737 = vpop.f32.mrf.mxu0
      %v2738 = vadd.f32 %v2649, %v2737
      %v2739 = vpop.f32.mrf.mxu0
      %v2740 = vadd.f32 %v2651, %v2739
      %2741 = vmatmul.bf16.gmra.mxu0 %v1917
      %v2742 = vpop.f32.mrf.mxu0
      %v2743 = vadd.f32 %v2654, %v2742
      %v2744 = vpop.f32.mrf.mxu0
      %v2745 = vadd.f32 %v2656, %v2744
      %2746 = vmatmul.bf16.gmra.mxu0 %v1923
      %v2747 = vpop.f32.mrf.mxu0
      %v2748 = vadd.f32 %v2659, %v2747
      %v2749 = vpop.f32.mrf.mxu0
      %v2750 = vadd.f32 %v2661, %v2749
      %2751 = vmatmul.bf16.gmra.mxu0 %v1929
      %v2752 = vpop.f32.mrf.mxu0
      %v2753 = vadd.f32 %v2664, %v2752
      %v2754 = vpop.f32.mrf.mxu0
      %v2755 = vadd.f32 %v2666, %v2754
      %2756 = vmatmul.bf16.gmra.mxu0 %v1938
      %v2757 = vpop.f32.mrf.mxu0
      %v2758 = vadd.f32 %v2669, %v2757
      %v2759 = vpop.f32.mrf.mxu0
      %v2760 = vadd.f32 %v2671, %v2759
      %2761 = vmatmul.bf16.gmra.mxu0 %v1944
      %v2762 = vpop.f32.mrf.mxu0
      %v2763 = vadd.f32 %v2674, %v2762
      %v2764 = vpop.f32.mrf.mxu0
      %v2765 = vadd.f32 %v2676, %v2764
      %2766 = vmatmul.bf16.gmra.mxu0 %v1950
      %v2767 = vpop.f32.mrf.mxu0
      %v2768 = vadd.f32 %v2679, %v2767
      %v2769 = vpop.f32.mrf.mxu0
      %v2770 = vadd.f32 %v2681, %v2769
      %2771 = vmatmul.bf16.gmra.mxu0 %v1956
      %v2772 = vpop.f32.mrf.mxu0
      %v2773 = vadd.f32 %v2684, %v2772
      %v2774 = vpop.f32.mrf.mxu0
      %v2775 = vadd.f32 %v2686, %v2774
      %2776 = vmatmul.bf16.gmra.mxu0 %v1965
      %v2777 = vpop.f32.mrf.mxu0
      %v2778 = vadd.f32 %v2689, %v2777
      %v2779 = vpop.f32.mrf.mxu0
      %v2780 = vadd.f32 %v2691, %v2779
      %2781 = vmatmul.bf16.gmra.mxu0 %v1971
      %v2782 = vpop.f32.mrf.mxu0
      %v2783 = vadd.f32 %v2694, %v2782
      %v2784 = vpop.f32.mrf.mxu0
      %v2785 = vadd.f32 %v2696, %v2784
      %2786 = vmatmul.bf16.gmra.mxu0 %v1977
      %v2787 = vpop.f32.mrf.mxu0
      %v2788 = vadd.f32 %v2699, %v2787
      %v2789 = vpop.f32.mrf.mxu0
      %v2790 = vadd.f32 %v2701, %v2789
      %2791 = vmatmul.bf16.gmra.mxu0 %v1983
      %v2792 = vpop.f32.mrf.mxu0
      %v2793 = vadd.f32 %v2704, %v2792
      %v2794 = vpop.f32.mrf.mxu0
      %v2795 = vadd.f32 %v2706, %v2794
      %2796 = vdwg.mxu0
      %2797 = vmatpush.bf16.msra.mxu0 %v2417
      %2798 = vmatpush.bf16.msra.mxu0 %v2416
      %2799 = vmatpush.bf16.msra.mxu0 %v2415
      %2800 = vmatpush.bf16.msra.mxu0 %v2414
      %2801 = vmatpush.bf16.msra.mxu0 %v2413
      %2802 = vmatpush.bf16.msra.mxu0 %v2412
      %2803 = vmatpush.bf16.msra.mxu0 %v2411
      %2804 = vmatpush.bf16.msra.mxu0 %v2410
      %2805 = vmatmul.bf16.gmra.mxu0 %v1885
      %v2806 = vpop.f32.mrf.mxu0
      %v2807 = vadd.f32 %v2718, %v2806
      %v2808 = vpop.f32.mrf.mxu0
      %v2809 = vadd.f32 %v2720, %v2808
      %2810 = vmatmul.bf16.gmra.mxu0 %v1891
      %v2811 = vpop.f32.mrf.mxu0
      %v2812 = vadd.f32 %v2723, %v2811
      %v2813 = vpop.f32.mrf.mxu0
      %v2814 = vadd.f32 %v2725, %v2813
      %2815 = vmatmul.bf16.gmra.mxu0 %v1897
      %v2816 = vpop.f32.mrf.mxu0
      %v2817 = vadd.f32 %v2728, %v2816
      %v2818 = vpop.f32.mrf.mxu0
      %v2819 = vadd.f32 %v2730, %v2818
      %2820 = vmatmul.bf16.gmra.mxu0 %v1903
      %v2821 = vpop.f32.mrf.mxu0
      %v2822 = vadd.f32 %v2733, %v2821
      %v2823 = vpop.f32.mrf.mxu0
      %v2824 = vadd.f32 %v2735, %v2823
      %2825 = vmatmul.bf16.gmra.mxu0 %v1912
      %v2826 = vpop.f32.mrf.mxu0
      %v2827 = vadd.f32 %v2738, %v2826
      %v2828 = vpop.f32.mrf.mxu0
      %v2829 = vadd.f32 %v2740, %v2828
      %2830 = vmatmul.bf16.gmra.mxu0 %v1918
      %v2831 = vpop.f32.mrf.mxu0
      %v2832 = vadd.f32 %v2743, %v2831
      %v2833 = vpop.f32.mrf.mxu0
      %v2834 = vadd.f32 %v2745, %v2833
      %2835 = vmatmul.bf16.gmra.mxu0 %v1924
      %v2836 = vpop.f32.mrf.mxu0
      %v2837 = vadd.f32 %v2748, %v2836
      %v2838 = vpop.f32.mrf.mxu0
      %v2839 = vadd.f32 %v2750, %v2838
      %2840 = vmatmul.bf16.gmra.mxu0 %v1930
      %v2841 = vpop.f32.mrf.mxu0
      %v2842 = vadd.f32 %v2753, %v2841
      %v2843 = vpop.f32.mrf.mxu0
      %v2844 = vadd.f32 %v2755, %v2843
      %2845 = vmatmul.bf16.gmra.mxu0 %v1939
      %v2846 = vpop.f32.mrf.mxu0
      %v2847 = vadd.f32 %v2758, %v2846
      %v2848 = vpop.f32.mrf.mxu0
      %v2849 = vadd.f32 %v2760, %v2848
      %2850 = vmatmul.bf16.gmra.mxu0 %v1945
      %v2851 = vpop.f32.mrf.mxu0
      %v2852 = vadd.f32 %v2763, %v2851
      %v2853 = vpop.f32.mrf.mxu0
      %v2854 = vadd.f32 %v2765, %v2853
      %2855 = vmatmul.bf16.gmra.mxu0 %v1951
      %v2856 = vpop.f32.mrf.mxu0
      %v2857 = vadd.f32 %v2768, %v2856
      %v2858 = vpop.f32.mrf.mxu0
      %v2859 = vadd.f32 %v2770, %v2858
      %2860 = vmatmul.bf16.gmra.mxu0 %v1957
      %v2861 = vpop.f32.mrf.mxu0
      %v2862 = vadd.f32 %v2773, %v2861
      %v2863 = vpop.f32.mrf.mxu0
      %v2864 = vadd.f32 %v2775, %v2863
      %2865 = vmatmul.bf16.gmra.mxu0 %v1966
      %v2866 = vpop.f32.mrf.mxu0
      %v2867 = vadd.f32 %v2778, %v2866
      %v2868 = vpop.f32.mrf.mxu0
      %v2869 = vadd.f32 %v2780, %v2868
      %2870 = vmatmul.bf16.gmra.mxu0 %v1972
      %v2871 = vpop.f32.mrf.mxu0
      %v2872 = vadd.f32 %v2783, %v2871
      %v2873 = vpop.f32.mrf.mxu0
      %v2874 = vadd.f32 %v2785, %v2873
      %2875 = vmatmul.bf16.gmra.mxu0 %v1978
      %v2876 = vpop.f32.mrf.mxu0
      %v2877 = vadd.f32 %v2788, %v2876
      %v2878 = vpop.f32.mrf.mxu0
      %v2879 = vadd.f32 %v2790, %v2878
      %2880 = vmatmul.bf16.gmra.mxu0 %v1984
      %v2881 = vpop.f32.mrf.mxu0
      %v2882 = vadd.f32 %v2793, %v2881
      %v2883 = vpop.f32.mrf.mxu0
      %v2884 = vadd.f32 %v2795, %v2883
      %2885 = vdwg.mxu0
      %2886 = vmatpush.bf16.msra.mxu0 %v2425
      %2887 = vmatpush.bf16.msra.mxu0 %v2424
      %2888 = vmatpush.bf16.msra.mxu0 %v2423
      %2889 = vmatpush.bf16.msra.mxu0 %v2422
      %2890 = vmatpush.bf16.msra.mxu0 %v2421
      %2891 = vmatpush.bf16.msra.mxu0 %v2420
      %2892 = vmatpush.bf16.msra.mxu0 %v2419
      %2893 = vmatpush.bf16.msra.mxu0 %v2418
      %2894 = vmatmul.bf16.gmra.mxu0 %v1886
      %v2895 = vpop.f32.mrf.mxu0
      %v2896 = vadd.f32 %v2807, %v2895
      %v2897 = vpop.f32.mrf.mxu0
      %v2898 = vadd.f32 %v2809, %v2897
      %2899 = vmatmul.bf16.gmra.mxu0 %v1892
      %v2900 = vpop.f32.mrf.mxu0
      %v2901 = vadd.f32 %v2812, %v2900
      %v2902 = vpop.f32.mrf.mxu0
      %v2903 = vadd.f32 %v2814, %v2902
      %2904 = vmatmul.bf16.gmra.mxu0 %v1898
      %v2905 = vpop.f32.mrf.mxu0
      %v2906 = vadd.f32 %v2817, %v2905
      %v2907 = vpop.f32.mrf.mxu0
      %v2908 = vadd.f32 %v2819, %v2907
      %2909 = vmatmul.bf16.gmra.mxu0 %v1904
      %v2910 = vpop.f32.mrf.mxu0
      %v2911 = vadd.f32 %v2822, %v2910
      %v2912 = vpop.f32.mrf.mxu0
      %v2913 = vadd.f32 %v2824, %v2912
      %2914 = vmatmul.bf16.gmra.mxu0 %v1913
      %v2915 = vpop.f32.mrf.mxu0
      %v2916 = vadd.f32 %v2827, %v2915
      %v2917 = vpop.f32.mrf.mxu0
      %v2918 = vadd.f32 %v2829, %v2917
      %2919 = vmatmul.bf16.gmra.mxu0 %v1919
      %v2920 = vpop.f32.mrf.mxu0
      %v2921 = vadd.f32 %v2832, %v2920
      %v2922 = vpop.f32.mrf.mxu0
      %v2923 = vadd.f32 %v2834, %v2922
      %2924 = vmatmul.bf16.gmra.mxu0 %v1925
      %v2925 = vpop.f32.mrf.mxu0
      %v2926 = vadd.f32 %v2837, %v2925
      %v2927 = vpop.f32.mrf.mxu0
      %v2928 = vadd.f32 %v2839, %v2927
      %2929 = vmatmul.bf16.gmra.mxu0 %v1931
      %v2930 = vpop.f32.mrf.mxu0
      %v2931 = vadd.f32 %v2842, %v2930
      %v2932 = vpop.f32.mrf.mxu0
      %v2933 = vadd.f32 %v2844, %v2932
      %2934 = vmatmul.bf16.gmra.mxu0 %v1940
      %v2935 = vpop.f32.mrf.mxu0
      %v2936 = vadd.f32 %v2847, %v2935
      %v2937 = vpop.f32.mrf.mxu0
      %v2938 = vadd.f32 %v2849, %v2937
      %2939 = vmatmul.bf16.gmra.mxu0 %v1946
      %v2940 = vpop.f32.mrf.mxu0
      %v2941 = vadd.f32 %v2852, %v2940
      %v2942 = vpop.f32.mrf.mxu0
      %v2943 = vadd.f32 %v2854, %v2942
      %2944 = vmatmul.bf16.gmra.mxu0 %v1952
      %v2945 = vpop.f32.mrf.mxu0
      %v2946 = vadd.f32 %v2857, %v2945
      %v2947 = vpop.f32.mrf.mxu0
      %v2948 = vadd.f32 %v2859, %v2947
      %2949 = vmatmul.bf16.gmra.mxu0 %v1958
      %v2950 = vpop.f32.mrf.mxu0
      %v2951 = vadd.f32 %v2862, %v2950
      %v2952 = vpop.f32.mrf.mxu0
      %v2953 = vadd.f32 %v2864, %v2952
      %2954 = vmatmul.bf16.gmra.mxu0 %v1967
      %v2955 = vpop.f32.mrf.mxu0
      %v2956 = vadd.f32 %v2867, %v2955
      %v2957 = vpop.f32.mrf.mxu0
      %v2958 = vadd.f32 %v2869, %v2957
      %2959 = vmatmul.bf16.gmra.mxu0 %v1973
      %v2960 = vpop.f32.mrf.mxu0
      %v2961 = vadd.f32 %v2872, %v2960
      %v2962 = vpop.f32.mrf.mxu0
      %v2963 = vadd.f32 %v2874, %v2962
      %2964 = vmatmul.bf16.gmra.mxu0 %v1979
      %v2965 = vpop.f32.mrf.mxu0
      %v2966 = vadd.f32 %v2877, %v2965
      %v2967 = vpop.f32.mrf.mxu0
      %v2968 = vadd.f32 %v2879, %v2967
      %2969 = vmatmul.bf16.gmra.mxu0 %v1985
      %v2970 = vpop.f32.mrf.mxu0
      %v2971 = vadd.f32 %v2882, %v2970
      %v2972 = vpop.f32.mrf.mxu0
      %v2973 = vadd.f32 %v2884, %v2972
      %2974 = vdwg.mxu0
      %2975 = vmatpush.bf16.msra.mxu0 %v2433
      %2976 = vmatpush.bf16.msra.mxu0 %v2432
      %2977 = vmatpush.bf16.msra.mxu0 %v2431
      %2978 = vmatpush.bf16.msra.mxu0 %v2430
      %2979 = vmatpush.bf16.msra.mxu0 %v2429
      %2980 = vmatpush.bf16.msra.mxu0 %v2428
      %2981 = vmatpush.bf16.msra.mxu0 %v2427
      %2982 = vmatpush.bf16.msra.mxu0 %v2426
      %2983 = vmatmul.bf16.gmra.mxu0 %v1887
      %v2984 = vpop.f32.mrf.mxu0
      %v2985 = vadd.f32 %v2896, %v2984
      %v2986 = vpop.f32.mrf.mxu0
      %v2987 = vadd.f32 %v2898, %v2986
      %2988 = vmatmul.bf16.gmra.mxu0 %v1893
      %v2989 = vpop.f32.mrf.mxu0
      %v2990 = vadd.f32 %v2901, %v2989
      %v2991 = vpop.f32.mrf.mxu0
      %v2992 = vadd.f32 %v2903, %v2991
      %2993 = vmatmul.bf16.gmra.mxu0 %v1899
      %v2994 = vpop.f32.mrf.mxu0
      %v2995 = vadd.f32 %v2906, %v2994
      %v2996 = vpop.f32.mrf.mxu0
      %v2997 = vadd.f32 %v2908, %v2996
      %2998 = vmatmul.bf16.gmra.mxu0 %v1905
      %v2999 = vpop.f32.mrf.mxu0
      %v3000 = vadd.f32 %v2911, %v2999
      %v3001 = vpop.f32.mrf.mxu0
      %v3002 = vadd.f32 %v2913, %v3001
      %3003 = vmatmul.bf16.gmra.mxu0 %v1914
      %v3004 = vpop.f32.mrf.mxu0
      %v3005 = vadd.f32 %v2916, %v3004
      %v3006 = vpop.f32.mrf.mxu0
      %v3007 = vadd.f32 %v2918, %v3006
      %3008 = vmatmul.bf16.gmra.mxu0 %v1920
      %v3009 = vpop.f32.mrf.mxu0
      %v3010 = vadd.f32 %v2921, %v3009
      %v3011 = vpop.f32.mrf.mxu0
      %v3012 = vadd.f32 %v2923, %v3011
      %3013 = vmatmul.bf16.gmra.mxu0 %v1926
      %v3014 = vpop.f32.mrf.mxu0
      %v3015 = vadd.f32 %v2926, %v3014
      %v3016 = vpop.f32.mrf.mxu0
      %v3017 = vadd.f32 %v2928, %v3016
      %3018 = vmatmul.bf16.gmra.mxu0 %v1932
      %v3019 = vpop.f32.mrf.mxu0
      %v3020 = vadd.f32 %v2931, %v3019
      %v3021 = vpop.f32.mrf.mxu0
      %v3022 = vadd.f32 %v2933, %v3021
      %3023 = vmatmul.bf16.gmra.mxu0 %v1941
      %v3024 = vpop.f32.mrf.mxu0
      %v3025 = vadd.f32 %v2936, %v3024
      %v3026 = vpop.f32.mrf.mxu0
      %v3027 = vadd.f32 %v2938, %v3026
      %3028 = vmatmul.bf16.gmra.mxu0 %v1947
      %v3029 = vpop.f32.mrf.mxu0
      %v3030 = vadd.f32 %v2941, %v3029
      %v3031 = vpop.f32.mrf.mxu0
      %v3032 = vadd.f32 %v2943, %v3031
      %3033 = vmatmul.bf16.gmra.mxu0 %v1953
      %v3034 = vpop.f32.mrf.mxu0
      %v3035 = vadd.f32 %v2946, %v3034
      %v3036 = vpop.f32.mrf.mxu0
      %v3037 = vadd.f32 %v2948, %v3036
      %3038 = vmatmul.bf16.gmra.mxu0 %v1959
      %v3039 = vpop.f32.mrf.mxu0
      %v3040 = vadd.f32 %v2951, %v3039
      %v3041 = vpop.f32.mrf.mxu0
      %v3042 = vadd.f32 %v2953, %v3041
      %3043 = vmatmul.bf16.gmra.mxu0 %v1968
      %v3044 = vpop.f32.mrf.mxu0
      %v3045 = vadd.f32 %v2956, %v3044
      %v3046 = vpop.f32.mrf.mxu0
      %v3047 = vadd.f32 %v2958, %v3046
      %3048 = vmatmul.bf16.gmra.mxu0 %v1974
      %v3049 = vpop.f32.mrf.mxu0
      %v3050 = vadd.f32 %v2961, %v3049
      %v3051 = vpop.f32.mrf.mxu0
      %v3052 = vadd.f32 %v2963, %v3051
      %3053 = vmatmul.bf16.gmra.mxu0 %v1980
      %v3054 = vpop.f32.mrf.mxu0
      %v3055 = vadd.f32 %v2966, %v3054
      %v3056 = vpop.f32.mrf.mxu0
      %v3057 = vadd.f32 %v2968, %v3056
      %3058 = vmatmul.bf16.gmra.mxu0 %v1986
      %v3059 = vpop.f32.mrf.mxu0
      %v3060 = vadd.f32 %v2971, %v3059
      %v3061 = vpop.f32.mrf.mxu0
      %v3062 = vadd.f32 %v2973, %v3061
      %3063 = vdwg.mxu0
      %3064 = vmatpush.bf16.msra.mxu0 %v2441
      %3065 = vmatpush.bf16.msra.mxu0 %v2440
      %3066 = vmatpush.bf16.msra.mxu0 %v2439
      %3067 = vmatpush.bf16.msra.mxu0 %v2438
      %3068 = vmatpush.bf16.msra.mxu0 %v2437
      %3069 = vmatpush.bf16.msra.mxu0 %v2436
      %3070 = vmatpush.bf16.msra.mxu0 %v2435
      %3071 = vmatpush.bf16.msra.mxu0 %v2434
      %3072 = vmatmul.bf16.gmra.mxu0 %v1888
      %v3073 = vpop.f32.mrf.mxu0
      %v3074 = vadd.f32 %v2985, %v3073
      %v3075 = vpop.f32.mrf.mxu0
      %v3076 = vadd.f32 %v2987, %v3075
      %3077 = vmatmul.bf16.gmra.mxu0 %v1894
      %v3078 = vpop.f32.mrf.mxu0
      %v3079 = vadd.f32 %v2990, %v3078
      %v3080 = vpop.f32.mrf.mxu0
      %v3081 = vadd.f32 %v2992, %v3080
      %3082 = vmatmul.bf16.gmra.mxu0 %v1900
      %v3083 = vpop.f32.mrf.mxu0
      %v3084 = vadd.f32 %v2995, %v3083
      %v3085 = vpop.f32.mrf.mxu0
      %v3086 = vadd.f32 %v2997, %v3085
      %3087 = vmatmul.bf16.gmra.mxu0 %v1906
      %v3088 = vpop.f32.mrf.mxu0
      %v3089 = vadd.f32 %v3000, %v3088
      %v3090 = vpop.f32.mrf.mxu0
      %v3091 = vadd.f32 %v3002, %v3090
      %3092 = vmatmul.bf16.gmra.mxu0 %v1915
      %v3093 = vpop.f32.mrf.mxu0
      %v3094 = vadd.f32 %v3005, %v3093
      %v3095 = vpop.f32.mrf.mxu0
      %v3096 = vadd.f32 %v3007, %v3095
      %3097 = vmatmul.bf16.gmra.mxu0 %v1921
      %v3098 = vpop.f32.mrf.mxu0
      %v3099 = vadd.f32 %v3010, %v3098
      %v3100 = vpop.f32.mrf.mxu0
      %v3101 = vadd.f32 %v3012, %v3100
      %3102 = vmatmul.bf16.gmra.mxu0 %v1927
      %v3103 = vpop.f32.mrf.mxu0
      %v3104 = vadd.f32 %v3015, %v3103
      %v3105 = vpop.f32.mrf.mxu0
      %v3106 = vadd.f32 %v3017, %v3105
      %3107 = vmatmul.bf16.gmra.mxu0 %v1933
      %v3108 = vpop.f32.mrf.mxu0
      %v3109 = vadd.f32 %v3020, %v3108
      %v3110 = vpop.f32.mrf.mxu0
      %v3111 = vadd.f32 %v3022, %v3110
      %3112 = vmatmul.bf16.gmra.mxu0 %v1942
      %v3113 = vpop.f32.mrf.mxu0
      %v3114 = vadd.f32 %v3025, %v3113
      %v3115 = vpop.f32.mrf.mxu0
      %v3116 = vadd.f32 %v3027, %v3115
      %3117 = vmatmul.bf16.gmra.mxu0 %v1948
      %v3118 = vpop.f32.mrf.mxu0
      %v3119 = vadd.f32 %v3030, %v3118
      %v3120 = vpop.f32.mrf.mxu0
      %v3121 = vadd.f32 %v3032, %v3120
      %3122 = vmatmul.bf16.gmra.mxu0 %v1954
      %v3123 = vpop.f32.mrf.mxu0
      %v3124 = vadd.f32 %v3035, %v3123
      %v3125 = vpop.f32.mrf.mxu0
      %v3126 = vadd.f32 %v3037, %v3125
      %3127 = vmatmul.bf16.gmra.mxu0 %v1960
      %v3128 = vpop.f32.mrf.mxu0
      %v3129 = vadd.f32 %v3040, %v3128
      %v3130 = vpop.f32.mrf.mxu0
      %v3131 = vadd.f32 %v3042, %v3130
      %3132 = vmatmul.bf16.gmra.mxu0 %v1969
      %v3133 = vpop.f32.mrf.mxu0
      %v3134 = vadd.f32 %v3045, %v3133
      %v3135 = vpop.f32.mrf.mxu0
      %v3136 = vadd.f32 %v3047, %v3135
      %3137 = vmatmul.bf16.gmra.mxu0 %v1975
      %v3138 = vpop.f32.mrf.mxu0
      %v3139 = vadd.f32 %v3050, %v3138
      %v3140 = vpop.f32.mrf.mxu0
      %v3141 = vadd.f32 %v3052, %v3140
      %3142 = vmatmul.bf16.gmra.mxu0 %v1981
      %v3143 = vpop.f32.mrf.mxu0
      %v3144 = vadd.f32 %v3055, %v3143
      %v3145 = vpop.f32.mrf.mxu0
      %v3146 = vadd.f32 %v3057, %v3145
      %3147 = vmatmul.bf16.gmra.mxu0 %v1987
      %v3148 = vpop.f32.mrf.mxu0
      %v3149 = vadd.f32 %v3060, %v3148
      %v3150 = vpop.f32.mrf.mxu0
      %v3151 = vadd.f32 %v3062, %v3150
      %3152 = vdwg.mxu0
      %3153 = vmatpush.bf16.msra.mxu0 %v2449
      %3154 = vmatpush.bf16.msra.mxu0 %v2448
      %3155 = vmatpush.bf16.msra.mxu0 %v2447
      %3156 = vmatpush.bf16.msra.mxu0 %v2446
      %3157 = vmatpush.bf16.msra.mxu0 %v2445
      %3158 = vmatpush.bf16.msra.mxu0 %v2444
      %3159 = vmatpush.bf16.msra.mxu0 %v2443
      %3160 = vmatpush.bf16.msra.mxu0 %v2442
      %3161 = vmatmul.bf16.gmra.mxu0 %v1889
      %v3162 = vpop.f32.mrf.mxu0
      %v3163 = vadd.f32 %v3074, %v3162
      %v3164 = vpop.f32.mrf.mxu0
      %v3165 = vadd.f32 %v3076, %v3164
      %3166 = vmatmul.bf16.gmra.mxu0 %v1895
      %v3167 = vpop.f32.mrf.mxu0
      %v3168 = vadd.f32 %v3079, %v3167
      %v3169 = vpop.f32.mrf.mxu0
      %v3170 = vadd.f32 %v3081, %v3169
      %3171 = vmatmul.bf16.gmra.mxu0 %v1901
      %v3172 = vpop.f32.mrf.mxu0
      %v3173 = vadd.f32 %v3084, %v3172
      %v3174 = vpop.f32.mrf.mxu0
      %v3175 = vadd.f32 %v3086, %v3174
      %3176 = vmatmul.bf16.gmra.mxu0 %v1907
      %v3177 = vpop.f32.mrf.mxu0
      %v3178 = vadd.f32 %v3089, %v3177
      %v3179 = vpop.f32.mrf.mxu0
      %v3180 = vadd.f32 %v3091, %v3179
      %3181 = vmatmul.bf16.gmra.mxu0 %v1916
      %v3182 = vpop.f32.mrf.mxu0
      %v3183 = vadd.f32 %v3094, %v3182
      %v3184 = vpop.f32.mrf.mxu0
      %v3185 = vadd.f32 %v3096, %v3184
      %3186 = vmatmul.bf16.gmra.mxu0 %v1922
      %v3187 = vpop.f32.mrf.mxu0
      %v3188 = vadd.f32 %v3099, %v3187
      %v3189 = vpop.f32.mrf.mxu0
      %v3190 = vadd.f32 %v3101, %v3189
      %3191 = vmatmul.bf16.gmra.mxu0 %v1928
      %v3192 = vpop.f32.mrf.mxu0
      %v3193 = vadd.f32 %v3104, %v3192
      %v3194 = vpop.f32.mrf.mxu0
      %v3195 = vadd.f32 %v3106, %v3194
      %3196 = vmatmul.bf16.gmra.mxu0 %v1934
      %v3197 = vpop.f32.mrf.mxu0
      %v3198 = vadd.f32 %v3109, %v3197
      %v3199 = vpop.f32.mrf.mxu0
      %v3200 = vadd.f32 %v3111, %v3199
      %3201 = vmatmul.bf16.gmra.mxu0 %v1943
      %v3202 = vpop.f32.mrf.mxu0
      %v3203 = vadd.f32 %v3114, %v3202
      %v3204 = vpop.f32.mrf.mxu0
      %v3205 = vadd.f32 %v3116, %v3204
      %3206 = vmatmul.bf16.gmra.mxu0 %v1949
      %v3207 = vpop.f32.mrf.mxu0
      %v3208 = vadd.f32 %v3119, %v3207
      %v3209 = vpop.f32.mrf.mxu0
      %v3210 = vadd.f32 %v3121, %v3209
      %3211 = vmatmul.bf16.gmra.mxu0 %v1955
      %v3212 = vpop.f32.mrf.mxu0
      %v3213 = vadd.f32 %v3124, %v3212
      %v3214 = vpop.f32.mrf.mxu0
      %v3215 = vadd.f32 %v3126, %v3214
      %3216 = vmatmul.bf16.gmra.mxu0 %v1961
      %v3217 = vpop.f32.mrf.mxu0
      %v3218 = vadd.f32 %v3129, %v3217
      %v3219 = vpop.f32.mrf.mxu0
      %v3220 = vadd.f32 %v3131, %v3219
      %3221 = vmatmul.bf16.gmra.mxu0 %v1970
      %v3222 = vpop.f32.mrf.mxu0
      %v3223 = vadd.f32 %v3134, %v3222
      %v3224 = vpop.f32.mrf.mxu0
      %v3225 = vadd.f32 %v3136, %v3224
      %3226 = vmatmul.bf16.gmra.mxu0 %v1976
      %v3227 = vpop.f32.mrf.mxu0
      %v3228 = vadd.f32 %v3139, %v3227
      %v3229 = vpop.f32.mrf.mxu0
      %v3230 = vadd.f32 %v3141, %v3229
      %3231 = vmatmul.bf16.gmra.mxu0 %v1982
      %v3232 = vpop.f32.mrf.mxu0
      %v3233 = vadd.f32 %v3144, %v3232
      %v3234 = vpop.f32.mrf.mxu0
      %v3235 = vadd.f32 %v3146, %v3234
      %3236 = vmatmul.bf16.gmra.mxu0 %v1988
      %v3237 = vpop.f32.mrf.mxu0
      %v3238 = vadd.f32 %v3149, %v3237
      %v3239 = vpop.f32.mrf.mxu0
      %v3240 = vadd.f32 %v3151, %v3239
      %3241 = vdwg.mxu0
      %3242 = vmatpush.bf16.msra.mxu0 %v2457
      %3243 = vmatpush.bf16.msra.mxu0 %v2456
      %3244 = vmatpush.bf16.msra.mxu0 %v2455
      %3245 = vmatpush.bf16.msra.mxu0 %v2454
      %3246 = vmatpush.bf16.msra.mxu0 %v2453
      %3247 = vmatpush.bf16.msra.mxu0 %v2452
      %3248 = vmatpush.bf16.msra.mxu0 %v2451
      %3249 = vmatpush.bf16.msra.mxu0 %v2450
      %3250 = vmatmul.bf16.gmra.mxu0 %v1890
      %v3251 = vpop.f32.mrf.mxu0
      %v3252 = vadd.f32 %v3163, %v3251
      %v3253 = vpop.f32.mrf.mxu0
      %v3254 = vadd.f32 %v3165, %v3253
      %3255 = vmatmul.bf16.gmra.mxu0 %v1896
      %v3256 = vpop.f32.mrf.mxu0
      %v3257 = vadd.f32 %v3168, %v3256
      %v3258 = vpop.f32.mrf.mxu0
      %v3259 = vadd.f32 %v3170, %v3258
      %3260 = vmatmul.bf16.gmra.mxu0 %v1902
      %v3261 = vpop.f32.mrf.mxu0
      %v3262 = vadd.f32 %v3173, %v3261
      %v3263 = vpop.f32.mrf.mxu0
      %v3264 = vadd.f32 %v3175, %v3263
      %3265 = vmatmul.bf16.gmra.mxu0 %v1908
      %v3266 = vpop.f32.mrf.mxu0
      %v3267 = vadd.f32 %v3178, %v3266
      %v3268 = vpop.f32.mrf.mxu0
      %v3269 = vadd.f32 %v3180, %v3268
      %3270 = vmatmul.bf16.gmra.mxu0 %v1917
      %v3271 = vpop.f32.mrf.mxu0
      %v3272 = vadd.f32 %v3183, %v3271
      %v3273 = vpop.f32.mrf.mxu0
      %v3274 = vadd.f32 %v3185, %v3273
      %3275 = vmatmul.bf16.gmra.mxu0 %v1923
      %v3276 = vpop.f32.mrf.mxu0
      %v3277 = vadd.f32 %v3188, %v3276
      %v3278 = vpop.f32.mrf.mxu0
      %v3279 = vadd.f32 %v3190, %v3278
      %3280 = vmatmul.bf16.gmra.mxu0 %v1929
      %v3281 = vpop.f32.mrf.mxu0
      %v3282 = vadd.f32 %v3193, %v3281
      %v3283 = vpop.f32.mrf.mxu0
      %v3284 = vadd.f32 %v3195, %v3283
      %3285 = vmatmul.bf16.gmra.mxu0 %v1935
      %v3286 = vpop.f32.mrf.mxu0
      %v3287 = vadd.f32 %v3198, %v3286
      %v3288 = vpop.f32.mrf.mxu0
      %v3289 = vadd.f32 %v3200, %v3288
      %3290 = vmatmul.bf16.gmra.mxu0 %v1944
      %v3291 = vpop.f32.mrf.mxu0
      %v3292 = vadd.f32 %v3203, %v3291
      %v3293 = vpop.f32.mrf.mxu0
      %v3294 = vadd.f32 %v3205, %v3293
      %3295 = vmatmul.bf16.gmra.mxu0 %v1950
      %v3296 = vpop.f32.mrf.mxu0
      %v3297 = vadd.f32 %v3208, %v3296
      %v3298 = vpop.f32.mrf.mxu0
      %v3299 = vadd.f32 %v3210, %v3298
      %3300 = vmatmul.bf16.gmra.mxu0 %v1956
      %v3301 = vpop.f32.mrf.mxu0
      %v3302 = vadd.f32 %v3213, %v3301
      %v3303 = vpop.f32.mrf.mxu0
      %v3304 = vadd.f32 %v3215, %v3303
      %3305 = vmatmul.bf16.gmra.mxu0 %v1962
      %v3306 = vpop.f32.mrf.mxu0
      %v3307 = vadd.f32 %v3218, %v3306
      %v3308 = vpop.f32.mrf.mxu0
      %v3309 = vadd.f32 %v3220, %v3308
      %3310 = vmatmul.bf16.gmra.mxu0 %v1971
      %v3311 = vpop.f32.mrf.mxu0
      %v3312 = vadd.f32 %v3223, %v3311
      %v3313 = vpop.f32.mrf.mxu0
      %v3314 = vadd.f32 %v3225, %v3313
      %3315 = vmatmul.bf16.gmra.mxu0 %v1977
      %v3316 = vpop.f32.mrf.mxu0
      %v3317 = vadd.f32 %v3228, %v3316
      %v3318 = vpop.f32.mrf.mxu0
      %v3319 = vadd.f32 %v3230, %v3318
      %3320 = vmatmul.bf16.gmra.mxu0 %v1983
      %v3321 = vpop.f32.mrf.mxu0
      %v3322 = vadd.f32 %v3233, %v3321
      %v3323 = vpop.f32.mrf.mxu0
      %v3324 = vadd.f32 %v3235, %v3323
      %3325 = vmatmul.bf16.gmra.mxu0 %v1989
      %v3326 = vpop.f32.mrf.mxu0
      %v3327 = vadd.f32 %v3238, %v3326
      %v3328 = vpop.f32.mrf.mxu0
      %v3329 = vadd.f32 %v3240, %v3328
      %3330 = vdwg.mxu0
      %v3331 = vpack.c.b16 %v634, %v632
      %v3332 = vpack.c.b16 %v1639, %v1637
      %v3333 = vpack.c.b16 %v1640, %v1638
      %v3334 = vpack.c.b16 %v636, %v634
      %v3335 = vpack.c.b16 %v1641, %v1639
      %v3336 = vpack.c.b16 %v1642, %v1640
      %v3337 = vpack.c.b16 %v638, %v636
      %v3338 = vpack.c.b16 %v1643, %v1641
      %v3339 = vpack.c.b16 %v1644, %v1642
      %v3340 = vpack.c.b16 %v640, %v638
      %v3341 = vpack.c.b16 %v1645, %v1643
      %v3342 = vpack.c.b16 %v1646, %v1644
      %v3343 = vpack.c.b16 %v642, %v640
      %v3344 = vpack.c.b16 %v1647, %v1645
      %v3345 = vpack.c.b16 %v1648, %v1646
      %v3346 = vpack.c.b16 %v644, %v642
      %v3347 = vpack.c.b16 %v1649, %v1647
      %v3348 = vpack.c.b16 %v1650, %v1648
      %v3349 = vpack.c.b16 %v646, %v644
      %v3350 = vpack.c.b16 %v1651, %v1649
      %v3351 = vpack.c.b16 %v1652, %v1650
      %v3352 = vpack.c.b16 %v648, %v646
      %v3353 = vpack.c.b16 %v1653, %v1651
      %v3354 = vpack.c.b16 %v1654, %v1652
      %v3355 = vpack.c.b16 %v650, %v648
      %v3356 = vpack.c.b16 %v1655, %v1653
      %v3357 = vpack.c.b16 %v1656, %v1654
      %v3529 = vunpack.c.l.b16 %v1493
      %v3530 = vunpack.c.l.b16 %v1494
      %v3531 = vunpack.c.l.b16 %v1495
      %v3532 = vunpack.c.l.b16 %v1496
      %v3533 = vunpack.c.l.b16 %v1497
      %v3534 = vunpack.c.l.b16 %v1498
      %v3535 = vunpack.c.l.b16 %v1499
      %v3536 = vunpack.c.l.b16 %v1500
      %v3537 = vunpack.c.l.b16 %v1501
      %v3538 = vunpack.c.l.b16 %v1502
      %v3539 = vunpack.c.l.b16 %v1503
      %v3540 = vunpack.c.l.b16 %v1504
      %v3541 = vunpack.c.l.b16 %v1505
      %v3542 = vunpack.c.l.b16 %v1506
      %v3543 = vunpack.c.l.b16 %v1507
      %v3544 = vunpack.c.l.b16 %v1508
      %v3545 = vunpack.c.l.b16 %v1509
      %v3546 = vunpack.c.l.b16 %v1510
      %v3547 = vunpack.c.l.b16 %v1511
      %v3548 = vunpack.c.l.b16 %v1512
      %v3549 = vunpack.c.l.b16 %v1513
      %v3550 = vunpack.c.l.b16 %v1514
      %v3551 = vunpack.c.l.b16 %v1515
      %v3552 = vunpack.c.l.b16 %v1516
      %v3553 = vunpack.c.l.b16 %v1517
      %v3554 = vunpack.c.l.b16 %v1518
      %v3555 = vunpack.c.l.b16 %v1519
      %v3556 = vunpack.c.l.b16 %v1520
      %v3557 = vunpack.c.l.b16 %v1521
      %v3558 = vunpack.c.l.b16 %v1522
      %v3559 = vunpack.c.l.b16 %v1523
      %v3560 = vunpack.c.l.b16 %v1524
      %v3561 = vunpack.c.l.b16 %v1525
      %v3562 = vunpack.c.l.b16 %v1526
      %v3563 = vunpack.c.l.b16 %v1527
      %v3564 = vunpack.c.l.b16 %v1528
      %v3565 = vunpack.c.l.b16 %v1529
      %v3566 = vunpack.c.l.b16 %v1530
      %v3567 = vunpack.c.l.b16 %v1531
      %v3568 = vunpack.c.l.b16 %v1532
      %v3569 = vunpack.c.l.b16 %v1533
      %v3570 = vunpack.c.l.b16 %v1534
      %v3571 = vunpack.c.l.b16 %v1535
      %v3572 = vunpack.c.l.b16 %v1536
      %v3573 = vunpack.c.l.b16 %v1537
      %v3574 = vunpack.c.l.b16 %v1538
      %v3575 = vunpack.c.l.b16 %v1539
      %v3576 = vunpack.c.l.b16 %v1540
      %v3577 = vunpack.c.l.b16 %v1541
      %v3578 = vunpack.c.l.b16 %v1542
      %v3579 = vunpack.c.l.b16 %v1543
      %v3580 = vunpack.c.l.b16 %v1544
      %v3581 = vunpack.c.l.b16 %v1545
      %v3582 = vunpack.c.l.b16 %v1546
      %v3583 = vunpack.c.l.b16 %v1547
      %v3584 = vunpack.c.l.b16 %v1548
      %v3585 = vunpack.c.l.b16 %v1549
      %v3586 = vunpack.c.l.b16 %v1550
      %v3587 = vunpack.c.l.b16 %v1551
      %v3588 = vunpack.c.l.b16 %v1552
      %v3589 = vunpack.c.l.b16 %v1553
      %v3590 = vunpack.c.l.b16 %v1554
      %v3591 = vunpack.c.l.b16 %v1555
      %v3592 = vunpack.c.l.b16 %v1556
      %v3593 = vunpack.c.l.b16 %v1557
      %v3594 = vunpack.c.l.b16 %v1558
      %v3595 = vunpack.c.l.b16 %v1559
      %v3596 = vunpack.c.l.b16 %v1560
      %v3597 = vunpack.c.l.b16 %v1561
      %v3598 = vunpack.c.l.b16 %v1562
      %v3599 = vunpack.c.l.b16 %v1563
      %v3600 = vunpack.c.l.b16 %v1564
      %v3601 = vunpack.c.l.b16 %v1565
      %v3602 = vunpack.c.l.b16 %v1566
      %v3603 = vunpack.c.l.b16 %v1567
      %v3604 = vunpack.c.l.b16 %v1568
      %v3605 = vunpack.c.l.b16 %v1569
      %v3606 = vunpack.c.l.b16 %v1570
      %v3607 = vunpack.c.l.b16 %v1571
      %v3608 = vunpack.c.l.b16 %v1572
      %v3609 = vunpack.c.l.b16 %v1573
      %v3610 = vunpack.c.l.b16 %v1574
      %v3611 = vunpack.c.l.b16 %v1575
      %v3612 = vunpack.c.l.b16 %v1576
      %v3613 = vunpack.c.l.b16 %v1577
      %v3614 = vunpack.c.l.b16 %v1578
      %v3615 = vunpack.c.l.b16 %v1579
      %v3616 = vunpack.c.l.b16 %v1580
      %v3617 = vunpack.c.l.b16 %v1581
      %v3618 = vunpack.c.l.b16 %v1582
      %v3619 = vunpack.c.l.b16 %v1583
      %v3620 = vunpack.c.l.b16 %v1584
      %v3621 = vunpack.c.l.b16 %v1585
      %v3622 = vunpack.c.l.b16 %v1586
      %v3623 = vunpack.c.l.b16 %v1587
      %v3624 = vunpack.c.l.b16 %v1588
      %v3625 = vunpack.c.l.b16 %v1589
      %v3626 = vunpack.c.l.b16 %v1590
      %v3627 = vunpack.c.l.b16 %v1591
      %v3628 = vunpack.c.l.b16 %v1592
      %v3629 = vunpack.c.l.b16 %v1593
      %v3630 = vunpack.c.l.b16 %v1594
      %v3631 = vunpack.c.l.b16 %v1595
      %v3632 = vunpack.c.l.b16 %v1596
      %v3633 = vunpack.c.l.b16 %v1597
      %v3634 = vunpack.c.l.b16 %v1598
      %v3635 = vunpack.c.l.b16 %v1599
      %v3636 = vunpack.c.l.b16 %v1600
      %v3637 = vunpack.c.l.b16 %v1601
      %v3638 = vunpack.c.l.b16 %v1602
      %v3639 = vunpack.c.l.b16 %v1603
      %v3640 = vunpack.c.l.b16 %v1604
      %v3641 = vunpack.c.l.b16 %v1605
      %v3642 = vunpack.c.l.b16 %v1606
      %v3643 = vunpack.c.l.b16 %v1607
      %v3644 = vunpack.c.l.b16 %v1608
      %v3645 = vunpack.c.l.b16 %v1609
      %v3646 = vunpack.c.l.b16 %v1610
      %v3647 = vunpack.c.l.b16 %v1611
      %v3648 = vunpack.c.l.b16 %v1612
      %v3649 = vunpack.c.l.b16 %v1613
      %v3650 = vunpack.c.l.b16 %v1614
      %v3651 = vunpack.c.l.b16 %v1615
      %v3652 = vunpack.c.l.b16 %v1616
      %v3653 = vunpack.c.l.b16 %v1617
      %v3654 = vunpack.c.l.b16 %v1618
      %v3655 = vunpack.c.l.b16 %v1619
      %v3656 = vunpack.c.l.b16 %v1620
      %v3657 = vunpack.c.l.b16 %v1621
      %v3658 = vunpack.c.l.b16 %v1622
      %v3659 = vunpack.c.l.b16 %v1623
      %v3660 = vunpack.c.l.b16 %v1624
      %v3661 = vunpack.c.l.b16 %v1625
      %v3662 = vunpack.c.l.b16 %v1626
      %v3663 = vunpack.c.l.b16 %v1627
      %v3664 = vunpack.c.l.b16 %v1628
      %v3665 = vunpack.c.l.b16 %v1629
      %v3666 = vunpack.c.l.b16 %v1630
      %v3667 = vunpack.c.l.b16 %v1631
      %v3668 = vunpack.c.l.b16 %v1632
      %v3669 = vunpack.c.l.b16 %v1633
      %v3670 = vunpack.c.l.b16 %v1634
      %v3671 = vunpack.c.l.b16 %v1635
      %v3672 = vunpack.c.l.b16 %v1636
      %v3673 = vpack.c.b16 %v3530, %v3529
      %v3674 = vpack.c.b16 %v3532, %v3531
      %v3675 = vpack.c.b16 %v3534, %v3533
      %v3676 = vpack.c.b16 %v3536, %v3535
      %v3677 = vpack.c.b16 %v3538, %v3537
      %v3678 = vpack.c.b16 %v3540, %v3539
      %v3679 = vpack.c.b16 %v3542, %v3541
      %v3680 = vpack.c.b16 %v3544, %v3543
      %v3681 = vpack.c.b16 %v3546, %v3545
      %v3682 = vpack.c.b16 %v3548, %v3547
      %v3683 = vpack.c.b16 %v3550, %v3549
      %v3684 = vpack.c.b16 %v3552, %v3551
      %v3685 = vpack.c.b16 %v3554, %v3553
      %v3686 = vpack.c.b16 %v3556, %v3555
      %v3687 = vpack.c.b16 %v3558, %v3557
      %v3688 = vpack.c.b16 %v3560, %v3559
      %v3689 = vpack.c.b16 %v3562, %v3561
      %v3690 = vpack.c.b16 %v3564, %v3563
      %v3691 = vpack.c.b16 %v3566, %v3565
      %v3692 = vpack.c.b16 %v3568, %v3567
      %v3693 = vpack.c.b16 %v3570, %v3569
      %v3694 = vpack.c.b16 %v3572, %v3571
      %v3695 = vpack.c.b16 %v3574, %v3573
      %v3696 = vpack.c.b16 %v3576, %v3575
      %v3697 = vpack.c.b16 %v3578, %v3577
      %v3698 = vpack.c.b16 %v3580, %v3579
      %v3699 = vpack.c.b16 %v3582, %v3581
      %v3700 = vpack.c.b16 %v3584, %v3583
      %v3701 = vpack.c.b16 %v3586, %v3585
      %v3702 = vpack.c.b16 %v3588, %v3587
      %v3703 = vpack.c.b16 %v3590, %v3589
      %v3704 = vpack.c.b16 %v3592, %v3591
      %v3705 = vpack.c.b16 %v3594, %v3593
      %v3706 = vpack.c.b16 %v3596, %v3595
      %v3707 = vpack.c.b16 %v3598, %v3597
      %v3708 = vpack.c.b16 %v3600, %v3599
      %v3709 = vpack.c.b16 %v3602, %v3601
      %v3710 = vpack.c.b16 %v3604, %v3603
      %v3711 = vpack.c.b16 %v3606, %v3605
      %v3712 = vpack.c.b16 %v3608, %v3607
      %v3713 = vpack.c.b16 %v3610, %v3609
      %v3714 = vpack.c.b16 %v3612, %v3611
      %v3715 = vpack.c.b16 %v3614, %v3613
      %v3716 = vpack.c.b16 %v3616, %v3615
      %v3717 = vpack.c.b16 %v3618, %v3617
      %v3718 = vpack.c.b16 %v3620, %v3619
      %v3719 = vpack.c.b16 %v3622, %v3621
      %v3720 = vpack.c.b16 %v3624, %v3623
      %v3721 = vpack.c.b16 %v3626, %v3625
      %v3722 = vpack.c.b16 %v3628, %v3627
      %v3723 = vpack.c.b16 %v3630, %v3629
      %v3724 = vpack.c.b16 %v3632, %v3631
      %v3725 = vpack.c.b16 %v3634, %v3633
      %v3726 = vpack.c.b16 %v3636, %v3635
      %v3727 = vpack.c.b16 %v3638, %v3637
      %v3728 = vpack.c.b16 %v3640, %v3639
      %v3729 = vpack.c.b16 %v3642, %v3641
      %v3730 = vpack.c.b16 %v3644, %v3643
      %v3731 = vpack.c.b16 %v3646, %v3645
      %v3732 = vpack.c.b16 %v3648, %v3647
      %v3733 = vpack.c.b16 %v3650, %v3649
      %v3734 = vpack.c.b16 %v3652, %v3651
      %v3735 = vpack.c.b16 %v3654, %v3653
      %v3736 = vpack.c.b16 %v3656, %v3655
      %v3737 = vpack.c.b16 %v3658, %v3657
      %v3738 = vpack.c.b16 %v3660, %v3659
      %v3739 = vpack.c.b16 %v3662, %v3661
      %v3740 = vpack.c.b16 %v3664, %v3663
      %v3741 = vpack.c.b16 %v3666, %v3665
      %v3742 = vpack.c.b16 %v3668, %v3667
      %v3743 = vpack.c.b16 %v3670, %v3669
      %v3744 = vpack.c.b16 %v3672, %v3671
      %3817 = vmatpush.bf16.msra.mxu0 %v3680
      %3818 = vmatpush.bf16.msra.mxu0 %v3679
      %3819 = vmatpush.bf16.msra.mxu0 %v3678
      %3820 = vmatpush.bf16.msra.mxu0 %v3677
      %3821 = vmatpush.bf16.msra.mxu0 %v3676
      %3822 = vmatpush.bf16.msra.mxu0 %v3675
      %3823 = vmatpush.bf16.msra.mxu0 %v3674
      %3824 = vmatpush.bf16.msra.mxu0 %v3673
      %3825 = vmatmul.bf16.gmra.mxu0 %v3331
      %v3826 = vpop.f32.mrf.mxu0
      %v3827 = vadd.f32 %v3252, %v3826
      %v3828 = vpop.f32.mrf.mxu0
      %v3829 = vadd.f32 %v3254, %v3828
      %3830 = vmatmul.bf16.gmra.mxu0 %v3337
      %v3831 = vpop.f32.mrf.mxu0
      %v3832 = vadd.f32 %v3257, %v3831
      %v3833 = vpop.f32.mrf.mxu0
      %v3834 = vadd.f32 %v3259, %v3833
      %3835 = vmatmul.bf16.gmra.mxu0 %v3343
      %v3836 = vpop.f32.mrf.mxu0
      %v3837 = vadd.f32 %v3262, %v3836
      %v3838 = vpop.f32.mrf.mxu0
      %v3839 = vadd.f32 %v3264, %v3838
      %3840 = vmatmul.bf16.gmra.mxu0 %v3349
      %v3841 = vpop.f32.mrf.mxu0
      %v3842 = vadd.f32 %v3267, %v3841
      %v3843 = vpop.f32.mrf.mxu0
      %v3844 = vadd.f32 %v3269, %v3843
      %3845 = vmatmul.bf16.gmra.mxu0 %v1882
      %v3846 = vpop.f32.mrf.mxu0
      %v3847 = vadd.f32 %v3272, %v3846
      %v3848 = vpop.f32.mrf.mxu0
      %v3849 = vadd.f32 %v3274, %v3848
      %3850 = vmatmul.bf16.gmra.mxu0 %v1888
      %v3851 = vpop.f32.mrf.mxu0
      %v3852 = vadd.f32 %v3277, %v3851
      %v3853 = vpop.f32.mrf.mxu0
      %v3854 = vadd.f32 %v3279, %v3853
      %3855 = vmatmul.bf16.gmra.mxu0 %v1894
      %v3856 = vpop.f32.mrf.mxu0
      %v3857 = vadd.f32 %v3282, %v3856
      %v3858 = vpop.f32.mrf.mxu0
      %v3859 = vadd.f32 %v3284, %v3858
      %3860 = vmatmul.bf16.gmra.mxu0 %v1900
      %v3861 = vpop.f32.mrf.mxu0
      %v3862 = vadd.f32 %v3287, %v3861
      %v3863 = vpop.f32.mrf.mxu0
      %v3864 = vadd.f32 %v3289, %v3863
      %3865 = vmatmul.bf16.gmra.mxu0 %v1909
      %v3866 = vpop.f32.mrf.mxu0
      %v3867 = vadd.f32 %v3292, %v3866
      %v3868 = vpop.f32.mrf.mxu0
      %v3869 = vadd.f32 %v3294, %v3868
      %3870 = vmatmul.bf16.gmra.mxu0 %v1915
      %v3871 = vpop.f32.mrf.mxu0
      %v3872 = vadd.f32 %v3297, %v3871
      %v3873 = vpop.f32.mrf.mxu0
      %v3874 = vadd.f32 %v3299, %v3873
      %3875 = vmatmul.bf16.gmra.mxu0 %v1921
      %v3876 = vpop.f32.mrf.mxu0
      %v3877 = vadd.f32 %v3302, %v3876
      %v3878 = vpop.f32.mrf.mxu0
      %v3879 = vadd.f32 %v3304, %v3878
      %3880 = vmatmul.bf16.gmra.mxu0 %v1927
      %v3881 = vpop.f32.mrf.mxu0
      %v3882 = vadd.f32 %v3307, %v3881
      %v3883 = vpop.f32.mrf.mxu0
      %v3884 = vadd.f32 %v3309, %v3883
      %3885 = vmatmul.bf16.gmra.mxu0 %v1936
      %v3886 = vpop.f32.mrf.mxu0
      %v3887 = vadd.f32 %v3312, %v3886
      %v3888 = vpop.f32.mrf.mxu0
      %v3889 = vadd.f32 %v3314, %v3888
      %3890 = vmatmul.bf16.gmra.mxu0 %v1942
      %v3891 = vpop.f32.mrf.mxu0
      %v3892 = vadd.f32 %v3317, %v3891
      %v3893 = vpop.f32.mrf.mxu0
      %v3894 = vadd.f32 %v3319, %v3893
      %3895 = vmatmul.bf16.gmra.mxu0 %v1948
      %v3896 = vpop.f32.mrf.mxu0
      %v3897 = vadd.f32 %v3322, %v3896
      %v3898 = vpop.f32.mrf.mxu0
      %v3899 = vadd.f32 %v3324, %v3898
      %3900 = vmatmul.bf16.gmra.mxu0 %v1954
      %v3901 = vpop.f32.mrf.mxu0
      %v3902 = vadd.f32 %v3327, %v3901
      %v3903 = vpop.f32.mrf.mxu0
      %v3904 = vadd.f32 %v3329, %v3903
      %3905 = vdwg.mxu0
      %3906 = vmatpush.bf16.msra.mxu0 %v3688
      %3907 = vmatpush.bf16.msra.mxu0 %v3687
      %3908 = vmatpush.bf16.msra.mxu0 %v3686
      %3909 = vmatpush.bf16.msra.mxu0 %v3685
      %3910 = vmatpush.bf16.msra.mxu0 %v3684
      %3911 = vmatpush.bf16.msra.mxu0 %v3683
      %3912 = vmatpush.bf16.msra.mxu0 %v3682
      %3913 = vmatpush.bf16.msra.mxu0 %v3681
      %3914 = vmatmul.bf16.gmra.mxu0 %v3332
      %v3915 = vpop.f32.mrf.mxu0
      %v3916 = vadd.f32 %v3827, %v3915
      %v3917 = vpop.f32.mrf.mxu0
      %v3918 = vadd.f32 %v3829, %v3917
      %3919 = vmatmul.bf16.gmra.mxu0 %v3338
      %v3920 = vpop.f32.mrf.mxu0
      %v3921 = vadd.f32 %v3832, %v3920
      %v3922 = vpop.f32.mrf.mxu0
      %v3923 = vadd.f32 %v3834, %v3922
      %3924 = vmatmul.bf16.gmra.mxu0 %v3344
      %v3925 = vpop.f32.mrf.mxu0
      %v3926 = vadd.f32 %v3837, %v3925
      %v3927 = vpop.f32.mrf.mxu0
      %v3928 = vadd.f32 %v3839, %v3927
      %3929 = vmatmul.bf16.gmra.mxu0 %v3350
      %v3930 = vpop.f32.mrf.mxu0
      %v3931 = vadd.f32 %v3842, %v3930
      %v3932 = vpop.f32.mrf.mxu0
      %v3933 = vadd.f32 %v3844, %v3932
      %3934 = vmatmul.bf16.gmra.mxu0 %v1883
      %v3935 = vpop.f32.mrf.mxu0
      %v3936 = vadd.f32 %v3847, %v3935
      %v3937 = vpop.f32.mrf.mxu0
      %v3938 = vadd.f32 %v3849, %v3937
      %3939 = vmatmul.bf16.gmra.mxu0 %v1889
      %v3940 = vpop.f32.mrf.mxu0
      %v3941 = vadd.f32 %v3852, %v3940
      %v3942 = vpop.f32.mrf.mxu0
      %v3943 = vadd.f32 %v3854, %v3942
      %3944 = vmatmul.bf16.gmra.mxu0 %v1895
      %v3945 = vpop.f32.mrf.mxu0
      %v3946 = vadd.f32 %v3857, %v3945
      %v3947 = vpop.f32.mrf.mxu0
      %v3948 = vadd.f32 %v3859, %v3947
      %3949 = vmatmul.bf16.gmra.mxu0 %v1901
      %v3950 = vpop.f32.mrf.mxu0
      %v3951 = vadd.f32 %v3862, %v3950
      %v3952 = vpop.f32.mrf.mxu0
      %v3953 = vadd.f32 %v3864, %v3952
      %3954 = vmatmul.bf16.gmra.mxu0 %v1910
      %v3955 = vpop.f32.mrf.mxu0
      %v3956 = vadd.f32 %v3867, %v3955
      %v3957 = vpop.f32.mrf.mxu0
      %v3958 = vadd.f32 %v3869, %v3957
      %3959 = vmatmul.bf16.gmra.mxu0 %v1916
      %v3960 = vpop.f32.mrf.mxu0
      %v3961 = vadd.f32 %v3872, %v3960
      %v3962 = vpop.f32.mrf.mxu0
      %v3963 = vadd.f32 %v3874, %v3962
      %3964 = vmatmul.bf16.gmra.mxu0 %v1922
      %v3965 = vpop.f32.mrf.mxu0
      %v3966 = vadd.f32 %v3877, %v3965
      %v3967 = vpop.f32.mrf.mxu0
      %v3968 = vadd.f32 %v3879, %v3967
      %3969 = vmatmul.bf16.gmra.mxu0 %v1928
      %v3970 = vpop.f32.mrf.mxu0
      %v3971 = vadd.f32 %v3882, %v3970
      %v3972 = vpop.f32.mrf.mxu0
      %v3973 = vadd.f32 %v3884, %v3972
      %3974 = vmatmul.bf16.gmra.mxu0 %v1937
      %v3975 = vpop.f32.mrf.mxu0
      %v3976 = vadd.f32 %v3887, %v3975
      %v3977 = vpop.f32.mrf.mxu0
      %v3978 = vadd.f32 %v3889, %v3977
      %3979 = vmatmul.bf16.gmra.mxu0 %v1943
      %v3980 = vpop.f32.mrf.mxu0
      %v3981 = vadd.f32 %v3892, %v3980
      %v3982 = vpop.f32.mrf.mxu0
      %v3983 = vadd.f32 %v3894, %v3982
      %3984 = vmatmul.bf16.gmra.mxu0 %v1949
      %v3985 = vpop.f32.mrf.mxu0
      %v3986 = vadd.f32 %v3897, %v3985
      %v3987 = vpop.f32.mrf.mxu0
      %v3988 = vadd.f32 %v3899, %v3987
      %3989 = vmatmul.bf16.gmra.mxu0 %v1955
      %v3990 = vpop.f32.mrf.mxu0
      %v3991 = vadd.f32 %v3902, %v3990
      %v3992 = vpop.f32.mrf.mxu0
      %v3993 = vadd.f32 %v3904, %v3992
      %3994 = vdwg.mxu0
      %3995 = vmatpush.bf16.msra.mxu0 %v3696
      %3996 = vmatpush.bf16.msra.mxu0 %v3695
      %3997 = vmatpush.bf16.msra.mxu0 %v3694
      %3998 = vmatpush.bf16.msra.mxu0 %v3693
      %3999 = vmatpush.bf16.msra.mxu0 %v3692
      %4000 = vmatpush.bf16.msra.mxu0 %v3691
      %4001 = vmatpush.bf16.msra.mxu0 %v3690
      %4002 = vmatpush.bf16.msra.mxu0 %v3689
      %4003 = vmatmul.bf16.gmra.mxu0 %v3333
      %v4004 = vpop.f32.mrf.mxu0
      %v4005 = vadd.f32 %v3916, %v4004
      %v4006 = vpop.f32.mrf.mxu0
      %v4007 = vadd.f32 %v3918, %v4006
      %4008 = vmatmul.bf16.gmra.mxu0 %v3339
      %v4009 = vpop.f32.mrf.mxu0
      %v4010 = vadd.f32 %v3921, %v4009
      %v4011 = vpop.f32.mrf.mxu0
      %v4012 = vadd.f32 %v3923, %v4011
      %4013 = vmatmul.bf16.gmra.mxu0 %v3345
      %v4014 = vpop.f32.mrf.mxu0
      %v4015 = vadd.f32 %v3926, %v4014
      %v4016 = vpop.f32.mrf.mxu0
      %v4017 = vadd.f32 %v3928, %v4016
      %4018 = vmatmul.bf16.gmra.mxu0 %v3351
      %v4019 = vpop.f32.mrf.mxu0
      %v4020 = vadd.f32 %v3931, %v4019
      %v4021 = vpop.f32.mrf.mxu0
      %v4022 = vadd.f32 %v3933, %v4021
      %4023 = vmatmul.bf16.gmra.mxu0 %v1884
      %v4024 = vpop.f32.mrf.mxu0
      %v4025 = vadd.f32 %v3936, %v4024
      %v4026 = vpop.f32.mrf.mxu0
      %v4027 = vadd.f32 %v3938, %v4026
      %4028 = vmatmul.bf16.gmra.mxu0 %v1890
      %v4029 = vpop.f32.mrf.mxu0
      %v4030 = vadd.f32 %v3941, %v4029
      %v4031 = vpop.f32.mrf.mxu0
      %v4032 = vadd.f32 %v3943, %v4031
      %4033 = vmatmul.bf16.gmra.mxu0 %v1896
      %v4034 = vpop.f32.mrf.mxu0
      %v4035 = vadd.f32 %v3946, %v4034
      %v4036 = vpop.f32.mrf.mxu0
      %v4037 = vadd.f32 %v3948, %v4036
      %4038 = vmatmul.bf16.gmra.mxu0 %v1902
      %v4039 = vpop.f32.mrf.mxu0
      %v4040 = vadd.f32 %v3951, %v4039
      %v4041 = vpop.f32.mrf.mxu0
      %v4042 = vadd.f32 %v3953, %v4041
      %4043 = vmatmul.bf16.gmra.mxu0 %v1911
      %v4044 = vpop.f32.mrf.mxu0
      %v4045 = vadd.f32 %v3956, %v4044
      %v4046 = vpop.f32.mrf.mxu0
      %v4047 = vadd.f32 %v3958, %v4046
      %4048 = vmatmul.bf16.gmra.mxu0 %v1917
      %v4049 = vpop.f32.mrf.mxu0
      %v4050 = vadd.f32 %v3961, %v4049
      %v4051 = vpop.f32.mrf.mxu0
      %v4052 = vadd.f32 %v3963, %v4051
      %4053 = vmatmul.bf16.gmra.mxu0 %v1923
      %v4054 = vpop.f32.mrf.mxu0
      %v4055 = vadd.f32 %v3966, %v4054
      %v4056 = vpop.f32.mrf.mxu0
      %v4057 = vadd.f32 %v3968, %v4056
      %4058 = vmatmul.bf16.gmra.mxu0 %v1929
      %v4059 = vpop.f32.mrf.mxu0
      %v4060 = vadd.f32 %v3971, %v4059
      %v4061 = vpop.f32.mrf.mxu0
      %v4062 = vadd.f32 %v3973, %v4061
      %4063 = vmatmul.bf16.gmra.mxu0 %v1938
      %v4064 = vpop.f32.mrf.mxu0
      %v4065 = vadd.f32 %v3976, %v4064
      %v4066 = vpop.f32.mrf.mxu0
      %v4067 = vadd.f32 %v3978, %v4066
      %4068 = vmatmul.bf16.gmra.mxu0 %v1944
      %v4069 = vpop.f32.mrf.mxu0
      %v4070 = vadd.f32 %v3981, %v4069
      %v4071 = vpop.f32.mrf.mxu0
      %v4072 = vadd.f32 %v3983, %v4071
      %4073 = vmatmul.bf16.gmra.mxu0 %v1950
      %v4074 = vpop.f32.mrf.mxu0
      %v4075 = vadd.f32 %v3986, %v4074
      %v4076 = vpop.f32.mrf.mxu0
      %v4077 = vadd.f32 %v3988, %v4076
      %4078 = vmatmul.bf16.gmra.mxu0 %v1956
      %v4079 = vpop.f32.mrf.mxu0
      %v4080 = vadd.f32 %v3991, %v4079
      %v4081 = vpop.f32.mrf.mxu0
      %v4082 = vadd.f32 %v3993, %v4081
      %4083 = vdwg.mxu0
      %4084 = vmatpush.bf16.msra.mxu0 %v3704
      %4085 = vmatpush.bf16.msra.mxu0 %v3703
      %4086 = vmatpush.bf16.msra.mxu0 %v3702
      %4087 = vmatpush.bf16.msra.mxu0 %v3701
      %4088 = vmatpush.bf16.msra.mxu0 %v3700
      %4089 = vmatpush.bf16.msra.mxu0 %v3699
      %4090 = vmatpush.bf16.msra.mxu0 %v3698
      %4091 = vmatpush.bf16.msra.mxu0 %v3697
      %4092 = vmatmul.bf16.gmra.mxu0 %v3334
      %v4093 = vpop.f32.mrf.mxu0
      %v4094 = vadd.f32 %v4005, %v4093
      %v4095 = vpop.f32.mrf.mxu0
      %v4096 = vadd.f32 %v4007, %v4095
      %4097 = vmatmul.bf16.gmra.mxu0 %v3340
      %v4098 = vpop.f32.mrf.mxu0
      %v4099 = vadd.f32 %v4010, %v4098
      %v4100 = vpop.f32.mrf.mxu0
      %v4101 = vadd.f32 %v4012, %v4100
      %4102 = vmatmul.bf16.gmra.mxu0 %v3346
      %v4103 = vpop.f32.mrf.mxu0
      %v4104 = vadd.f32 %v4015, %v4103
      %v4105 = vpop.f32.mrf.mxu0
      %v4106 = vadd.f32 %v4017, %v4105
      %4107 = vmatmul.bf16.gmra.mxu0 %v3352
      %v4108 = vpop.f32.mrf.mxu0
      %v4109 = vadd.f32 %v4020, %v4108
      %v4110 = vpop.f32.mrf.mxu0
      %v4111 = vadd.f32 %v4022, %v4110
      %4112 = vmatmul.bf16.gmra.mxu0 %v1885
      %v4113 = vpop.f32.mrf.mxu0
      %v4114 = vadd.f32 %v4025, %v4113
      %v4115 = vpop.f32.mrf.mxu0
      %v4116 = vadd.f32 %v4027, %v4115
      %4117 = vmatmul.bf16.gmra.mxu0 %v1891
      %v4118 = vpop.f32.mrf.mxu0
      %v4119 = vadd.f32 %v4030, %v4118
      %v4120 = vpop.f32.mrf.mxu0
      %v4121 = vadd.f32 %v4032, %v4120
      %4122 = vmatmul.bf16.gmra.mxu0 %v1897
      %v4123 = vpop.f32.mrf.mxu0
      %v4124 = vadd.f32 %v4035, %v4123
      %v4125 = vpop.f32.mrf.mxu0
      %v4126 = vadd.f32 %v4037, %v4125
      %4127 = vmatmul.bf16.gmra.mxu0 %v1903
      %v4128 = vpop.f32.mrf.mxu0
      %v4129 = vadd.f32 %v4040, %v4128
      %v4130 = vpop.f32.mrf.mxu0
      %v4131 = vadd.f32 %v4042, %v4130
      %4132 = vmatmul.bf16.gmra.mxu0 %v1912
      %v4133 = vpop.f32.mrf.mxu0
      %v4134 = vadd.f32 %v4045, %v4133
      %v4135 = vpop.f32.mrf.mxu0
      %v4136 = vadd.f32 %v4047, %v4135
      %4137 = vmatmul.bf16.gmra.mxu0 %v1918
      %v4138 = vpop.f32.mrf.mxu0
      %v4139 = vadd.f32 %v4050, %v4138
      %v4140 = vpop.f32.mrf.mxu0
      %v4141 = vadd.f32 %v4052, %v4140
      %4142 = vmatmul.bf16.gmra.mxu0 %v1924
      %v4143 = vpop.f32.mrf.mxu0
      %v4144 = vadd.f32 %v4055, %v4143
      %v4145 = vpop.f32.mrf.mxu0
      %v4146 = vadd.f32 %v4057, %v4145
      %4147 = vmatmul.bf16.gmra.mxu0 %v1930
      %v4148 = vpop.f32.mrf.mxu0
      %v4149 = vadd.f32 %v4060, %v4148
      %v4150 = vpop.f32.mrf.mxu0
      %v4151 = vadd.f32 %v4062, %v4150
      %4152 = vmatmul.bf16.gmra.mxu0 %v1939
      %v4153 = vpop.f32.mrf.mxu0
      %v4154 = vadd.f32 %v4065, %v4153
      %v4155 = vpop.f32.mrf.mxu0
      %v4156 = vadd.f32 %v4067, %v4155
      %4157 = vmatmul.bf16.gmra.mxu0 %v1945
      %v4158 = vpop.f32.mrf.mxu0
      %v4159 = vadd.f32 %v4070, %v4158
      %v4160 = vpop.f32.mrf.mxu0
      %v4161 = vadd.f32 %v4072, %v4160
      %4162 = vmatmul.bf16.gmra.mxu0 %v1951
      %v4163 = vpop.f32.mrf.mxu0
      %v4164 = vadd.f32 %v4075, %v4163
      %v4165 = vpop.f32.mrf.mxu0
      %v4166 = vadd.f32 %v4077, %v4165
      %4167 = vmatmul.bf16.gmra.mxu0 %v1957
      %v4168 = vpop.f32.mrf.mxu0
      %v4169 = vadd.f32 %v4080, %v4168
      %v4170 = vpop.f32.mrf.mxu0
      %v4171 = vadd.f32 %v4082, %v4170
      %4172 = vdwg.mxu0
      %4173 = vmatpush.bf16.msra.mxu0 %v3712
      %4174 = vmatpush.bf16.msra.mxu0 %v3711
      %4175 = vmatpush.bf16.msra.mxu0 %v3710
      %4176 = vmatpush.bf16.msra.mxu0 %v3709
      %4177 = vmatpush.bf16.msra.mxu0 %v3708
      %4178 = vmatpush.bf16.msra.mxu0 %v3707
      %4179 = vmatpush.bf16.msra.mxu0 %v3706
      %4180 = vmatpush.bf16.msra.mxu0 %v3705
      %4181 = vmatmul.bf16.gmra.mxu0 %v3335
      %v4182 = vpop.f32.mrf.mxu0
      %v4183 = vadd.f32 %v4094, %v4182
      %v4184 = vpop.f32.mrf.mxu0
      %v4185 = vadd.f32 %v4096, %v4184
      %4186 = vmatmul.bf16.gmra.mxu0 %v3341
      %v4187 = vpop.f32.mrf.mxu0
      %v4188 = vadd.f32 %v4099, %v4187
      %v4189 = vpop.f32.mrf.mxu0
      %v4190 = vadd.f32 %v4101, %v4189
      %4191 = vmatmul.bf16.gmra.mxu0 %v3347
      %v4192 = vpop.f32.mrf.mxu0
      %v4193 = vadd.f32 %v4104, %v4192
      %v4194 = vpop.f32.mrf.mxu0
      %v4195 = vadd.f32 %v4106, %v4194
      %4196 = vmatmul.bf16.gmra.mxu0 %v3353
      %v4197 = vpop.f32.mrf.mxu0
      %v4198 = vadd.f32 %v4109, %v4197
      %v4199 = vpop.f32.mrf.mxu0
      %v4200 = vadd.f32 %v4111, %v4199
      %4201 = vmatmul.bf16.gmra.mxu0 %v1886
      %v4202 = vpop.f32.mrf.mxu0
      %v4203 = vadd.f32 %v4114, %v4202
      %v4204 = vpop.f32.mrf.mxu0
      %v4205 = vadd.f32 %v4116, %v4204
      %4206 = vmatmul.bf16.gmra.mxu0 %v1892
      %v4207 = vpop.f32.mrf.mxu0
      %v4208 = vadd.f32 %v4119, %v4207
      %v4209 = vpop.f32.mrf.mxu0
      %v4210 = vadd.f32 %v4121, %v4209
      %4211 = vmatmul.bf16.gmra.mxu0 %v1898
      %v4212 = vpop.f32.mrf.mxu0
      %v4213 = vadd.f32 %v4124, %v4212
      %v4214 = vpop.f32.mrf.mxu0
      %v4215 = vadd.f32 %v4126, %v4214
      %4216 = vmatmul.bf16.gmra.mxu0 %v1904
      %v4217 = vpop.f32.mrf.mxu0
      %v4218 = vadd.f32 %v4129, %v4217
      %v4219 = vpop.f32.mrf.mxu0
      %v4220 = vadd.f32 %v4131, %v4219
      %4221 = vmatmul.bf16.gmra.mxu0 %v1913
      %v4222 = vpop.f32.mrf.mxu0
      %v4223 = vadd.f32 %v4134, %v4222
      %v4224 = vpop.f32.mrf.mxu0
      %v4225 = vadd.f32 %v4136, %v4224
      %4226 = vmatmul.bf16.gmra.mxu0 %v1919
      %v4227 = vpop.f32.mrf.mxu0
      %v4228 = vadd.f32 %v4139, %v4227
      %v4229 = vpop.f32.mrf.mxu0
      %v4230 = vadd.f32 %v4141, %v4229
      %4231 = vmatmul.bf16.gmra.mxu0 %v1925
      %v4232 = vpop.f32.mrf.mxu0
      %v4233 = vadd.f32 %v4144, %v4232
      %v4234 = vpop.f32.mrf.mxu0
      %v4235 = vadd.f32 %v4146, %v4234
      %4236 = vmatmul.bf16.gmra.mxu0 %v1931
      %v4237 = vpop.f32.mrf.mxu0
      %v4238 = vadd.f32 %v4149, %v4237
      %v4239 = vpop.f32.mrf.mxu0
      %v4240 = vadd.f32 %v4151, %v4239
      %4241 = vmatmul.bf16.gmra.mxu0 %v1940
      %v4242 = vpop.f32.mrf.mxu0
      %v4243 = vadd.f32 %v4154, %v4242
      %v4244 = vpop.f32.mrf.mxu0
      %v4245 = vadd.f32 %v4156, %v4244
      %4246 = vmatmul.bf16.gmra.mxu0 %v1946
      %v4247 = vpop.f32.mrf.mxu0
      %v4248 = vadd.f32 %v4159, %v4247
      %v4249 = vpop.f32.mrf.mxu0
      %v4250 = vadd.f32 %v4161, %v4249
      %4251 = vmatmul.bf16.gmra.mxu0 %v1952
      %v4252 = vpop.f32.mrf.mxu0
      %v4253 = vadd.f32 %v4164, %v4252
      %v4254 = vpop.f32.mrf.mxu0
      %v4255 = vadd.f32 %v4166, %v4254
      %4256 = vmatmul.bf16.gmra.mxu0 %v1958
      %v4257 = vpop.f32.mrf.mxu0
      %v4258 = vadd.f32 %v4169, %v4257
      %v4259 = vpop.f32.mrf.mxu0
      %v4260 = vadd.f32 %v4171, %v4259
      %4261 = vdwg.mxu0
      %4262 = vmatpush.bf16.msra.mxu0 %v3720
      %4263 = vmatpush.bf16.msra.mxu0 %v3719
      %4264 = vmatpush.bf16.msra.mxu0 %v3718
      %4265 = vmatpush.bf16.msra.mxu0 %v3717
      %4266 = vmatpush.bf16.msra.mxu0 %v3716
      %4267 = vmatpush.bf16.msra.mxu0 %v3715
      %4268 = vmatpush.bf16.msra.mxu0 %v3714
      %4269 = vmatpush.bf16.msra.mxu0 %v3713
      %4270 = vmatmul.bf16.gmra.mxu0 %v3336
      %v4271 = vpop.f32.mrf.mxu0
      %v4272 = vadd.f32 %v4183, %v4271
      %v4273 = vpop.f32.mrf.mxu0
      %v4274 = vadd.f32 %v4185, %v4273
      %4275 = vmatmul.bf16.gmra.mxu0 %v3342
      %v4276 = vpop.f32.mrf.mxu0
      %v4277 = vadd.f32 %v4188, %v4276
      %v4278 = vpop.f32.mrf.mxu0
      %v4279 = vadd.f32 %v4190, %v4278
      %4280 = vmatmul.bf16.gmra.mxu0 %v3348
      %v4281 = vpop.f32.mrf.mxu0
      %v4282 = vadd.f32 %v4193, %v4281
      %v4283 = vpop.f32.mrf.mxu0
      %v4284 = vadd.f32 %v4195, %v4283
      %4285 = vmatmul.bf16.gmra.mxu0 %v3354
      %v4286 = vpop.f32.mrf.mxu0
      %v4287 = vadd.f32 %v4198, %v4286
      %v4288 = vpop.f32.mrf.mxu0
      %v4289 = vadd.f32 %v4200, %v4288
      %4290 = vmatmul.bf16.gmra.mxu0 %v1887
      %v4291 = vpop.f32.mrf.mxu0
      %v4292 = vadd.f32 %v4203, %v4291
      %v4293 = vpop.f32.mrf.mxu0
      %v4294 = vadd.f32 %v4205, %v4293
      %4295 = vmatmul.bf16.gmra.mxu0 %v1893
      %v4296 = vpop.f32.mrf.mxu0
      %v4297 = vadd.f32 %v4208, %v4296
      %v4298 = vpop.f32.mrf.mxu0
      %v4299 = vadd.f32 %v4210, %v4298
      %4300 = vmatmul.bf16.gmra.mxu0 %v1899
      %v4301 = vpop.f32.mrf.mxu0
      %v4302 = vadd.f32 %v4213, %v4301
      %v4303 = vpop.f32.mrf.mxu0
      %v4304 = vadd.f32 %v4215, %v4303
      %4305 = vmatmul.bf16.gmra.mxu0 %v1905
      %v4306 = vpop.f32.mrf.mxu0
      %v4307 = vadd.f32 %v4218, %v4306
      %v4308 = vpop.f32.mrf.mxu0
      %v4309 = vadd.f32 %v4220, %v4308
      %4310 = vmatmul.bf16.gmra.mxu0 %v1914
      %v4311 = vpop.f32.mrf.mxu0
      %v4312 = vadd.f32 %v4223, %v4311
      %v4313 = vpop.f32.mrf.mxu0
      %v4314 = vadd.f32 %v4225, %v4313
      %4315 = vmatmul.bf16.gmra.mxu0 %v1920
      %v4316 = vpop.f32.mrf.mxu0
      %v4317 = vadd.f32 %v4228, %v4316
      %v4318 = vpop.f32.mrf.mxu0
      %v4319 = vadd.f32 %v4230, %v4318
      %4320 = vmatmul.bf16.gmra.mxu0 %v1926
      %v4321 = vpop.f32.mrf.mxu0
      %v4322 = vadd.f32 %v4233, %v4321
      %v4323 = vpop.f32.mrf.mxu0
      %v4324 = vadd.f32 %v4235, %v4323
      %4325 = vmatmul.bf16.gmra.mxu0 %v1932
      %v4326 = vpop.f32.mrf.mxu0
      %v4327 = vadd.f32 %v4238, %v4326
      %v4328 = vpop.f32.mrf.mxu0
      %v4329 = vadd.f32 %v4240, %v4328
      %4330 = vmatmul.bf16.gmra.mxu0 %v1941
      %v4331 = vpop.f32.mrf.mxu0
      %v4332 = vadd.f32 %v4243, %v4331
      %v4333 = vpop.f32.mrf.mxu0
      %v4334 = vadd.f32 %v4245, %v4333
      %4335 = vmatmul.bf16.gmra.mxu0 %v1947
      %v4336 = vpop.f32.mrf.mxu0
      %v4337 = vadd.f32 %v4248, %v4336
      %v4338 = vpop.f32.mrf.mxu0
      %v4339 = vadd.f32 %v4250, %v4338
      %4340 = vmatmul.bf16.gmra.mxu0 %v1953
      %v4341 = vpop.f32.mrf.mxu0
      %v4342 = vadd.f32 %v4253, %v4341
      %v4343 = vpop.f32.mrf.mxu0
      %v4344 = vadd.f32 %v4255, %v4343
      %4345 = vmatmul.bf16.gmra.mxu0 %v1959
      %v4346 = vpop.f32.mrf.mxu0
      %v4347 = vadd.f32 %v4258, %v4346
      %v4348 = vpop.f32.mrf.mxu0
      %v4349 = vadd.f32 %v4260, %v4348
      %4350 = vdwg.mxu0
      %4351 = vmatpush.bf16.msra.mxu0 %v3728
      %4352 = vmatpush.bf16.msra.mxu0 %v3727
      %4353 = vmatpush.bf16.msra.mxu0 %v3726
      %4354 = vmatpush.bf16.msra.mxu0 %v3725
      %4355 = vmatpush.bf16.msra.mxu0 %v3724
      %4356 = vmatpush.bf16.msra.mxu0 %v3723
      %4357 = vmatpush.bf16.msra.mxu0 %v3722
      %4358 = vmatpush.bf16.msra.mxu0 %v3721
      %4359 = vmatmul.bf16.gmra.mxu0 %v3337
      %v4360 = vpop.f32.mrf.mxu0
      %v4361 = vadd.f32 %v4272, %v4360
      %v4362 = vpop.f32.mrf.mxu0
      %v4363 = vadd.f32 %v4274, %v4362
      %4364 = vmatmul.bf16.gmra.mxu0 %v3343
      %v4365 = vpop.f32.mrf.mxu0
      %v4366 = vadd.f32 %v4277, %v4365
      %v4367 = vpop.f32.mrf.mxu0
      %v4368 = vadd.f32 %v4279, %v4367
      %4369 = vmatmul.bf16.gmra.mxu0 %v3349
      %v4370 = vpop.f32.mrf.mxu0
      %v4371 = vadd.f32 %v4282, %v4370
      %v4372 = vpop.f32.mrf.mxu0
      %v4373 = vadd.f32 %v4284, %v4372
      %4374 = vmatmul.bf16.gmra.mxu0 %v3355
      %v4375 = vpop.f32.mrf.mxu0
      %v4376 = vadd.f32 %v4287, %v4375
      %v4377 = vpop.f32.mrf.mxu0
      %v4378 = vadd.f32 %v4289, %v4377
      %4379 = vmatmul.bf16.gmra.mxu0 %v1888
      %v4380 = vpop.f32.mrf.mxu0
      %v4381 = vadd.f32 %v4292, %v4380
      %v4382 = vpop.f32.mrf.mxu0
      %v4383 = vadd.f32 %v4294, %v4382
      %4384 = vmatmul.bf16.gmra.mxu0 %v1894
      %v4385 = vpop.f32.mrf.mxu0
      %v4386 = vadd.f32 %v4297, %v4385
      %v4387 = vpop.f32.mrf.mxu0
      %v4388 = vadd.f32 %v4299, %v4387
      %4389 = vmatmul.bf16.gmra.mxu0 %v1900
      %v4390 = vpop.f32.mrf.mxu0
      %v4391 = vadd.f32 %v4302, %v4390
      %v4392 = vpop.f32.mrf.mxu0
      %v4393 = vadd.f32 %v4304, %v4392
      %4394 = vmatmul.bf16.gmra.mxu0 %v1906
      %v4395 = vpop.f32.mrf.mxu0
      %v4396 = vadd.f32 %v4307, %v4395
      %v4397 = vpop.f32.mrf.mxu0
      %v4398 = vadd.f32 %v4309, %v4397
      %4399 = vmatmul.bf16.gmra.mxu0 %v1915
      %v4400 = vpop.f32.mrf.mxu0
      %v4401 = vadd.f32 %v4312, %v4400
      %v4402 = vpop.f32.mrf.mxu0
      %v4403 = vadd.f32 %v4314, %v4402
      %4404 = vmatmul.bf16.gmra.mxu0 %v1921
      %v4405 = vpop.f32.mrf.mxu0
      %v4406 = vadd.f32 %v4317, %v4405
      %v4407 = vpop.f32.mrf.mxu0
      %v4408 = vadd.f32 %v4319, %v4407
      %4409 = vmatmul.bf16.gmra.mxu0 %v1927
      %v4410 = vpop.f32.mrf.mxu0
      %v4411 = vadd.f32 %v4322, %v4410
      %v4412 = vpop.f32.mrf.mxu0
      %v4413 = vadd.f32 %v4324, %v4412
      %4414 = vmatmul.bf16.gmra.mxu0 %v1933
      %v4415 = vpop.f32.mrf.mxu0
      %v4416 = vadd.f32 %v4327, %v4415
      %v4417 = vpop.f32.mrf.mxu0
      %v4418 = vadd.f32 %v4329, %v4417
      %4419 = vmatmul.bf16.gmra.mxu0 %v1942
      %v4420 = vpop.f32.mrf.mxu0
      %v4421 = vadd.f32 %v4332, %v4420
      %v4422 = vpop.f32.mrf.mxu0
      %v4423 = vadd.f32 %v4334, %v4422
      %4424 = vmatmul.bf16.gmra.mxu0 %v1948
      %v4425 = vpop.f32.mrf.mxu0
      %v4426 = vadd.f32 %v4337, %v4425
      %v4427 = vpop.f32.mrf.mxu0
      %v4428 = vadd.f32 %v4339, %v4427
      %4429 = vmatmul.bf16.gmra.mxu0 %v1954
      %v4430 = vpop.f32.mrf.mxu0
      %v4431 = vadd.f32 %v4342, %v4430
      %v4432 = vpop.f32.mrf.mxu0
      %v4433 = vadd.f32 %v4344, %v4432
      %4434 = vmatmul.bf16.gmra.mxu0 %v1960
      %v4435 = vpop.f32.mrf.mxu0
      %v4436 = vadd.f32 %v4347, %v4435
      %v4437 = vpop.f32.mrf.mxu0
      %v4438 = vadd.f32 %v4349, %v4437
      %4439 = vdwg.mxu0
      %4440 = vmatpush.bf16.msra.mxu0 %v3736
      %4441 = vmatpush.bf16.msra.mxu0 %v3735
      %4442 = vmatpush.bf16.msra.mxu0 %v3734
      %4443 = vmatpush.bf16.msra.mxu0 %v3733
      %4444 = vmatpush.bf16.msra.mxu0 %v3732
      %4445 = vmatpush.bf16.msra.mxu0 %v3731
      %4446 = vmatpush.bf16.msra.mxu0 %v3730
      %4447 = vmatpush.bf16.msra.mxu0 %v3729
      %4448 = vmatmul.bf16.gmra.mxu0 %v3338
      %v4449 = vpop.f32.mrf.mxu0
      %v4450 = vadd.f32 %v4361, %v4449
      %v4451 = vpop.f32.mrf.mxu0
      %v4452 = vadd.f32 %v4363, %v4451
      %4453 = vmatmul.bf16.gmra.mxu0 %v3344
      %v4454 = vpop.f32.mrf.mxu0
      %v4455 = vadd.f32 %v4366, %v4454
      %v4456 = vpop.f32.mrf.mxu0
      %v4457 = vadd.f32 %v4368, %v4456
      %4458 = vmatmul.bf16.gmra.mxu0 %v3350
      %v4459 = vpop.f32.mrf.mxu0
      %v4460 = vadd.f32 %v4371, %v4459
      %v4461 = vpop.f32.mrf.mxu0
      %v4462 = vadd.f32 %v4373, %v4461
      %4463 = vmatmul.bf16.gmra.mxu0 %v3356
      %v4464 = vpop.f32.mrf.mxu0
      %v4465 = vadd.f32 %v4376, %v4464
      %v4466 = vpop.f32.mrf.mxu0
      %v4467 = vadd.f32 %v4378, %v4466
      %4468 = vmatmul.bf16.gmra.mxu0 %v1889
      %v4469 = vpop.f32.mrf.mxu0
      %v4470 = vadd.f32 %v4381, %v4469
      %v4471 = vpop.f32.mrf.mxu0
      %v4472 = vadd.f32 %v4383, %v4471
      %4473 = vmatmul.bf16.gmra.mxu0 %v1895
      %v4474 = vpop.f32.mrf.mxu0
      %v4475 = vadd.f32 %v4386, %v4474
      %v4476 = vpop.f32.mrf.mxu0
      %v4477 = vadd.f32 %v4388, %v4476
      %4478 = vmatmul.bf16.gmra.mxu0 %v1901
      %v4479 = vpop.f32.mrf.mxu0
      %v4480 = vadd.f32 %v4391, %v4479
      %v4481 = vpop.f32.mrf.mxu0
      %v4482 = vadd.f32 %v4393, %v4481
      %4483 = vmatmul.bf16.gmra.mxu0 %v1907
      %v4484 = vpop.f32.mrf.mxu0
      %v4485 = vadd.f32 %v4396, %v4484
      %v4486 = vpop.f32.mrf.mxu0
      %v4487 = vadd.f32 %v4398, %v4486
      %4488 = vmatmul.bf16.gmra.mxu0 %v1916
      %v4489 = vpop.f32.mrf.mxu0
      %v4490 = vadd.f32 %v4401, %v4489
      %v4491 = vpop.f32.mrf.mxu0
      %v4492 = vadd.f32 %v4403, %v4491
      %4493 = vmatmul.bf16.gmra.mxu0 %v1922
      %v4494 = vpop.f32.mrf.mxu0
      %v4495 = vadd.f32 %v4406, %v4494
      %v4496 = vpop.f32.mrf.mxu0
      %v4497 = vadd.f32 %v4408, %v4496
      %4498 = vmatmul.bf16.gmra.mxu0 %v1928
      %v4499 = vpop.f32.mrf.mxu0
      %v4500 = vadd.f32 %v4411, %v4499
      %v4501 = vpop.f32.mrf.mxu0
      %v4502 = vadd.f32 %v4413, %v4501
      %4503 = vmatmul.bf16.gmra.mxu0 %v1934
      %v4504 = vpop.f32.mrf.mxu0
      %v4505 = vadd.f32 %v4416, %v4504
      %v4506 = vpop.f32.mrf.mxu0
      %v4507 = vadd.f32 %v4418, %v4506
      %4508 = vmatmul.bf16.gmra.mxu0 %v1943
      %v4509 = vpop.f32.mrf.mxu0
      %v4510 = vadd.f32 %v4421, %v4509
      %v4511 = vpop.f32.mrf.mxu0
      %v4512 = vadd.f32 %v4423, %v4511
      %4513 = vmatmul.bf16.gmra.mxu0 %v1949
      %v4514 = vpop.f32.mrf.mxu0
      %v4515 = vadd.f32 %v4426, %v4514
      %v4516 = vpop.f32.mrf.mxu0
      %v4517 = vadd.f32 %v4428, %v4516
      %4518 = vmatmul.bf16.gmra.mxu0 %v1955
      %v4519 = vpop.f32.mrf.mxu0
      %v4520 = vadd.f32 %v4431, %v4519
      %v4521 = vpop.f32.mrf.mxu0
      %v4522 = vadd.f32 %v4433, %v4521
      %4523 = vmatmul.bf16.gmra.mxu0 %v1961
      %v4524 = vpop.f32.mrf.mxu0
      %v4525 = vadd.f32 %v4436, %v4524
      %v4526 = vpop.f32.mrf.mxu0
      %v4527 = vadd.f32 %v4438, %v4526
      %4528 = vdwg.mxu0
      %4529 = vmatpush.bf16.msra.mxu0 %v3744
      %4530 = vmatpush.bf16.msra.mxu0 %v3743
      %4531 = vmatpush.bf16.msra.mxu0 %v3742
      %4532 = vmatpush.bf16.msra.mxu0 %v3741
      %4533 = vmatpush.bf16.msra.mxu0 %v3740
      %4534 = vmatpush.bf16.msra.mxu0 %v3739
      %4535 = vmatpush.bf16.msra.mxu0 %v3738
      %4536 = vmatpush.bf16.msra.mxu0 %v3737
      %4537 = vmatmul.bf16.gmra.mxu0 %v3339
      %v4538 = vpop.f32.mrf.mxu0
      %v4539 = vadd.f32 %v4450, %v4538
      %v4540 = vpop.f32.mrf.mxu0
      %v4541 = vadd.f32 %v4452, %v4540
      %4542 = vmatmul.bf16.gmra.mxu0 %v3345
      %v4543 = vpop.f32.mrf.mxu0
      %v4544 = vadd.f32 %v4455, %v4543
      %v4545 = vpop.f32.mrf.mxu0
      %v4546 = vadd.f32 %v4457, %v4545
      %4547 = vmatmul.bf16.gmra.mxu0 %v3351
      %v4548 = vpop.f32.mrf.mxu0
      %v4549 = vadd.f32 %v4460, %v4548
      %v4550 = vpop.f32.mrf.mxu0
      %v4551 = vadd.f32 %v4462, %v4550
      %4552 = vmatmul.bf16.gmra.mxu0 %v3357
      %v4553 = vpop.f32.mrf.mxu0
      %v4554 = vadd.f32 %v4465, %v4553
      %v4555 = vpop.f32.mrf.mxu0
      %v4556 = vadd.f32 %v4467, %v4555
      %4557 = vmatmul.bf16.gmra.mxu0 %v1890
      %v4558 = vpop.f32.mrf.mxu0
      %v4559 = vadd.f32 %v4470, %v4558
      %v4560 = vpop.f32.mrf.mxu0
      %v4561 = vadd.f32 %v4472, %v4560
      %4562 = vmatmul.bf16.gmra.mxu0 %v1896
      %v4563 = vpop.f32.mrf.mxu0
      %v4564 = vadd.f32 %v4475, %v4563
      %v4565 = vpop.f32.mrf.mxu0
      %v4566 = vadd.f32 %v4477, %v4565
      %4567 = vmatmul.bf16.gmra.mxu0 %v1902
      %v4568 = vpop.f32.mrf.mxu0
      %v4569 = vadd.f32 %v4480, %v4568
      %v4570 = vpop.f32.mrf.mxu0
      %v4571 = vadd.f32 %v4482, %v4570
      %4572 = vmatmul.bf16.gmra.mxu0 %v1908
      %v4573 = vpop.f32.mrf.mxu0
      %v4574 = vadd.f32 %v4485, %v4573
      %v4575 = vpop.f32.mrf.mxu0
      %v4576 = vadd.f32 %v4487, %v4575
      %4577 = vmatmul.bf16.gmra.mxu0 %v1917
      %v4578 = vpop.f32.mrf.mxu0
      %v4579 = vadd.f32 %v4490, %v4578
      %v4580 = vpop.f32.mrf.mxu0
      %v4581 = vadd.f32 %v4492, %v4580
      %4582 = vmatmul.bf16.gmra.mxu0 %v1923
      %v4583 = vpop.f32.mrf.mxu0
      %v4584 = vadd.f32 %v4495, %v4583
      %v4585 = vpop.f32.mrf.mxu0
      %v4586 = vadd.f32 %v4497, %v4585
      %4587 = vmatmul.bf16.gmra.mxu0 %v1929
      %v4588 = vpop.f32.mrf.mxu0
      %v4589 = vadd.f32 %v4500, %v4588
      %v4590 = vpop.f32.mrf.mxu0
      %v4591 = vadd.f32 %v4502, %v4590
      %4592 = vmatmul.bf16.gmra.mxu0 %v1935
      %v4593 = vpop.f32.mrf.mxu0
      %v4594 = vadd.f32 %v4505, %v4593
      %v4595 = vpop.f32.mrf.mxu0
      %v4596 = vadd.f32 %v4507, %v4595
      %4597 = vmatmul.bf16.gmra.mxu0 %v1944
      %v4598 = vpop.f32.mrf.mxu0
      %v4599 = vadd.f32 %v4510, %v4598
      %v4600 = vpop.f32.mrf.mxu0
      %v4601 = vadd.f32 %v4512, %v4600
      %4602 = vmatmul.bf16.gmra.mxu0 %v1950
      %v4603 = vpop.f32.mrf.mxu0
      %v4604 = vadd.f32 %v4515, %v4603
      %v4605 = vpop.f32.mrf.mxu0
      %v4606 = vadd.f32 %v4517, %v4605
      %4607 = vmatmul.bf16.gmra.mxu0 %v1956
      %v4608 = vpop.f32.mrf.mxu0
      %v4609 = vadd.f32 %v4520, %v4608
      %v4610 = vpop.f32.mrf.mxu0
      %v4611 = vadd.f32 %v4522, %v4610
      %4612 = vmatmul.bf16.gmra.mxu0 %v1962
      %v4613 = vpop.f32.mrf.mxu0
      %v4614 = vadd.f32 %v4525, %v4613
      %v4615 = vpop.f32.mrf.mxu0
      %v4616 = vadd.f32 %v4527, %v4615
      %4617 = vdwg.mxu0
      %s4618 = scalar_lea.vmem %s6, 1152
      %v4619 = vld [vmem:[%s4618] sm:$0xf]
      %v4620 = vld [vmem:[%s4618 + $0x4] sm:$0xf]
      %v4621 = vld [vmem:[%s4618 + $0x8] sm:$0xf]
      %v4622 = vld [vmem:[%s4618 + $0xc] sm:$0xf]
      %v4623 = vld [vmem:[%s4618 + $0x10] sm:$0xf]
      %v4624 = vld [vmem:[%s4618 + $0x14] sm:$0xf]
      %v4625 = vld [vmem:[%s4618 + $0x18] sm:$0xf]
      %v4626 = vld [vmem:[%s4618 + $0x1c] sm:$0xf]
      %v4627 = vld [vmem:[%s4618 + $0x20] sm:$0xf]
      %v4628 = vld [vmem:[%s4618 + $0x24] sm:$0xf]
      %v4629 = vld [vmem:[%s4618 + $0x28] sm:$0xf]
      %v4630 = vld [vmem:[%s4618 + $0x2c] sm:$0xf]
      %v4631 = vld [vmem:[%s4618 + $0x30] sm:$0xf]
      %v4632 = vld [vmem:[%s4618 + $0x34] sm:$0xf]
      %v4633 = vld [vmem:[%s4618 + $0x38] sm:$0xf]
      %v4634 = vld [vmem:[%s4618 + $0x3c] sm:$0xf]
      %v4635 = vld [vmem:[%s4618 + $0x40] sm:$0xf]
      %v4636 = vld [vmem:[%s4618 + $0x44] sm:$0xf]
      %v4637 = vld [vmem:[%s4618 + $0x48] sm:$0xf]
      %v4638 = vld [vmem:[%s4618 + $0x4c] sm:$0xf]
      %v4639 = vld [vmem:[%s4618 + $0x50] sm:$0xf]
      %v4640 = vld [vmem:[%s4618 + $0x54] sm:$0xf]
      %v4641 = vld [vmem:[%s4618 + $0x58] sm:$0xf]
      %v4642 = vld [vmem:[%s4618 + $0x5c] sm:$0xf]
      %v4643 = vld [vmem:[%s4618 + $0x60] sm:$0xf]
      %v4644 = vld [vmem:[%s4618 + $0x64] sm:$0xf]
      %v4645 = vld [vmem:[%s4618 + $0x68] sm:$0xf]
      %v4646 = vld [vmem:[%s4618 + $0x6c] sm:$0xf]
      %v4647 = vld [vmem:[%s4618 + $0x70] sm:$0xf]
      %v4648 = vld [vmem:[%s4618 + $0x74] sm:$0xf]
      %v4649 = vld [vmem:[%s4618 + $0x78] sm:$0xf]
      %v4650 = vld [vmem:[%s4618 + $0x7c] sm:$0xf]
      %v4651 = vld [vmem:[%s4618 + $0x80] sm:$0xf]
      %v4652 = vld [vmem:[%s4618 + $0x84] sm:$0xf]
      %v4653 = vld [vmem:[%s4618 + $0x88] sm:$0xf]
      %v4654 = vld [vmem:[%s4618 + $0x8c] sm:$0xf]
      %v4655 = vld [vmem:[%s4618 + $0x90] sm:$0xf]
      %v4656 = vld [vmem:[%s4618 + $0x94] sm:$0xf]
      %v4657 = vld [vmem:[%s4618 + $0x98] sm:$0xf]
      %v4658 = vld [vmem:[%s4618 + $0x9c] sm:$0xf]
      %v4659 = vld [vmem:[%s4618 + $0xa0] sm:$0xf]
      %v4660 = vld [vmem:[%s4618 + $0xa4] sm:$0xf]
      %v4661 = vld [vmem:[%s4618 + $0xa8] sm:$0xf]
      %v4662 = vld [vmem:[%s4618 + $0xac] sm:$0xf]
      %v4663 = vld [vmem:[%s4618 + $0xb0] sm:$0xf]
      %v4664 = vld [vmem:[%s4618 + $0xb4] sm:$0xf]
      %v4665 = vld [vmem:[%s4618 + $0xb8] sm:$0xf]
      %v4666 = vld [vmem:[%s4618 + $0xbc] sm:$0xf]
      %v4667 = vld [vmem:[%s4618 + $0xc0] sm:$0xf]
      %v4668 = vld [vmem:[%s4618 + $0xc4] sm:$0xf]
      %v4669 = vld [vmem:[%s4618 + $0xc8] sm:$0xf]
      %v4670 = vld [vmem:[%s4618 + $0xcc] sm:$0xf]
      %v4671 = vld [vmem:[%s4618 + $0xd0] sm:$0xf]
      %v4672 = vld [vmem:[%s4618 + $0xd4] sm:$0xf]
      %v4673 = vld [vmem:[%s4618 + $0xd8] sm:$0xf]
      %v4674 = vld [vmem:[%s4618 + $0xdc] sm:$0xf]
      %v4675 = vld [vmem:[%s4618 + $0xe0] sm:$0xf]
      %v4676 = vld [vmem:[%s4618 + $0xe4] sm:$0xf]
      %v4677 = vld [vmem:[%s4618 + $0xe8] sm:$0xf]
      %v4678 = vld [vmem:[%s4618 + $0xec] sm:$0xf]
      %v4679 = vld [vmem:[%s4618 + $0xf0] sm:$0xf]
      %v4680 = vld [vmem:[%s4618 + $0xf4] sm:$0xf]
      %v4681 = vld [vmem:[%s4618 + $0xf8] sm:$0xf]
      %v4682 = vld [vmem:[%s4618 + $0xfc] sm:$0xf]
      %v4683 = vld [vmem:[%s4618 + $0x100] sm:$0xf]
      %v4684 = vld [vmem:[%s4618 + $0x104] sm:$0xf]
      %v4685 = vld [vmem:[%s4618 + $0x108] sm:$0xf]
      %v4686 = vld [vmem:[%s4618 + $0x10c] sm:$0xf]
      %v4687 = vld [vmem:[%s4618 + $0x110] sm:$0xf]
      %v4688 = vld [vmem:[%s4618 + $0x114] sm:$0xf]
      %v4689 = vld [vmem:[%s4618 + $0x118] sm:$0xf]
      %v4690 = vld [vmem:[%s4618 + $0x11c] sm:$0xf]
      %v4691 = vld [vmem:[%s4618 + $0x120] sm:$0xf]
      %v4692 = vld [vmem:[%s4618 + $0x124] sm:$0xf]
      %v4693 = vld [vmem:[%s4618 + $0x128] sm:$0xf]
      %v4694 = vld [vmem:[%s4618 + $0x12c] sm:$0xf]
      %v4695 = vld [vmem:[%s4618 + $0x130] sm:$0xf]
      %v4696 = vld [vmem:[%s4618 + $0x134] sm:$0xf]
      %v4697 = vld [vmem:[%s4618 + $0x138] sm:$0xf]
      %v4698 = vld [vmem:[%s4618 + $0x13c] sm:$0xf]
      %v4699 = vld [vmem:[%s4618 + $0x140] sm:$0xf]
      %v4700 = vld [vmem:[%s4618 + $0x144] sm:$0xf]
      %v4701 = vld [vmem:[%s4618 + $0x148] sm:$0xf]
      %v4702 = vld [vmem:[%s4618 + $0x14c] sm:$0xf]
      %v4703 = vld [vmem:[%s4618 + $0x150] sm:$0xf]
      %v4704 = vld [vmem:[%s4618 + $0x154] sm:$0xf]
      %v4705 = vld [vmem:[%s4618 + $0x158] sm:$0xf]
      %v4706 = vld [vmem:[%s4618 + $0x15c] sm:$0xf]
      %v4707 = vld [vmem:[%s4618 + $0x160] sm:$0xf]
      %v4708 = vld [vmem:[%s4618 + $0x164] sm:$0xf]
      %v4709 = vld [vmem:[%s4618 + $0x168] sm:$0xf]
      %v4710 = vld [vmem:[%s4618 + $0x16c] sm:$0xf]
      %v4711 = vld [vmem:[%s4618 + $0x170] sm:$0xf]
      %v4712 = vld [vmem:[%s4618 + $0x174] sm:$0xf]
      %v4713 = vld [vmem:[%s4618 + $0x178] sm:$0xf]
      %v4714 = vld [vmem:[%s4618 + $0x17c] sm:$0xf]
      %v4715 = vld [vmem:[%s4618 + $0x180] sm:$0xf]
      %v4716 = vld [vmem:[%s4618 + $0x184] sm:$0xf]
      %v4717 = vld [vmem:[%s4618 + $0x188] sm:$0xf]
      %v4718 = vld [vmem:[%s4618 + $0x18c] sm:$0xf]
      %v4719 = vld [vmem:[%s4618 + $0x190] sm:$0xf]
      %v4720 = vld [vmem:[%s4618 + $0x194] sm:$0xf]
      %v4721 = vld [vmem:[%s4618 + $0x198] sm:$0xf]
      %v4722 = vld [vmem:[%s4618 + $0x19c] sm:$0xf]
      %v4723 = vld [vmem:[%s4618 + $0x1a0] sm:$0xf]
      %v4724 = vld [vmem:[%s4618 + $0x1a4] sm:$0xf]
      %v4725 = vld [vmem:[%s4618 + $0x1a8] sm:$0xf]
      %v4726 = vld [vmem:[%s4618 + $0x1ac] sm:$0xf]
      %v4727 = vld [vmem:[%s4618 + $0x1b0] sm:$0xf]
      %v4728 = vld [vmem:[%s4618 + $0x1b4] sm:$0xf]
      %v4729 = vld [vmem:[%s4618 + $0x1b8] sm:$0xf]
      %v4730 = vld [vmem:[%s4618 + $0x1bc] sm:$0xf]
      %v4731 = vld [vmem:[%s4618 + $0x1c0] sm:$0xf]
      %v4732 = vld [vmem:[%s4618 + $0x1c4] sm:$0xf]
      %v4733 = vld [vmem:[%s4618 + $0x1c8] sm:$0xf]
      %v4734 = vld [vmem:[%s4618 + $0x1cc] sm:$0xf]
      %v4735 = vld [vmem:[%s4618 + $0x1d0] sm:$0xf]
      %v4736 = vld [vmem:[%s4618 + $0x1d4] sm:$0xf]
      %v4737 = vld [vmem:[%s4618 + $0x1d8] sm:$0xf]
      %v4738 = vld [vmem:[%s4618 + $0x1dc] sm:$0xf]
      %v4739 = vld [vmem:[%s4618 + $0x1e0] sm:$0xf]
      %v4740 = vld [vmem:[%s4618 + $0x1e4] sm:$0xf]
      %v4741 = vld [vmem:[%s4618 + $0x1e8] sm:$0xf]
      %v4742 = vld [vmem:[%s4618 + $0x1ec] sm:$0xf]
      %v4743 = vld [vmem:[%s4618 + $0x1f0] sm:$0xf]
      %v4744 = vld [vmem:[%s4618 + $0x1f4] sm:$0xf]
      %v4745 = vld [vmem:[%s4618 + $0x1f8] sm:$0xf]
      %v4746 = vld [vmem:[%s4618 + $0x1fc] sm:$0xf]
      %v4747 = vld [vmem:[%s4618 + $0x200] sm:$0xf]
      %v4748 = vld [vmem:[%s4618 + $0x204] sm:$0xf]
      %v4749 = vld [vmem:[%s4618 + $0x208] sm:$0xf]
      %v4750 = vld [vmem:[%s4618 + $0x20c] sm:$0xf]
      %v4751 = vld [vmem:[%s4618 + $0x210] sm:$0xf]
      %v4752 = vld [vmem:[%s4618 + $0x214] sm:$0xf]
      %v4753 = vld [vmem:[%s4618 + $0x218] sm:$0xf]
      %v4754 = vld [vmem:[%s4618 + $0x21c] sm:$0xf]
      %v4755 = vld [vmem:[%s4618 + $0x220] sm:$0xf]
      %v4756 = vld [vmem:[%s4618 + $0x224] sm:$0xf]
      %v4757 = vld [vmem:[%s4618 + $0x228] sm:$0xf]
      %v4758 = vld [vmem:[%s4618 + $0x22c] sm:$0xf]
      %v4759 = vld [vmem:[%s4618 + $0x230] sm:$0xf]
      %v4760 = vld [vmem:[%s4618 + $0x234] sm:$0xf]
      %v4761 = vld [vmem:[%s4618 + $0x238] sm:$0xf]
      %v4762 = vld [vmem:[%s4618 + $0x23c] sm:$0xf]
      %v4763 = vunpack.c.l.b16 %v1418
      %v4764 = vunpack.c.l.b16 %v1482
      %v4765 = vunpack.c.l.b16 %v1425
      %v4766 = vunpack.c.l.b16 %v1483
      %v4767 = vunpack.c.l.b16 %v1432
      %v4768 = vunpack.c.l.b16 %v1484
      %v4769 = vunpack.c.l.b16 %v1439
      %v4770 = vunpack.c.l.b16 %v1485
      %v4771 = vunpack.c.l.b16 %v1446
      %v4772 = vunpack.c.l.b16 %v1486
      %v4773 = vunpack.c.l.b16 %v1453
      %v4774 = vunpack.c.l.b16 %v1487
      %v4775 = vunpack.c.l.b16 %v1460
      %v4776 = vunpack.c.l.b16 %v1488
      %v4777 = vunpack.c.l.b16 %v1467
      %v4778 = vunpack.c.l.b16 %v1489
      %v4779 = vunpack.c.l.b16 %v1474
      %v4780 = vunpack.c.l.b16 %v1490
      %v4781 = vunpack.c.l.b16 %v1481
      %v4782 = vunpack.c.l.b16 %v1491
      %v4783 = vpack.c.b16 %v1384, %v1382
      %v4784 = vpack.c.b16 %v4765, %v4763
      %v4785 = vpack.c.b16 %v4766, %v4764
      %v4786 = vpack.c.b16 %v1386, %v1384
      %v4787 = vpack.c.b16 %v4767, %v4765
      %v4788 = vpack.c.b16 %v4768, %v4766
      %v4789 = vpack.c.b16 %v1388, %v1386
      %v4790 = vpack.c.b16 %v4769, %v4767
      %v4791 = vpack.c.b16 %v4770, %v4768
      %v4792 = vpack.c.b16 %v1390, %v1388
      %v4793 = vpack.c.b16 %v4771, %v4769
      %v4794 = vpack.c.b16 %v4772, %v4770
      %v4795 = vpack.c.b16 %v1392, %v1390
      %v4796 = vpack.c.b16 %v4773, %v4771
      %v4797 = vpack.c.b16 %v4774, %v4772
      %v4798 = vpack.c.b16 %v1394, %v1392
      %v4799 = vpack.c.b16 %v4775, %v4773
      %v4800 = vpack.c.b16 %v4776, %v4774
      %v4801 = vpack.c.b16 %v1396, %v1394
      %v4802 = vpack.c.b16 %v4777, %v4775
      %v4803 = vpack.c.b16 %v4778, %v4776
      %v4804 = vpack.c.b16 %v1398, %v1396
      %v4805 = vpack.c.b16 %v4779, %v4777
      %v4806 = vpack.c.b16 %v4780, %v4778
      %v4807 = vpack.c.b16 %v1400, %v1398
      %v4808 = vpack.c.b16 %v4781, %v4779
      %v4809 = vpack.c.b16 %v4782, %v4780
      %v4981 = vunpack.c.l.b16 %v4619
      %v4982 = vunpack.c.l.b16 %v4620
      %v4983 = vunpack.c.l.b16 %v4621
      %v4984 = vunpack.c.l.b16 %v4622
      %v4985 = vunpack.c.l.b16 %v4623
      %v4986 = vunpack.c.l.b16 %v4624
      %v4987 = vunpack.c.l.b16 %v4625
      %v4988 = vunpack.c.l.b16 %v4626
      %v4989 = vunpack.c.l.b16 %v4627
      %v4990 = vunpack.c.l.b16 %v4628
      %v4991 = vunpack.c.l.b16 %v4629
      %v4992 = vunpack.c.l.b16 %v4630
      %v4993 = vunpack.c.l.b16 %v4631
      %v4994 = vunpack.c.l.b16 %v4632
      %v4995 = vunpack.c.l.b16 %v4633
      %v4996 = vunpack.c.l.b16 %v4634
      %v4997 = vunpack.c.l.b16 %v4635
      %v4998 = vunpack.c.l.b16 %v4636
      %v4999 = vunpack.c.l.b16 %v4637
      %v5000 = vunpack.c.l.b16 %v4638
      %v5001 = vunpack.c.l.b16 %v4639
      %v5002 = vunpack.c.l.b16 %v4640
      %v5003 = vunpack.c.l.b16 %v4641
      %v5004 = vunpack.c.l.b16 %v4642
      %v5005 = vunpack.c.l.b16 %v4643
      %v5006 = vunpack.c.l.b16 %v4644
      %v5007 = vunpack.c.l.b16 %v4645
      %v5008 = vunpack.c.l.b16 %v4646
      %v5009 = vunpack.c.l.b16 %v4647
      %v5010 = vunpack.c.l.b16 %v4648
      %v5011 = vunpack.c.l.b16 %v4649
      %v5012 = vunpack.c.l.b16 %v4650
      %v5013 = vunpack.c.l.b16 %v4651
      %v5014 = vunpack.c.l.b16 %v4652
      %v5015 = vunpack.c.l.b16 %v4653
      %v5016 = vunpack.c.l.b16 %v4654
      %v5017 = vunpack.c.l.b16 %v4655
      %v5018 = vunpack.c.l.b16 %v4656
      %v5019 = vunpack.c.l.b16 %v4657
      %v5020 = vunpack.c.l.b16 %v4658
      %v5021 = vunpack.c.l.b16 %v4659
      %v5022 = vunpack.c.l.b16 %v4660
      %v5023 = vunpack.c.l.b16 %v4661
      %v5024 = vunpack.c.l.b16 %v4662
      %v5025 = vunpack.c.l.b16 %v4663
      %v5026 = vunpack.c.l.b16 %v4664
      %v5027 = vunpack.c.l.b16 %v4665
      %v5028 = vunpack.c.l.b16 %v4666
      %v5029 = vunpack.c.l.b16 %v4667
      %v5030 = vunpack.c.l.b16 %v4668
      %v5031 = vunpack.c.l.b16 %v4669
      %v5032 = vunpack.c.l.b16 %v4670
      %v5033 = vunpack.c.l.b16 %v4671
      %v5034 = vunpack.c.l.b16 %v4672
      %v5035 = vunpack.c.l.b16 %v4673
      %v5036 = vunpack.c.l.b16 %v4674
      %v5037 = vunpack.c.l.b16 %v4675
      %v5038 = vunpack.c.l.b16 %v4676
      %v5039 = vunpack.c.l.b16 %v4677
      %v5040 = vunpack.c.l.b16 %v4678
      %v5041 = vunpack.c.l.b16 %v4679
      %v5042 = vunpack.c.l.b16 %v4680
      %v5043 = vunpack.c.l.b16 %v4681
      %v5044 = vunpack.c.l.b16 %v4682
      %v5045 = vunpack.c.l.b16 %v4683
      %v5046 = vunpack.c.l.b16 %v4684
      %v5047 = vunpack.c.l.b16 %v4685
      %v5048 = vunpack.c.l.b16 %v4686
      %v5049 = vunpack.c.l.b16 %v4687
      %v5050 = vunpack.c.l.b16 %v4688
      %v5051 = vunpack.c.l.b16 %v4689
      %v5052 = vunpack.c.l.b16 %v4690
      %v5053 = vunpack.c.l.b16 %v4691
      %v5054 = vunpack.c.l.b16 %v4692
      %v5055 = vunpack.c.l.b16 %v4693
      %v5056 = vunpack.c.l.b16 %v4694
      %v5057 = vunpack.c.l.b16 %v4695
      %v5058 = vunpack.c.l.b16 %v4696
      %v5059 = vunpack.c.l.b16 %v4697
      %v5060 = vunpack.c.l.b16 %v4698
      %v5061 = vunpack.c.l.b16 %v4699
      %v5062 = vunpack.c.l.b16 %v4700
      %v5063 = vunpack.c.l.b16 %v4701
      %v5064 = vunpack.c.l.b16 %v4702
      %v5065 = vunpack.c.l.b16 %v4703
      %v5066 = vunpack.c.l.b16 %v4704
      %v5067 = vunpack.c.l.b16 %v4705
      %v5068 = vunpack.c.l.b16 %v4706
      %v5069 = vunpack.c.l.b16 %v4707
      %v5070 = vunpack.c.l.b16 %v4708
      %v5071 = vunpack.c.l.b16 %v4709
      %v5072 = vunpack.c.l.b16 %v4710
      %v5073 = vunpack.c.l.b16 %v4711
      %v5074 = vunpack.c.l.b16 %v4712
      %v5075 = vunpack.c.l.b16 %v4713
      %v5076 = vunpack.c.l.b16 %v4714
      %v5077 = vunpack.c.l.b16 %v4715
      %v5078 = vunpack.c.l.b16 %v4716
      %v5079 = vunpack.c.l.b16 %v4717
      %v5080 = vunpack.c.l.b16 %v4718
      %v5081 = vunpack.c.l.b16 %v4719
      %v5082 = vunpack.c.l.b16 %v4720
      %v5083 = vunpack.c.l.b16 %v4721
      %v5084 = vunpack.c.l.b16 %v4722
      %v5085 = vunpack.c.l.b16 %v4723
      %v5086 = vunpack.c.l.b16 %v4724
      %v5087 = vunpack.c.l.b16 %v4725
      %v5088 = vunpack.c.l.b16 %v4726
      %v5089 = vunpack.c.l.b16 %v4727
      %v5090 = vunpack.c.l.b16 %v4728
      %v5091 = vunpack.c.l.b16 %v4729
      %v5092 = vunpack.c.l.b16 %v4730
      %v5093 = vunpack.c.l.b16 %v4731
      %v5094 = vunpack.c.l.b16 %v4732
      %v5095 = vunpack.c.l.b16 %v4733
      %v5096 = vunpack.c.l.b16 %v4734
      %v5097 = vunpack.c.l.b16 %v4735
      %v5098 = vunpack.c.l.b16 %v4736
      %v5099 = vunpack.c.l.b16 %v4737
      %v5100 = vunpack.c.l.b16 %v4738
      %v5101 = vunpack.c.l.b16 %v4739
      %v5102 = vunpack.c.l.b16 %v4740
      %v5103 = vunpack.c.l.b16 %v4741
      %v5104 = vunpack.c.l.b16 %v4742
      %v5105 = vunpack.c.l.b16 %v4743
      %v5106 = vunpack.c.l.b16 %v4744
      %v5107 = vunpack.c.l.b16 %v4745
      %v5108 = vunpack.c.l.b16 %v4746
      %v5109 = vunpack.c.l.b16 %v4747
      %v5110 = vunpack.c.l.b16 %v4748
      %v5111 = vunpack.c.l.b16 %v4749
      %v5112 = vunpack.c.l.b16 %v4750
      %v5113 = vunpack.c.l.b16 %v4751
      %v5114 = vunpack.c.l.b16 %v4752
      %v5115 = vunpack.c.l.b16 %v4753
      %v5116 = vunpack.c.l.b16 %v4754
      %v5117 = vunpack.c.l.b16 %v4755
      %v5118 = vunpack.c.l.b16 %v4756
      %v5119 = vunpack.c.l.b16 %v4757
      %v5120 = vunpack.c.l.b16 %v4758
      %v5121 = vunpack.c.l.b16 %v4759
      %v5122 = vunpack.c.l.b16 %v4760
      %v5123 = vunpack.c.l.b16 %v4761
      %v5124 = vunpack.c.l.b16 %v4762
      %v5125 = vpack.c.b16 %v4982, %v4981
      %v5126 = vpack.c.b16 %v4984, %v4983
      %v5127 = vpack.c.b16 %v4986, %v4985
      %v5128 = vpack.c.b16 %v4988, %v4987
      %v5129 = vpack.c.b16 %v4990, %v4989
      %v5130 = vpack.c.b16 %v4992, %v4991
      %v5131 = vpack.c.b16 %v4994, %v4993
      %v5132 = vpack.c.b16 %v4996, %v4995
      %v5133 = vpack.c.b16 %v4998, %v4997
      %v5134 = vpack.c.b16 %v5000, %v4999
      %v5135 = vpack.c.b16 %v5002, %v5001
      %v5136 = vpack.c.b16 %v5004, %v5003
      %v5137 = vpack.c.b16 %v5006, %v5005
      %v5138 = vpack.c.b16 %v5008, %v5007
      %v5139 = vpack.c.b16 %v5010, %v5009
      %v5140 = vpack.c.b16 %v5012, %v5011
      %v5141 = vpack.c.b16 %v5014, %v5013
      %v5142 = vpack.c.b16 %v5016, %v5015
      %v5143 = vpack.c.b16 %v5018, %v5017
      %v5144 = vpack.c.b16 %v5020, %v5019
      %v5145 = vpack.c.b16 %v5022, %v5021
      %v5146 = vpack.c.b16 %v5024, %v5023
      %v5147 = vpack.c.b16 %v5026, %v5025
      %v5148 = vpack.c.b16 %v5028, %v5027
      %v5149 = vpack.c.b16 %v5030, %v5029
      %v5150 = vpack.c.b16 %v5032, %v5031
      %v5151 = vpack.c.b16 %v5034, %v5033
      %v5152 = vpack.c.b16 %v5036, %v5035
      %v5153 = vpack.c.b16 %v5038, %v5037
      %v5154 = vpack.c.b16 %v5040, %v5039
      %v5155 = vpack.c.b16 %v5042, %v5041
      %v5156 = vpack.c.b16 %v5044, %v5043
      %v5157 = vpack.c.b16 %v5046, %v5045
      %v5158 = vpack.c.b16 %v5048, %v5047
      %v5159 = vpack.c.b16 %v5050, %v5049
      %v5160 = vpack.c.b16 %v5052, %v5051
      %v5161 = vpack.c.b16 %v5054, %v5053
      %v5162 = vpack.c.b16 %v5056, %v5055
      %v5163 = vpack.c.b16 %v5058, %v5057
      %v5164 = vpack.c.b16 %v5060, %v5059
      %v5165 = vpack.c.b16 %v5062, %v5061
      %v5166 = vpack.c.b16 %v5064, %v5063
      %v5167 = vpack.c.b16 %v5066, %v5065
      %v5168 = vpack.c.b16 %v5068, %v5067
      %v5169 = vpack.c.b16 %v5070, %v5069
      %v5170 = vpack.c.b16 %v5072, %v5071
      %v5171 = vpack.c.b16 %v5074, %v5073
      %v5172 = vpack.c.b16 %v5076, %v5075
      %v5173 = vpack.c.b16 %v5078, %v5077
      %v5174 = vpack.c.b16 %v5080, %v5079
      %v5175 = vpack.c.b16 %v5082, %v5081
      %v5176 = vpack.c.b16 %v5084, %v5083
      %v5177 = vpack.c.b16 %v5086, %v5085
      %v5178 = vpack.c.b16 %v5088, %v5087
      %v5179 = vpack.c.b16 %v5090, %v5089
      %v5180 = vpack.c.b16 %v5092, %v5091
      %v5181 = vpack.c.b16 %v5094, %v5093
      %v5182 = vpack.c.b16 %v5096, %v5095
      %v5183 = vpack.c.b16 %v5098, %v5097
      %v5184 = vpack.c.b16 %v5100, %v5099
      %v5185 = vpack.c.b16 %v5102, %v5101
      %v5186 = vpack.c.b16 %v5104, %v5103
      %v5187 = vpack.c.b16 %v5106, %v5105
      %v5188 = vpack.c.b16 %v5108, %v5107
      %v5189 = vpack.c.b16 %v5110, %v5109
      %v5190 = vpack.c.b16 %v5112, %v5111
      %v5191 = vpack.c.b16 %v5114, %v5113
      %v5192 = vpack.c.b16 %v5116, %v5115
      %v5193 = vpack.c.b16 %v5118, %v5117
      %v5194 = vpack.c.b16 %v5120, %v5119
      %v5195 = vpack.c.b16 %v5122, %v5121
      %v5196 = vpack.c.b16 %v5124, %v5123
      %5269 = vmatpush.bf16.msra.mxu0 %v5132
      %5270 = vmatpush.bf16.msra.mxu0 %v5131
      %5271 = vmatpush.bf16.msra.mxu0 %v5130
      %5272 = vmatpush.bf16.msra.mxu0 %v5129
      %5273 = vmatpush.bf16.msra.mxu0 %v5128
      %5274 = vmatpush.bf16.msra.mxu0 %v5127
      %5275 = vmatpush.bf16.msra.mxu0 %v5126
      %5276 = vmatpush.bf16.msra.mxu0 %v5125
      %5277 = vmatmul.bf16.gmra.mxu0 %v1909
      %v5278 = vpop.f32.mrf.mxu0
      %v5279 = vadd.f32 0.0, %v5278
      %v5280 = vpop.f32.mrf.mxu0
      %v5281 = vadd.f32 0.0, %v5280
      %5282 = vmatmul.bf16.gmra.mxu0 %v1915
      %v5283 = vpop.f32.mrf.mxu0
      %v5284 = vadd.f32 0.0, %v5283
      %v5285 = vpop.f32.mrf.mxu0
      %v5286 = vadd.f32 0.0, %v5285
      %5287 = vmatmul.bf16.gmra.mxu0 %v1921
      %v5288 = vpop.f32.mrf.mxu0
      %v5289 = vadd.f32 0.0, %v5288
      %v5290 = vpop.f32.mrf.mxu0
      %v5291 = vadd.f32 0.0, %v5290
      %5292 = vmatmul.bf16.gmra.mxu0 %v1927
      %v5293 = vpop.f32.mrf.mxu0
      %v5294 = vadd.f32 0.0, %v5293
      %v5295 = vpop.f32.mrf.mxu0
      %v5296 = vadd.f32 0.0, %v5295
      %5297 = vmatmul.bf16.gmra.mxu0 %v1936
      %v5298 = vpop.f32.mrf.mxu0
      %v5299 = vadd.f32 0.0, %v5298
      %v5300 = vpop.f32.mrf.mxu0
      %v5301 = vadd.f32 0.0, %v5300
      %5302 = vmatmul.bf16.gmra.mxu0 %v1942
      %v5303 = vpop.f32.mrf.mxu0
      %v5304 = vadd.f32 0.0, %v5303
      %v5305 = vpop.f32.mrf.mxu0
      %v5306 = vadd.f32 0.0, %v5305
      %5307 = vmatmul.bf16.gmra.mxu0 %v1948
      %v5308 = vpop.f32.mrf.mxu0
      %v5309 = vadd.f32 0.0, %v5308
      %v5310 = vpop.f32.mrf.mxu0
      %v5311 = vadd.f32 0.0, %v5310
      %5312 = vmatmul.bf16.gmra.mxu0 %v1954
      %v5313 = vpop.f32.mrf.mxu0
      %v5314 = vadd.f32 0.0, %v5313
      %v5315 = vpop.f32.mrf.mxu0
      %v5316 = vadd.f32 0.0, %v5315
      %5317 = vmatmul.bf16.gmra.mxu0 %v1963
      %v5318 = vpop.f32.mrf.mxu0
      %v5319 = vadd.f32 0.0, %v5318
      %v5320 = vpop.f32.mrf.mxu0
      %v5321 = vadd.f32 0.0, %v5320
      %5322 = vmatmul.bf16.gmra.mxu0 %v1969
      %v5323 = vpop.f32.mrf.mxu0
      %v5324 = vadd.f32 0.0, %v5323
      %v5325 = vpop.f32.mrf.mxu0
      %v5326 = vadd.f32 0.0, %v5325
      %5327 = vmatmul.bf16.gmra.mxu0 %v1975
      %v5328 = vpop.f32.mrf.mxu0
      %v5329 = vadd.f32 0.0, %v5328
      %v5330 = vpop.f32.mrf.mxu0
      %v5331 = vadd.f32 0.0, %v5330
      %5332 = vmatmul.bf16.gmra.mxu0 %v1981
      %v5333 = vpop.f32.mrf.mxu0
      %v5334 = vadd.f32 0.0, %v5333
      %v5335 = vpop.f32.mrf.mxu0
      %v5336 = vadd.f32 0.0, %v5335
      %5337 = vmatmul.bf16.gmra.mxu0 %v4783
      %v5338 = vpop.f32.mrf.mxu0
      %v5339 = vadd.f32 0.0, %v5338
      %v5340 = vpop.f32.mrf.mxu0
      %v5341 = vadd.f32 0.0, %v5340
      %5342 = vmatmul.bf16.gmra.mxu0 %v4789
      %v5343 = vpop.f32.mrf.mxu0
      %v5344 = vadd.f32 0.0, %v5343
      %v5345 = vpop.f32.mrf.mxu0
      %v5346 = vadd.f32 0.0, %v5345
      %5347 = vmatmul.bf16.gmra.mxu0 %v4795
      %v5348 = vpop.f32.mrf.mxu0
      %v5349 = vadd.f32 0.0, %v5348
      %v5350 = vpop.f32.mrf.mxu0
      %v5351 = vadd.f32 0.0, %v5350
      %5352 = vmatmul.bf16.gmra.mxu0 %v4801
      %v5353 = vpop.f32.mrf.mxu0
      %v5354 = vadd.f32 0.0, %v5353
      %v5355 = vpop.f32.mrf.mxu0
      %v5356 = vadd.f32 0.0, %v5355
      %5357 = vdwg.mxu0
      %5358 = vmatpush.bf16.msra.mxu0 %v5140
      %5359 = vmatpush.bf16.msra.mxu0 %v5139
      %5360 = vmatpush.bf16.msra.mxu0 %v5138
      %5361 = vmatpush.bf16.msra.mxu0 %v5137
      %5362 = vmatpush.bf16.msra.mxu0 %v5136
      %5363 = vmatpush.bf16.msra.mxu0 %v5135
      %5364 = vmatpush.bf16.msra.mxu0 %v5134
      %5365 = vmatpush.bf16.msra.mxu0 %v5133
      %5366 = vmatmul.bf16.gmra.mxu0 %v1910
      %v5367 = vpop.f32.mrf.mxu0
      %v5368 = vadd.f32 %v5279, %v5367
      %v5369 = vpop.f32.mrf.mxu0
      %v5370 = vadd.f32 %v5281, %v5369
      %5371 = vmatmul.bf16.gmra.mxu0 %v1916
      %v5372 = vpop.f32.mrf.mxu0
      %v5373 = vadd.f32 %v5284, %v5372
      %v5374 = vpop.f32.mrf.mxu0
      %v5375 = vadd.f32 %v5286, %v5374
      %5376 = vmatmul.bf16.gmra.mxu0 %v1922
      %v5377 = vpop.f32.mrf.mxu0
      %v5378 = vadd.f32 %v5289, %v5377
      %v5379 = vpop.f32.mrf.mxu0
      %v5380 = vadd.f32 %v5291, %v5379
      %5381 = vmatmul.bf16.gmra.mxu0 %v1928
      %v5382 = vpop.f32.mrf.mxu0
      %v5383 = vadd.f32 %v5294, %v5382
      %v5384 = vpop.f32.mrf.mxu0
      %v5385 = vadd.f32 %v5296, %v5384
      %5386 = vmatmul.bf16.gmra.mxu0 %v1937
      %v5387 = vpop.f32.mrf.mxu0
      %v5388 = vadd.f32 %v5299, %v5387
      %v5389 = vpop.f32.mrf.mxu0
      %v5390 = vadd.f32 %v5301, %v5389
      %5391 = vmatmul.bf16.gmra.mxu0 %v1943
      %v5392 = vpop.f32.mrf.mxu0
      %v5393 = vadd.f32 %v5304, %v5392
      %v5394 = vpop.f32.mrf.mxu0
      %v5395 = vadd.f32 %v5306, %v5394
      %5396 = vmatmul.bf16.gmra.mxu0 %v1949
      %v5397 = vpop.f32.mrf.mxu0
      %v5398 = vadd.f32 %v5309, %v5397
      %v5399 = vpop.f32.mrf.mxu0
      %v5400 = vadd.f32 %v5311, %v5399
      %5401 = vmatmul.bf16.gmra.mxu0 %v1955
      %v5402 = vpop.f32.mrf.mxu0
      %v5403 = vadd.f32 %v5314, %v5402
      %v5404 = vpop.f32.mrf.mxu0
      %v5405 = vadd.f32 %v5316, %v5404
      %5406 = vmatmul.bf16.gmra.mxu0 %v1964
      %v5407 = vpop.f32.mrf.mxu0
      %v5408 = vadd.f32 %v5319, %v5407
      %v5409 = vpop.f32.mrf.mxu0
      %v5410 = vadd.f32 %v5321, %v5409
      %5411 = vmatmul.bf16.gmra.mxu0 %v1970
      %v5412 = vpop.f32.mrf.mxu0
      %v5413 = vadd.f32 %v5324, %v5412
      %v5414 = vpop.f32.mrf.mxu0
      %v5415 = vadd.f32 %v5326, %v5414
      %5416 = vmatmul.bf16.gmra.mxu0 %v1976
      %v5417 = vpop.f32.mrf.mxu0
      %v5418 = vadd.f32 %v5329, %v5417
      %v5419 = vpop.f32.mrf.mxu0
      %v5420 = vadd.f32 %v5331, %v5419
      %5421 = vmatmul.bf16.gmra.mxu0 %v1982
      %v5422 = vpop.f32.mrf.mxu0
      %v5423 = vadd.f32 %v5334, %v5422
      %v5424 = vpop.f32.mrf.mxu0
      %v5425 = vadd.f32 %v5336, %v5424
      %5426 = vmatmul.bf16.gmra.mxu0 %v4784
      %v5427 = vpop.f32.mrf.mxu0
      %v5428 = vadd.f32 %v5339, %v5427
      %v5429 = vpop.f32.mrf.mxu0
      %v5430 = vadd.f32 %v5341, %v5429
      %5431 = vmatmul.bf16.gmra.mxu0 %v4790
      %v5432 = vpop.f32.mrf.mxu0
      %v5433 = vadd.f32 %v5344, %v5432
      %v5434 = vpop.f32.mrf.mxu0
      %v5435 = vadd.f32 %v5346, %v5434
      %5436 = vmatmul.bf16.gmra.mxu0 %v4796
      %v5437 = vpop.f32.mrf.mxu0
      %v5438 = vadd.f32 %v5349, %v5437
      %v5439 = vpop.f32.mrf.mxu0
      %v5440 = vadd.f32 %v5351, %v5439
      %5441 = vmatmul.bf16.gmra.mxu0 %v4802
      %v5442 = vpop.f32.mrf.mxu0
      %v5443 = vadd.f32 %v5354, %v5442
      %v5444 = vpop.f32.mrf.mxu0
      %v5445 = vadd.f32 %v5356, %v5444
      %5446 = vdwg.mxu0
      %5447 = vmatpush.bf16.msra.mxu0 %v5148
      %5448 = vmatpush.bf16.msra.mxu0 %v5147
      %5449 = vmatpush.bf16.msra.mxu0 %v5146
      %5450 = vmatpush.bf16.msra.mxu0 %v5145
      %5451 = vmatpush.bf16.msra.mxu0 %v5144
      %5452 = vmatpush.bf16.msra.mxu0 %v5143
      %5453 = vmatpush.bf16.msra.mxu0 %v5142
      %5454 = vmatpush.bf16.msra.mxu0 %v5141
      %5455 = vmatmul.bf16.gmra.mxu0 %v1911
      %v5456 = vpop.f32.mrf.mxu0
      %v5457 = vadd.f32 %v5368, %v5456
      %v5458 = vpop.f32.mrf.mxu0
      %v5459 = vadd.f32 %v5370, %v5458
      %5460 = vmatmul.bf16.gmra.mxu0 %v1917
      %v5461 = vpop.f32.mrf.mxu0
      %v5462 = vadd.f32 %v5373, %v5461
      %v5463 = vpop.f32.mrf.mxu0
      %v5464 = vadd.f32 %v5375, %v5463
      %5465 = vmatmul.bf16.gmra.mxu0 %v1923
      %v5466 = vpop.f32.mrf.mxu0
      %v5467 = vadd.f32 %v5378, %v5466
      %v5468 = vpop.f32.mrf.mxu0
      %v5469 = vadd.f32 %v5380, %v5468
      %5470 = vmatmul.bf16.gmra.mxu0 %v1929
      %v5471 = vpop.f32.mrf.mxu0
      %v5472 = vadd.f32 %v5383, %v5471
      %v5473 = vpop.f32.mrf.mxu0
      %v5474 = vadd.f32 %v5385, %v5473
      %5475 = vmatmul.bf16.gmra.mxu0 %v1938
      %v5476 = vpop.f32.mrf.mxu0
      %v5477 = vadd.f32 %v5388, %v5476
      %v5478 = vpop.f32.mrf.mxu0
      %v5479 = vadd.f32 %v5390, %v5478
      %5480 = vmatmul.bf16.gmra.mxu0 %v1944
      %v5481 = vpop.f32.mrf.mxu0
      %v5482 = vadd.f32 %v5393, %v5481
      %v5483 = vpop.f32.mrf.mxu0
      %v5484 = vadd.f32 %v5395, %v5483
      %5485 = vmatmul.bf16.gmra.mxu0 %v1950
      %v5486 = vpop.f32.mrf.mxu0
      %v5487 = vadd.f32 %v5398, %v5486
      %v5488 = vpop.f32.mrf.mxu0
      %v5489 = vadd.f32 %v5400, %v5488
      %5490 = vmatmul.bf16.gmra.mxu0 %v1956
      %v5491 = vpop.f32.mrf.mxu0
      %v5492 = vadd.f32 %v5403, %v5491
      %v5493 = vpop.f32.mrf.mxu0
      %v5494 = vadd.f32 %v5405, %v5493
      %5495 = vmatmul.bf16.gmra.mxu0 %v1965
      %v5496 = vpop.f32.mrf.mxu0
      %v5497 = vadd.f32 %v5408, %v5496
      %v5498 = vpop.f32.mrf.mxu0
      %v5499 = vadd.f32 %v5410, %v5498
      %5500 = vmatmul.bf16.gmra.mxu0 %v1971
      %v5501 = vpop.f32.mrf.mxu0
      %v5502 = vadd.f32 %v5413, %v5501
      %v5503 = vpop.f32.mrf.mxu0
      %v5504 = vadd.f32 %v5415, %v5503
      %5505 = vmatmul.bf16.gmra.mxu0 %v1977
      %v5506 = vpop.f32.mrf.mxu0
      %v5507 = vadd.f32 %v5418, %v5506
      %v5508 = vpop.f32.mrf.mxu0
      %v5509 = vadd.f32 %v5420, %v5508
      %5510 = vmatmul.bf16.gmra.mxu0 %v1983
      %v5511 = vpop.f32.mrf.mxu0
      %v5512 = vadd.f32 %v5423, %v5511
      %v5513 = vpop.f32.mrf.mxu0
      %v5514 = vadd.f32 %v5425, %v5513
      %5515 = vmatmul.bf16.gmra.mxu0 %v4785
      %v5516 = vpop.f32.mrf.mxu0
      %v5517 = vadd.f32 %v5428, %v5516
      %v5518 = vpop.f32.mrf.mxu0
      %v5519 = vadd.f32 %v5430, %v5518
      %5520 = vmatmul.bf16.gmra.mxu0 %v4791
      %v5521 = vpop.f32.mrf.mxu0
      %v5522 = vadd.f32 %v5433, %v5521
      %v5523 = vpop.f32.mrf.mxu0
      %v5524 = vadd.f32 %v5435, %v5523
      %5525 = vmatmul.bf16.gmra.mxu0 %v4797
      %v5526 = vpop.f32.mrf.mxu0
      %v5527 = vadd.f32 %v5438, %v5526
      %v5528 = vpop.f32.mrf.mxu0
      %v5529 = vadd.f32 %v5440, %v5528
      %5530 = vmatmul.bf16.gmra.mxu0 %v4803
      %v5531 = vpop.f32.mrf.mxu0
      %v5532 = vadd.f32 %v5443, %v5531
      %v5533 = vpop.f32.mrf.mxu0
      %v5534 = vadd.f32 %v5445, %v5533
      %5535 = vdwg.mxu0
      %5536 = vmatpush.bf16.msra.mxu0 %v5156
      %5537 = vmatpush.bf16.msra.mxu0 %v5155
      %5538 = vmatpush.bf16.msra.mxu0 %v5154
      %5539 = vmatpush.bf16.msra.mxu0 %v5153
      %5540 = vmatpush.bf16.msra.mxu0 %v5152
      %5541 = vmatpush.bf16.msra.mxu0 %v5151
      %5542 = vmatpush.bf16.msra.mxu0 %v5150
      %5543 = vmatpush.bf16.msra.mxu0 %v5149
      %5544 = vmatmul.bf16.gmra.mxu0 %v1912
      %v5545 = vpop.f32.mrf.mxu0
      %v5546 = vadd.f32 %v5457, %v5545
      %v5547 = vpop.f32.mrf.mxu0
      %v5548 = vadd.f32 %v5459, %v5547
      %5549 = vmatmul.bf16.gmra.mxu0 %v1918
      %v5550 = vpop.f32.mrf.mxu0
      %v5551 = vadd.f32 %v5462, %v5550
      %v5552 = vpop.f32.mrf.mxu0
      %v5553 = vadd.f32 %v5464, %v5552
      %5554 = vmatmul.bf16.gmra.mxu0 %v1924
      %v5555 = vpop.f32.mrf.mxu0
      %v5556 = vadd.f32 %v5467, %v5555
      %v5557 = vpop.f32.mrf.mxu0
      %v5558 = vadd.f32 %v5469, %v5557
      %5559 = vmatmul.bf16.gmra.mxu0 %v1930
      %v5560 = vpop.f32.mrf.mxu0
      %v5561 = vadd.f32 %v5472, %v5560
      %v5562 = vpop.f32.mrf.mxu0
      %v5563 = vadd.f32 %v5474, %v5562
      %5564 = vmatmul.bf16.gmra.mxu0 %v1939
      %v5565 = vpop.f32.mrf.mxu0
      %v5566 = vadd.f32 %v5477, %v5565
      %v5567 = vpop.f32.mrf.mxu0
      %v5568 = vadd.f32 %v5479, %v5567
      %5569 = vmatmul.bf16.gmra.mxu0 %v1945
      %v5570 = vpop.f32.mrf.mxu0
      %v5571 = vadd.f32 %v5482, %v5570
      %v5572 = vpop.f32.mrf.mxu0
      %v5573 = vadd.f32 %v5484, %v5572
      %5574 = vmatmul.bf16.gmra.mxu0 %v1951
      %v5575 = vpop.f32.mrf.mxu0
      %v5576 = vadd.f32 %v5487, %v5575
      %v5577 = vpop.f32.mrf.mxu0
      %v5578 = vadd.f32 %v5489, %v5577
      %5579 = vmatmul.bf16.gmra.mxu0 %v1957
      %v5580 = vpop.f32.mrf.mxu0
      %v5581 = vadd.f32 %v5492, %v5580
      %v5582 = vpop.f32.mrf.mxu0
      %v5583 = vadd.f32 %v5494, %v5582
      %5584 = vmatmul.bf16.gmra.mxu0 %v1966
      %v5585 = vpop.f32.mrf.mxu0
      %v5586 = vadd.f32 %v5497, %v5585
      %v5587 = vpop.f32.mrf.mxu0
      %v5588 = vadd.f32 %v5499, %v5587
      %5589 = vmatmul.bf16.gmra.mxu0 %v1972
      %v5590 = vpop.f32.mrf.mxu0
      %v5591 = vadd.f32 %v5502, %v5590
      %v5592 = vpop.f32.mrf.mxu0
      %v5593 = vadd.f32 %v5504, %v5592
      %5594 = vmatmul.bf16.gmra.mxu0 %v1978
      %v5595 = vpop.f32.mrf.mxu0
      %v5596 = vadd.f32 %v5507, %v5595
      %v5597 = vpop.f32.mrf.mxu0
      %v5598 = vadd.f32 %v5509, %v5597
      %5599 = vmatmul.bf16.gmra.mxu0 %v1984
      %v5600 = vpop.f32.mrf.mxu0
      %v5601 = vadd.f32 %v5512, %v5600
      %v5602 = vpop.f32.mrf.mxu0
      %v5603 = vadd.f32 %v5514, %v5602
      %5604 = vmatmul.bf16.gmra.mxu0 %v4786
      %v5605 = vpop.f32.mrf.mxu0
      %v5606 = vadd.f32 %v5517, %v5605
      %v5607 = vpop.f32.mrf.mxu0
      %v5608 = vadd.f32 %v5519, %v5607
      %5609 = vmatmul.bf16.gmra.mxu0 %v4792
      %v5610 = vpop.f32.mrf.mxu0
      %v5611 = vadd.f32 %v5522, %v5610
      %v5612 = vpop.f32.mrf.mxu0
      %v5613 = vadd.f32 %v5524, %v5612
      %5614 = vmatmul.bf16.gmra.mxu0 %v4798
      %v5615 = vpop.f32.mrf.mxu0
      %v5616 = vadd.f32 %v5527, %v5615
      %v5617 = vpop.f32.mrf.mxu0
      %v5618 = vadd.f32 %v5529, %v5617
      %5619 = vmatmul.bf16.gmra.mxu0 %v4804
      %v5620 = vpop.f32.mrf.mxu0
      %v5621 = vadd.f32 %v5532, %v5620
      %v5622 = vpop.f32.mrf.mxu0
      %v5623 = vadd.f32 %v5534, %v5622
      %5624 = vdwg.mxu0
      %5625 = vmatpush.bf16.msra.mxu0 %v5164
      %5626 = vmatpush.bf16.msra.mxu0 %v5163
      %5627 = vmatpush.bf16.msra.mxu0 %v5162
      %5628 = vmatpush.bf16.msra.mxu0 %v5161
      %5629 = vmatpush.bf16.msra.mxu0 %v5160
      %5630 = vmatpush.bf16.msra.mxu0 %v5159
      %5631 = vmatpush.bf16.msra.mxu0 %v5158
      %5632 = vmatpush.bf16.msra.mxu0 %v5157
      %5633 = vmatmul.bf16.gmra.mxu0 %v1913
      %v5634 = vpop.f32.mrf.mxu0
      %v5635 = vadd.f32 %v5546, %v5634
      %v5636 = vpop.f32.mrf.mxu0
      %v5637 = vadd.f32 %v5548, %v5636
      %5638 = vmatmul.bf16.gmra.mxu0 %v1919
      %v5639 = vpop.f32.mrf.mxu0
      %v5640 = vadd.f32 %v5551, %v5639
      %v5641 = vpop.f32.mrf.mxu0
      %v5642 = vadd.f32 %v5553, %v5641
      %5643 = vmatmul.bf16.gmra.mxu0 %v1925
      %v5644 = vpop.f32.mrf.mxu0
      %v5645 = vadd.f32 %v5556, %v5644
      %v5646 = vpop.f32.mrf.mxu0
      %v5647 = vadd.f32 %v5558, %v5646
      %5648 = vmatmul.bf16.gmra.mxu0 %v1931
      %v5649 = vpop.f32.mrf.mxu0
      %v5650 = vadd.f32 %v5561, %v5649
      %v5651 = vpop.f32.mrf.mxu0
      %v5652 = vadd.f32 %v5563, %v5651
      %5653 = vmatmul.bf16.gmra.mxu0 %v1940
      %v5654 = vpop.f32.mrf.mxu0
      %v5655 = vadd.f32 %v5566, %v5654
      %v5656 = vpop.f32.mrf.mxu0
      %v5657 = vadd.f32 %v5568, %v5656
      %5658 = vmatmul.bf16.gmra.mxu0 %v1946
      %v5659 = vpop.f32.mrf.mxu0
      %v5660 = vadd.f32 %v5571, %v5659
      %v5661 = vpop.f32.mrf.mxu0
      %v5662 = vadd.f32 %v5573, %v5661
      %5663 = vmatmul.bf16.gmra.mxu0 %v1952
      %v5664 = vpop.f32.mrf.mxu0
      %v5665 = vadd.f32 %v5576, %v5664
      %v5666 = vpop.f32.mrf.mxu0
      %v5667 = vadd.f32 %v5578, %v5666
      %5668 = vmatmul.bf16.gmra.mxu0 %v1958
      %v5669 = vpop.f32.mrf.mxu0
      %v5670 = vadd.f32 %v5581, %v5669
      %v5671 = vpop.f32.mrf.mxu0
      %v5672 = vadd.f32 %v5583, %v5671
      %5673 = vmatmul.bf16.gmra.mxu0 %v1967
      %v5674 = vpop.f32.mrf.mxu0
      %v5675 = vadd.f32 %v5586, %v5674
      %v5676 = vpop.f32.mrf.mxu0
      %v5677 = vadd.f32 %v5588, %v5676
      %5678 = vmatmul.bf16.gmra.mxu0 %v1973
      %v5679 = vpop.f32.mrf.mxu0
      %v5680 = vadd.f32 %v5591, %v5679
      %v5681 = vpop.f32.mrf.mxu0
      %v5682 = vadd.f32 %v5593, %v5681
      %5683 = vmatmul.bf16.gmra.mxu0 %v1979
      %v5684 = vpop.f32.mrf.mxu0
      %v5685 = vadd.f32 %v5596, %v5684
      %v5686 = vpop.f32.mrf.mxu0
      %v5687 = vadd.f32 %v5598, %v5686
      %5688 = vmatmul.bf16.gmra.mxu0 %v1985
      %v5689 = vpop.f32.mrf.mxu0
      %v5690 = vadd.f32 %v5601, %v5689
      %v5691 = vpop.f32.mrf.mxu0
      %v5692 = vadd.f32 %v5603, %v5691
      %5693 = vmatmul.bf16.gmra.mxu0 %v4787
      %v5694 = vpop.f32.mrf.mxu0
      %v5695 = vadd.f32 %v5606, %v5694
      %v5696 = vpop.f32.mrf.mxu0
      %v5697 = vadd.f32 %v5608, %v5696
      %5698 = vmatmul.bf16.gmra.mxu0 %v4793
      %v5699 = vpop.f32.mrf.mxu0
      %v5700 = vadd.f32 %v5611, %v5699
      %v5701 = vpop.f32.mrf.mxu0
      %v5702 = vadd.f32 %v5613, %v5701
      %5703 = vmatmul.bf16.gmra.mxu0 %v4799
      %v5704 = vpop.f32.mrf.mxu0
      %v5705 = vadd.f32 %v5616, %v5704
      %v5706 = vpop.f32.mrf.mxu0
      %v5707 = vadd.f32 %v5618, %v5706
      %5708 = vmatmul.bf16.gmra.mxu0 %v4805
      %v5709 = vpop.f32.mrf.mxu0
      %v5710 = vadd.f32 %v5621, %v5709
      %v5711 = vpop.f32.mrf.mxu0
      %v5712 = vadd.f32 %v5623, %v5711
      %5713 = vdwg.mxu0
      %5714 = vmatpush.bf16.msra.mxu0 %v5172
      %5715 = vmatpush.bf16.msra.mxu0 %v5171
      %5716 = vmatpush.bf16.msra.mxu0 %v5170
      %5717 = vmatpush.bf16.msra.mxu0 %v5169
      %5718 = vmatpush.bf16.msra.mxu0 %v5168
      %5719 = vmatpush.bf16.msra.mxu0 %v5167
      %5720 = vmatpush.bf16.msra.mxu0 %v5166
      %5721 = vmatpush.bf16.msra.mxu0 %v5165
      %5722 = vmatmul.bf16.gmra.mxu0 %v1914
      %v5723 = vpop.f32.mrf.mxu0
      %v5724 = vadd.f32 %v5635, %v5723
      %v5725 = vpop.f32.mrf.mxu0
      %v5726 = vadd.f32 %v5637, %v5725
      %5727 = vmatmul.bf16.gmra.mxu0 %v1920
      %v5728 = vpop.f32.mrf.mxu0
      %v5729 = vadd.f32 %v5640, %v5728
      %v5730 = vpop.f32.mrf.mxu0
      %v5731 = vadd.f32 %v5642, %v5730
      %5732 = vmatmul.bf16.gmra.mxu0 %v1926
      %v5733 = vpop.f32.mrf.mxu0
      %v5734 = vadd.f32 %v5645, %v5733
      %v5735 = vpop.f32.mrf.mxu0
      %v5736 = vadd.f32 %v5647, %v5735
      %5737 = vmatmul.bf16.gmra.mxu0 %v1932
      %v5738 = vpop.f32.mrf.mxu0
      %v5739 = vadd.f32 %v5650, %v5738
      %v5740 = vpop.f32.mrf.mxu0
      %v5741 = vadd.f32 %v5652, %v5740
      %5742 = vmatmul.bf16.gmra.mxu0 %v1941
      %v5743 = vpop.f32.mrf.mxu0
      %v5744 = vadd.f32 %v5655, %v5743
      %v5745 = vpop.f32.mrf.mxu0
      %v5746 = vadd.f32 %v5657, %v5745
      %5747 = vmatmul.bf16.gmra.mxu0 %v1947
      %v5748 = vpop.f32.mrf.mxu0
      %v5749 = vadd.f32 %v5660, %v5748
      %v5750 = vpop.f32.mrf.mxu0
      %v5751 = vadd.f32 %v5662, %v5750
      %5752 = vmatmul.bf16.gmra.mxu0 %v1953
      %v5753 = vpop.f32.mrf.mxu0
      %v5754 = vadd.f32 %v5665, %v5753
      %v5755 = vpop.f32.mrf.mxu0
      %v5756 = vadd.f32 %v5667, %v5755
      %5757 = vmatmul.bf16.gmra.mxu0 %v1959
      %v5758 = vpop.f32.mrf.mxu0
      %v5759 = vadd.f32 %v5670, %v5758
      %v5760 = vpop.f32.mrf.mxu0
      %v5761 = vadd.f32 %v5672, %v5760
      %5762 = vmatmul.bf16.gmra.mxu0 %v1968
      %v5763 = vpop.f32.mrf.mxu0
      %v5764 = vadd.f32 %v5675, %v5763
      %v5765 = vpop.f32.mrf.mxu0
      %v5766 = vadd.f32 %v5677, %v5765
      %5767 = vmatmul.bf16.gmra.mxu0 %v1974
      %v5768 = vpop.f32.mrf.mxu0
      %v5769 = vadd.f32 %v5680, %v5768
      %v5770 = vpop.f32.mrf.mxu0
      %v5771 = vadd.f32 %v5682, %v5770
      %5772 = vmatmul.bf16.gmra.mxu0 %v1980
      %v5773 = vpop.f32.mrf.mxu0
      %v5774 = vadd.f32 %v5685, %v5773
      %v5775 = vpop.f32.mrf.mxu0
      %v5776 = vadd.f32 %v5687, %v5775
      %5777 = vmatmul.bf16.gmra.mxu0 %v1986
      %v5778 = vpop.f32.mrf.mxu0
      %v5779 = vadd.f32 %v5690, %v5778
      %v5780 = vpop.f32.mrf.mxu0
      %v5781 = vadd.f32 %v5692, %v5780
      %5782 = vmatmul.bf16.gmra.mxu0 %v4788
      %v5783 = vpop.f32.mrf.mxu0
      %v5784 = vadd.f32 %v5695, %v5783
      %v5785 = vpop.f32.mrf.mxu0
      %v5786 = vadd.f32 %v5697, %v5785
      %5787 = vmatmul.bf16.gmra.mxu0 %v4794
      %v5788 = vpop.f32.mrf.mxu0
      %v5789 = vadd.f32 %v5700, %v5788
      %v5790 = vpop.f32.mrf.mxu0
      %v5791 = vadd.f32 %v5702, %v5790
      %5792 = vmatmul.bf16.gmra.mxu0 %v4800
      %v5793 = vpop.f32.mrf.mxu0
      %v5794 = vadd.f32 %v5705, %v5793
      %v5795 = vpop.f32.mrf.mxu0
      %v5796 = vadd.f32 %v5707, %v5795
      %5797 = vmatmul.bf16.gmra.mxu0 %v4806
      %v5798 = vpop.f32.mrf.mxu0
      %v5799 = vadd.f32 %v5710, %v5798
      %v5800 = vpop.f32.mrf.mxu0
      %v5801 = vadd.f32 %v5712, %v5800
      %5802 = vdwg.mxu0
      %5803 = vmatpush.bf16.msra.mxu0 %v5180
      %5804 = vmatpush.bf16.msra.mxu0 %v5179
      %5805 = vmatpush.bf16.msra.mxu0 %v5178
      %5806 = vmatpush.bf16.msra.mxu0 %v5177
      %5807 = vmatpush.bf16.msra.mxu0 %v5176
      %5808 = vmatpush.bf16.msra.mxu0 %v5175
      %5809 = vmatpush.bf16.msra.mxu0 %v5174
      %5810 = vmatpush.bf16.msra.mxu0 %v5173
      %5811 = vmatmul.bf16.gmra.mxu0 %v1915
      %v5812 = vpop.f32.mrf.mxu0
      %v5813 = vadd.f32 %v5724, %v5812
      %v5814 = vpop.f32.mrf.mxu0
      %v5815 = vadd.f32 %v5726, %v5814
      %5816 = vmatmul.bf16.gmra.mxu0 %v1921
      %v5817 = vpop.f32.mrf.mxu0
      %v5818 = vadd.f32 %v5729, %v5817
      %v5819 = vpop.f32.mrf.mxu0
      %v5820 = vadd.f32 %v5731, %v5819
      %5821 = vmatmul.bf16.gmra.mxu0 %v1927
      %v5822 = vpop.f32.mrf.mxu0
      %v5823 = vadd.f32 %v5734, %v5822
      %v5824 = vpop.f32.mrf.mxu0
      %v5825 = vadd.f32 %v5736, %v5824
      %5826 = vmatmul.bf16.gmra.mxu0 %v1933
      %v5827 = vpop.f32.mrf.mxu0
      %v5828 = vadd.f32 %v5739, %v5827
      %v5829 = vpop.f32.mrf.mxu0
      %v5830 = vadd.f32 %v5741, %v5829
      %5831 = vmatmul.bf16.gmra.mxu0 %v1942
      %v5832 = vpop.f32.mrf.mxu0
      %v5833 = vadd.f32 %v5744, %v5832
      %v5834 = vpop.f32.mrf.mxu0
      %v5835 = vadd.f32 %v5746, %v5834
      %5836 = vmatmul.bf16.gmra.mxu0 %v1948
      %v5837 = vpop.f32.mrf.mxu0
      %v5838 = vadd.f32 %v5749, %v5837
      %v5839 = vpop.f32.mrf.mxu0
      %v5840 = vadd.f32 %v5751, %v5839
      %5841 = vmatmul.bf16.gmra.mxu0 %v1954
      %v5842 = vpop.f32.mrf.mxu0
      %v5843 = vadd.f32 %v5754, %v5842
      %v5844 = vpop.f32.mrf.mxu0
      %v5845 = vadd.f32 %v5756, %v5844
      %5846 = vmatmul.bf16.gmra.mxu0 %v1960
      %v5847 = vpop.f32.mrf.mxu0
      %v5848 = vadd.f32 %v5759, %v5847
      %v5849 = vpop.f32.mrf.mxu0
      %v5850 = vadd.f32 %v5761, %v5849
      %5851 = vmatmul.bf16.gmra.mxu0 %v1969
      %v5852 = vpop.f32.mrf.mxu0
      %v5853 = vadd.f32 %v5764, %v5852
      %v5854 = vpop.f32.mrf.mxu0
      %v5855 = vadd.f32 %v5766, %v5854
      %5856 = vmatmul.bf16.gmra.mxu0 %v1975
      %v5857 = vpop.f32.mrf.mxu0
      %v5858 = vadd.f32 %v5769, %v5857
      %v5859 = vpop.f32.mrf.mxu0
      %v5860 = vadd.f32 %v5771, %v5859
      %5861 = vmatmul.bf16.gmra.mxu0 %v1981
      %v5862 = vpop.f32.mrf.mxu0
      %v5863 = vadd.f32 %v5774, %v5862
      %v5864 = vpop.f32.mrf.mxu0
      %v5865 = vadd.f32 %v5776, %v5864
      %5866 = vmatmul.bf16.gmra.mxu0 %v1987
      %v5867 = vpop.f32.mrf.mxu0
      %v5868 = vadd.f32 %v5779, %v5867
      %v5869 = vpop.f32.mrf.mxu0
      %v5870 = vadd.f32 %v5781, %v5869
      %5871 = vmatmul.bf16.gmra.mxu0 %v4789
      %v5872 = vpop.f32.mrf.mxu0
      %v5873 = vadd.f32 %v5784, %v5872
      %v5874 = vpop.f32.mrf.mxu0
      %v5875 = vadd.f32 %v5786, %v5874
      %5876 = vmatmul.bf16.gmra.mxu0 %v4795
      %v5877 = vpop.f32.mrf.mxu0
      %v5878 = vadd.f32 %v5789, %v5877
      %v5879 = vpop.f32.mrf.mxu0
      %v5880 = vadd.f32 %v5791, %v5879
      %5881 = vmatmul.bf16.gmra.mxu0 %v4801
      %v5882 = vpop.f32.mrf.mxu0
      %v5883 = vadd.f32 %v5794, %v5882
      %v5884 = vpop.f32.mrf.mxu0
      %v5885 = vadd.f32 %v5796, %v5884
      %5886 = vmatmul.bf16.gmra.mxu0 %v4807
      %v5887 = vpop.f32.mrf.mxu0
      %v5888 = vadd.f32 %v5799, %v5887
      %v5889 = vpop.f32.mrf.mxu0
      %v5890 = vadd.f32 %v5801, %v5889
      %5891 = vdwg.mxu0
      %5892 = vmatpush.bf16.msra.mxu0 %v5188
      %5893 = vmatpush.bf16.msra.mxu0 %v5187
      %5894 = vmatpush.bf16.msra.mxu0 %v5186
      %5895 = vmatpush.bf16.msra.mxu0 %v5185
      %5896 = vmatpush.bf16.msra.mxu0 %v5184
      %5897 = vmatpush.bf16.msra.mxu0 %v5183
      %5898 = vmatpush.bf16.msra.mxu0 %v5182
      %5899 = vmatpush.bf16.msra.mxu0 %v5181
      %5900 = vmatmul.bf16.gmra.mxu0 %v1916
      %v5901 = vpop.f32.mrf.mxu0
      %v5902 = vadd.f32 %v5813, %v5901
      %v5903 = vpop.f32.mrf.mxu0
      %v5904 = vadd.f32 %v5815, %v5903
      %5905 = vmatmul.bf16.gmra.mxu0 %v1922
      %v5906 = vpop.f32.mrf.mxu0
      %v5907 = vadd.f32 %v5818, %v5906
      %v5908 = vpop.f32.mrf.mxu0
      %v5909 = vadd.f32 %v5820, %v5908
      %5910 = vmatmul.bf16.gmra.mxu0 %v1928
      %v5911 = vpop.f32.mrf.mxu0
      %v5912 = vadd.f32 %v5823, %v5911
      %v5913 = vpop.f32.mrf.mxu0
      %v5914 = vadd.f32 %v5825, %v5913
      %5915 = vmatmul.bf16.gmra.mxu0 %v1934
      %v5916 = vpop.f32.mrf.mxu0
      %v5917 = vadd.f32 %v5828, %v5916
      %v5918 = vpop.f32.mrf.mxu0
      %v5919 = vadd.f32 %v5830, %v5918
      %5920 = vmatmul.bf16.gmra.mxu0 %v1943
      %v5921 = vpop.f32.mrf.mxu0
      %v5922 = vadd.f32 %v5833, %v5921
      %v5923 = vpop.f32.mrf.mxu0
      %v5924 = vadd.f32 %v5835, %v5923
      %5925 = vmatmul.bf16.gmra.mxu0 %v1949
      %v5926 = vpop.f32.mrf.mxu0
      %v5927 = vadd.f32 %v5838, %v5926
      %v5928 = vpop.f32.mrf.mxu0
      %v5929 = vadd.f32 %v5840, %v5928
      %5930 = vmatmul.bf16.gmra.mxu0 %v1955
      %v5931 = vpop.f32.mrf.mxu0
      %v5932 = vadd.f32 %v5843, %v5931
      %v5933 = vpop.f32.mrf.mxu0
      %v5934 = vadd.f32 %v5845, %v5933
      %5935 = vmatmul.bf16.gmra.mxu0 %v1961
      %v5936 = vpop.f32.mrf.mxu0
      %v5937 = vadd.f32 %v5848, %v5936
      %v5938 = vpop.f32.mrf.mxu0
      %v5939 = vadd.f32 %v5850, %v5938
      %5940 = vmatmul.bf16.gmra.mxu0 %v1970
      %v5941 = vpop.f32.mrf.mxu0
      %v5942 = vadd.f32 %v5853, %v5941
      %v5943 = vpop.f32.mrf.mxu0
      %v5944 = vadd.f32 %v5855, %v5943
      %5945 = vmatmul.bf16.gmra.mxu0 %v1976
      %v5946 = vpop.f32.mrf.mxu0
      %v5947 = vadd.f32 %v5858, %v5946
      %v5948 = vpop.f32.mrf.mxu0
      %v5949 = vadd.f32 %v5860, %v5948
      %5950 = vmatmul.bf16.gmra.mxu0 %v1982
      %v5951 = vpop.f32.mrf.mxu0
      %v5952 = vadd.f32 %v5863, %v5951
      %v5953 = vpop.f32.mrf.mxu0
      %v5954 = vadd.f32 %v5865, %v5953
      %5955 = vmatmul.bf16.gmra.mxu0 %v1988
      %v5956 = vpop.f32.mrf.mxu0
      %v5957 = vadd.f32 %v5868, %v5956
      %v5958 = vpop.f32.mrf.mxu0
      %v5959 = vadd.f32 %v5870, %v5958
      %5960 = vmatmul.bf16.gmra.mxu0 %v4790
      %v5961 = vpop.f32.mrf.mxu0
      %v5962 = vadd.f32 %v5873, %v5961
      %v5963 = vpop.f32.mrf.mxu0
      %v5964 = vadd.f32 %v5875, %v5963
      %5965 = vmatmul.bf16.gmra.mxu0 %v4796
      %v5966 = vpop.f32.mrf.mxu0
      %v5967 = vadd.f32 %v5878, %v5966
      %v5968 = vpop.f32.mrf.mxu0
      %v5969 = vadd.f32 %v5880, %v5968
      %5970 = vmatmul.bf16.gmra.mxu0 %v4802
      %v5971 = vpop.f32.mrf.mxu0
      %v5972 = vadd.f32 %v5883, %v5971
      %v5973 = vpop.f32.mrf.mxu0
      %v5974 = vadd.f32 %v5885, %v5973
      %5975 = vmatmul.bf16.gmra.mxu0 %v4808
      %v5976 = vpop.f32.mrf.mxu0
      %v5977 = vadd.f32 %v5888, %v5976
      %v5978 = vpop.f32.mrf.mxu0
      %v5979 = vadd.f32 %v5890, %v5978
      %5980 = vdwg.mxu0
      %5981 = vmatpush.bf16.msra.mxu0 %v5196
      %5982 = vmatpush.bf16.msra.mxu0 %v5195
      %5983 = vmatpush.bf16.msra.mxu0 %v5194
      %5984 = vmatpush.bf16.msra.mxu0 %v5193
      %5985 = vmatpush.bf16.msra.mxu0 %v5192
      %5986 = vmatpush.bf16.msra.mxu0 %v5191
      %5987 = vmatpush.bf16.msra.mxu0 %v5190
      %5988 = vmatpush.bf16.msra.mxu0 %v5189
      %5989 = vmatmul.bf16.gmra.mxu0 %v1917
      %v5990 = vpop.f32.mrf.mxu0
      %v5991 = vadd.f32 %v5902, %v5990
      %v5992 = vpop.f32.mrf.mxu0
      %v5993 = vadd.f32 %v5904, %v5992
      %5994 = vmatmul.bf16.gmra.mxu0 %v1923
      %v5995 = vpop.f32.mrf.mxu0
      %v5996 = vadd.f32 %v5907, %v5995
      %v5997 = vpop.f32.mrf.mxu0
      %v5998 = vadd.f32 %v5909, %v5997
      %5999 = vmatmul.bf16.gmra.mxu0 %v1929
      %v6000 = vpop.f32.mrf.mxu0
      %v6001 = vadd.f32 %v5912, %v6000
      %v6002 = vpop.f32.mrf.mxu0
      %v6003 = vadd.f32 %v5914, %v6002
      %6004 = vmatmul.bf16.gmra.mxu0 %v1935
      %v6005 = vpop.f32.mrf.mxu0
      %v6006 = vadd.f32 %v5917, %v6005
      %v6007 = vpop.f32.mrf.mxu0
      %v6008 = vadd.f32 %v5919, %v6007
      %6009 = vmatmul.bf16.gmra.mxu0 %v1944
      %v6010 = vpop.f32.mrf.mxu0
      %v6011 = vadd.f32 %v5922, %v6010
      %v6012 = vpop.f32.mrf.mxu0
      %v6013 = vadd.f32 %v5924, %v6012
      %6014 = vmatmul.bf16.gmra.mxu0 %v1950
      %v6015 = vpop.f32.mrf.mxu0
      %v6016 = vadd.f32 %v5927, %v6015
      %v6017 = vpop.f32.mrf.mxu0
      %v6018 = vadd.f32 %v5929, %v6017
      %6019 = vmatmul.bf16.gmra.mxu0 %v1956
      %v6020 = vpop.f32.mrf.mxu0
      %v6021 = vadd.f32 %v5932, %v6020
      %v6022 = vpop.f32.mrf.mxu0
      %v6023 = vadd.f32 %v5934, %v6022
      %6024 = vmatmul.bf16.gmra.mxu0 %v1962
      %v6025 = vpop.f32.mrf.mxu0
      %v6026 = vadd.f32 %v5937, %v6025
      %v6027 = vpop.f32.mrf.mxu0
      %v6028 = vadd.f32 %v5939, %v6027
      %6029 = vmatmul.bf16.gmra.mxu0 %v1971
      %v6030 = vpop.f32.mrf.mxu0
      %v6031 = vadd.f32 %v5942, %v6030
      %v6032 = vpop.f32.mrf.mxu0
      %v6033 = vadd.f32 %v5944, %v6032
      %6034 = vmatmul.bf16.gmra.mxu0 %v1977
      %v6035 = vpop.f32.mrf.mxu0
      %v6036 = vadd.f32 %v5947, %v6035
      %v6037 = vpop.f32.mrf.mxu0
      %v6038 = vadd.f32 %v5949, %v6037
      %6039 = vmatmul.bf16.gmra.mxu0 %v1983
      %v6040 = vpop.f32.mrf.mxu0
      %v6041 = vadd.f32 %v5952, %v6040
      %v6042 = vpop.f32.mrf.mxu0
      %v6043 = vadd.f32 %v5954, %v6042
      %6044 = vmatmul.bf16.gmra.mxu0 %v1989
      %v6045 = vpop.f32.mrf.mxu0
      %v6046 = vadd.f32 %v5957, %v6045
      %v6047 = vpop.f32.mrf.mxu0
      %v6048 = vadd.f32 %v5959, %v6047
      %6049 = vmatmul.bf16.gmra.mxu0 %v4791
      %v6050 = vpop.f32.mrf.mxu0
      %v6051 = vadd.f32 %v5962, %v6050
      %v6052 = vpop.f32.mrf.mxu0
      %v6053 = vadd.f32 %v5964, %v6052
      %6054 = vmatmul.bf16.gmra.mxu0 %v4797
      %v6055 = vpop.f32.mrf.mxu0
      %v6056 = vadd.f32 %v5967, %v6055
      %v6057 = vpop.f32.mrf.mxu0
      %v6058 = vadd.f32 %v5969, %v6057
      %6059 = vmatmul.bf16.gmra.mxu0 %v4803
      %v6060 = vpop.f32.mrf.mxu0
      %v6061 = vadd.f32 %v5972, %v6060
      %v6062 = vpop.f32.mrf.mxu0
      %v6063 = vadd.f32 %v5974, %v6062
      %6064 = vmatmul.bf16.gmra.mxu0 %v4809
      %v6065 = vpop.f32.mrf.mxu0
      %v6066 = vadd.f32 %v5977, %v6065
      %v6067 = vpop.f32.mrf.mxu0
      %v6068 = vadd.f32 %v5979, %v6067
      %6069 = vdwg.mxu0
      %v6070 = vadd.f32 %v4539, %v5991
      %v6071 = vadd.f32 %v4541, %v5993
      %v6072 = vadd.f32 %v4544, %v5996
      %v6073 = vadd.f32 %v4546, %v5998
      %v6074 = vadd.f32 %v4549, %v6001
      %v6075 = vadd.f32 %v4551, %v6003
      %v6076 = vadd.f32 %v4554, %v6006
      %v6077 = vadd.f32 %v4556, %v6008
      %v6078 = vadd.f32 %v4559, %v6011
      %v6079 = vadd.f32 %v4561, %v6013
      %v6080 = vadd.f32 %v4564, %v6016
      %v6081 = vadd.f32 %v4566, %v6018
      %v6082 = vadd.f32 %v4569, %v6021
      %v6083 = vadd.f32 %v4571, %v6023
      %v6084 = vadd.f32 %v4574, %v6026
      %v6085 = vadd.f32 %v4576, %v6028
      %v6086 = vadd.f32 %v4579, %v6031
      %v6087 = vadd.f32 %v4581, %v6033
      %v6088 = vadd.f32 %v4584, %v6036
      %v6089 = vadd.f32 %v4586, %v6038
      %v6090 = vadd.f32 %v4589, %v6041
      %v6091 = vadd.f32 %v4591, %v6043
      %v6092 = vadd.f32 %v4594, %v6046
      %v6093 = vadd.f32 %v4596, %v6048
      %v6094 = vadd.f32 %v4599, %v6051
      %v6095 = vadd.f32 %v4601, %v6053
      %v6096 = vadd.f32 %v4604, %v6056
      %v6097 = vadd.f32 %v4606, %v6058
      %v6098 = vadd.f32 %v4609, %v6061
      %v6099 = vadd.f32 %v4611, %v6063
      %v6100 = vadd.f32 %v4614, %v6066
      %v6101 = vadd.f32 %v4616, %v6068
      %v6103 = vperm.slane %v1492, 0
      %v6105 = vadd.f32 %v6070, %v6103
      %v6106 = vadd.f32 %v6071, %v6103
      %v6107 = vadd.f32 %v6072, %v6103
      %v6108 = vadd.f32 %v6073, %v6103
      %v6109 = vadd.f32 %v6074, %v6103
      %v6110 = vadd.f32 %v6075, %v6103
      %v6111 = vadd.f32 %v6076, %v6103
      %v6112 = vadd.f32 %v6077, %v6103
      %v6113 = vadd.f32 %v6078, %v6103
      %v6114 = vadd.f32 %v6079, %v6103
      %v6115 = vadd.f32 %v6080, %v6103
      %v6116 = vadd.f32 %v6081, %v6103
      %v6117 = vadd.f32 %v6082, %v6103
      %v6118 = vadd.f32 %v6083, %v6103
      %v6119 = vadd.f32 %v6084, %v6103
      %v6120 = vadd.f32 %v6085, %v6103
      %v6121 = vadd.f32 %v6086, %v6103
      %v6122 = vadd.f32 %v6087, %v6103
      %v6123 = vadd.f32 %v6088, %v6103
      %v6124 = vadd.f32 %v6089, %v6103
      %v6125 = vadd.f32 %v6090, %v6103
      %v6126 = vadd.f32 %v6091, %v6103
      %v6127 = vadd.f32 %v6092, %v6103
      %v6128 = vadd.f32 %v6093, %v6103
      %v6129 = vadd.f32 %v6094, %v6103
      %v6130 = vadd.f32 %v6095, %v6103
      %v6131 = vadd.f32 %v6096, %v6103
      %v6132 = vadd.f32 %v6097, %v6103
      %v6133 = vadd.f32 %v6098, %v6103
      %v6134 = vadd.f32 %v6099, %v6103
      %v6135 = vadd.f32 %v6100, %v6103
      %v6136 = vadd.f32 %v6101, %v6103
      %v6137 = vmax.f32 %v6105, 0.0
      %v6138 = vmax.f32 %v6106, 0.0
      %v6139 = vmax.f32 %v6107, 0.0
      %v6140 = vmax.f32 %v6108, 0.0
      %v6141 = vmax.f32 %v6109, 0.0
      %v6142 = vmax.f32 %v6110, 0.0
      %v6143 = vmax.f32 %v6111, 0.0
      %v6144 = vmax.f32 %v6112, 0.0
      %v6145 = vmax.f32 %v6113, 0.0
      %v6146 = vmax.f32 %v6114, 0.0
      %v6147 = vmax.f32 %v6115, 0.0
      %v6148 = vmax.f32 %v6116, 0.0
      %v6149 = vmax.f32 %v6117, 0.0
      %v6150 = vmax.f32 %v6118, 0.0
      %v6151 = vmax.f32 %v6119, 0.0
      %v6152 = vmax.f32 %v6120, 0.0
      %v6153 = vmax.f32 %v6121, 0.0
      %v6154 = vmax.f32 %v6122, 0.0
      %v6155 = vmax.f32 %v6123, 0.0
      %v6156 = vmax.f32 %v6124, 0.0
      %v6157 = vmax.f32 %v6125, 0.0
      %v6158 = vmax.f32 %v6126, 0.0
      %v6159 = vmax.f32 %v6127, 0.0
      %v6160 = vmax.f32 %v6128, 0.0
      %v6161 = vmax.f32 %v6129, 0.0
      %v6162 = vmax.f32 %v6130, 0.0
      %v6163 = vmax.f32 %v6131, 0.0
      %v6164 = vmax.f32 %v6132, 0.0
      %v6165 = vmax.f32 %v6133, 0.0
      %v6166 = vmax.f32 %v6134, 0.0
      %v6167 = vmax.f32 %v6135, 0.0
      %v6168 = vmax.f32 %v6136, 0.0
      %v6169 = vpack.c.bf16 %v6137, %v6137
      %v6170 = vpack.c.bf16 %v6138, %v6138
      %v6171 = vpack.c.bf16 %v6139, %v6139
      %v6172 = vpack.c.bf16 %v6140, %v6140
      %v6173 = vpack.c.bf16 %v6141, %v6141
      %v6174 = vpack.c.bf16 %v6142, %v6142
      %v6175 = vpack.c.bf16 %v6143, %v6143
      %v6176 = vpack.c.bf16 %v6144, %v6144
      %v6177 = vpack.c.bf16 %v6145, %v6145
      %v6178 = vpack.c.bf16 %v6146, %v6146
      %v6179 = vpack.c.bf16 %v6147, %v6147
      %v6180 = vpack.c.bf16 %v6148, %v6148
      %v6181 = vpack.c.bf16 %v6149, %v6149
      %v6182 = vpack.c.bf16 %v6150, %v6150
      %v6183 = vpack.c.bf16 %v6151, %v6151
      %v6184 = vpack.c.bf16 %v6152, %v6152
      %v6185 = vpack.c.bf16 %v6153, %v6153
      %v6186 = vpack.c.bf16 %v6154, %v6154
      %v6187 = vpack.c.bf16 %v6155, %v6155
      %v6188 = vpack.c.bf16 %v6156, %v6156
      %v6189 = vpack.c.bf16 %v6157, %v6157
      %v6190 = vpack.c.bf16 %v6158, %v6158
      %v6191 = vpack.c.bf16 %v6159, %v6159
      %v6192 = vpack.c.bf16 %v6160, %v6160
      %v6193 = vpack.c.bf16 %v6161, %v6161
      %v6194 = vpack.c.bf16 %v6162, %v6162
      %v6195 = vpack.c.bf16 %v6163, %v6163
      %v6196 = vpack.c.bf16 %v6164, %v6164
      %v6197 = vpack.c.bf16 %v6165, %v6165
      %v6198 = vpack.c.bf16 %v6166, %v6166
      %v6199 = vpack.c.bf16 %v6167, %v6167
      %v6200 = vpack.c.bf16 %v6168, %v6168
      %6201 = vst [vmem:[%s590] sm:$0xf] %v6169
      %6202 = vst [vmem:[%s590 + $0x4] sm:$0xf] %v6170
      %6203 = vst [vmem:[%s590 + $0x8] sm:$0xf] %v6171
      %6204 = vst [vmem:[%s590 + $0xc] sm:$0xf] %v6172
      %6205 = vst [vmem:[%s590 + $0x10] sm:$0xf] %v6173
      %6206 = vst [vmem:[%s590 + $0x14] sm:$0xf] %v6174
      %6207 = vst [vmem:[%s590 + $0x18] sm:$0xf] %v6175
      %6208 = vst [vmem:[%s590 + $0x1c] sm:$0xf] %v6176
      %6209 = vst [vmem:[%s590 + $0x20] sm:$0xf] %v6177
      %6210 = vst [vmem:[%s590 + $0x24] sm:$0xf] %v6178
      %6211 = vst [vmem:[%s590 + $0x28] sm:$0xf] %v6179
      %6212 = vst [vmem:[%s590 + $0x2c] sm:$0xf] %v6180
      %6213 = vst [vmem:[%s590 + $0x30] sm:$0xf] %v6181
      %6214 = vst [vmem:[%s590 + $0x34] sm:$0xf] %v6182
      %6215 = vst [vmem:[%s590 + $0x38] sm:$0xf] %v6183
      %6216 = vst [vmem:[%s590 + $0x3c] sm:$0xf] %v6184
      %6217 = vst [vmem:[%s590 + $0x40] sm:$0xf] %v6185
      %6218 = vst [vmem:[%s590 + $0x44] sm:$0xf] %v6186
      %6219 = vst [vmem:[%s590 + $0x48] sm:$0xf] %v6187
      %6220 = vst [vmem:[%s590 + $0x4c] sm:$0xf] %v6188
      %6221 = vst [vmem:[%s590 + $0x50] sm:$0xf] %v6189
      %6222 = vst [vmem:[%s590 + $0x54] sm:$0xf] %v6190
      %6223 = vst [vmem:[%s590 + $0x58] sm:$0xf] %v6191
      %6224 = vst [vmem:[%s590 + $0x5c] sm:$0xf] %v6192
      %6225 = vst [vmem:[%s590 + $0x60] sm:$0xf] %v6193
      %6226 = vst [vmem:[%s590 + $0x64] sm:$0xf] %v6194
      %6227 = vst [vmem:[%s590 + $0x68] sm:$0xf] %v6195
      %6228 = vst [vmem:[%s590 + $0x6c] sm:$0xf] %v6196
      %6229 = vst [vmem:[%s590 + $0x70] sm:$0xf] %v6197
      %6230 = vst [vmem:[%s590 + $0x74] sm:$0xf] %v6198
      %6231 = vst [vmem:[%s590 + $0x78] sm:$0xf] %v6199
      %6232 = vst [vmem:[%s590 + $0x7c] sm:$0xf] %v6200
      %s6233 = smul.u32 4, %s24
      %p6234 = scmp.lt.s32.totalorder %s23, 1
      %s6235 = scalar_select %p6234, %s23, 1
      %p6236 = scmp.lt.s32.totalorder %s6233, 7
      %s6237 = scalar_select %p6236, %s6233, 7
      %s6238 = smul.addr %s6237, 8
      %s6239 = smul.addr %s6235, 64
      %s6240 = sadd.s32 %s6238, %s6239
      %s6241 = smul.addr %s6240, 4
      %s6242 = scalar_lea.vmem %s8, %s6241
      // Predicated region
      $region53: #{conv3d_one_input.2} parent=51 // pred_check
        %p6243 = pneg %p283
      $region54: #{conv3d_one_input.2} parent=51 // pred_check_branch
        %6245 = sbr.rel (%p6243) target = $region56
      $region55: #{conv3d_one_input.2} parent=51 // pred_region
        %s6246 = smul.u32 4, %s24
      $region56: #{conv3d_one_input.2} parent=51 // pred_fallthru
        _
    $region52: #{conv3d_one_input.2} parent=5 // pred_fallthru
      _
    %p6247 = scmp.le.s32.totalorder 2, %s14
    // Predicated region
    $region57: #{conv3d_one_input.2} parent=5 // pred_check
      %p6248 = pneg %p6247
    $region58: #{conv3d_one_input.2} parent=5 // pred_check_branch
      %6250 = sbr.rel (%p6248) target = $region60
    $region59: #{conv3d_one_input.2} parent=5 // pred_region
      %s6251 = ssub.s32 %s14, 2
      // Predicated region
      $region61: #{conv3d_one_input.2} parent=59 // pred_check
        %p6252 = pneg %p289
      $region62: #{conv3d_one_input.2} parent=59 // pred_check_branch
        %6254 = sbr.rel (%p6252) target = $region64
      $region63: #{conv3d_one_input.2} parent=59 // pred_region
        %s6255 = smul.u32 4, %s26
        %p6256 = scmp.lt.s32.totalorder %s25, 1
        %s6257 = scalar_select %p6256, %s25, 1
        %p6258 = scmp.lt.s32.totalorder %s6255, 7
        %s6259 = scalar_select %p6258, %s6255, 7
        %s6260 = smul.addr %s6259, 8
        %s6261 = smul.addr %s6257, 64
        %s6262 = sadd.s32 %s6260, %s6261
        %s6263 = smul.addr %s6262, 4
        %s6264 = scalar_lea.vmem %s8, %s6263
      $region64: #{conv3d_one_input.2} parent=59 // pred_fallthru
        _
    $region60: #{conv3d_one_input.2} parent=5 // pred_fallthru
      _
  $region6: #{conv3d_one_input.2} parent=0 // loop_footer
    %s18 = sadd.s32 1, %s14
  $region7: #{conv3d_one_input.2} parent=0 // loop_footer_branch
    %13 = sbr.rel target = $region3
  $region8: #{conv3d_one_input.2} parent=0 // loop_exit
    _

</llo_original>
